<compile_context>
chip_gen: v7x
topology: tpu7x:2x2x1
jax: 0.10.0
libtpu: 0.0.40
codegen_flags: <defaults>
</compile_context>

<pallas_src>
import functools
import numpy as np
import jax
import jax.numpy as jnp
from jax.experimental import pallas as pl
from jax.experimental.pallas import tpu as pltpu

# ----------------------------- configuration --------------------------------
N_CH = 8            # n_channels (small synthetic config)
N_MELS = 32         # n_mels
N_FFT = 128         # n_fft
HOP = N_FFT // 2    # torchaudio default hop_length = win_length // 2
SAMPLE_RATE = 16000
F_MIN, F_MAX = 0.0, 8000.0
N_CLASS = 10        # len(TAGS) placeholder (TAGS not available in-script)
STRIDES = [(2, 2)] * 5 + [(2, 3)] * 2


def _round_up(x, m):
    return (x + m - 1) // m * m


# ------------------------------ Pallas kernels -------------------------------
def _frontend_kernel(fT_ref, cosT_ref, sinT_ref, melT_ref, s_ref, t_ref, o_ref):
    # power spectrogram via (window-folded) DFT-as-matmul, mel projection,
    # AmplitudeToDB (power, amin=1e-10, ref=1, no top_db) and spec_bn (eval).
    fT = fT_ref[...]                                                     # (n_fft, B*T)
    re = jnp.dot(cosT_ref[...], fT, preferred_element_type=jnp.float32)  # (Fp, B*T)
    im = jnp.dot(sinT_ref[...], fT, preferred_element_type=jnp.float32)
    power = re * re + im * im
    mel = jnp.dot(melT_ref[...], power, preferred_element_type=jnp.float32)  # (n_mels, B*T)
    db = 10.0 * jnp.log10(jnp.maximum(mel, 1e-10))
    o_ref[...] = db * s_ref[...] + t_ref[...]


def _resblock_kernel(x_ref, s_ref, r_ref, g1_ref, b1_ref, g3_ref, b3_ref,
                     g2_ref, b2_ref, o_ref):
    # Res_2d: relu( bn2(conv2(relu(bn1(conv1(x))))) + bn3(conv3(x)) )
    # conv = sum over dh of (row-select S_dh @ X) @ (col-select*weight G_dh)
    X = x_ref[...]                                                       # (Hin_s, n_in)
    t0 = jnp.dot(s_ref[0], X, preferred_element_type=jnp.float32)
    t1 = jnp.dot(s_ref[1], X, preferred_element_type=jnp.float32)
    t2 = jnp.dot(s_ref[2], X, preferred_element_type=jnp.float32)
    y1 = (jnp.dot(t0, g1_ref[0], preferred_element_type=jnp.float32)
          + jnp.dot(t1, g1_ref[1], preferred_element_type=jnp.float32)
          + jnp.dot(t2, g1_ref[2], preferred_element_type=jnp.float32)
          + b1_ref[...])                                                 # conv1 + bn1
    y3 = (jnp.dot(t0, g3_ref[0], preferred_element_type=jnp.float32)
          + jnp.dot(t1, g3_ref[1], preferred_element_type=jnp.float32)
          + jnp.dot(t2, g3_ref[2], preferred_element_type=jnp.float32)
          + b3_ref[...])                                                 # conv3 + bn3
    h1 = jnp.maximum(y1, 0.0)                                            # relu
    # conv2 (stride 1): row shifts via R_dh (R_1 == identity on valid rows)
    u0 = jnp.dot(r_ref[0], h1, preferred_element_type=jnp.float32)
    u2 = jnp.dot(r_ref[2], h1, preferred_element_type=jnp.float32)
    y2 = (jnp.dot(u0, g2_ref[0], preferred_element_type=jnp.float32)
          + jnp.dot(h1, g2_ref[1], preferred_element_type=jnp.float32)
          + jnp.dot(u2, g2_ref[2], preferred_element_type=jnp.float32)
          + b2_ref[...])                                                 # conv2 + bn2
    o_ref[...] = jnp.maximum(y2 + y3, 0.0)                               # + residual, relu


def _head_kernel(f_ref, w1_ref, b1_ref, w2_ref, b2_ref, o_ref):
    # dense_1 + folded bn_1 + relu + (dropout=identity) + dense_2
    h = jnp.maximum(
        jnp.dot(f_ref[...], w1_ref[...], preferred_element_type=jnp.float32)
        + b1_ref[...], 0.0)
    o_ref[...] = (jnp.dot(h, w2_ref[...], preferred_element_type=jnp.float32)
                  + b2_ref[...])


# --------------------------- pallas_call wrapper ------------------------------
def _zero_index_map(ndim):
    zeros = (0,) * ndim
    return lambda i: zeros


def _single_call(kernel, out_shape, args, *, flops=0, transcendentals=0):
    bytes_accessed = int(sum(int(a.size) * a.dtype.itemsize for a in args)
                         + int(np.prod(out_shape)) * 4)
    return pl.pallas_call(
        kernel,
        out_shape=jax.ShapeDtypeStruct(tuple(out_shape), jnp.float32),
        grid_spec=pltpu.PrefetchScalarGridSpec(
            num_scalar_prefetch=0,
            grid=(1,),
            in_specs=[pl.BlockSpec(tuple(a.shape), _zero_index_map(a.ndim))
                      for a in args],
            out_specs=pl.BlockSpec(tuple(out_shape), _zero_index_map(len(out_shape))),
        ),
        cost_estimate=pl.CostEstimate(flops=int(flops),
                                      transcendentals=int(transcendentals),
                                      bytes_accessed=bytes_accessed),
    )(*args)


def frontend_call(framesT, fp):
    n_fft, BT = framesT.shape
    Fp = fp["cosT"].shape[0]
    n_mels = fp["melT"].shape[0]
    flops = 2 * (2 * Fp * n_fft * BT + n_mels * Fp * BT)
    args = [framesT, fp["cosT"], fp["sinT"], fp["melT"], fp["spec_s"], fp["spec_t"]]
    return _single_call(_frontend_kernel, (n_mels, BT), args,
                        flops=flops, transcendentals=n_mels * BT)


def resblock_call(x, lp):
    out_shape = lp["b1"].shape          # (Hout_s, n_mid)
    Hin_s, n_in = x.shape
    Ho_s, n_mid = out_shape
    flops = 2 * (3 * Ho_s * Hin_s * n_in        # S row-select matmuls
                 + 6 * Ho_s * n_in * n_mid      # G1 + G3
                 + 2 * Ho_s * Ho_s * n_mid      # R row-shift matmuls
                 + 3 * Ho_s * n_mid * n_mid)    # G2
    args = [x, lp["s"], lp["r"], lp["g1"], lp["b1"], lp["g3"], lp["b3"],
            lp["g2"], lp["b2"]]
    return _single_call(_resblock_kernel, out_shape, args, flops=flops)


def head_call(feat, hp, B):
    Mp = _round_up(max(B, 8), 8)
    f = jnp.pad(feat.astype(jnp.float32), ((0, Mp - B), (0, 0)))
    fin, fmid = hp["w1"].shape
    n_out = hp["w2"].shape[1]
    flops = 2 * (Mp * fin * fmid + Mp * fmid * n_out)
    out = _single_call(_head_kernel, (Mp, n_out),
                       [f, hp["w1"], hp["b1"], hp["w2"], hp["b2"]], flops=flops)
    return out[:B]


# ------------------------------ plain-JAX glue --------------------------------
def layer_dims(B, n_mels, T):
    chans = [1, N_CH, N_CH, 2 * N_CH, 2 * N_CH, 2 * N_CH, 2 * N_CH, 4 * N_CH]
    H, W = n_mels, T
    metas = []
    for li, (sh, sw) in enumerate(STRIDES):
        Ho = (H - 1) // sh + 1
        Wo = (W - 1) // sw + 1
        metas.append(dict(H=H, W=W, Ho=Ho, Wo=Wo, sh=sh, sw=sw,
                          Cin=chans[li], Cout=chans[li + 1]))
        H, W = Ho, Wo
    return metas


def mel_filterbank(n_freqs, n_mels, sample_rate, f_min, f_max):
    # torchaudio melscale_fbanks (mel_scale='htk', norm=None)
    all_freqs = np.linspace(0.0, sample_rate / 2, n_freqs)
    hz_to_mel = lambda f: 2595.0 * np.log10(1.0 + f / 700.0)
    mel_to_hz = lambda m: 700.0 * (10.0 ** (m / 2595.0) - 1.0)
    m_pts = np.linspace(hz_to_mel(f_min), hz_to_mel(f_max), n_mels + 2)
    f_pts = mel_to_hz(m_pts)
    f_diff = f_pts[1:] - f_pts[:-1]
    slopes = f_pts[None, :] - all_freqs[:, None]
    down = -slopes[:, :-2] / f_diff[:-1]
    up = slopes[:, 2:] / f_diff[1:]
    return np.maximum(0.0, np.minimum(down, up)).astype(np.float32)  # (F, n_mels)


# ------------------------------ parameter init --------------------------------
def init_conv(key, cin, cout):
    kw, kb = jax.random.split(key)
    bound = 1.0 / np.sqrt(cin * 9)
    w = jax.random.uniform(kw, (3, 3, cin, cout), jnp.float32, -bound, bound)
    b = jax.random.uniform(kb, (cout,), jnp.float32, -bound, bound)
    return w, b


def init_bn(key, c, eps=1e-5):
    kg, kb, km, kv = jax.random.split(key, 4)
    gamma = 1.0 + 0.1 * jax.random.normal(kg, (c,), jnp.float32)
    beta = 0.1 * jax.random.normal(kb, (c,), jnp.float32)
    rmean = 0.1 * jax.random.normal(km, (c,), jnp.float32)
    rvar = 1.0 + 0.1 * jax.random.uniform(kv, (c,), jnp.float32)
    scale = gamma / jnp.sqrt(rvar + eps)
    shift = beta - rmean * scale
    return scale, shift


def init_linear(key, fin, fout):
    kw, kb = jax.random.split(key)
    bound = 1.0 / np.sqrt(fin)
    w = jax.random.uniform(kw, (fin, fout), jnp.float32, -bound, bound)
    b = jax.random.uniform(kb, (fout,), jnp.float32, -bound, bound)
    return w, b


def fold_bn(w, b, scale, shift):
    # BN(conv(x)) == conv_{w*scale}(x) + (b*scale + shift)
    w = np.asarray(w, np.float32)
    b = np.asarray(b, np.float32)
    scale = np.asarray(scale, np.float32)
    shift = np.asarray(shift, np.float32)
    return w * scale[None, None, None, :], b * scale + shift


def build_layer_mats(meta, B, convs):
    """Bake im2col / stride / zero-padding of a Res_2d block into constant mats."""
    H, W, Cin, Cout = meta["H"], meta["W"], meta["Cin"], meta["Cout"]
    Ho, Wo, sh, sw = meta["Ho"], meta["Wo"], meta["sh"], meta["sw"]
    Hin_s = _round_up(max(H, 1), 8)
    Hout_s = _round_up(max(Ho, 1), 8)
    n_in = B * W * Cin
    n_mid = B * Wo * Cout
    (w1, b1), (w2, b2), (w3, b3) = convs   # BN-folded, numpy float32

    # Row selectors: S_dh picks input row sh*i + dh - 1 (zero-padding => omitted).
    S = np.zeros((3, Hout_s, Hin_s), np.float32)
    R = np.zeros((3, Hout_s, Hout_s), np.float32)
    for dh in range(3):
        for i in range(Ho):
            r = sh * i + dh - 1
            if 0 <= r < H:
                S[dh, i, r] = 1.0
            r2 = i + dh - 1
            if 0 <= r2 < Ho:
                R[dh, i, r2] = 1.0

    def col_in(b, j):
        return (b * W + j) * Cin

    def col_out(b, j):
        return (b * Wo + j) * Cout

    def build_G(wf, C_src, W_src, stride_w, col_src):
        G = np.zeros((3, B * W_src * C_src, n_mid), np.float32)
        for dh in range(3):
            for dw in range(3):
                for b in range(B):
                    for j in range(Wo):
                        jw = stride_w * j + dw - 1
                        if 0 <= jw < W_src:
                            G[dh,
                              col_src(b, jw):col_src(b, jw) + C_src,
                              col_out(b, j):col_out(b, j) + Cout] += wf[dh, dw]
        return G

    def bias_mat(bf):
        Bm = np.zeros((Hout_s, n_mid), np.float32)
        Bm[:Ho, :] = np.tile(bf, B * Wo)[None, :]
        return Bm

    return dict(
        s=jnp.asarray(S), r=jnp.asarray(R),
        g1=jnp.asarray(build_G(w1, Cin, W, sw, col_in)), b1=jnp.asarray(bias_mat(b1)),
        g3=jnp.asarray(build_G(w3, Cin, W, sw, col_in)), b3=jnp.asarray(bias_mat(b3)),
        g2=jnp.asarray(build_G(w2, Cout, Wo, 1, col_out)), b2=jnp.asarray(bias_mat(b2)),
    )


def init_params(key, B, L):
    pad = N_FFT // 2
    T = 1 + ((L + 2 * pad) - N_FFT) // HOP
    keys = iter(jax.random.split(key, 64))
    params = {}

    # ---- front-end constants: Hann folded into DFT, mel fb, spec_bn folded ----
    spec_s, spec_t = init_bn(next(keys), 1)
    n = np.arange(N_FFT)
    hann = (0.5 - 0.5 * np.cos(2.0 * np.pi * n / N_FFT)).astype(np.float64)
    F = N_FFT // 2 + 1
    Fp = _round_up(F, 8)                       # pad freq bins with zero rows
    ang = 2.0 * np.pi * n[:, None] * np.arange(F)[None, :] / N_FFT
    cosw = hann[:, None] * np.cos(ang)         # (n_fft, F)
    sinw = hann[:, None] * (-np.sin(ang))
    cosT = np.zeros((Fp, N_FFT), np.float32)
    sinT = np.zeros((Fp, N_FFT), np.float32)
    cosT[:F] = cosw.T
    sinT[:F] = sinw.T
    melfb = mel_filterbank(F, N_MELS, SAMPLE_RATE, F_MIN, F_MAX)  # (F, n_mels)
    melT = np.zeros((N_MELS, Fp), np.float32)
    melT[:, :F] = melfb.T
    params["frontend"] = dict(
        cosT=jnp.asarray(cosT), sinT=jnp.asarray(sinT), melT=jnp.asarray(melT),
        spec_s=jnp.asarray(np.asarray(spec_s, np.float32).reshape(1, 1)),
        spec_t=jnp.asarray(np.asarray(spec_t, np.float32).reshape(1, 1)),
    )

    # ---- Res_2d blocks (BN + im2col + stride folded into constant matrices) ----
    metas = layer_dims(B, N_MELS, T)
    layers = []
    for meta in metas:
        Cin, Cout = meta["Cin"], meta["Cout"]
        w1, b1 = init_conv(next(keys), Cin, Cout)
        bn1 = init_bn(next(keys), Cout)
        w2, b2 = init_conv(next(keys), Cout, Cout)
        bn2 = init_bn(next(keys), Cout)
        w3, b3 = init_conv(next(keys), Cin, Cout)   # stride!=1 -> diff=True always
        bn3 = init_bn(next(keys), Cout)
        convs = (fold_bn(w1, b1, *bn1), fold_bn(w2, b2, *bn2), fold_bn(w3, b3, *bn3))
        layers.append(build_layer_mats(meta, B, convs))
    params["layers"] = layers

    # ---- head (BatchNorm1d folded into dense_1) ----
    d1_w, d1_b = init_linear(next(keys), 4 * N_CH, 2 * N_CH)
    s1d, t1d = init_bn(next(keys), 2 * N_CH)
    d2_w, d2_b = init_linear(next(keys), 2 * N_CH, N_CLASS)
    w1f = np.asarray(d1_w, np.float32) * np.asarray(s1d, np.float32)[None, :]
    b1f = (np.asarray(d1_b, np.float32) * np.asarray(s1d, np.float32)
           + np.asarray(t1d, np.float32))
    params["head"] = dict(
        w1=jnp.asarray(w1f), b1=jnp.asarray(b1f.reshape(1, -1)),
        w2=jnp.asarray(np.asarray(d2_w, np.float32)),
        b2=jnp.asarray(np.asarray(d2_b, np.float32).reshape(1, -1)),
    )
    return params


# ------------------------------ model forward ---------------------------------
def model_forward(params, audio):
    B, L = audio.shape
    # torch.stft(center=True, pad_mode='reflect') framing (XLA gather glue).
    pad = N_FFT // 2
    xp = jnp.pad(audio, ((0, 0), (pad, pad)), mode="reflect")
    T = 1 + (xp.shape[1] - N_FFT) // HOP
    idx = np.arange(T)[:, None] * HOP + np.arange(N_FFT)[None, :]
    framesT = xp[:, idx].reshape(B * T, N_FFT).T          # (n_fft, B*T)

    # Fused MelSpectrogram + AmplitudeToDB + spec_bn -> (n_mels, B*T)
    x = frontend_call(framesT.astype(jnp.float32), params["frontend"])

    # 7 fused Res_2d blocks
    for lp in params["layers"]:
        x = resblock_call(x, lp)

    # head: frequency dim must have collapsed to 1 (torch squeeze(2))
    metas = layer_dims(B, N_MELS, T)
    mf = metas[-1]
    assert mf["Ho"] == 1, "frequency dimension did not collapse to 1"
    Wo_f, C_f = mf["Wo"], mf["Cout"]
    row = x[0].reshape(B, Wo_f, C_f)                      # (B, Wo_f, 4*n_channels)
    feat = jnp.max(row, axis=1) if Wo_f > 1 else row[:, 0, :]   # MaxPool1d over time
    x_chk = feat
    logits = head_call(feat, params["head"], B)
    return logits, x_chk


# ----------------------------------- main --------------------------------------
if __name__ == "__main__":
    key = jax.random.PRNGKey(0)
    k_params, k_audio = jax.random.split(key)

    B, L = 2, 512                        # small audio batch: 2 clips of 512 samples
    params = init_params(k_params, B, L)
    audio = jax.random.normal(k_audio, (B, L), jnp.float32)

    fwd = jax.jit(model_forward)
    logits, x_chk = jax.block_until_ready(fwd(params, audio))

    assert logits.shape == (B, N_CLASS), logits.shape
    assert x_chk.shape == (B, 4 * N_CH), x_chk.shape
    assert bool(jnp.all(jnp.isfinite(logits))) and bool(jnp.all(jnp.isfinite(x_chk)))
    print("KERNEL_OK")
</pallas_src>

<mosaic_0001>
module attributes {stable_mosaic.version = 11 : i64} {
  func.func private @main(%arg0: i32) attributes {dimension_semantics = [#tpu.dimension_semantics<core_parallel>], iteration_bounds = array<i64: 2>, tpu.core_type = #tpu.core_type<sc_scalar_subcore>, window_params = []} {
    return
  }
}

module attributes {stable_mosaic.version = 11 : i64} {
  func.func private @main(%arg0: i32) attributes {dimension_semantics = [#tpu.dimension_semantics<core_parallel>], iteration_bounds = array<i64: 2>, tpu.core_type = #tpu.core_type<sc_scalar_subcore>, window_params = []} {
    return
  }
}

module attributes {stable_mosaic.version = 11 : i64} {
  func.func @_resblock_kernel(%arg0: i32, %arg1: memref<32x18xf32, #tpu.memory_space<vmem>>, %arg2: memref<3x16x32xf32, #tpu.memory_space<vmem>>, %arg3: memref<3x16x16xf32, #tpu.memory_space<vmem>>, %arg4: memref<3x18x80xf32, #tpu.memory_space<vmem>>, %arg5: memref<16x80xf32, #tpu.memory_space<vmem>>, %arg6: memref<3x18x80xf32, #tpu.memory_space<vmem>>, %arg7: memref<16x80xf32, #tpu.memory_space<vmem>>, %arg8: memref<3x80x80xf32, #tpu.memory_space<vmem>>, %arg9: memref<16x80xf32, #tpu.memory_space<vmem>>, %arg10: memref<16x80xf32, #tpu.memory_space<vmem>>) attributes {dimension_semantics = [#tpu.dimension_semantics<arbitrary>], iteration_bounds = array<i64: 1>, scalar_prefetch = 0 : i64, scratch_operands = 0 : i64, tpu.core_type = #tpu.core_type<tc>, window_params = [{pipeline_mode = #tpu.pipeline_mode<synchronous>, transform_indices = @transform_0, window_bounds = array<i64: 32, 18>}, {pipeline_mode = #tpu.pipeline_mode<synchronous>, transform_indices = @transform_1, window_bounds = array<i64: 3, 16, 32>}, {pipeline_mode = #tpu.pipeline_mode<synchronous>, transform_indices = @transform_2, window_bounds = array<i64: 3, 16, 16>}, {pipeline_mode = #tpu.pipeline_mode<synchronous>, transform_indices = @transform_3, window_bounds = array<i64: 3, 18, 80>}, {pipeline_mode = #tpu.pipeline_mode<synchronous>, transform_indices = @transform_4, window_bounds = array<i64: 16, 80>}, {pipeline_mode = #tpu.pipeline_mode<synchronous>, transform_indices = @transform_5, window_bounds = array<i64: 3, 18, 80>}, {pipeline_mode = #tpu.pipeline_mode<synchronous>, transform_indices = @transform_6, window_bounds = array<i64: 16, 80>}, {pipeline_mode = #tpu.pipeline_mode<synchronous>, transform_indices = @transform_7, window_bounds = array<i64: 3, 80, 80>}, {pipeline_mode = #tpu.pipeline_mode<synchronous>, transform_indices = @transform_8, window_bounds = array<i64: 16, 80>}, {pipeline_mode = #tpu.pipeline_mode<synchronous>, transform_indices = @transform_9, window_bounds = array<i64: 16, 80>}]} {
    %c0 = arith.constant 0 : index
    %c0_0 = arith.constant 0 : index
    %0 = vector.load %arg1[%c0, %c0_0] : memref<32x18xf32, #tpu.memory_space<vmem>>, vector<32x18xf32>
    %c0_1 = arith.constant 0 : index
    %c0_2 = arith.constant 0 : index
    %c0_3 = arith.constant 0 : index
    %1 = vector.load %arg2[%c0_1, %c0_2, %c0_3] : memref<3x16x32xf32, #tpu.memory_space<vmem>>, vector<1x16x32xf32>
    %2 = vector.shape_cast %1 : vector<1x16x32xf32> to vector<16x32xf32>
    %cst = arith.constant dense<0.000000e+00> : vector<16x18xf32>
    %3 = tpu.matmul %2, %0, %cst {dimension_numbers = #tpu.dot_dimension_numbers<[1], [0], [0], [1], [0, 0, 1, 1], [], []>} : vector<16x32xf32>, vector<32x18xf32>, vector<16x18xf32> -> vector<16x18xf32>
    %c1 = arith.constant 1 : index
    %c0_4 = arith.constant 0 : index
    %c0_5 = arith.constant 0 : index
    %4 = vector.load %arg2[%c1, %c0_4, %c0_5] : memref<3x16x32xf32, #tpu.memory_space<vmem>>, vector<1x16x32xf32>
    %5 = vector.shape_cast %4 : vector<1x16x32xf32> to vector<16x32xf32>
    %cst_6 = arith.constant dense<0.000000e+00> : vector<16x18xf32>
    %6 = tpu.matmul %5, %0, %cst_6 {dimension_numbers = #tpu.dot_dimension_numbers<[1], [0], [0], [1], [0, 0, 1, 1], [], []>} : vector<16x32xf32>, vector<32x18xf32>, vector<16x18xf32> -> vector<16x18xf32>
    %c2 = arith.constant 2 : index
    %c0_7 = arith.constant 0 : index
    %c0_8 = arith.constant 0 : index
    %7 = vector.load %arg2[%c2, %c0_7, %c0_8] : memref<3x16x32xf32, #tpu.memory_space<vmem>>, vector<1x16x32xf32>
    %8 = vector.shape_cast %7 : vector<1x16x32xf32> to vector<16x32xf32>
    %cst_9 = arith.constant dense<0.000000e+00> : vector<16x18xf32>
    %9 = tpu.matmul %8, %0, %cst_9 {dimension_numbers = #tpu.dot_dimension_numbers<[1], [0], [0], [1], [0, 0, 1, 1], [], []>} : vector<16x32xf32>, vector<32x18xf32>, vector<16x18xf32> -> vector<16x18xf32>
    %c0_10 = arith.constant 0 : index
    %c0_11 = arith.constant 0 : index
    %c0_12 = arith.constant 0 : index
    %10 = vector.load %arg4[%c0_10, %c0_11, %c0_12] : memref<3x18x80xf32, #tpu.memory_space<vmem>>, vector<1x18x80xf32>
    %11 = vector.shape_cast %10 : vector<1x18x80xf32> to vector<18x80xf32>
    %cst_13 = arith.constant dense<0.000000e+00> : vector<16x80xf32>
    %12 = tpu.matmul %3, %11, %cst_13 {dimension_numbers = #tpu.dot_dimension_numbers<[1], [0], [0], [1], [0, 0, 1, 1], [], []>} : vector<16x18xf32>, vector<18x80xf32>, vector<16x80xf32> -> vector<16x80xf32>
    %c1_14 = arith.constant 1 : index
    %c0_15 = arith.constant 0 : index
    %c0_16 = arith.constant 0 : index
    %13 = vector.load %arg4[%c1_14, %c0_15, %c0_16] : memref<3x18x80xf32, #tpu.memory_space<vmem>>, vector<1x18x80xf32>
    %14 = vector.shape_cast %13 : vector<1x18x80xf32> to vector<18x80xf32>
    %cst_17 = arith.constant dense<0.000000e+00> : vector<16x80xf32>
    %15 = tpu.matmul %6, %14, %cst_17 {dimension_numbers = #tpu.dot_dimension_numbers<[1], [0], [0], [1], [0, 0, 1, 1], [], []>} : vector<16x18xf32>, vector<18x80xf32>, vector<16x80xf32> -> vector<16x80xf32>
    %16 = arith.addf %12, %15 : vector<16x80xf32>
    %c2_18 = arith.constant 2 : index
    %c0_19 = arith.constant 0 : index
    %c0_20 = arith.constant 0 : index
    %17 = vector.load %arg4[%c2_18, %c0_19, %c0_20] : memref<3x18x80xf32, #tpu.memory_space<vmem>>, vector<1x18x80xf32>
    %18 = vector.shape_cast %17 : vector<1x18x80xf32> to vector<18x80xf32>
    %cst_21 = arith.constant dense<0.000000e+00> : vector<16x80xf32>
    %19 = tpu.matmul %9, %18, %cst_21 {dimension_numbers = #tpu.dot_dimension_numbers<[1], [0], [0], [1], [0, 0, 1, 1], [], []>} : vector<16x18xf32>, vector<18x80xf32>, vector<16x80xf32> -> vector<16x80xf32>
    %20 = arith.addf %16, %19 : vector<16x80xf32>
    %c0_22 = arith.constant 0 : index
    %c0_23 = arith.constant 0 : index
    %21 = vector.load %arg5[%c0_22, %c0_23] : memref<16x80xf32, #tpu.memory_space<vmem>>, vector<16x80xf32>
    %22 = arith.addf %20, %21 : vector<16x80xf32>
    %c0_24 = arith.constant 0 : index
    %c0_25 = arith.constant 0 : index
    %c0_26 = arith.constant 0 : index
    %23 = vector.load %arg6[%c0_24, %c0_25, %c0_26] : memref<3x18x80xf32, #tpu.memory_space<vmem>>, vector<1x18x80xf32>
    %24 = vector.shape_cast %23 : vector<1x18x80xf32> to vector<18x80xf32>
    %cst_27 = arith.constant dense<0.000000e+00> : vector<16x80xf32>
    %25 = tpu.matmul %3, %24, %cst_27 {dimension_numbers = #tpu.dot_dimension_numbers<[1], [0], [0], [1], [0, 0, 1, 1], [], []>} : vector<16x18xf32>, vector<18x80xf32>, vector<16x80xf32> -> vector<16x80xf32>
    %c1_28 = arith.constant 1 : index
    %c0_29 = arith.constant 0 : index
    %c0_30 = arith.constant 0 : index
    %26 = vector.load %arg6[%c1_28, %c0_29, %c0_30] : memref<3x18x80xf32, #tpu.memory_space<vmem>>, vector<1x18x80xf32>
    %27 = vector.shape_cast %26 : vector<1x18x80xf32> to vector<18x80xf32>
    %cst_31 = arith.constant dense<0.000000e+00> : vector<16x80xf32>
    %28 = tpu.matmul %6, %27, %cst_31 {dimension_numbers = #tpu.dot_dimension_numbers<[1], [0], [0], [1], [0, 0, 1, 1], [], []>} : vector<16x18xf32>, vector<18x80xf32>, vector<16x80xf32> -> vector<16x80xf32>
    %29 = arith.addf %25, %28 : vector<16x80xf32>
    %c2_32 = arith.constant 2 : index
    %c0_33 = arith.constant 0 : index
    %c0_34 = arith.constant 0 : index
    %30 = vector.load %arg6[%c2_32, %c0_33, %c0_34] : memref<3x18x80xf32, #tpu.memory_space<vmem>>, vector<1x18x80xf32>
    %31 = vector.shape_cast %30 : vector<1x18x80xf32> to vector<18x80xf32>
    %cst_35 = arith.constant dense<0.000000e+00> : vector<16x80xf32>
    %32 = tpu.matmul %9, %31, %cst_35 {dimension_numbers = #tpu.dot_dimension_numbers<[1], [0], [0], [1], [0, 0, 1, 1], [], []>} : vector<16x18xf32>, vector<18x80xf32>, vector<16x80xf32> -> vector<16x80xf32>
    %33 = arith.addf %29, %32 : vector<16x80xf32>
    %c0_36 = arith.constant 0 : index
    %c0_37 = arith.constant 0 : index
    %34 = vector.load %arg7[%c0_36, %c0_37] : memref<16x80xf32, #tpu.memory_space<vmem>>, vector<16x80xf32>
    %35 = arith.addf %33, %34 : vector<16x80xf32>
    %cst_38 = arith.constant 0.000000e+00 : f32
    %36 = vector.broadcast %cst_38 : f32 to vector<16x80xf32>
    %37 = arith.maximumf %22, %36 : vector<16x80xf32>
    %c0_39 = arith.constant 0 : index
    %c0_40 = arith.constant 0 : index
    %c0_41 = arith.constant 0 : index
    %38 = vector.load %arg3[%c0_39, %c0_40, %c0_41] : memref<3x16x16xf32, #tpu.memory_space<vmem>>, vector<1x16x16xf32>
    %39 = vector.shape_cast %38 : vector<1x16x16xf32> to vector<16x16xf32>
    %cst_42 = arith.constant dense<0.000000e+00> : vector<16x80xf32>
    %40 = tpu.matmul %39, %37, %cst_42 {dimension_numbers = #tpu.dot_dimension_numbers<[1], [0], [0], [1], [0, 0, 1, 1], [], []>} : vector<16x16xf32>, vector<16x80xf32>, vector<16x80xf32> -> vector<16x80xf32>
    %c2_43 = arith.constant 2 : index
    %c0_44 = arith.constant 0 : index
    %c0_45 = arith.constant 0 : index
    %41 = vector.load %arg3[%c2_43, %c0_44, %c0_45] : memref<3x16x16xf32, #tpu.memory_space<vmem>>, vector<1x16x16xf32>
    %42 = vector.shape_cast %41 : vector<1x16x16xf32> to vector<16x16xf32>
    %cst_46 = arith.constant dense<0.000000e+00> : vector<16x80xf32>
    %43 = tpu.matmul %42, %37, %cst_46 {dimension_numbers = #tpu.dot_dimension_numbers<[1], [0], [0], [1], [0, 0, 1, 1], [], []>} : vector<16x16xf32>, vector<16x80xf32>, vector<16x80xf32> -> vector<16x80xf32>
    %c0_47 = arith.constant 0 : index
    %c0_48 = arith.constant 0 : index
    %c0_49 = arith.constant 0 : index
    %44 = vector.load %arg8[%c0_47, %c0_48, %c0_49] : memref<3x80x80xf32, #tpu.memory_space<vmem>>, vector<1x80x80xf32>
    %45 = vector.shape_cast %44 : vector<1x80x80xf32> to vector<80x80xf32>
    %cst_50 = arith.constant dense<0.000000e+00> : vector<16x80xf32>
    %46 = tpu.matmul %40, %45, %cst_50 {dimension_numbers = #tpu.dot_dimension_numbers<[1], [0], [0], [1], [0, 0, 1, 1], [], []>} : vector<16x80xf32>, vector<80x80xf32>, vector<16x80xf32> -> vector<16x80xf32>
    %c1_51 = arith.constant 1 : index
    %c0_52 = arith.constant 0 : index
    %c0_53 = arith.constant 0 : index
    %47 = vector.load %arg8[%c1_51, %c0_52, %c0_53] : memref<3x80x80xf32, #tpu.memory_space<vmem>>, vector<1x80x80xf32>
    %48 = vector.shape_cast %47 : vector<1x80x80xf32> to vector<80x80xf32>
    %cst_54 = arith.constant dense<0.000000e+00> : vector<16x80xf32>
    %49 = tpu.matmul %37, %48, %cst_54 {dimension_numbers = #tpu.dot_dimension_numbers<[1], [0], [0], [1], [0, 0, 1, 1], [], []>} : vector<16x80xf32>, vector<80x80xf32>, vector<16x80xf32> -> vector<16x80xf32>
    %50 = arith.addf %46, %49 : vector<16x80xf32>
    %c2_55 = arith.constant 2 : index
    %c0_56 = arith.constant 0 : index
    %c0_57 = arith.constant 0 : index
    %51 = vector.load %arg8[%c2_55, %c0_56, %c0_57] : memref<3x80x80xf32, #tpu.memory_space<vmem>>, vector<1x80x80xf32>
    %52 = vector.shape_cast %51 : vector<1x80x80xf32> to vector<80x80xf32>
    %cst_58 = arith.constant dense<0.000000e+00> : vector<16x80xf32>
    %53 = tpu.matmul %43, %52, %cst_58 {dimension_numbers = #tpu.dot_dimension_numbers<[1], [0], [0], [1], [0, 0, 1, 1], [], []>} : vector<16x80xf32>, vector<80x80xf32>, vector<16x80xf32> -> vector<16x80xf32>
    %54 = arith.addf %50, %53 : vector<16x80xf32>
    %c0_59 = arith.constant 0 : index
    %c0_60 = arith.constant 0 : index
    %55 = vector.load %arg9[%c0_59, %c0_60] : memref<16x80xf32, #tpu.memory_space<vmem>>, vector<16x80xf32>
    %56 = arith.addf %54, %55 : vector<16x80xf32>
    %57 = arith.addf %56, %35 : vector<16x80xf32>
    %cst_61 = arith.constant 0.000000e+00 : f32
    %58 = vector.broadcast %cst_61 : f32 to vector<16x80xf32>
    %59 = arith.maximumf %57, %58 : vector<16x80xf32>
    %c0_62 = arith.constant 0 : index
    %c0_63 = arith.constant 0 : index
    %60 = vector.load %arg10[%c0_62, %c0_63] : memref<16x80xf32, #tpu.memory_space<vmem>>, vector<16x80xf32>
    tpu.vector_store %arg10[%c0_62, %c0_63], %59 {strides = array<i32>} : memref<16x80xf32, #tpu.memory_space<vmem>>, vector<16x80xf32>,
    return
  }
  func.func @transform_0(%arg0: i32) -> (i32, i32) {
    %c0_i32 = arith.constant 0 : i32
    %c0_i32_0 = arith.constant 0 : i32
    %c0_i32_1 = arith.constant 0 : i32
    return %c0_i32, %c0_i32_0 : i32, i32
  }
  func.func @transform_1(%arg0: i32) -> (i32, i32, i32) {
    %c0_i32 = arith.constant 0 : i32
    %c0_i32_0 = arith.constant 0 : i32
    %c0_i32_1 = arith.constant 0 : i32
    %c0_i32_2 = arith.constant 0 : i32
    return %c0_i32, %c0_i32_0, %c0_i32_1 : i32, i32, i32
  }
  func.func @transform_2(%arg0: i32) -> (i32, i32, i32) {
    %c0_i32 = arith.constant 0 : i32
    %c0_i32_0 = arith.constant 0 : i32
    %c0_i32_1 = arith.constant 0 : i32
    %c0_i32_2 = arith.constant 0 : i32
    return %c0_i32, %c0_i32_0, %c0_i32_1 : i32, i32, i32
  }
  func.func @transform_3(%arg0: i32) -> (i32, i32, i32) {
    %c0_i32 = arith.constant 0 : i32
    %c0_i32_0 = arith.constant 0 : i32
    %c0_i32_1 = arith.constant 0 : i32
    %c0_i32_2 = arith.constant 0 : i32
    return %c0_i32, %c0_i32_0, %c0_i32_1 : i32, i32, i32
  }
  func.func @transform_4(%arg0: i32) -> (i32, i32) {
    %c0_i32 = arith.constant 0 : i32
    %c0_i32_0 = arith.constant 0 : i32
    %c0_i32_1 = arith.constant 0 : i32
    return %c0_i32, %c0_i32_0 : i32, i32
  }
  func.func @transform_5(%arg0: i32) -> (i32, i32, i32) {
    %c0_i32 = arith.constant 0 : i32
    %c0_i32_0 = arith.constant 0 : i32
    %c0_i32_1 = arith.constant 0 : i32
    %c0_i32_2 = arith.constant 0 : i32
    return %c0_i32, %c0_i32_0, %c0_i32_1 : i32, i32, i32
  }
  func.func @transform_6(%arg0: i32) -> (i32, i32) {
    %c0_i32 = arith.constant 0 : i32
    %c0_i32_0 = arith.constant 0 : i32
    %c0_i32_1 = arith.constant 0 : i32
    return %c0_i32, %c0_i32_0 : i32, i32
  }
  func.func @transform_7(%arg0: i32) -> (i32, i32, i32) {
    %c0_i32 = arith.constant 0 : i32
    %c0_i32_0 = arith.constant 0 : i32
    %c0_i32_1 = arith.constant 0 : i32
    %c0_i32_2 = arith.constant 0 : i32
    return %c0_i32, %c0_i32_0, %c0_i32_1 : i32, i32, i32
  }
  func.func @transform_8(%arg0: i32) -> (i32, i32) {
    %c0_i32 = arith.constant 0 : i32
    %c0_i32_0 = arith.constant 0 : i32
    %c0_i32_1 = arith.constant 0 : i32
    return %c0_i32, %c0_i32_0 : i32, i32
  }
  func.func @transform_9(%arg0: i32) -> (i32, i32) {
    %c0_i32 = arith.constant 0 : i32
    %c0_i32_0 = arith.constant 0 : i32
    %c0_i32_1 = arith.constant 0 : i32
    return %c0_i32, %c0_i32_0 : i32, i32
  }
}

module attributes {stable_mosaic.version = 11 : i64} {
  func.func @_resblock_kernel(%arg0: i32, %arg1: memref<16x80xf32, #tpu.memory_space<vmem>>, %arg2: memref<3x8x16xf32, #tpu.memory_space<vmem>>, %arg3: memref<3x8x8xf32, #tpu.memory_space<vmem>>, %arg4: memref<3x80x48xf32, #tpu.memory_space<vmem>>, %arg5: memref<8x48xf32, #tpu.memory_space<vmem>>, %arg6: memref<3x80x48xf32, #tpu.memory_space<vmem>>, %arg7: memref<8x48xf32, #tpu.memory_space<vmem>>, %arg8: memref<3x48x48xf32, #tpu.memory_space<vmem>>, %arg9: memref<8x48xf32, #tpu.memory_space<vmem>>, %arg10: memref<8x48xf32, #tpu.memory_space<vmem>>) attributes {dimension_semantics = [#tpu.dimension_semantics<arbitrary>], iteration_bounds = array<i64: 1>, scalar_prefetch = 0 : i64, scratch_operands = 0 : i64, tpu.core_type = #tpu.core_type<tc>, window_params = [{pipeline_mode = #tpu.pipeline_mode<synchronous>, transform_indices = @transform_0, window_bounds = array<i64: 16, 80>}, {pipeline_mode = #tpu.pipeline_mode<synchronous>, transform_indices = @transform_1, window_bounds = array<i64: 3, 8, 16>}, {pipeline_mode = #tpu.pipeline_mode<synchronous>, transform_indices = @transform_2, window_bounds = array<i64: 3, 8, 8>}, {pipeline_mode = #tpu.pipeline_mode<synchronous>, transform_indices = @transform_3, window_bounds = array<i64: 3, 80, 48>}, {pipeline_mode = #tpu.pipeline_mode<synchronous>, transform_indices = @transform_4, window_bounds = array<i64: 8, 48>}, {pipeline_mode = #tpu.pipeline_mode<synchronous>, transform_indices = @transform_5, window_bounds = array<i64: 3, 80, 48>}, {pipeline_mode = #tpu.pipeline_mode<synchronous>, transform_indices = @transform_6, window_bounds = array<i64: 8, 48>}, {pipeline_mode = #tpu.pipeline_mode<synchronous>, transform_indices = @transform_7, window_bounds = array<i64: 3, 48, 48>}, {pipeline_mode = #tpu.pipeline_mode<synchronous>, transform_indices = @transform_8, window_bounds = array<i64: 8, 48>}, {pipeline_mode = #tpu.pipeline_mode<synchronous>, transform_indices = @transform_9, window_bounds = array<i64: 8, 48>}]} {
    %c0 = arith.constant 0 : index
    %c0_0 = arith.constant 0 : index
    %0 = vector.load %arg1[%c0, %c0_0] : memref<16x80xf32, #tpu.memory_space<vmem>>, vector<16x80xf32>
    %c0_1 = arith.constant 0 : index
    %c0_2 = arith.constant 0 : index
    %c0_3 = arith.constant 0 : index
    %1 = vector.load %arg2[%c0_1, %c0_2, %c0_3] : memref<3x8x16xf32, #tpu.memory_space<vmem>>, vector<1x8x16xf32>
    %2 = vector.shape_cast %1 : vector<1x8x16xf32> to vector<8x16xf32>
    %cst = arith.constant dense<0.000000e+00> : vector<8x80xf32>
    %3 = tpu.matmul %2, %0, %cst {dimension_numbers = #tpu.dot_dimension_numbers<[1], [0], [0], [1], [0, 0, 1, 1], [], []>} : vector<8x16xf32>, vector<16x80xf32>, vector<8x80xf32> -> vector<8x80xf32>
    %c1 = arith.constant 1 : index
    %c0_4 = arith.constant 0 : index
    %c0_5 = arith.constant 0 : index
    %4 = vector.load %arg2[%c1, %c0_4, %c0_5] : memref<3x8x16xf32, #tpu.memory_space<vmem>>, vector<1x8x16xf32>
    %5 = vector.shape_cast %4 : vector<1x8x16xf32> to vector<8x16xf32>
    %cst_6 = arith.constant dense<0.000000e+00> : vector<8x80xf32>
    %6 = tpu.matmul %5, %0, %cst_6 {dimension_numbers = #tpu.dot_dimension_numbers<[1], [0], [0], [1], [0, 0, 1, 1], [], []>} : vector<8x16xf32>, vector<16x80xf32>, vector<8x80xf32> -> vector<8x80xf32>
    %c2 = arith.constant 2 : index
    %c0_7 = arith.constant 0 : index
    %c0_8 = arith.constant 0 : index
    %7 = vector.load %arg2[%c2, %c0_7, %c0_8] : memref<3x8x16xf32, #tpu.memory_space<vmem>>, vector<1x8x16xf32>
    %8 = vector.shape_cast %7 : vector<1x8x16xf32> to vector<8x16xf32>
    %cst_9 = arith.constant dense<0.000000e+00> : vector<8x80xf32>
    %9 = tpu.matmul %8, %0, %cst_9 {dimension_numbers = #tpu.dot_dimension_numbers<[1], [0], [0], [1], [0, 0, 1, 1], [], []>} : vector<8x16xf32>, vector<16x80xf32>, vector<8x80xf32> -> vector<8x80xf32>
    %c0_10 = arith.constant 0 : index
    %c0_11 = arith.constant 0 : index
    %c0_12 = arith.constant 0 : index
    %10 = vector.load %arg4[%c0_10, %c0_11, %c0_12] : memref<3x80x48xf32, #tpu.memory_space<vmem>>, vector<1x80x48xf32>
    %11 = vector.shape_cast %10 : vector<1x80x48xf32> to vector<80x48xf32>
    %cst_13 = arith.constant dense<0.000000e+00> : vector<8x48xf32>
    %12 = tpu.matmul %3, %11, %cst_13 {dimension_numbers = #tpu.dot_dimension_numbers<[1], [0], [0], [1], [0, 0, 1, 1], [], []>} : vector<8x80xf32>, vector<80x48xf32>, vector<8x48xf32> -> vector<8x48xf32>
    %c1_14 = arith.constant 1 : index
    %c0_15 = arith.constant 0 : index
    %c0_16 = arith.constant 0 : index
    %13 = vector.load %arg4[%c1_14, %c0_15, %c0_16] : memref<3x80x48xf32, #tpu.memory_space<vmem>>, vector<1x80x48xf32>
    %14 = vector.shape_cast %13 : vector<1x80x48xf32> to vector<80x48xf32>
    %cst_17 = arith.constant dense<0.000000e+00> : vector<8x48xf32>
    %15 = tpu.matmul %6, %14, %cst_17 {dimension_numbers = #tpu.dot_dimension_numbers<[1], [0], [0], [1], [0, 0, 1, 1], [], []>} : vector<8x80xf32>, vector<80x48xf32>, vector<8x48xf32> -> vector<8x48xf32>
    %16 = arith.addf %12, %15 : vector<8x48xf32>
    %c2_18 = arith.constant 2 : index
    %c0_19 = arith.constant 0 : index
    %c0_20 = arith.constant 0 : index
    %17 = vector.load %arg4[%c2_18, %c0_19, %c0_20] : memref<3x80x48xf32, #tpu.memory_space<vmem>>, vector<1x80x48xf32>
    %18 = vector.shape_cast %17 : vector<1x80x48xf32> to vector<80x48xf32>
    %cst_21 = arith.constant dense<0.000000e+00> : vector<8x48xf32>
    %19 = tpu.matmul %9, %18, %cst_21 {dimension_numbers = #tpu.dot_dimension_numbers<[1], [0], [0], [1], [0, 0, 1, 1], [], []>} : vector<8x80xf32>, vector<80x48xf32>, vector<8x48xf32> -> vector<8x48xf32>
    %20 = arith.addf %16, %19 : vector<8x48xf32>
    %c0_22 = arith.constant 0 : index
    %c0_23 = arith.constant 0 : index
    %21 = vector.load %arg5[%c0_22, %c0_23] : memref<8x48xf32, #tpu.memory_space<vmem>>, vector<8x48xf32>
    %22 = arith.addf %20, %21 : vector<8x48xf32>
    %c0_24 = arith.constant 0 : index
    %c0_25 = arith.constant 0 : index
    %c0_26 = arith.constant 0 : index
    %23 = vector.load %arg6[%c0_24, %c0_25, %c0_26] : memref<3x80x48xf32, #tpu.memory_space<vmem>>, vector<1x80x48xf32>
    %24 = vector.shape_cast %23 : vector<1x80x48xf32> to vector<80x48xf32>
    %cst_27 = arith.constant dense<0.000000e+00> : vector<8x48xf32>
    %25 = tpu.matmul %3, %24, %cst_27 {dimension_numbers = #tpu.dot_dimension_numbers<[1], [0], [0], [1], [0, 0, 1, 1], [], []>} : vector<8x80xf32>, vector<80x48xf32>, vector<8x48xf32> -> vector<8x48xf32>
    %c1_28 = arith.constant 1 : index
    %c0_29 = arith.constant 0 : index
    %c0_30 = arith.constant 0 : index
    %26 = vector.load %arg6[%c1_28, %c0_29, %c0_30] : memref<3x80x48xf32, #tpu.memory_space<vmem>>, vector<1x80x48xf32>
    %27 = vector.shape_cast %26 : vector<1x80x48xf32> to vector<80x48xf32>
    %cst_31 = arith.constant dense<0.000000e+00> : vector<8x48xf32>
    %28 = tpu.matmul %6, %27, %cst_31 {dimension_numbers = #tpu.dot_dimension_numbers<[1], [0], [0], [1], [0, 0, 1, 1], [], []>} : vector<8x80xf32>, vector<80x48xf32>, vector<8x48xf32> -> vector<8x48xf32>
    %29 = arith.addf %25, %28 : vector<8x48xf32>
    %c2_32 = arith.constant 2 : index
    %c0_33 = arith.constant 0 : index
    %c0_34 = arith.constant 0 : index
    %30 = vector.load %arg6[%c2_32, %c0_33, %c0_34] : memref<3x80x48xf32, #tpu.memory_space<vmem>>, vector<1x80x48xf32>
    %31 = vector.shape_cast %30 : vector<1x80x48xf32> to vector<80x48xf32>
    %cst_35 = arith.constant dense<0.000000e+00> : vector<8x48xf32>
    %32 = tpu.matmul %9, %31, %cst_35 {dimension_numbers = #tpu.dot_dimension_numbers<[1], [0], [0], [1], [0, 0, 1, 1], [], []>} : vector<8x80xf32>, vector<80x48xf32>, vector<8x48xf32> -> vector<8x48xf32>
    %33 = arith.addf %29, %32 : vector<8x48xf32>
    %c0_36 = arith.constant 0 : index
    %c0_37 = arith.constant 0 : index
    %34 = vector.load %arg7[%c0_36, %c0_37] : memref<8x48xf32, #tpu.memory_space<vmem>>, vector<8x48xf32>
    %35 = arith.addf %33, %34 : vector<8x48xf32>
    %cst_38 = arith.constant 0.000000e+00 : f32
    %36 = vector.broadcast %cst_38 : f32 to vector<8x48xf32>
    %37 = arith.maximumf %22, %36 : vector<8x48xf32>
    %c0_39 = arith.constant 0 : index
    %c0_40 = arith.constant 0 : index
    %c0_41 = arith.constant 0 : index
    %38 = vector.load %arg3[%c0_39, %c0_40, %c0_41] : memref<3x8x8xf32, #tpu.memory_space<vmem>>, vector<1x8x8xf32>
    %39 = vector.shape_cast %38 : vector<1x8x8xf32> to vector<8x8xf32>
    %cst_42 = arith.constant dense<0.000000e+00> : vector<8x48xf32>
    %40 = tpu.matmul %39, %37, %cst_42 {dimension_numbers = #tpu.dot_dimension_numbers<[1], [0], [0], [1], [0, 0, 1, 1], [], []>} : vector<8x8xf32>, vector<8x48xf32>, vector<8x48xf32> -> vector<8x48xf32>
    %c2_43 = arith.constant 2 : index
    %c0_44 = arith.constant 0 : index
    %c0_45 = arith.constant 0 : index
    %41 = vector.load %arg3[%c2_43, %c0_44, %c0_45] : memref<3x8x8xf32, #tpu.memory_space<vmem>>, vector<1x8x8xf32>
    %42 = vector.shape_cast %41 : vector<1x8x8xf32> to vector<8x8xf32>
    %cst_46 = arith.constant dense<0.000000e+00> : vector<8x48xf32>
    %43 = tpu.matmul %42, %37, %cst_46 {dimension_numbers = #tpu.dot_dimension_numbers<[1], [0], [0], [1], [0, 0, 1, 1], [], []>} : vector<8x8xf32>, vector<8x48xf32>, vector<8x48xf32> -> vector<8x48xf32>
    %c0_47 = arith.constant 0 : index
    %c0_48 = arith.constant 0 : index
    %c0_49 = arith.constant 0 : index
    %44 = vector.load %arg8[%c0_47, %c0_48, %c0_49] : memref<3x48x48xf32, #tpu.memory_space<vmem>>, vector<1x48x48xf32>
    %45 = vector.shape_cast %44 : vector<1x48x48xf32> to vector<48x48xf32>
    %cst_50 = arith.constant dense<0.000000e+00> : vector<8x48xf32>
    %46 = tpu.matmul %40, %45, %cst_50 {dimension_numbers = #tpu.dot_dimension_numbers<[1], [0], [0], [1], [0, 0, 1, 1], [], []>} : vector<8x48xf32>, vector<48x48xf32>, vector<8x48xf32> -> vector<8x48xf32>
    %c1_51 = arith.constant 1 : index
    %c0_52 = arith.constant 0 : index
    %c0_53 = arith.constant 0 : index
    %47 = vector.load %arg8[%c1_51, %c0_52, %c0_53] : memref<3x48x48xf32, #tpu.memory_space<vmem>>, vector<1x48x48xf32>
    %48 = vector.shape_cast %47 : vector<1x48x48xf32> to vector<48x48xf32>
    %cst_54 = arith.constant dense<0.000000e+00> : vector<8x48xf32>
    %49 = tpu.matmul %37, %48, %cst_54 {dimension_numbers = #tpu.dot_dimension_numbers<[1], [0], [0], [1], [0, 0, 1, 1], [], []>} : vector<8x48xf32>, vector<48x48xf32>, vector<8x48xf32> -> vector<8x48xf32>
    %50 = arith.addf %46, %49 : vector<8x48xf32>
    %c2_55 = arith.constant 2 : index
    %c0_56 = arith.constant 0 : index
    %c0_57 = arith.constant 0 : index
    %51 = vector.load %arg8[%c2_55, %c0_56, %c0_57] : memref<3x48x48xf32, #tpu.memory_space<vmem>>, vector<1x48x48xf32>
    %52 = vector.shape_cast %51 : vector<1x48x48xf32> to vector<48x48xf32>
    %cst_58 = arith.constant dense<0.000000e+00> : vector<8x48xf32>
    %53 = tpu.matmul %43, %52, %cst_58 {dimension_numbers = #tpu.dot_dimension_numbers<[1], [0], [0], [1], [0, 0, 1, 1], [], []>} : vector<8x48xf32>, vector<48x48xf32>, vector<8x48xf32> -> vector<8x48xf32>
    %54 = arith.addf %50, %53 : vector<8x48xf32>
    %c0_59 = arith.constant 0 : index
    %c0_60 = arith.constant 0 : index
    %55 = vector.load %arg9[%c0_59, %c0_60] : memref<8x48xf32, #tpu.memory_space<vmem>>, vector<8x48xf32>
    %56 = arith.addf %54, %55 : vector<8x48xf32>
    %57 = arith.addf %56, %35 : vector<8x48xf32>
    %cst_61 = arith.constant 0.000000e+00 : f32
    %58 = vector.broadcast %cst_61 : f32 to vector<8x48xf32>
    %59 = arith.maximumf %57, %58 : vector<8x48xf32>
    %c0_62 = arith.constant 0 : index
    %c0_63 = arith.constant 0 : index
    %60 = vector.load %arg10[%c0_62, %c0_63] : memref<8x48xf32, #tpu.memory_space<vmem>>, vector<8x48xf32>
    tpu.vector_store %arg10[%c0_62, %c0_63], %59 {strides = array<i32>} : memref<8x48xf32, #tpu.memory_space<vmem>>, vector<8x48xf32>,
    return
  }
  func.func @transform_0(%arg0: i32) -> (i32, i32) {
    %c0_i32 = arith.constant 0 : i32
    %c0_i32_0 = arith.constant 0 : i32
    %c0_i32_1 = arith.constant 0 : i32
    return %c0_i32, %c0_i32_0 : i32, i32
  }
  func.func @transform_1(%arg0: i32) -> (i32, i32, i32) {
    %c0_i32 = arith.constant 0 : i32
    %c0_i32_0 = arith.constant 0 : i32
    %c0_i32_1 = arith.constant 0 : i32
    %c0_i32_2 = arith.constant 0 : i32
    return %c0_i32, %c0_i32_0, %c0_i32_1 : i32, i32, i32
  }
  func.func @transform_2(%arg0: i32) -> (i32, i32, i32) {
    %c0_i32 = arith.constant 0 : i32
    %c0_i32_0 = arith.constant 0 : i32
    %c0_i32_1 = arith.constant 0 : i32
    %c0_i32_2 = arith.constant 0 : i32
    return %c0_i32, %c0_i32_0, %c0_i32_1 : i32, i32, i32
  }
  func.func @transform_3(%arg0: i32) -> (i32, i32, i32) {
    %c0_i32 = arith.constant 0 : i32
    %c0_i32_0 = arith.constant 0 : i32
    %c0_i32_1 = arith.constant 0 : i32
    %c0_i32_2 = arith.constant 0 : i32
    return %c0_i32, %c0_i32_0, %c0_i32_1 : i32, i32, i32
  }
  func.func @transform_4(%arg0: i32) -> (i32, i32) {
    %c0_i32 = arith.constant 0 : i32
    %c0_i32_0 = arith.constant 0 : i32
    %c0_i32_1 = arith.constant 0 : i32
    return %c0_i32, %c0_i32_0 : i32, i32
  }
  func.func @transform_5(%arg0: i32) -> (i32, i32, i32) {
    %c0_i32 = arith.constant 0 : i32
    %c0_i32_0 = arith.constant 0 : i32
    %c0_i32_1 = arith.constant 0 : i32
    %c0_i32_2 = arith.constant 0 : i32
    return %c0_i32, %c0_i32_0, %c0_i32_1 : i32, i32, i32
  }
  func.func @transform_6(%arg0: i32) -> (i32, i32) {
    %c0_i32 = arith.constant 0 : i32
    %c0_i32_0 = arith.constant 0 : i32
    %c0_i32_1 = arith.constant 0 : i32
    return %c0_i32, %c0_i32_0 : i32, i32
  }
  func.func @transform_7(%arg0: i32) -> (i32, i32, i32) {
    %c0_i32 = arith.constant 0 : i32
    %c0_i32_0 = arith.constant 0 : i32
    %c0_i32_1 = arith.constant 0 : i32
    %c0_i32_2 = arith.constant 0 : i32
    return %c0_i32, %c0_i32_0, %c0_i32_1 : i32, i32, i32
  }
  func.func @transform_8(%arg0: i32) -> (i32, i32) {
    %c0_i32 = arith.constant 0 : i32
    %c0_i32_0 = arith.constant 0 : i32
    %c0_i32_1 = arith.constant 0 : i32
    return %c0_i32, %c0_i32_0 : i32, i32
  }
  func.func @transform_9(%arg0: i32) -> (i32, i32) {
    %c0_i32 = arith.constant 0 : i32
    %c0_i32_0 = arith.constant 0 : i32
    %c0_i32_1 = arith.constant 0 : i32
    return %c0_i32, %c0_i32_0 : i32, i32
  }
}

module attributes {stable_mosaic.version = 11 : i64} {
  func.func @_frontend_kernel(%arg0: i32, %arg1: memref<128x18xf32, #tpu.memory_space<vmem>>, %arg2: memref<72x128xf32, #tpu.memory_space<vmem>>, %arg3: memref<72x128xf32, #tpu.memory_space<vmem>>, %arg4: memref<32x72xf32, #tpu.memory_space<vmem>>, %arg5: memref<1x1xf32, #tpu.memory_space<vmem>>, %arg6: memref<1x1xf32, #tpu.memory_space<vmem>>, %arg7: memref<32x18xf32, #tpu.memory_space<vmem>>) attributes {dimension_semantics = [#tpu.dimension_semantics<arbitrary>], iteration_bounds = array<i64: 1>, scalar_prefetch = 0 : i64, scratch_operands = 0 : i64, tpu.core_type = #tpu.core_type<tc>, window_params = [{pipeline_mode = #tpu.pipeline_mode<synchronous>, transform_indices = @transform_0, window_bounds = array<i64: 128, 18>}, {pipeline_mode = #tpu.pipeline_mode<synchronous>, transform_indices = @transform_1, window_bounds = array<i64: 72, 128>}, {pipeline_mode = #tpu.pipeline_mode<synchronous>, transform_indices = @transform_2, window_bounds = array<i64: 72, 128>}, {pipeline_mode = #tpu.pipeline_mode<synchronous>, transform_indices = @transform_3, window_bounds = array<i64: 32, 72>}, {pipeline_mode = #tpu.pipeline_mode<synchronous>, transform_indices = @transform_4, window_bounds = array<i64: 1, 1>}, {pipeline_mode = #tpu.pipeline_mode<synchronous>, transform_indices = @transform_5, window_bounds = array<i64: 1, 1>}, {pipeline_mode = #tpu.pipeline_mode<synchronous>, transform_indices = @transform_6, window_bounds = array<i64: 32, 18>}]} {
    %c0 = arith.constant 0 : index
    %c0_0 = arith.constant 0 : index
    %0 = vector.load %arg1[%c0, %c0_0] : memref<128x18xf32, #tpu.memory_space<vmem>>, vector<128x18xf32>
    %c0_1 = arith.constant 0 : index
    %c0_2 = arith.constant 0 : index
    %1 = vector.load %arg2[%c0_1, %c0_2] : memref<72x128xf32, #tpu.memory_space<vmem>>, vector<72x128xf32>
    %cst = arith.constant dense<0.000000e+00> : vector<72x18xf32>
    %2 = tpu.matmul %1, %0, %cst {dimension_numbers = #tpu.dot_dimension_numbers<[1], [0], [0], [1], [0, 0, 1, 1], [], []>} : vector<72x128xf32>, vector<128x18xf32>, vector<72x18xf32> -> vector<72x18xf32>
    %c0_3 = arith.constant 0 : index
    %c0_4 = arith.constant 0 : index
    %3 = vector.load %arg3[%c0_3, %c0_4] : memref<72x128xf32, #tpu.memory_space<vmem>>, vector<72x128xf32>
    %cst_5 = arith.constant dense<0.000000e+00> : vector<72x18xf32>
    %4 = tpu.matmul %3, %0, %cst_5 {dimension_numbers = #tpu.dot_dimension_numbers<[1], [0], [0], [1], [0, 0, 1, 1], [], []>} : vector<72x128xf32>, vector<128x18xf32>, vector<72x18xf32> -> vector<72x18xf32>
    %5 = arith.mulf %2, %2 : vector<72x18xf32>
    %6 = arith.mulf %4, %4 : vector<72x18xf32>
    %7 = arith.addf %5, %6 : vector<72x18xf32>
    %c0_6 = arith.constant 0 : index
    %c0_7 = arith.constant 0 : index
    %8 = vector.load %arg4[%c0_6, %c0_7] : memref<32x72xf32, #tpu.memory_space<vmem>>, vector<32x72xf32>
    %cst_8 = arith.constant dense<0.000000e+00> : vector<32x18xf32>
    %9 = tpu.matmul %8, %7, %cst_8 {dimension_numbers = #tpu.dot_dimension_numbers<[1], [0], [0], [1], [0, 0, 1, 1], [], []>} : vector<32x72xf32>, vector<72x18xf32>, vector<32x18xf32> -> vector<32x18xf32>
    %cst_9 = arith.constant 1.000000e-10 : f32
    %10 = vector.broadcast %cst_9 : f32 to vector<32x18xf32>
    %11 = arith.maximumf %9, %10 : vector<32x18xf32>
    %12 = math.log %11 : vector<32x18xf32>
    %cst_10 = arith.constant 0.434294492 : f32
    %13 = vector.broadcast %cst_10 : f32 to vector<32x18xf32>
    %14 = arith.mulf %12, %13 : vector<32x18xf32>
    %cst_11 = arith.constant 1.000000e+01 : f32
    %15 = vector.broadcast %cst_11 : f32 to vector<32x18xf32>
    %16 = arith.mulf %15, %14 : vector<32x18xf32>
    %c0_12 = arith.constant 0 : index
    %c0_13 = arith.constant 0 : index
    %17 = vector.load %arg5[%c0_12, %c0_13] : memref<1x1xf32, #tpu.memory_space<vmem>>, vector<1x1xf32>
    %18 = vector.broadcast %17 : vector<1x1xf32> to vector<32x18xf32>
    %19 = arith.mulf %16, %18 : vector<32x18xf32>
    %c0_14 = arith.constant 0 : index
    %c0_15 = arith.constant 0 : index
    %20 = vector.load %arg6[%c0_14, %c0_15] : memref<1x1xf32, #tpu.memory_space<vmem>>, vector<1x1xf32>
    %21 = vector.broadcast %20 : vector<1x1xf32> to vector<32x18xf32>
    %22 = arith.addf %19, %21 : vector<32x18xf32>
    %c0_16 = arith.constant 0 : index
    %c0_17 = arith.constant 0 : index
    %23 = vector.load %arg7[%c0_16, %c0_17] : memref<32x18xf32, #tpu.memory_space<vmem>>, vector<32x18xf32>
    tpu.vector_store %arg7[%c0_16, %c0_17], %22 {strides = array<i32>} : memref<32x18xf32, #tpu.memory_space<vmem>>, vector<32x18xf32>,
    return
  }
  func.func @transform_0(%arg0: i32) -> (i32, i32) {
    %c0_i32 = arith.constant 0 : i32
    %c0_i32_0 = arith.constant 0 : i32
    %c0_i32_1 = arith.constant 0 : i32
    return %c0_i32, %c0_i32_0 : i32, i32
  }
  func.func @transform_1(%arg0: i32) -> (i32, i32) {
    %c0_i32 = arith.constant 0 : i32
    %c0_i32_0 = arith.constant 0 : i32
    %c0_i32_1 = arith.constant 0 : i32
    return %c0_i32, %c0_i32_0 : i32, i32
  }
  func.func @transform_2(%arg0: i32) -> (i32, i32) {
    %c0_i32 = arith.constant 0 : i32
    %c0_i32_0 = arith.constant 0 : i32
    %c0_i32_1 = arith.constant 0 : i32
    return %c0_i32, %c0_i32_0 : i32, i32
  }
  func.func @transform_3(%arg0: i32) -> (i32, i32) {
    %c0_i32 = arith.constant 0 : i32
    %c0_i32_0 = arith.constant 0 : i32
    %c0_i32_1 = arith.constant 0 : i32
    return %c0_i32, %c0_i32_0 : i32, i32
  }
  func.func @transform_4(%arg0: i32) -> (i32, i32) {
    %c0_i32 = arith.constant 0 : i32
    %c0_i32_0 = arith.constant 0 : i32
    %c0_i32_1 = arith.constant 0 : i32
    return %c0_i32, %c0_i32_0 : i32, i32
  }
  func.func @transform_5(%arg0: i32) -> (i32, i32) {
    %c0_i32 = arith.constant 0 : i32
    %c0_i32_0 = arith.constant 0 : i32
    %c0_i32_1 = arith.constant 0 : i32
    return %c0_i32, %c0_i32_0 : i32, i32
  }
  func.func @transform_6(%arg0: i32) -> (i32, i32) {
    %c0_i32 = arith.constant 0 : i32
    %c0_i32_0 = arith.constant 0 : i32
    %c0_i32_1 = arith.constant 0 : i32
    return %c0_i32, %c0_i32_0 : i32, i32
  }
}

module attributes {stable_mosaic.version = 11 : i64} {
  func.func @_resblock_kernel(%arg0: i32, %arg1: memref<8x48xf32, #tpu.memory_space<vmem>>, %arg2: memref<3x8x8xf32, #tpu.memory_space<vmem>>, %arg3: memref<3x8x8xf32, #tpu.memory_space<vmem>>, %arg4: memref<3x48x64xf32, #tpu.memory_space<vmem>>, %arg5: memref<8x64xf32, #tpu.memory_space<vmem>>, %arg6: memref<3x48x64xf32, #tpu.memory_space<vmem>>, %arg7: memref<8x64xf32, #tpu.memory_space<vmem>>, %arg8: memref<3x64x64xf32, #tpu.memory_space<vmem>>, %arg9: memref<8x64xf32, #tpu.memory_space<vmem>>, %arg10: memref<8x64xf32, #tpu.memory_space<vmem>>) attributes {dimension_semantics = [#tpu.dimension_semantics<arbitrary>], iteration_bounds = array<i64: 1>, scalar_prefetch = 0 : i64, scratch_operands = 0 : i64, tpu.core_type = #tpu.core_type<tc>, window_params = [{pipeline_mode = #tpu.pipeline_mode<synchronous>, transform_indices = @transform_0, window_bounds = array<i64: 8, 48>}, {pipeline_mode = #tpu.pipeline_mode<synchronous>, transform_indices = @transform_1, window_bounds = array<i64: 3, 8, 8>}, {pipeline_mode = #tpu.pipeline_mode<synchronous>, transform_indices = @transform_2, window_bounds = array<i64: 3, 8, 8>}, {pipeline_mode = #tpu.pipeline_mode<synchronous>, transform_indices = @transform_3, window_bounds = array<i64: 3, 48, 64>}, {pipeline_mode = #tpu.pipeline_mode<synchronous>, transform_indices = @transform_4, window_bounds = array<i64: 8, 64>}, {pipeline_mode = #tpu.pipeline_mode<synchronous>, transform_indices = @transform_5, window_bounds = array<i64: 3, 48, 64>}, {pipeline_mode = #tpu.pipeline_mode<synchronous>, transform_indices = @transform_6, window_bounds = array<i64: 8, 64>}, {pipeline_mode = #tpu.pipeline_mode<synchronous>, transform_indices = @transform_7, window_bounds = array<i64: 3, 64, 64>}, {pipeline_mode = #tpu.pipeline_mode<synchronous>, transform_indices = @transform_8, window_bounds = array<i64: 8, 64>}, {pipeline_mode = #tpu.pipeline_mode<synchronous>, transform_indices = @transform_9, window_bounds = array<i64: 8, 64>}]} {
    %c0 = arith.constant 0 : index
    %c0_0 = arith.constant 0 : index
    %0 = vector.load %arg1[%c0, %c0_0] : memref<8x48xf32, #tpu.memory_space<vmem>>, vector<8x48xf32>
    %c0_1 = arith.constant 0 : index
    %c0_2 = arith.constant 0 : index
    %c0_3 = arith.constant 0 : index
    %1 = vector.load %arg2[%c0_1, %c0_2, %c0_3] : memref<3x8x8xf32, #tpu.memory_space<vmem>>, vector<1x8x8xf32>
    %2 = vector.shape_cast %1 : vector<1x8x8xf32> to vector<8x8xf32>
    %cst = arith.constant dense<0.000000e+00> : vector<8x48xf32>
    %3 = tpu.matmul %2, %0, %cst {dimension_numbers = #tpu.dot_dimension_numbers<[1], [0], [0], [1], [0, 0, 1, 1], [], []>} : vector<8x8xf32>, vector<8x48xf32>, vector<8x48xf32> -> vector<8x48xf32>
    %c1 = arith.constant 1 : index
    %c0_4 = arith.constant 0 : index
    %c0_5 = arith.constant 0 : index
    %4 = vector.load %arg2[%c1, %c0_4, %c0_5] : memref<3x8x8xf32, #tpu.memory_space<vmem>>, vector<1x8x8xf32>
    %5 = vector.shape_cast %4 : vector<1x8x8xf32> to vector<8x8xf32>
    %cst_6 = arith.constant dense<0.000000e+00> : vector<8x48xf32>
    %6 = tpu.matmul %5, %0, %cst_6 {dimension_numbers = #tpu.dot_dimension_numbers<[1], [0], [0], [1], [0, 0, 1, 1], [], []>} : vector<8x8xf32>, vector<8x48xf32>, vector<8x48xf32> -> vector<8x48xf32>
    %c2 = arith.constant 2 : index
    %c0_7 = arith.constant 0 : index
    %c0_8 = arith.constant 0 : index
    %7 = vector.load %arg2[%c2, %c0_7, %c0_8] : memref<3x8x8xf32, #tpu.memory_space<vmem>>, vector<1x8x8xf32>
    %8 = vector.shape_cast %7 : vector<1x8x8xf32> to vector<8x8xf32>
    %cst_9 = arith.constant dense<0.000000e+00> : vector<8x48xf32>
    %9 = tpu.matmul %8, %0, %cst_9 {dimension_numbers = #tpu.dot_dimension_numbers<[1], [0], [0], [1], [0, 0, 1, 1], [], []>} : vector<8x8xf32>, vector<8x48xf32>, vector<8x48xf32> -> vector<8x48xf32>
    %c0_10 = arith.constant 0 : index
    %c0_11 = arith.constant 0 : index
    %c0_12 = arith.constant 0 : index
    %10 = vector.load %arg4[%c0_10, %c0_11, %c0_12] : memref<3x48x64xf32, #tpu.memory_space<vmem>>, vector<1x48x64xf32>
    %11 = vector.shape_cast %10 : vector<1x48x64xf32> to vector<48x64xf32>
    %cst_13 = arith.constant dense<0.000000e+00> : vector<8x64xf32>
    %12 = tpu.matmul %3, %11, %cst_13 {dimension_numbers = #tpu.dot_dimension_numbers<[1], [0], [0], [1], [0, 0, 1, 1], [], []>} : vector<8x48xf32>, vector<48x64xf32>, vector<8x64xf32> -> vector<8x64xf32>
    %c1_14 = arith.constant 1 : index
    %c0_15 = arith.constant 0 : index
    %c0_16 = arith.constant 0 : index
    %13 = vector.load %arg4[%c1_14, %c0_15, %c0_16] : memref<3x48x64xf32, #tpu.memory_space<vmem>>, vector<1x48x64xf32>
    %14 = vector.shape_cast %13 : vector<1x48x64xf32> to vector<48x64xf32>
    %cst_17 = arith.constant dense<0.000000e+00> : vector<8x64xf32>
    %15 = tpu.matmul %6, %14, %cst_17 {dimension_numbers = #tpu.dot_dimension_numbers<[1], [0], [0], [1], [0, 0, 1, 1], [], []>} : vector<8x48xf32>, vector<48x64xf32>, vector<8x64xf32> -> vector<8x64xf32>
    %16 = arith.addf %12, %15 : vector<8x64xf32>
    %c2_18 = arith.constant 2 : index
    %c0_19 = arith.constant 0 : index
    %c0_20 = arith.constant 0 : index
    %17 = vector.load %arg4[%c2_18, %c0_19, %c0_20] : memref<3x48x64xf32, #tpu.memory_space<vmem>>, vector<1x48x64xf32>
    %18 = vector.shape_cast %17 : vector<1x48x64xf32> to vector<48x64xf32>
    %cst_21 = arith.constant dense<0.000000e+00> : vector<8x64xf32>
    %19 = tpu.matmul %9, %18, %cst_21 {dimension_numbers = #tpu.dot_dimension_numbers<[1], [0], [0], [1], [0, 0, 1, 1], [], []>} : vector<8x48xf32>, vector<48x64xf32>, vector<8x64xf32> -> vector<8x64xf32>
    %20 = arith.addf %16, %19 : vector<8x64xf32>
    %c0_22 = arith.constant 0 : index
    %c0_23 = arith.constant 0 : index
    %21 = vector.load %arg5[%c0_22, %c0_23] : memref<8x64xf32, #tpu.memory_space<vmem>>, vector<8x64xf32>
    %22 = arith.addf %20, %21 : vector<8x64xf32>
    %c0_24 = arith.constant 0 : index
    %c0_25 = arith.constant 0 : index
    %c0_26 = arith.constant 0 : index
    %23 = vector.load %arg6[%c0_24, %c0_25, %c0_26] : memref<3x48x64xf32, #tpu.memory_space<vmem>>, vector<1x48x64xf32>
    %24 = vector.shape_cast %23 : vector<1x48x64xf32> to vector<48x64xf32>
    %cst_27 = arith.constant dense<0.000000e+00> : vector<8x64xf32>
    %25 = tpu.matmul %3, %24, %cst_27 {dimension_numbers = #tpu.dot_dimension_numbers<[1], [0], [0], [1], [0, 0, 1, 1], [], []>} : vector<8x48xf32>, vector<48x64xf32>, vector<8x64xf32> -> vector<8x64xf32>
    %c1_28 = arith.constant 1 : index
    %c0_29 = arith.constant 0 : index
    %c0_30 = arith.constant 0 : index
    %26 = vector.load %arg6[%c1_28, %c0_29, %c0_30] : memref<3x48x64xf32, #tpu.memory_space<vmem>>, vector<1x48x64xf32>
    %27 = vector.shape_cast %26 : vector<1x48x64xf32> to vector<48x64xf32>
    %cst_31 = arith.constant dense<0.000000e+00> : vector<8x64xf32>
    %28 = tpu.matmul %6, %27, %cst_31 {dimension_numbers = #tpu.dot_dimension_numbers<[1], [0], [0], [1], [0, 0, 1, 1], [], []>} : vector<8x48xf32>, vector<48x64xf32>, vector<8x64xf32> -> vector<8x64xf32>
    %29 = arith.addf %25, %28 : vector<8x64xf32>
    %c2_32 = arith.constant 2 : index
    %c0_33 = arith.constant 0 : index
    %c0_34 = arith.constant 0 : index
    %30 = vector.load %arg6[%c2_32, %c0_33, %c0_34] : memref<3x48x64xf32, #tpu.memory_space<vmem>>, vector<1x48x64xf32>
    %31 = vector.shape_cast %30 : vector<1x48x64xf32> to vector<48x64xf32>
    %cst_35 = arith.constant dense<0.000000e+00> : vector<8x64xf32>
    %32 = tpu.matmul %9, %31, %cst_35 {dimension_numbers = #tpu.dot_dimension_numbers<[1], [0], [0], [1], [0, 0, 1, 1], [], []>} : vector<8x48xf32>, vector<48x64xf32>, vector<8x64xf32> -> vector<8x64xf32>
    %33 = arith.addf %29, %32 : vector<8x64xf32>
    %c0_36 = arith.constant 0 : index
    %c0_37 = arith.constant 0 : index
    %34 = vector.load %arg7[%c0_36, %c0_37] : memref<8x64xf32, #tpu.memory_space<vmem>>, vector<8x64xf32>
    %35 = arith.addf %33, %34 : vector<8x64xf32>
    %cst_38 = arith.constant 0.000000e+00 : f32
    %36 = vector.broadcast %cst_38 : f32 to vector<8x64xf32>
    %37 = arith.maximumf %22, %36 : vector<8x64xf32>
    %c0_39 = arith.constant 0 : index
    %c0_40 = arith.constant 0 : index
    %c0_41 = arith.constant 0 : index
    %38 = vector.load %arg3[%c0_39, %c0_40, %c0_41] : memref<3x8x8xf32, #tpu.memory_space<vmem>>, vector<1x8x8xf32>
    %39 = vector.shape_cast %38 : vector<1x8x8xf32> to vector<8x8xf32>
    %cst_42 = arith.constant dense<0.000000e+00> : vector<8x64xf32>
    %40 = tpu.matmul %39, %37, %cst_42 {dimension_numbers = #tpu.dot_dimension_numbers<[1], [0], [0], [1], [0, 0, 1, 1], [], []>} : vector<8x8xf32>, vector<8x64xf32>, vector<8x64xf32> -> vector<8x64xf32>
    %c2_43 = arith.constant 2 : index
    %c0_44 = arith.constant 0 : index
    %c0_45 = arith.constant 0 : index
    %41 = vector.load %arg3[%c2_43, %c0_44, %c0_45] : memref<3x8x8xf32, #tpu.memory_space<vmem>>, vector<1x8x8xf32>
    %42 = vector.shape_cast %41 : vector<1x8x8xf32> to vector<8x8xf32>
    %cst_46 = arith.constant dense<0.000000e+00> : vector<8x64xf32>
    %43 = tpu.matmul %42, %37, %cst_46 {dimension_numbers = #tpu.dot_dimension_numbers<[1], [0], [0], [1], [0, 0, 1, 1], [], []>} : vector<8x8xf32>, vector<8x64xf32>, vector<8x64xf32> -> vector<8x64xf32>
    %c0_47 = arith.constant 0 : index
    %c0_48 = arith.constant 0 : index
    %c0_49 = arith.constant 0 : index
    %44 = vector.load %arg8[%c0_47, %c0_48, %c0_49] : memref<3x64x64xf32, #tpu.memory_space<vmem>>, vector<1x64x64xf32>
    %45 = vector.shape_cast %44 : vector<1x64x64xf32> to vector<64x64xf32>
    %cst_50 = arith.constant dense<0.000000e+00> : vector<8x64xf32>
    %46 = tpu.matmul %40, %45, %cst_50 {dimension_numbers = #tpu.dot_dimension_numbers<[1], [0], [0], [1], [0, 0, 1, 1], [], []>} : vector<8x64xf32>, vector<64x64xf32>, vector<8x64xf32> -> vector<8x64xf32>
    %c1_51 = arith.constant 1 : index
    %c0_52 = arith.constant 0 : index
    %c0_53 = arith.constant 0 : index
    %47 = vector.load %arg8[%c1_51, %c0_52, %c0_53] : memref<3x64x64xf32, #tpu.memory_space<vmem>>, vector<1x64x64xf32>
    %48 = vector.shape_cast %47 : vector<1x64x64xf32> to vector<64x64xf32>
    %cst_54 = arith.constant dense<0.000000e+00> : vector<8x64xf32>
    %49 = tpu.matmul %37, %48, %cst_54 {dimension_numbers = #tpu.dot_dimension_numbers<[1], [0], [0], [1], [0, 0, 1, 1], [], []>} : vector<8x64xf32>, vector<64x64xf32>, vector<8x64xf32> -> vector<8x64xf32>
    %50 = arith.addf %46, %49 : vector<8x64xf32>
    %c2_55 = arith.constant 2 : index
    %c0_56 = arith.constant 0 : index
    %c0_57 = arith.constant 0 : index
    %51 = vector.load %arg8[%c2_55, %c0_56, %c0_57] : memref<3x64x64xf32, #tpu.memory_space<vmem>>, vector<1x64x64xf32>
    %52 = vector.shape_cast %51 : vector<1x64x64xf32> to vector<64x64xf32>
    %cst_58 = arith.constant dense<0.000000e+00> : vector<8x64xf32>
    %53 = tpu.matmul %43, %52, %cst_58 {dimension_numbers = #tpu.dot_dimension_numbers<[1], [0], [0], [1], [0, 0, 1, 1], [], []>} : vector<8x64xf32>, vector<64x64xf32>, vector<8x64xf32> -> vector<8x64xf32>
    %54 = arith.addf %50, %53 : vector<8x64xf32>
    %c0_59 = arith.constant 0 : index
    %c0_60 = arith.constant 0 : index
    %55 = vector.load %arg9[%c0_59, %c0_60] : memref<8x64xf32, #tpu.memory_space<vmem>>, vector<8x64xf32>
    %56 = arith.addf %54, %55 : vector<8x64xf32>
    %57 = arith.addf %56, %35 : vector<8x64xf32>
    %cst_61 = arith.constant 0.000000e+00 : f32
    %58 = vector.broadcast %cst_61 : f32 to vector<8x64xf32>
    %59 = arith.maximumf %57, %58 : vector<8x64xf32>
    %c0_62 = arith.constant 0 : index
    %c0_63 = arith.constant 0 : index
    %60 = vector.load %arg10[%c0_62, %c0_63] : memref<8x64xf32, #tpu.memory_space<vmem>>, vector<8x64xf32>
    tpu.vector_store %arg10[%c0_62, %c0_63], %59 {strides = array<i32>} : memref<8x64xf32, #tpu.memory_space<vmem>>, vector<8x64xf32>,
    return
  }
  func.func @transform_0(%arg0: i32) -> (i32, i32) {
    %c0_i32 = arith.constant 0 : i32
    %c0_i32_0 = arith.constant 0 : i32
    %c0_i32_1 = arith.constant 0 : i32
    return %c0_i32, %c0_i32_0 : i32, i32
  }
  func.func @transform_1(%arg0: i32) -> (i32, i32, i32) {
    %c0_i32 = arith.constant 0 : i32
    %c0_i32_0 = arith.constant 0 : i32
    %c0_i32_1 = arith.constant 0 : i32
    %c0_i32_2 = arith.constant 0 : i32
    return %c0_i32, %c0_i32_0, %c0_i32_1 : i32, i32, i32
  }
  func.func @transform_2(%arg0: i32) -> (i32, i32, i32) {
    %c0_i32 = arith.constant 0 : i32
    %c0_i32_0 = arith.constant 0 : i32
    %c0_i32_1 = arith.constant 0 : i32
    %c0_i32_2 = arith.constant 0 : i32
    return %c0_i32, %c0_i32_0, %c0_i32_1 : i32, i32, i32
  }
  func.func @transform_3(%arg0: i32) -> (i32, i32, i32) {
    %c0_i32 = arith.constant 0 : i32
    %c0_i32_0 = arith.constant 0 : i32
    %c0_i32_1 = arith.constant 0 : i32
    %c0_i32_2 = arith.constant 0 : i32
    return %c0_i32, %c0_i32_0, %c0_i32_1 : i32, i32, i32
  }
  func.func @transform_4(%arg0: i32) -> (i32, i32) {
    %c0_i32 = arith.constant 0 : i32
    %c0_i32_0 = arith.constant 0 : i32
    %c0_i32_1 = arith.constant 0 : i32
    return %c0_i32, %c0_i32_0 : i32, i32
  }
  func.func @transform_5(%arg0: i32) -> (i32, i32, i32) {
    %c0_i32 = arith.constant 0 : i32
    %c0_i32_0 = arith.constant 0 : i32
    %c0_i32_1 = arith.constant 0 : i32
    %c0_i32_2 = arith.constant 0 : i32
    return %c0_i32, %c0_i32_0, %c0_i32_1 : i32, i32, i32
  }
  func.func @transform_6(%arg0: i32) -> (i32, i32) {
    %c0_i32 = arith.constant 0 : i32
    %c0_i32_0 = arith.constant 0 : i32
    %c0_i32_1 = arith.constant 0 : i32
    return %c0_i32, %c0_i32_0 : i32, i32
  }
  func.func @transform_7(%arg0: i32) -> (i32, i32, i32) {
    %c0_i32 = arith.constant 0 : i32
    %c0_i32_0 = arith.constant 0 : i32
    %c0_i32_1 = arith.constant 0 : i32
    %c0_i32_2 = arith.constant 0 : i32
    return %c0_i32, %c0_i32_0, %c0_i32_1 : i32, i32, i32
  }
  func.func @transform_8(%arg0: i32) -> (i32, i32) {
    %c0_i32 = arith.constant 0 : i32
    %c0_i32_0 = arith.constant 0 : i32
    %c0_i32_1 = arith.constant 0 : i32
    return %c0_i32, %c0_i32_0 : i32, i32
  }
  func.func @transform_9(%arg0: i32) -> (i32, i32) {
    %c0_i32 = arith.constant 0 : i32
    %c0_i32_0 = arith.constant 0 : i32
    %c0_i32_1 = arith.constant 0 : i32
    return %c0_i32, %c0_i32_0 : i32, i32
  }
}

module attributes {stable_mosaic.version = 11 : i64} {
  func.func @_resblock_kernel(%arg0: i32, %arg1: memref<8x32xf32, #tpu.memory_space<vmem>>, %arg2: memref<3x8x8xf32, #tpu.memory_space<vmem>>, %arg3: memref<3x8x8xf32, #tpu.memory_space<vmem>>, %arg4: memref<3x32x32xf32, #tpu.memory_space<vmem>>, %arg5: memref<8x32xf32, #tpu.memory_space<vmem>>, %arg6: memref<3x32x32xf32, #tpu.memory_space<vmem>>, %arg7: memref<8x32xf32, #tpu.memory_space<vmem>>, %arg8: memref<3x32x32xf32, #tpu.memory_space<vmem>>, %arg9: memref<8x32xf32, #tpu.memory_space<vmem>>, %arg10: memref<8x32xf32, #tpu.memory_space<vmem>>) attributes {dimension_semantics = [#tpu.dimension_semantics<arbitrary>], iteration_bounds = array<i64: 1>, scalar_prefetch = 0 : i64, scratch_operands = 0 : i64, tpu.core_type = #tpu.core_type<tc>, window_params = [{pipeline_mode = #tpu.pipeline_mode<synchronous>, transform_indices = @transform_0, window_bounds = array<i64: 8, 32>}, {pipeline_mode = #tpu.pipeline_mode<synchronous>, transform_indices = @transform_1, window_bounds = array<i64: 3, 8, 8>}, {pipeline_mode = #tpu.pipeline_mode<synchronous>, transform_indices = @transform_2, window_bounds = array<i64: 3, 8, 8>}, {pipeline_mode = #tpu.pipeline_mode<synchronous>, transform_indices = @transform_3, window_bounds = array<i64: 3, 32, 32>}, {pipeline_mode = #tpu.pipeline_mode<synchronous>, transform_indices = @transform_4, window_bounds = array<i64: 8, 32>}, {pipeline_mode = #tpu.pipeline_mode<synchronous>, transform_indices = @transform_5, window_bounds = array<i64: 3, 32, 32>}, {pipeline_mode = #tpu.pipeline_mode<synchronous>, transform_indices = @transform_6, window_bounds = array<i64: 8, 32>}, {pipeline_mode = #tpu.pipeline_mode<synchronous>, transform_indices = @transform_7, window_bounds = array<i64: 3, 32, 32>}, {pipeline_mode = #tpu.pipeline_mode<synchronous>, transform_indices = @transform_8, window_bounds = array<i64: 8, 32>}, {pipeline_mode = #tpu.pipeline_mode<synchronous>, transform_indices = @transform_9, window_bounds = array<i64: 8, 32>}]} {
    %c0 = arith.constant 0 : index
    %c0_0 = arith.constant 0 : index
    %0 = vector.load %arg1[%c0, %c0_0] : memref<8x32xf32, #tpu.memory_space<vmem>>, vector<8x32xf32>
    %c0_1 = arith.constant 0 : index
    %c0_2 = arith.constant 0 : index
    %c0_3 = arith.constant 0 : index
    %1 = vector.load %arg2[%c0_1, %c0_2, %c0_3] : memref<3x8x8xf32, #tpu.memory_space<vmem>>, vector<1x8x8xf32>
    %2 = vector.shape_cast %1 : vector<1x8x8xf32> to vector<8x8xf32>
    %cst = arith.constant dense<0.000000e+00> : vector<8x32xf32>
    %3 = tpu.matmul %2, %0, %cst {dimension_numbers = #tpu.dot_dimension_numbers<[1], [0], [0], [1], [0, 0, 1, 1], [], []>} : vector<8x8xf32>, vector<8x32xf32>, vector<8x32xf32> -> vector<8x32xf32>
    %c1 = arith.constant 1 : index
    %c0_4 = arith.constant 0 : index
    %c0_5 = arith.constant 0 : index
    %4 = vector.load %arg2[%c1, %c0_4, %c0_5] : memref<3x8x8xf32, #tpu.memory_space<vmem>>, vector<1x8x8xf32>
    %5 = vector.shape_cast %4 : vector<1x8x8xf32> to vector<8x8xf32>
    %cst_6 = arith.constant dense<0.000000e+00> : vector<8x32xf32>
    %6 = tpu.matmul %5, %0, %cst_6 {dimension_numbers = #tpu.dot_dimension_numbers<[1], [0], [0], [1], [0, 0, 1, 1], [], []>} : vector<8x8xf32>, vector<8x32xf32>, vector<8x32xf32> -> vector<8x32xf32>
    %c2 = arith.constant 2 : index
    %c0_7 = arith.constant 0 : index
    %c0_8 = arith.constant 0 : index
    %7 = vector.load %arg2[%c2, %c0_7, %c0_8] : memref<3x8x8xf32, #tpu.memory_space<vmem>>, vector<1x8x8xf32>
    %8 = vector.shape_cast %7 : vector<1x8x8xf32> to vector<8x8xf32>
    %cst_9 = arith.constant dense<0.000000e+00> : vector<8x32xf32>
    %9 = tpu.matmul %8, %0, %cst_9 {dimension_numbers = #tpu.dot_dimension_numbers<[1], [0], [0], [1], [0, 0, 1, 1], [], []>} : vector<8x8xf32>, vector<8x32xf32>, vector<8x32xf32> -> vector<8x32xf32>
    %c0_10 = arith.constant 0 : index
    %c0_11 = arith.constant 0 : index
    %c0_12 = arith.constant 0 : index
    %10 = vector.load %arg4[%c0_10, %c0_11, %c0_12] : memref<3x32x32xf32, #tpu.memory_space<vmem>>, vector<1x32x32xf32>
    %11 = vector.shape_cast %10 : vector<1x32x32xf32> to vector<32x32xf32>
    %cst_13 = arith.constant dense<0.000000e+00> : vector<8x32xf32>
    %12 = tpu.matmul %3, %11, %cst_13 {dimension_numbers = #tpu.dot_dimension_numbers<[1], [0], [0], [1], [0, 0, 1, 1], [], []>} : vector<8x32xf32>, vector<32x32xf32>, vector<8x32xf32> -> vector<8x32xf32>
    %c1_14 = arith.constant 1 : index
    %c0_15 = arith.constant 0 : index
    %c0_16 = arith.constant 0 : index
    %13 = vector.load %arg4[%c1_14, %c0_15, %c0_16] : memref<3x32x32xf32, #tpu.memory_space<vmem>>, vector<1x32x32xf32>
    %14 = vector.shape_cast %13 : vector<1x32x32xf32> to vector<32x32xf32>
    %cst_17 = arith.constant dense<0.000000e+00> : vector<8x32xf32>
    %15 = tpu.matmul %6, %14, %cst_17 {dimension_numbers = #tpu.dot_dimension_numbers<[1], [0], [0], [1], [0, 0, 1, 1], [], []>} : vector<8x32xf32>, vector<32x32xf32>, vector<8x32xf32> -> vector<8x32xf32>
    %16 = arith.addf %12, %15 : vector<8x32xf32>
    %c2_18 = arith.constant 2 : index
    %c0_19 = arith.constant 0 : index
    %c0_20 = arith.constant 0 : index
    %17 = vector.load %arg4[%c2_18, %c0_19, %c0_20] : memref<3x32x32xf32, #tpu.memory_space<vmem>>, vector<1x32x32xf32>
    %18 = vector.shape_cast %17 : vector<1x32x32xf32> to vector<32x32xf32>
    %cst_21 = arith.constant dense<0.000000e+00> : vector<8x32xf32>
    %19 = tpu.matmul %9, %18, %cst_21 {dimension_numbers = #tpu.dot_dimension_numbers<[1], [0], [0], [1], [0, 0, 1, 1], [], []>} : vector<8x32xf32>, vector<32x32xf32>, vector<8x32xf32> -> vector<8x32xf32>
    %20 = arith.addf %16, %19 : vector<8x32xf32>
    %c0_22 = arith.constant 0 : index
    %c0_23 = arith.constant 0 : index
    %21 = vector.load %arg5[%c0_22, %c0_23] : memref<8x32xf32, #tpu.memory_space<vmem>>, vector<8x32xf32>
    %22 = arith.addf %20, %21 : vector<8x32xf32>
    %c0_24 = arith.constant 0 : index
    %c0_25 = arith.constant 0 : index
    %c0_26 = arith.constant 0 : index
    %23 = vector.load %arg6[%c0_24, %c0_25, %c0_26] : memref<3x32x32xf32, #tpu.memory_space<vmem>>, vector<1x32x32xf32>
    %24 = vector.shape_cast %23 : vector<1x32x32xf32> to vector<32x32xf32>
    %cst_27 = arith.constant dense<0.000000e+00> : vector<8x32xf32>
    %25 = tpu.matmul %3, %24, %cst_27 {dimension_numbers = #tpu.dot_dimension_numbers<[1], [0], [0], [1], [0, 0, 1, 1], [], []>} : vector<8x32xf32>, vector<32x32xf32>, vector<8x32xf32> -> vector<8x32xf32>
    %c1_28 = arith.constant 1 : index
    %c0_29 = arith.constant 0 : index
    %c0_30 = arith.constant 0 : index
    %26 = vector.load %arg6[%c1_28, %c0_29, %c0_30] : memref<3x32x32xf32, #tpu.memory_space<vmem>>, vector<1x32x32xf32>
    %27 = vector.shape_cast %26 : vector<1x32x32xf32> to vector<32x32xf32>
    %cst_31 = arith.constant dense<0.000000e+00> : vector<8x32xf32>
    %28 = tpu.matmul %6, %27, %cst_31 {dimension_numbers = #tpu.dot_dimension_numbers<[1], [0], [0], [1], [0, 0, 1, 1], [], []>} : vector<8x32xf32>, vector<32x32xf32>, vector<8x32xf32> -> vector<8x32xf32>
    %29 = arith.addf %25, %28 : vector<8x32xf32>
    %c2_32 = arith.constant 2 : index
    %c0_33 = arith.constant 0 : index
    %c0_34 = arith.constant 0 : index
    %30 = vector.load %arg6[%c2_32, %c0_33, %c0_34] : memref<3x32x32xf32, #tpu.memory_space<vmem>>, vector<1x32x32xf32>
    %31 = vector.shape_cast %30 : vector<1x32x32xf32> to vector<32x32xf32>
    %cst_35 = arith.constant dense<0.000000e+00> : vector<8x32xf32>
    %32 = tpu.matmul %9, %31, %cst_35 {dimension_numbers = #tpu.dot_dimension_numbers<[1], [0], [0], [1], [0, 0, 1, 1], [], []>} : vector<8x32xf32>, vector<32x32xf32>, vector<8x32xf32> -> vector<8x32xf32>
    %33 = arith.addf %29, %32 : vector<8x32xf32>
    %c0_36 = arith.constant 0 : index
    %c0_37 = arith.constant 0 : index
    %34 = vector.load %arg7[%c0_36, %c0_37] : memref<8x32xf32, #tpu.memory_space<vmem>>, vector<8x32xf32>
    %35 = arith.addf %33, %34 : vector<8x32xf32>
    %cst_38 = arith.constant 0.000000e+00 : f32
    %36 = vector.broadcast %cst_38 : f32 to vector<8x32xf32>
    %37 = arith.maximumf %22, %36 : vector<8x32xf32>
    %c0_39 = arith.constant 0 : index
    %c0_40 = arith.constant 0 : index
    %c0_41 = arith.constant 0 : index
    %38 = vector.load %arg3[%c0_39, %c0_40, %c0_41] : memref<3x8x8xf32, #tpu.memory_space<vmem>>, vector<1x8x8xf32>
    %39 = vector.shape_cast %38 : vector<1x8x8xf32> to vector<8x8xf32>
    %cst_42 = arith.constant dense<0.000000e+00> : vector<8x32xf32>
    %40 = tpu.matmul %39, %37, %cst_42 {dimension_numbers = #tpu.dot_dimension_numbers<[1], [0], [0], [1], [0, 0, 1, 1], [], []>} : vector<8x8xf32>, vector<8x32xf32>, vector<8x32xf32> -> vector<8x32xf32>
    %c2_43 = arith.constant 2 : index
    %c0_44 = arith.constant 0 : index
    %c0_45 = arith.constant 0 : index
    %41 = vector.load %arg3[%c2_43, %c0_44, %c0_45] : memref<3x8x8xf32, #tpu.memory_space<vmem>>, vector<1x8x8xf32>
    %42 = vector.shape_cast %41 : vector<1x8x8xf32> to vector<8x8xf32>
    %cst_46 = arith.constant dense<0.000000e+00> : vector<8x32xf32>
    %43 = tpu.matmul %42, %37, %cst_46 {dimension_numbers = #tpu.dot_dimension_numbers<[1], [0], [0], [1], [0, 0, 1, 1], [], []>} : vector<8x8xf32>, vector<8x32xf32>, vector<8x32xf32> -> vector<8x32xf32>
    %c0_47 = arith.constant 0 : index
    %c0_48 = arith.constant 0 : index
    %c0_49 = arith.constant 0 : index
    %44 = vector.load %arg8[%c0_47, %c0_48, %c0_49] : memref<3x32x32xf32, #tpu.memory_space<vmem>>, vector<1x32x32xf32>
    %45 = vector.shape_cast %44 : vector<1x32x32xf32> to vector<32x32xf32>
    %cst_50 = arith.constant dense<0.000000e+00> : vector<8x32xf32>
    %46 = tpu.matmul %40, %45, %cst_50 {dimension_numbers = #tpu.dot_dimension_numbers<[1], [0], [0], [1], [0, 0, 1, 1], [], []>} : vector<8x32xf32>, vector<32x32xf32>, vector<8x32xf32> -> vector<8x32xf32>
    %c1_51 = arith.constant 1 : index
    %c0_52 = arith.constant 0 : index
    %c0_53 = arith.constant 0 : index
    %47 = vector.load %arg8[%c1_51, %c0_52, %c0_53] : memref<3x32x32xf32, #tpu.memory_space<vmem>>, vector<1x32x32xf32>
    %48 = vector.shape_cast %47 : vector<1x32x32xf32> to vector<32x32xf32>
    %cst_54 = arith.constant dense<0.000000e+00> : vector<8x32xf32>
    %49 = tpu.matmul %37, %48, %cst_54 {dimension_numbers = #tpu.dot_dimension_numbers<[1], [0], [0], [1], [0, 0, 1, 1], [], []>} : vector<8x32xf32>, vector<32x32xf32>, vector<8x32xf32> -> vector<8x32xf32>
    %50 = arith.addf %46, %49 : vector<8x32xf32>
    %c2_55 = arith.constant 2 : index
    %c0_56 = arith.constant 0 : index
    %c0_57 = arith.constant 0 : index
    %51 = vector.load %arg8[%c2_55, %c0_56, %c0_57] : memref<3x32x32xf32, #tpu.memory_space<vmem>>, vector<1x32x32xf32>
    %52 = vector.shape_cast %51 : vector<1x32x32xf32> to vector<32x32xf32>
    %cst_58 = arith.constant dense<0.000000e+00> : vector<8x32xf32>
    %53 = tpu.matmul %43, %52, %cst_58 {dimension_numbers = #tpu.dot_dimension_numbers<[1], [0], [0], [1], [0, 0, 1, 1], [], []>} : vector<8x32xf32>, vector<32x32xf32>, vector<8x32xf32> -> vector<8x32xf32>
    %54 = arith.addf %50, %53 : vector<8x32xf32>
    %c0_59 = arith.constant 0 : index
    %c0_60 = arith.constant 0 : index
    %55 = vector.load %arg9[%c0_59, %c0_60] : memref<8x32xf32, #tpu.memory_space<vmem>>, vector<8x32xf32>
    %56 = arith.addf %54, %55 : vector<8x32xf32>
    %57 = arith.addf %56, %35 : vector<8x32xf32>
    %cst_61 = arith.constant 0.000000e+00 : f32
    %58 = vector.broadcast %cst_61 : f32 to vector<8x32xf32>
    %59 = arith.maximumf %57, %58 : vector<8x32xf32>
    %c0_62 = arith.constant 0 : index
    %c0_63 = arith.constant 0 : index
    %60 = vector.load %arg10[%c0_62, %c0_63] : memref<8x32xf32, #tpu.memory_space<vmem>>, vector<8x32xf32>
    tpu.vector_store %arg10[%c0_62, %c0_63], %59 {strides = array<i32>} : memref<8x32xf32, #tpu.memory_space<vmem>>, vector<8x32xf32>,
    return
  }
  func.func @transform_0(%arg0: i32) -> (i32, i32) {
    %c0_i32 = arith.constant 0 : i32
    %c0_i32_0 = arith.constant 0 : i32
    %c0_i32_1 = arith.constant 0 : i32
    return %c0_i32, %c0_i32_0 : i32, i32
  }
  func.func @transform_1(%arg0: i32) -> (i32, i32, i32) {
    %c0_i32 = arith.constant 0 : i32
    %c0_i32_0 = arith.constant 0 : i32
    %c0_i32_1 = arith.constant 0 : i32
    %c0_i32_2 = arith.constant 0 : i32
    return %c0_i32, %c0_i32_0, %c0_i32_1 : i32, i32, i32
  }
  func.func @transform_2(%arg0: i32) -> (i32, i32, i32) {
    %c0_i32 = arith.constant 0 : i32
    %c0_i32_0 = arith.constant 0 : i32
    %c0_i32_1 = arith.constant 0 : i32
    %c0_i32_2 = arith.constant 0 : i32
    return %c0_i32, %c0_i32_0, %c0_i32_1 : i32, i32, i32
  }
  func.func @transform_3(%arg0: i32) -> (i32, i32, i32) {
    %c0_i32 = arith.constant 0 : i32
    %c0_i32_0 = arith.constant 0 : i32
    %c0_i32_1 = arith.constant 0 : i32
    %c0_i32_2 = arith.constant 0 : i32
    return %c0_i32, %c0_i32_0, %c0_i32_1 : i32, i32, i32
  }
  func.func @transform_4(%arg0: i32) -> (i32, i32) {
    %c0_i32 = arith.constant 0 : i32
    %c0_i32_0 = arith.constant 0 : i32
    %c0_i32_1 = arith.constant 0 : i32
    return %c0_i32, %c0_i32_0 : i32, i32
  }
  func.func @transform_5(%arg0: i32) -> (i32, i32, i32) {
    %c0_i32 = arith.constant 0 : i32
    %c0_i32_0 = arith.constant 0 : i32
    %c0_i32_1 = arith.constant 0 : i32
    %c0_i32_2 = arith.constant 0 : i32
    return %c0_i32, %c0_i32_0, %c0_i32_1 : i32, i32, i32
  }
  func.func @transform_6(%arg0: i32) -> (i32, i32) {
    %c0_i32 = arith.constant 0 : i32
    %c0_i32_0 = arith.constant 0 : i32
    %c0_i32_1 = arith.constant 0 : i32
    return %c0_i32, %c0_i32_0 : i32, i32
  }
  func.func @transform_7(%arg0: i32) -> (i32, i32, i32) {
    %c0_i32 = arith.constant 0 : i32
    %c0_i32_0 = arith.constant 0 : i32
    %c0_i32_1 = arith.constant 0 : i32
    %c0_i32_2 = arith.constant 0 : i32
    return %c0_i32, %c0_i32_0, %c0_i32_1 : i32, i32, i32
  }
  func.func @transform_8(%arg0: i32) -> (i32, i32) {
    %c0_i32 = arith.constant 0 : i32
    %c0_i32_0 = arith.constant 0 : i32
    %c0_i32_1 = arith.constant 0 : i32
    return %c0_i32, %c0_i32_0 : i32, i32
  }
  func.func @transform_9(%arg0: i32) -> (i32, i32) {
    %c0_i32 = arith.constant 0 : i32
    %c0_i32_0 = arith.constant 0 : i32
    %c0_i32_1 = arith.constant 0 : i32
    return %c0_i32, %c0_i32_0 : i32, i32
  }
}

module attributes {stable_mosaic.version = 11 : i64} {
  func.func @_resblock_kernel(%arg0: i32, %arg1: memref<8x32xf32, #tpu.memory_space<vmem>>, %arg2: memref<3x8x8xf32, #tpu.memory_space<vmem>>, %arg3: memref<3x8x8xf32, #tpu.memory_space<vmem>>, %arg4: memref<3x32x64xf32, #tpu.memory_space<vmem>>, %arg5: memref<8x64xf32, #tpu.memory_space<vmem>>, %arg6: memref<3x32x64xf32, #tpu.memory_space<vmem>>, %arg7: memref<8x64xf32, #tpu.memory_space<vmem>>, %arg8: memref<3x64x64xf32, #tpu.memory_space<vmem>>, %arg9: memref<8x64xf32, #tpu.memory_space<vmem>>, %arg10: memref<8x64xf32, #tpu.memory_space<vmem>>) attributes {dimension_semantics = [#tpu.dimension_semantics<arbitrary>], iteration_bounds = array<i64: 1>, scalar_prefetch = 0 : i64, scratch_operands = 0 : i64, tpu.core_type = #tpu.core_type<tc>, window_params = [{pipeline_mode = #tpu.pipeline_mode<synchronous>, transform_indices = @transform_0, window_bounds = array<i64: 8, 32>}, {pipeline_mode = #tpu.pipeline_mode<synchronous>, transform_indices = @transform_1, window_bounds = array<i64: 3, 8, 8>}, {pipeline_mode = #tpu.pipeline_mode<synchronous>, transform_indices = @transform_2, window_bounds = array<i64: 3, 8, 8>}, {pipeline_mode = #tpu.pipeline_mode<synchronous>, transform_indices = @transform_3, window_bounds = array<i64: 3, 32, 64>}, {pipeline_mode = #tpu.pipeline_mode<synchronous>, transform_indices = @transform_4, window_bounds = array<i64: 8, 64>}, {pipeline_mode = #tpu.pipeline_mode<synchronous>, transform_indices = @transform_5, window_bounds = array<i64: 3, 32, 64>}, {pipeline_mode = #tpu.pipeline_mode<synchronous>, transform_indices = @transform_6, window_bounds = array<i64: 8, 64>}, {pipeline_mode = #tpu.pipeline_mode<synchronous>, transform_indices = @transform_7, window_bounds = array<i64: 3, 64, 64>}, {pipeline_mode = #tpu.pipeline_mode<synchronous>, transform_indices = @transform_8, window_bounds = array<i64: 8, 64>}, {pipeline_mode = #tpu.pipeline_mode<synchronous>, transform_indices = @transform_9, window_bounds = array<i64: 8, 64>}]} {
    %c0 = arith.constant 0 : index
    %c0_0 = arith.constant 0 : index
    %0 = vector.load %arg1[%c0, %c0_0] : memref<8x32xf32, #tpu.memory_space<vmem>>, vector<8x32xf32>
    %c0_1 = arith.constant 0 : index
    %c0_2 = arith.constant 0 : index
    %c0_3 = arith.constant 0 : index
    %1 = vector.load %arg2[%c0_1, %c0_2, %c0_3] : memref<3x8x8xf32, #tpu.memory_space<vmem>>, vector<1x8x8xf32>
    %2 = vector.shape_cast %1 : vector<1x8x8xf32> to vector<8x8xf32>
    %cst = arith.constant dense<0.000000e+00> : vector<8x32xf32>
    %3 = tpu.matmul %2, %0, %cst {dimension_numbers = #tpu.dot_dimension_numbers<[1], [0], [0], [1], [0, 0, 1, 1], [], []>} : vector<8x8xf32>, vector<8x32xf32>, vector<8x32xf32> -> vector<8x32xf32>
    %c1 = arith.constant 1 : index
    %c0_4 = arith.constant 0 : index
    %c0_5 = arith.constant 0 : index
    %4 = vector.load %arg2[%c1, %c0_4, %c0_5] : memref<3x8x8xf32, #tpu.memory_space<vmem>>, vector<1x8x8xf32>
    %5 = vector.shape_cast %4 : vector<1x8x8xf32> to vector<8x8xf32>
    %cst_6 = arith.constant dense<0.000000e+00> : vector<8x32xf32>
    %6 = tpu.matmul %5, %0, %cst_6 {dimension_numbers = #tpu.dot_dimension_numbers<[1], [0], [0], [1], [0, 0, 1, 1], [], []>} : vector<8x8xf32>, vector<8x32xf32>, vector<8x32xf32> -> vector<8x32xf32>
    %c2 = arith.constant 2 : index
    %c0_7 = arith.constant 0 : index
    %c0_8 = arith.constant 0 : index
    %7 = vector.load %arg2[%c2, %c0_7, %c0_8] : memref<3x8x8xf32, #tpu.memory_space<vmem>>, vector<1x8x8xf32>
    %8 = vector.shape_cast %7 : vector<1x8x8xf32> to vector<8x8xf32>
    %cst_9 = arith.constant dense<0.000000e+00> : vector<8x32xf32>
    %9 = tpu.matmul %8, %0, %cst_9 {dimension_numbers = #tpu.dot_dimension_numbers<[1], [0], [0], [1], [0, 0, 1, 1], [], []>} : vector<8x8xf32>, vector<8x32xf32>, vector<8x32xf32> -> vector<8x32xf32>
    %c0_10 = arith.constant 0 : index
    %c0_11 = arith.constant 0 : index
    %c0_12 = arith.constant 0 : index
    %10 = vector.load %arg4[%c0_10, %c0_11, %c0_12] : memref<3x32x64xf32, #tpu.memory_space<vmem>>, vector<1x32x64xf32>
    %11 = vector.shape_cast %10 : vector<1x32x64xf32> to vector<32x64xf32>
    %cst_13 = arith.constant dense<0.000000e+00> : vector<8x64xf32>
    %12 = tpu.matmul %3, %11, %cst_13 {dimension_numbers = #tpu.dot_dimension_numbers<[1], [0], [0], [1], [0, 0, 1, 1], [], []>} : vector<8x32xf32>, vector<32x64xf32>, vector<8x64xf32> -> vector<8x64xf32>
    %c1_14 = arith.constant 1 : index
    %c0_15 = arith.constant 0 : index
    %c0_16 = arith.constant 0 : index
    %13 = vector.load %arg4[%c1_14, %c0_15, %c0_16] : memref<3x32x64xf32, #tpu.memory_space<vmem>>, vector<1x32x64xf32>
    %14 = vector.shape_cast %13 : vector<1x32x64xf32> to vector<32x64xf32>
    %cst_17 = arith.constant dense<0.000000e+00> : vector<8x64xf32>
    %15 = tpu.matmul %6, %14, %cst_17 {dimension_numbers = #tpu.dot_dimension_numbers<[1], [0], [0], [1], [0, 0, 1, 1], [], []>} : vector<8x32xf32>, vector<32x64xf32>, vector<8x64xf32> -> vector<8x64xf32>
    %16 = arith.addf %12, %15 : vector<8x64xf32>
    %c2_18 = arith.constant 2 : index
    %c0_19 = arith.constant 0 : index
    %c0_20 = arith.constant 0 : index
    %17 = vector.load %arg4[%c2_18, %c0_19, %c0_20] : memref<3x32x64xf32, #tpu.memory_space<vmem>>, vector<1x32x64xf32>
    %18 = vector.shape_cast %17 : vector<1x32x64xf32> to vector<32x64xf32>
    %cst_21 = arith.constant dense<0.000000e+00> : vector<8x64xf32>
    %19 = tpu.matmul %9, %18, %cst_21 {dimension_numbers = #tpu.dot_dimension_numbers<[1], [0], [0], [1], [0, 0, 1, 1], [], []>} : vector<8x32xf32>, vector<32x64xf32>, vector<8x64xf32> -> vector<8x64xf32>
    %20 = arith.addf %16, %19 : vector<8x64xf32>
    %c0_22 = arith.constant 0 : index
    %c0_23 = arith.constant 0 : index
    %21 = vector.load %arg5[%c0_22, %c0_23] : memref<8x64xf32, #tpu.memory_space<vmem>>, vector<8x64xf32>
    %22 = arith.addf %20, %21 : vector<8x64xf32>
    %c0_24 = arith.constant 0 : index
    %c0_25 = arith.constant 0 : index
    %c0_26 = arith.constant 0 : index
    %23 = vector.load %arg6[%c0_24, %c0_25, %c0_26] : memref<3x32x64xf32, #tpu.memory_space<vmem>>, vector<1x32x64xf32>
    %24 = vector.shape_cast %23 : vector<1x32x64xf32> to vector<32x64xf32>
    %cst_27 = arith.constant dense<0.000000e+00> : vector<8x64xf32>
    %25 = tpu.matmul %3, %24, %cst_27 {dimension_numbers = #tpu.dot_dimension_numbers<[1], [0], [0], [1], [0, 0, 1, 1], [], []>} : vector<8x32xf32>, vector<32x64xf32>, vector<8x64xf32> -> vector<8x64xf32>
    %c1_28 = arith.constant 1 : index
    %c0_29 = arith.constant 0 : index
    %c0_30 = arith.constant 0 : index
    %26 = vector.load %arg6[%c1_28, %c0_29, %c0_30] : memref<3x32x64xf32, #tpu.memory_space<vmem>>, vector<1x32x64xf32>
    %27 = vector.shape_cast %26 : vector<1x32x64xf32> to vector<32x64xf32>
    %cst_31 = arith.constant dense<0.000000e+00> : vector<8x64xf32>
    %28 = tpu.matmul %6, %27, %cst_31 {dimension_numbers = #tpu.dot_dimension_numbers<[1], [0], [0], [1], [0, 0, 1, 1], [], []>} : vector<8x32xf32>, vector<32x64xf32>, vector<8x64xf32> -> vector<8x64xf32>
    %29 = arith.addf %25, %28 : vector<8x64xf32>
    %c2_32 = arith.constant 2 : index
    %c0_33 = arith.constant 0 : index
    %c0_34 = arith.constant 0 : index
    %30 = vector.load %arg6[%c2_32, %c0_33, %c0_34] : memref<3x32x64xf32, #tpu.memory_space<vmem>>, vector<1x32x64xf32>
    %31 = vector.shape_cast %30 : vector<1x32x64xf32> to vector<32x64xf32>
    %cst_35 = arith.constant dense<0.000000e+00> : vector<8x64xf32>
    %32 = tpu.matmul %9, %31, %cst_35 {dimension_numbers = #tpu.dot_dimension_numbers<[1], [0], [0], [1], [0, 0, 1, 1], [], []>} : vector<8x32xf32>, vector<32x64xf32>, vector<8x64xf32> -> vector<8x64xf32>
    %33 = arith.addf %29, %32 : vector<8x64xf32>
    %c0_36 = arith.constant 0 : index
    %c0_37 = arith.constant 0 : index
    %34 = vector.load %arg7[%c0_36, %c0_37] : memref<8x64xf32, #tpu.memory_space<vmem>>, vector<8x64xf32>
    %35 = arith.addf %33, %34 : vector<8x64xf32>
    %cst_38 = arith.constant 0.000000e+00 : f32
    %36 = vector.broadcast %cst_38 : f32 to vector<8x64xf32>
    %37 = arith.maximumf %22, %36 : vector<8x64xf32>
    %c0_39 = arith.constant 0 : index
    %c0_40 = arith.constant 0 : index
    %c0_41 = arith.constant 0 : index
    %38 = vector.load %arg3[%c0_39, %c0_40, %c0_41] : memref<3x8x8xf32, #tpu.memory_space<vmem>>, vector<1x8x8xf32>
    %39 = vector.shape_cast %38 : vector<1x8x8xf32> to vector<8x8xf32>
    %cst_42 = arith.constant dense<0.000000e+00> : vector<8x64xf32>
    %40 = tpu.matmul %39, %37, %cst_42 {dimension_numbers = #tpu.dot_dimension_numbers<[1], [0], [0], [1], [0, 0, 1, 1], [], []>} : vector<8x8xf32>, vector<8x64xf32>, vector<8x64xf32> -> vector<8x64xf32>
    %c2_43 = arith.constant 2 : index
    %c0_44 = arith.constant 0 : index
    %c0_45 = arith.constant 0 : index
    %41 = vector.load %arg3[%c2_43, %c0_44, %c0_45] : memref<3x8x8xf32, #tpu.memory_space<vmem>>, vector<1x8x8xf32>
    %42 = vector.shape_cast %41 : vector<1x8x8xf32> to vector<8x8xf32>
    %cst_46 = arith.constant dense<0.000000e+00> : vector<8x64xf32>
    %43 = tpu.matmul %42, %37, %cst_46 {dimension_numbers = #tpu.dot_dimension_numbers<[1], [0], [0], [1], [0, 0, 1, 1], [], []>} : vector<8x8xf32>, vector<8x64xf32>, vector<8x64xf32> -> vector<8x64xf32>
    %c0_47 = arith.constant 0 : index
    %c0_48 = arith.constant 0 : index
    %c0_49 = arith.constant 0 : index
    %44 = vector.load %arg8[%c0_47, %c0_48, %c0_49] : memref<3x64x64xf32, #tpu.memory_space<vmem>>, vector<1x64x64xf32>
    %45 = vector.shape_cast %44 : vector<1x64x64xf32> to vector<64x64xf32>
    %cst_50 = arith.constant dense<0.000000e+00> : vector<8x64xf32>
    %46 = tpu.matmul %40, %45, %cst_50 {dimension_numbers = #tpu.dot_dimension_numbers<[1], [0], [0], [1], [0, 0, 1, 1], [], []>} : vector<8x64xf32>, vector<64x64xf32>, vector<8x64xf32> -> vector<8x64xf32>
    %c1_51 = arith.constant 1 : index
    %c0_52 = arith.constant 0 : index
    %c0_53 = arith.constant 0 : index
    %47 = vector.load %arg8[%c1_51, %c0_52, %c0_53] : memref<3x64x64xf32, #tpu.memory_space<vmem>>, vector<1x64x64xf32>
    %48 = vector.shape_cast %47 : vector<1x64x64xf32> to vector<64x64xf32>
    %cst_54 = arith.constant dense<0.000000e+00> : vector<8x64xf32>
    %49 = tpu.matmul %37, %48, %cst_54 {dimension_numbers = #tpu.dot_dimension_numbers<[1], [0], [0], [1], [0, 0, 1, 1], [], []>} : vector<8x64xf32>, vector<64x64xf32>, vector<8x64xf32> -> vector<8x64xf32>
    %50 = arith.addf %46, %49 : vector<8x64xf32>
    %c2_55 = arith.constant 2 : index
    %c0_56 = arith.constant 0 : index
    %c0_57 = arith.constant 0 : index
    %51 = vector.load %arg8[%c2_55, %c0_56, %c0_57] : memref<3x64x64xf32, #tpu.memory_space<vmem>>, vector<1x64x64xf32>
    %52 = vector.shape_cast %51 : vector<1x64x64xf32> to vector<64x64xf32>
    %cst_58 = arith.constant dense<0.000000e+00> : vector<8x64xf32>
    %53 = tpu.matmul %43, %52, %cst_58 {dimension_numbers = #tpu.dot_dimension_numbers<[1], [0], [0], [1], [0, 0, 1, 1], [], []>} : vector<8x64xf32>, vector<64x64xf32>, vector<8x64xf32> -> vector<8x64xf32>
    %54 = arith.addf %50, %53 : vector<8x64xf32>
    %c0_59 = arith.constant 0 : index
    %c0_60 = arith.constant 0 : index
    %55 = vector.load %arg9[%c0_59, %c0_60] : memref<8x64xf32, #tpu.memory_space<vmem>>, vector<8x64xf32>
    %56 = arith.addf %54, %55 : vector<8x64xf32>
    %57 = arith.addf %56, %35 : vector<8x64xf32>
    %cst_61 = arith.constant 0.000000e+00 : f32
    %58 = vector.broadcast %cst_61 : f32 to vector<8x64xf32>
    %59 = arith.maximumf %57, %58 : vector<8x64xf32>
    %c0_62 = arith.constant 0 : index
    %c0_63 = arith.constant 0 : index
    %60 = vector.load %arg10[%c0_62, %c0_63] : memref<8x64xf32, #tpu.memory_space<vmem>>, vector<8x64xf32>
    tpu.vector_store %arg10[%c0_62, %c0_63], %59 {strides = array<i32>} : memref<8x64xf32, #tpu.memory_space<vmem>>, vector<8x64xf32>,
    return
  }
  func.func @transform_0(%arg0: i32) -> (i32, i32) {
    %c0_i32 = arith.constant 0 : i32
    %c0_i32_0 = arith.constant 0 : i32
    %c0_i32_1 = arith.constant 0 : i32
    return %c0_i32, %c0_i32_0 : i32, i32
  }
  func.func @transform_1(%arg0: i32) -> (i32, i32, i32) {
    %c0_i32 = arith.constant 0 : i32
    %c0_i32_0 = arith.constant 0 : i32
    %c0_i32_1 = arith.constant 0 : i32
    %c0_i32_2 = arith.constant 0 : i32
    return %c0_i32, %c0_i32_0, %c0_i32_1 : i32, i32, i32
  }
  func.func @transform_2(%arg0: i32) -> (i32, i32, i32) {
    %c0_i32 = arith.constant 0 : i32
    %c0_i32_0 = arith.constant 0 : i32
    %c0_i32_1 = arith.constant 0 : i32
    %c0_i32_2 = arith.constant 0 : i32
    return %c0_i32, %c0_i32_0, %c0_i32_1 : i32, i32, i32
  }
  func.func @transform_3(%arg0: i32) -> (i32, i32, i32) {
    %c0_i32 = arith.constant 0 : i32
    %c0_i32_0 = arith.constant 0 : i32
    %c0_i32_1 = arith.constant 0 : i32
    %c0_i32_2 = arith.constant 0 : i32
    return %c0_i32, %c0_i32_0, %c0_i32_1 : i32, i32, i32
  }
  func.func @transform_4(%arg0: i32) -> (i32, i32) {
    %c0_i32 = arith.constant 0 : i32
    %c0_i32_0 = arith.constant 0 : i32
    %c0_i32_1 = arith.constant 0 : i32
    return %c0_i32, %c0_i32_0 : i32, i32
  }
  func.func @transform_5(%arg0: i32) -> (i32, i32, i32) {
    %c0_i32 = arith.constant 0 : i32
    %c0_i32_0 = arith.constant 0 : i32
    %c0_i32_1 = arith.constant 0 : i32
    %c0_i32_2 = arith.constant 0 : i32
    return %c0_i32, %c0_i32_0, %c0_i32_1 : i32, i32, i32
  }
  func.func @transform_6(%arg0: i32) -> (i32, i32) {
    %c0_i32 = arith.constant 0 : i32
    %c0_i32_0 = arith.constant 0 : i32
    %c0_i32_1 = arith.constant 0 : i32
    return %c0_i32, %c0_i32_0 : i32, i32
  }
  func.func @transform_7(%arg0: i32) -> (i32, i32, i32) {
    %c0_i32 = arith.constant 0 : i32
    %c0_i32_0 = arith.constant 0 : i32
    %c0_i32_1 = arith.constant 0 : i32
    %c0_i32_2 = arith.constant 0 : i32
    return %c0_i32, %c0_i32_0, %c0_i32_1 : i32, i32, i32
  }
  func.func @transform_8(%arg0: i32) -> (i32, i32) {
    %c0_i32 = arith.constant 0 : i32
    %c0_i32_0 = arith.constant 0 : i32
    %c0_i32_1 = arith.constant 0 : i32
    return %c0_i32, %c0_i32_0 : i32, i32
  }
  func.func @transform_9(%arg0: i32) -> (i32, i32) {
    %c0_i32 = arith.constant 0 : i32
    %c0_i32_0 = arith.constant 0 : i32
    %c0_i32_1 = arith.constant 0 : i32
    return %c0_i32, %c0_i32_0 : i32, i32
  }
}

module attributes {stable_mosaic.version = 11 : i64} {
  func.func @_head_kernel(%arg0: i32, %arg1: memref<8x32xf32, #tpu.memory_space<vmem>>, %arg2: memref<32x16xf32, #tpu.memory_space<vmem>>, %arg3: memref<1x16xf32, #tpu.memory_space<vmem>>, %arg4: memref<16x10xf32, #tpu.memory_space<vmem>>, %arg5: memref<1x10xf32, #tpu.memory_space<vmem>>, %arg6: memref<8x10xf32, #tpu.memory_space<vmem>>) attributes {dimension_semantics = [#tpu.dimension_semantics<arbitrary>], iteration_bounds = array<i64: 1>, scalar_prefetch = 0 : i64, scratch_operands = 0 : i64, tpu.core_type = #tpu.core_type<tc>, window_params = [{pipeline_mode = #tpu.pipeline_mode<synchronous>, transform_indices = @transform_0, window_bounds = array<i64: 8, 32>}, {pipeline_mode = #tpu.pipeline_mode<synchronous>, transform_indices = @transform_1, window_bounds = array<i64: 32, 16>}, {pipeline_mode = #tpu.pipeline_mode<synchronous>, transform_indices = @transform_2, window_bounds = array<i64: 1, 16>}, {pipeline_mode = #tpu.pipeline_mode<synchronous>, transform_indices = @transform_3, window_bounds = array<i64: 16, 10>}, {pipeline_mode = #tpu.pipeline_mode<synchronous>, transform_indices = @transform_4, window_bounds = array<i64: 1, 10>}, {pipeline_mode = #tpu.pipeline_mode<synchronous>, transform_indices = @transform_5, window_bounds = array<i64: 8, 10>}]} {
    %c0 = arith.constant 0 : index
    %c0_0 = arith.constant 0 : index
    %0 = vector.load %arg1[%c0, %c0_0] : memref<8x32xf32, #tpu.memory_space<vmem>>, vector<8x32xf32>
    %c0_1 = arith.constant 0 : index
    %c0_2 = arith.constant 0 : index
    %1 = vector.load %arg2[%c0_1, %c0_2] : memref<32x16xf32, #tpu.memory_space<vmem>>, vector<32x16xf32>
    %cst = arith.constant dense<0.000000e+00> : vector<8x16xf32>
    %2 = tpu.matmul %0, %1, %cst {dimension_numbers = #tpu.dot_dimension_numbers<[1], [0], [0], [1], [0, 0, 1, 1], [], []>} : vector<8x32xf32>, vector<32x16xf32>, vector<8x16xf32> -> vector<8x16xf32>
    %c0_3 = arith.constant 0 : index
    %c0_4 = arith.constant 0 : index
    %3 = vector.load %arg3[%c0_3, %c0_4] : memref<1x16xf32, #tpu.memory_space<vmem>>, vector<1x16xf32>
    %4 = vector.broadcast %3 : vector<1x16xf32> to vector<8x16xf32>
    %5 = arith.addf %2, %4 : vector<8x16xf32>
    %cst_5 = arith.constant 0.000000e+00 : f32
    %6 = vector.broadcast %cst_5 : f32 to vector<8x16xf32>
    %7 = arith.maximumf %5, %6 : vector<8x16xf32>
    %c0_6 = arith.constant 0 : index
    %c0_7 = arith.constant 0 : index
    %8 = vector.load %arg4[%c0_6, %c0_7] : memref<16x10xf32, #tpu.memory_space<vmem>>, vector<16x10xf32>
    %cst_8 = arith.constant dense<0.000000e+00> : vector<8x10xf32>
    %9 = tpu.matmul %7, %8, %cst_8 {dimension_numbers = #tpu.dot_dimension_numbers<[1], [0], [0], [1], [0, 0, 1, 1], [], []>} : vector<8x16xf32>, vector<16x10xf32>, vector<8x10xf32> -> vector<8x10xf32>
    %c0_9 = arith.constant 0 : index
    %c0_10 = arith.constant 0 : index
    %10 = vector.load %arg5[%c0_9, %c0_10] : memref<1x10xf32, #tpu.memory_space<vmem>>, vector<1x10xf32>
    %11 = vector.broadcast %10 : vector<1x10xf32> to vector<8x10xf32>
    %12 = arith.addf %9, %11 : vector<8x10xf32>
    %c0_11 = arith.constant 0 : index
    %c0_12 = arith.constant 0 : index
    %13 = vector.load %arg6[%c0_11, %c0_12] : memref<8x10xf32, #tpu.memory_space<vmem>>, vector<8x10xf32>
    tpu.vector_store %arg6[%c0_11, %c0_12], %12 {strides = array<i32>} : memref<8x10xf32, #tpu.memory_space<vmem>>, vector<8x10xf32>,
    return
  }
  func.func @transform_0(%arg0: i32) -> (i32, i32) {
    %c0_i32 = arith.constant 0 : i32
    %c0_i32_0 = arith.constant 0 : i32
    %c0_i32_1 = arith.constant 0 : i32
    return %c0_i32, %c0_i32_0 : i32, i32
  }
  func.func @transform_1(%arg0: i32) -> (i32, i32) {
    %c0_i32 = arith.constant 0 : i32
    %c0_i32_0 = arith.constant 0 : i32
    %c0_i32_1 = arith.constant 0 : i32
    return %c0_i32, %c0_i32_0 : i32, i32
  }
  func.func @transform_2(%arg0: i32) -> (i32, i32) {
    %c0_i32 = arith.constant 0 : i32
    %c0_i32_0 = arith.constant 0 : i32
    %c0_i32_1 = arith.constant 0 : i32
    return %c0_i32, %c0_i32_0 : i32, i32
  }
  func.func @transform_3(%arg0: i32) -> (i32, i32) {
    %c0_i32 = arith.constant 0 : i32
    %c0_i32_0 = arith.constant 0 : i32
    %c0_i32_1 = arith.constant 0 : i32
    return %c0_i32, %c0_i32_0 : i32, i32
  }
  func.func @transform_4(%arg0: i32) -> (i32, i32) {
    %c0_i32 = arith.constant 0 : i32
    %c0_i32_0 = arith.constant 0 : i32
    %c0_i32_1 = arith.constant 0 : i32
    return %c0_i32, %c0_i32_0 : i32, i32
  }
  func.func @transform_5(%arg0: i32) -> (i32, i32) {
    %c0_i32 = arith.constant 0 : i32
    %c0_i32_0 = arith.constant 0 : i32
    %c0_i32_1 = arith.constant 0 : i32
    return %c0_i32, %c0_i32_0 : i32, i32
  }
}

module attributes {stable_mosaic.version = 11 : i64} {
  func.func @_resblock_kernel(%arg0: i32, %arg1: memref<8x64xf32, #tpu.memory_space<vmem>>, %arg2: memref<3x8x8xf32, #tpu.memory_space<vmem>>, %arg3: memref<3x8x8xf32, #tpu.memory_space<vmem>>, %arg4: memref<3x64x32xf32, #tpu.memory_space<vmem>>, %arg5: memref<8x32xf32, #tpu.memory_space<vmem>>, %arg6: memref<3x64x32xf32, #tpu.memory_space<vmem>>, %arg7: memref<8x32xf32, #tpu.memory_space<vmem>>, %arg8: memref<3x32x32xf32, #tpu.memory_space<vmem>>, %arg9: memref<8x32xf32, #tpu.memory_space<vmem>>, %arg10: memref<8x32xf32, #tpu.memory_space<vmem>>) attributes {dimension_semantics = [#tpu.dimension_semantics<arbitrary>], iteration_bounds = array<i64: 1>, scalar_prefetch = 0 : i64, scratch_operands = 0 : i64, tpu.core_type = #tpu.core_type<tc>, window_params = [{pipeline_mode = #tpu.pipeline_mode<synchronous>, transform_indices = @transform_0, window_bounds = array<i64: 8, 64>}, {pipeline_mode = #tpu.pipeline_mode<synchronous>, transform_indices = @transform_1, window_bounds = array<i64: 3, 8, 8>}, {pipeline_mode = #tpu.pipeline_mode<synchronous>, transform_indices = @transform_2, window_bounds = array<i64: 3, 8, 8>}, {pipeline_mode = #tpu.pipeline_mode<synchronous>, transform_indices = @transform_3, window_bounds = array<i64: 3, 64, 32>}, {pipeline_mode = #tpu.pipeline_mode<synchronous>, transform_indices = @transform_4, window_bounds = array<i64: 8, 32>}, {pipeline_mode = #tpu.pipeline_mode<synchronous>, transform_indices = @transform_5, window_bounds = array<i64: 3, 64, 32>}, {pipeline_mode = #tpu.pipeline_mode<synchronous>, transform_indices = @transform_6, window_bounds = array<i64: 8, 32>}, {pipeline_mode = #tpu.pipeline_mode<synchronous>, transform_indices = @transform_7, window_bounds = array<i64: 3, 32, 32>}, {pipeline_mode = #tpu.pipeline_mode<synchronous>, transform_indices = @transform_8, window_bounds = array<i64: 8, 32>}, {pipeline_mode = #tpu.pipeline_mode<synchronous>, transform_indices = @transform_9, window_bounds = array<i64: 8, 32>}]} {
    %c0 = arith.constant 0 : index
    %c0_0 = arith.constant 0 : index
    %0 = vector.load %arg1[%c0, %c0_0] : memref<8x64xf32, #tpu.memory_space<vmem>>, vector<8x64xf32>
    %c0_1 = arith.constant 0 : index
    %c0_2 = arith.constant 0 : index
    %c0_3 = arith.constant 0 : index
    %1 = vector.load %arg2[%c0_1, %c0_2, %c0_3] : memref<3x8x8xf32, #tpu.memory_space<vmem>>, vector<1x8x8xf32>
    %2 = vector.shape_cast %1 : vector<1x8x8xf32> to vector<8x8xf32>
    %cst = arith.constant dense<0.000000e+00> : vector<8x64xf32>
    %3 = tpu.matmul %2, %0, %cst {dimension_numbers = #tpu.dot_dimension_numbers<[1], [0], [0], [1], [0, 0, 1, 1], [], []>} : vector<8x8xf32>, vector<8x64xf32>, vector<8x64xf32> -> vector<8x64xf32>
    %c1 = arith.constant 1 : index
    %c0_4 = arith.constant 0 : index
    %c0_5 = arith.constant 0 : index
    %4 = vector.load %arg2[%c1, %c0_4, %c0_5] : memref<3x8x8xf32, #tpu.memory_space<vmem>>, vector<1x8x8xf32>
    %5 = vector.shape_cast %4 : vector<1x8x8xf32> to vector<8x8xf32>
    %cst_6 = arith.constant dense<0.000000e+00> : vector<8x64xf32>
    %6 = tpu.matmul %5, %0, %cst_6 {dimension_numbers = #tpu.dot_dimension_numbers<[1], [0], [0], [1], [0, 0, 1, 1], [], []>} : vector<8x8xf32>, vector<8x64xf32>, vector<8x64xf32> -> vector<8x64xf32>
    %c2 = arith.constant 2 : index
    %c0_7 = arith.constant 0 : index
    %c0_8 = arith.constant 0 : index
    %7 = vector.load %arg2[%c2, %c0_7, %c0_8] : memref<3x8x8xf32, #tpu.memory_space<vmem>>, vector<1x8x8xf32>
    %8 = vector.shape_cast %7 : vector<1x8x8xf32> to vector<8x8xf32>
    %cst_9 = arith.constant dense<0.000000e+00> : vector<8x64xf32>
    %9 = tpu.matmul %8, %0, %cst_9 {dimension_numbers = #tpu.dot_dimension_numbers<[1], [0], [0], [1], [0, 0, 1, 1], [], []>} : vector<8x8xf32>, vector<8x64xf32>, vector<8x64xf32> -> vector<8x64xf32>
    %c0_10 = arith.constant 0 : index
    %c0_11 = arith.constant 0 : index
    %c0_12 = arith.constant 0 : index
    %10 = vector.load %arg4[%c0_10, %c0_11, %c0_12] : memref<3x64x32xf32, #tpu.memory_space<vmem>>, vector<1x64x32xf32>
    %11 = vector.shape_cast %10 : vector<1x64x32xf32> to vector<64x32xf32>
    %cst_13 = arith.constant dense<0.000000e+00> : vector<8x32xf32>
    %12 = tpu.matmul %3, %11, %cst_13 {dimension_numbers = #tpu.dot_dimension_numbers<[1], [0], [0], [1], [0, 0, 1, 1], [], []>} : vector<8x64xf32>, vector<64x32xf32>, vector<8x32xf32> -> vector<8x32xf32>
    %c1_14 = arith.constant 1 : index
    %c0_15 = arith.constant 0 : index
    %c0_16 = arith.constant 0 : index
    %13 = vector.load %arg4[%c1_14, %c0_15, %c0_16] : memref<3x64x32xf32, #tpu.memory_space<vmem>>, vector<1x64x32xf32>
    %14 = vector.shape_cast %13 : vector<1x64x32xf32> to vector<64x32xf32>
    %cst_17 = arith.constant dense<0.000000e+00> : vector<8x32xf32>
    %15 = tpu.matmul %6, %14, %cst_17 {dimension_numbers = #tpu.dot_dimension_numbers<[1], [0], [0], [1], [0, 0, 1, 1], [], []>} : vector<8x64xf32>, vector<64x32xf32>, vector<8x32xf32> -> vector<8x32xf32>
    %16 = arith.addf %12, %15 : vector<8x32xf32>
    %c2_18 = arith.constant 2 : index
    %c0_19 = arith.constant 0 : index
    %c0_20 = arith.constant 0 : index
    %17 = vector.load %arg4[%c2_18, %c0_19, %c0_20] : memref<3x64x32xf32, #tpu.memory_space<vmem>>, vector<1x64x32xf32>
    %18 = vector.shape_cast %17 : vector<1x64x32xf32> to vector<64x32xf32>
    %cst_21 = arith.constant dense<0.000000e+00> : vector<8x32xf32>
    %19 = tpu.matmul %9, %18, %cst_21 {dimension_numbers = #tpu.dot_dimension_numbers<[1], [0], [0], [1], [0, 0, 1, 1], [], []>} : vector<8x64xf32>, vector<64x32xf32>, vector<8x32xf32> -> vector<8x32xf32>
    %20 = arith.addf %16, %19 : vector<8x32xf32>
    %c0_22 = arith.constant 0 : index
    %c0_23 = arith.constant 0 : index
    %21 = vector.load %arg5[%c0_22, %c0_23] : memref<8x32xf32, #tpu.memory_space<vmem>>, vector<8x32xf32>
    %22 = arith.addf %20, %21 : vector<8x32xf32>
    %c0_24 = arith.constant 0 : index
    %c0_25 = arith.constant 0 : index
    %c0_26 = arith.constant 0 : index
    %23 = vector.load %arg6[%c0_24, %c0_25, %c0_26] : memref<3x64x32xf32, #tpu.memory_space<vmem>>, vector<1x64x32xf32>
    %24 = vector.shape_cast %23 : vector<1x64x32xf32> to vector<64x32xf32>
    %cst_27 = arith.constant dense<0.000000e+00> : vector<8x32xf32>
    %25 = tpu.matmul %3, %24, %cst_27 {dimension_numbers = #tpu.dot_dimension_numbers<[1], [0], [0], [1], [0, 0, 1, 1], [], []>} : vector<8x64xf32>, vector<64x32xf32>, vector<8x32xf32> -> vector<8x32xf32>
    %c1_28 = arith.constant 1 : index
    %c0_29 = arith.constant 0 : index
    %c0_30 = arith.constant 0 : index
    %26 = vector.load %arg6[%c1_28, %c0_29, %c0_30] : memref<3x64x32xf32, #tpu.memory_space<vmem>>, vector<1x64x32xf32>
    %27 = vector.shape_cast %26 : vector<1x64x32xf32> to vector<64x32xf32>
    %cst_31 = arith.constant dense<0.000000e+00> : vector<8x32xf32>
    %28 = tpu.matmul %6, %27, %cst_31 {dimension_numbers = #tpu.dot_dimension_numbers<[1], [0], [0], [1], [0, 0, 1, 1], [], []>} : vector<8x64xf32>, vector<64x32xf32>, vector<8x32xf32> -> vector<8x32xf32>
    %29 = arith.addf %25, %28 : vector<8x32xf32>
    %c2_32 = arith.constant 2 : index
    %c0_33 = arith.constant 0 : index
    %c0_34 = arith.constant 0 : index
    %30 = vector.load %arg6[%c2_32, %c0_33, %c0_34] : memref<3x64x32xf32, #tpu.memory_space<vmem>>, vector<1x64x32xf32>
    %31 = vector.shape_cast %30 : vector<1x64x32xf32> to vector<64x32xf32>
    %cst_35 = arith.constant dense<0.000000e+00> : vector<8x32xf32>
    %32 = tpu.matmul %9, %31, %cst_35 {dimension_numbers = #tpu.dot_dimension_numbers<[1], [0], [0], [1], [0, 0, 1, 1], [], []>} : vector<8x64xf32>, vector<64x32xf32>, vector<8x32xf32> -> vector<8x32xf32>
    %33 = arith.addf %29, %32 : vector<8x32xf32>
    %c0_36 = arith.constant 0 : index
    %c0_37 = arith.constant 0 : index
    %34 = vector.load %arg7[%c0_36, %c0_37] : memref<8x32xf32, #tpu.memory_space<vmem>>, vector<8x32xf32>
    %35 = arith.addf %33, %34 : vector<8x32xf32>
    %cst_38 = arith.constant 0.000000e+00 : f32
    %36 = vector.broadcast %cst_38 : f32 to vector<8x32xf32>
    %37 = arith.maximumf %22, %36 : vector<8x32xf32>
    %c0_39 = arith.constant 0 : index
    %c0_40 = arith.constant 0 : index
    %c0_41 = arith.constant 0 : index
    %38 = vector.load %arg3[%c0_39, %c0_40, %c0_41] : memref<3x8x8xf32, #tpu.memory_space<vmem>>, vector<1x8x8xf32>
    %39 = vector.shape_cast %38 : vector<1x8x8xf32> to vector<8x8xf32>
    %cst_42 = arith.constant dense<0.000000e+00> : vector<8x32xf32>
    %40 = tpu.matmul %39, %37, %cst_42 {dimension_numbers = #tpu.dot_dimension_numbers<[1], [0], [0], [1], [0, 0, 1, 1], [], []>} : vector<8x8xf32>, vector<8x32xf32>, vector<8x32xf32> -> vector<8x32xf32>
    %c2_43 = arith.constant 2 : index
    %c0_44 = arith.constant 0 : index
    %c0_45 = arith.constant 0 : index
    %41 = vector.load %arg3[%c2_43, %c0_44, %c0_45] : memref<3x8x8xf32, #tpu.memory_space<vmem>>, vector<1x8x8xf32>
    %42 = vector.shape_cast %41 : vector<1x8x8xf32> to vector<8x8xf32>
    %cst_46 = arith.constant dense<0.000000e+00> : vector<8x32xf32>
    %43 = tpu.matmul %42, %37, %cst_46 {dimension_numbers = #tpu.dot_dimension_numbers<[1], [0], [0], [1], [0, 0, 1, 1], [], []>} : vector<8x8xf32>, vector<8x32xf32>, vector<8x32xf32> -> vector<8x32xf32>
    %c0_47 = arith.constant 0 : index
    %c0_48 = arith.constant 0 : index
    %c0_49 = arith.constant 0 : index
    %44 = vector.load %arg8[%c0_47, %c0_48, %c0_49] : memref<3x32x32xf32, #tpu.memory_space<vmem>>, vector<1x32x32xf32>
    %45 = vector.shape_cast %44 : vector<1x32x32xf32> to vector<32x32xf32>
    %cst_50 = arith.constant dense<0.000000e+00> : vector<8x32xf32>
    %46 = tpu.matmul %40, %45, %cst_50 {dimension_numbers = #tpu.dot_dimension_numbers<[1], [0], [0], [1], [0, 0, 1, 1], [], []>} : vector<8x32xf32>, vector<32x32xf32>, vector<8x32xf32> -> vector<8x32xf32>
    %c1_51 = arith.constant 1 : index
    %c0_52 = arith.constant 0 : index
    %c0_53 = arith.constant 0 : index
    %47 = vector.load %arg8[%c1_51, %c0_52, %c0_53] : memref<3x32x32xf32, #tpu.memory_space<vmem>>, vector<1x32x32xf32>
    %48 = vector.shape_cast %47 : vector<1x32x32xf32> to vector<32x32xf32>
    %cst_54 = arith.constant dense<0.000000e+00> : vector<8x32xf32>
    %49 = tpu.matmul %37, %48, %cst_54 {dimension_numbers = #tpu.dot_dimension_numbers<[1], [0], [0], [1], [0, 0, 1, 1], [], []>} : vector<8x32xf32>, vector<32x32xf32>, vector<8x32xf32> -> vector<8x32xf32>
    %50 = arith.addf %46, %49 : vector<8x32xf32>
    %c2_55 = arith.constant 2 : index
    %c0_56 = arith.constant 0 : index
    %c0_57 = arith.constant 0 : index
    %51 = vector.load %arg8[%c2_55, %c0_56, %c0_57] : memref<3x32x32xf32, #tpu.memory_space<vmem>>, vector<1x32x32xf32>
    %52 = vector.shape_cast %51 : vector<1x32x32xf32> to vector<32x32xf32>
    %cst_58 = arith.constant dense<0.000000e+00> : vector<8x32xf32>
    %53 = tpu.matmul %43, %52, %cst_58 {dimension_numbers = #tpu.dot_dimension_numbers<[1], [0], [0], [1], [0, 0, 1, 1], [], []>} : vector<8x32xf32>, vector<32x32xf32>, vector<8x32xf32> -> vector<8x32xf32>
    %54 = arith.addf %50, %53 : vector<8x32xf32>
    %c0_59 = arith.constant 0 : index
    %c0_60 = arith.constant 0 : index
    %55 = vector.load %arg9[%c0_59, %c0_60] : memref<8x32xf32, #tpu.memory_space<vmem>>, vector<8x32xf32>
    %56 = arith.addf %54, %55 : vector<8x32xf32>
    %57 = arith.addf %56, %35 : vector<8x32xf32>
    %cst_61 = arith.constant 0.000000e+00 : f32
    %58 = vector.broadcast %cst_61 : f32 to vector<8x32xf32>
    %59 = arith.maximumf %57, %58 : vector<8x32xf32>
    %c0_62 = arith.constant 0 : index
    %c0_63 = arith.constant 0 : index
    %60 = vector.load %arg10[%c0_62, %c0_63] : memref<8x32xf32, #tpu.memory_space<vmem>>, vector<8x32xf32>
    tpu.vector_store %arg10[%c0_62, %c0_63], %59 {strides = array<i32>} : memref<8x32xf32, #tpu.memory_space<vmem>>, vector<8x32xf32>,
    return
  }
  func.func @transform_0(%arg0: i32) -> (i32, i32) {
    %c0_i32 = arith.constant 0 : i32
    %c0_i32_0 = arith.constant 0 : i32
    %c0_i32_1 = arith.constant 0 : i32
    return %c0_i32, %c0_i32_0 : i32, i32
  }
  func.func @transform_1(%arg0: i32) -> (i32, i32, i32) {
    %c0_i32 = arith.constant 0 : i32
    %c0_i32_0 = arith.constant 0 : i32
    %c0_i32_1 = arith.constant 0 : i32
    %c0_i32_2 = arith.constant 0 : i32
    return %c0_i32, %c0_i32_0, %c0_i32_1 : i32, i32, i32
  }
  func.func @transform_2(%arg0: i32) -> (i32, i32, i32) {
    %c0_i32 = arith.constant 0 : i32
    %c0_i32_0 = arith.constant 0 : i32
    %c0_i32_1 = arith.constant 0 : i32
    %c0_i32_2 = arith.constant 0 : i32
    return %c0_i32, %c0_i32_0, %c0_i32_1 : i32, i32, i32
  }
  func.func @transform_3(%arg0: i32) -> (i32, i32, i32) {
    %c0_i32 = arith.constant 0 : i32
    %c0_i32_0 = arith.constant 0 : i32
    %c0_i32_1 = arith.constant 0 : i32
    %c0_i32_2 = arith.constant 0 : i32
    return %c0_i32, %c0_i32_0, %c0_i32_1 : i32, i32, i32
  }
  func.func @transform_4(%arg0: i32) -> (i32, i32) {
    %c0_i32 = arith.constant 0 : i32
    %c0_i32_0 = arith.constant 0 : i32
    %c0_i32_1 = arith.constant 0 : i32
    return %c0_i32, %c0_i32_0 : i32, i32
  }
  func.func @transform_5(%arg0: i32) -> (i32, i32, i32) {
    %c0_i32 = arith.constant 0 : i32
    %c0_i32_0 = arith.constant 0 : i32
    %c0_i32_1 = arith.constant 0 : i32
    %c0_i32_2 = arith.constant 0 : i32
    return %c0_i32, %c0_i32_0, %c0_i32_1 : i32, i32, i32
  }
  func.func @transform_6(%arg0: i32) -> (i32, i32) {
    %c0_i32 = arith.constant 0 : i32
    %c0_i32_0 = arith.constant 0 : i32
    %c0_i32_1 = arith.constant 0 : i32
    return %c0_i32, %c0_i32_0 : i32, i32
  }
  func.func @transform_7(%arg0: i32) -> (i32, i32, i32) {
    %c0_i32 = arith.constant 0 : i32
    %c0_i32_0 = arith.constant 0 : i32
    %c0_i32_1 = arith.constant 0 : i32
    %c0_i32_2 = arith.constant 0 : i32
    return %c0_i32, %c0_i32_0, %c0_i32_1 : i32, i32, i32
  }
  func.func @transform_8(%arg0: i32) -> (i32, i32) {
    %c0_i32 = arith.constant 0 : i32
    %c0_i32_0 = arith.constant 0 : i32
    %c0_i32_1 = arith.constant 0 : i32
    return %c0_i32, %c0_i32_0 : i32, i32
  }
  func.func @transform_9(%arg0: i32) -> (i32, i32) {
    %c0_i32 = arith.constant 0 : i32
    %c0_i32_0 = arith.constant 0 : i32
    %c0_i32_1 = arith.constant 0 : i32
    return %c0_i32, %c0_i32_0 : i32, i32
  }
}

</mosaic_0001>

<llo_original>
// kernel: model_forward.9
$region0: #{model_forward.9}
  #allocation0 [shape = 'u32[]', space=smem, size = 0x4, offset = 0x4, fixed_abs, tag = 'smem constant byte address 0x4 - core index']
  #allocation1 [shape = 'u32[144,128]{1,0:T(1,128)}', space=vmem, size = 0x12000, scoped, tag = 'internal scratch']
  #allocation2 [shape = 'f32[1,1]{1,0:T(1,128)S(1)}', space=vmem, size = 0x200, scoped, tag = 'scoped memory for model_forward.9']
  #allocation3 [shape = 'f32[1,1]{1,0:T(1,128)S(1)}', space=vmem, size = 0x200, scoped, tag = 'scoped memory for model_forward.9']
  %s0 = inlined_call_operand.vmem [shape: f32[128,18], index: 0, kind: input, shape index: {}]
  %s1 = inlined_call_operand.vmem [shape: f32[72,128], index: 1, kind: input, shape index: {}]
  %s2 = inlined_call_operand.vmem [shape: f32[72,128], index: 2, kind: input, shape index: {}]
  %s3 = inlined_call_operand.vmem [shape: f32[32,72], index: 3, kind: input, shape index: {}]
  %s4 = inlined_call_operand.<no memory space> [shape: f32[1,1], index: 4, kind: input, shape index: {}]
  %s5 = inlined_call_operand.<no memory space> [shape: f32[1,1], index: 5, kind: input, shape index: {}]
  %s6 = inlined_call_operand.vmem [shape: f32[32,18], index: 6, kind: output, shape index: {}]
  %s7 = sld [smem:[#allocation0]]
  $region34: #{model_forward.9} parent=0
    _
  %s9 = ssub.s32 1, %s7
  %s10 = scalar_select 0, %s9, %s7
  %v11 = vstv %s4
  %12 = vst [vmem:[#allocation2] sm:$0x1] %v11
  %v13 = vstv %s5
  %14 = vst [vmem:[#allocation3] sm:$0x1] %v13
  // Predicated region
  $region2: #{model_forward.9} parent=0 // pred_check
    _
  $region3: #{model_forward.9} parent=0 // pred_check_branch
    %16 = sbr.rel (0) target = $region5
  $region4: #{model_forward.9} parent=0 // pred_region
    _
  $region5: #{model_forward.9} parent=0 // pred_fallthru
    _
  // Predicated region
  $region6: #{model_forward.9} parent=0 // pred_check
    _
  $region7: #{model_forward.9} parent=0 // pred_check_branch
    %18 = sbr.rel (0) target = $region9
  $region8: #{model_forward.9} parent=0 // pred_region
    _
  $region9: #{model_forward.9} parent=0 // pred_fallthru
    _
  // Predicated region
  $region10: #{model_forward.9} parent=0 // pred_check
    _
  $region11: #{model_forward.9} parent=0 // pred_check_branch
    %20 = sbr.rel (0) target = $region13
  $region12: #{model_forward.9} parent=0 // pred_region
    _
  $region13: #{model_forward.9} parent=0 // pred_fallthru
    _
  // Predicated region
  $region14: #{model_forward.9} parent=0 // pred_check
    _
  $region15: #{model_forward.9} parent=0 // pred_check_branch
    %22 = sbr.rel (0) target = $region17
  $region16: #{model_forward.9} parent=0 // pred_region
    _
  $region17: #{model_forward.9} parent=0 // pred_fallthru
    _
  // Predicated region
  $region18: #{model_forward.9} parent=0 // pred_check
    _
  $region19: #{model_forward.9} parent=0 // pred_check_branch
    %24 = sbr.rel (0) target = $region21
  $region20: #{model_forward.9} parent=0 // pred_region
    _
  $region21: #{model_forward.9} parent=0 // pred_fallthru
    _
  // Predicated region
  $region22: #{model_forward.9} parent=0 // pred_check
    _
  $region23: #{model_forward.9} parent=0 // pred_check_branch
    %26 = sbr.rel (0) target = $region25
  $region24: #{model_forward.9} parent=0 // pred_region
    _
  $region25: #{model_forward.9} parent=0 // pred_fallthru
    _
  %v27 = vld [vmem:[%s0] sm:$0xff]
  %v28 = vld [vmem:[%s0 + $0x8] sm:$0xff]
  %v29 = vld [vmem:[%s0 + $0x10] sm:$0xff]
  %v30 = vld [vmem:[%s0 + $0x18] sm:$0xff]
  %v31 = vld [vmem:[%s0 + $0x20] sm:$0xff]
  %v32 = vld [vmem:[%s0 + $0x28] sm:$0xff]
  %v33 = vld [vmem:[%s0 + $0x30] sm:$0xff]
  %v34 = vld [vmem:[%s0 + $0x38] sm:$0xff]
  %v35 = vld [vmem:[%s0 + $0x40] sm:$0xff]
  %v36 = vld [vmem:[%s0 + $0x48] sm:$0xff]
  %v37 = vld [vmem:[%s0 + $0x50] sm:$0xff]
  %v38 = vld [vmem:[%s0 + $0x58] sm:$0xff]
  %v39 = vld [vmem:[%s0 + $0x60] sm:$0xff]
  %v40 = vld [vmem:[%s0 + $0x68] sm:$0xff]
  %v41 = vld [vmem:[%s0 + $0x70] sm:$0xff]
  %v42 = vld [vmem:[%s0 + $0x78] sm:$0xff]
  %v43 = vld [vmem:[%s1] sm:$0xff]
  %v44 = vld [vmem:[%s1 + $0x8] sm:$0xff]
  %v45 = vld [vmem:[%s1 + $0x10] sm:$0xff]
  %v46 = vld [vmem:[%s1 + $0x18] sm:$0xff]
  %v47 = vld [vmem:[%s1 + $0x20] sm:$0xff]
  %v48 = vld [vmem:[%s1 + $0x28] sm:$0xff]
  %v49 = vld [vmem:[%s1 + $0x30] sm:$0xff]
  %v50 = vld [vmem:[%s1 + $0x38] sm:$0xff]
  %v51 = vld [vmem:[%s1 + $0x40] sm:$0xff]
  %52 = vmatprep.subr.mxu0 0.0
  %53 = vmatpush1.msra.mxu0 %v27
  %54 = vmatprep.subr.mxu0 0.0
  %55 = vmatpush1.msra.mxu0 %v28
  %56 = vmatprep.subr.mxu0 0.0
  %57 = vmatpush1.msra.mxu0 %v29
  %58 = vmatprep.subr.mxu0 0.0
  %59 = vmatpush1.msra.mxu0 %v30
  %60 = vmatprep.subr.mxu0 0.0
  %61 = vmatpush1.msra.mxu0 %v31
  %62 = vmatprep.subr.mxu0 0.0
  %63 = vmatpush1.msra.mxu0 %v32
  %64 = vmatprep.subr.mxu0 0.0
  %65 = vmatpush1.msra.mxu0 %v33
  %66 = vmatprep.subr.mxu0 0.0
  %67 = vmatpush1.msra.mxu0 %v34
  %68 = vmatprep.subr.mxu0 0.0
  %69 = vmatpush1.msra.mxu0 %v35
  %70 = vmatprep.subr.mxu0 0.0
  %71 = vmatpush1.msra.mxu0 %v36
  %72 = vmatprep.subr.mxu0 0.0
  %73 = vmatpush1.msra.mxu0 %v37
  %74 = vmatprep.subr.mxu0 0.0
  %75 = vmatpush1.msra.mxu0 %v38
  %76 = vmatprep.subr.mxu0 0.0
  %77 = vmatpush1.msra.mxu0 %v39
  %78 = vmatprep.subr.mxu0 0.0
  %79 = vmatpush1.msra.mxu0 %v40
  %80 = vmatprep.subr.mxu0 0.0
  %81 = vmatpush1.msra.mxu0 %v41
  %82 = vmatprep.subr.mxu0 0.0
  %83 = vmatpush1.msra.mxu0 %v42
  %84 = vmatprep.subr.mxu0 0.0
  %85 = vmatpush1.msra.mxu0 0.0
  %86 = vmatprep.subr.mxu0 0.0
  %87 = vmatpush1.msra.mxu0 0.0
  %88 = vmatprep.subr.mxu0 0.0
  %89 = vmatpush1.msra.mxu0 0.0
  %90 = vmatprep.subr.mxu0 0.0
  %91 = vmatpush1.msra.mxu0 0.0
  %92 = vmatprep.subr.mxu0 0.0
  %93 = vmatpush1.msra.mxu0 0.0
  %94 = vmatprep.subr.mxu0 0.0
  %95 = vmatpush1.msra.mxu0 0.0
  %96 = vmatprep.subr.mxu0 0.0
  %97 = vmatpush1.msra.mxu0 0.0
  %98 = vmatprep.subr.mxu0 0.0
  %99 = vmatpush1.msra.mxu0 0.0
  %100 = vmatprep.subr.mxu0 0.0
  %101 = vmatpush1.msra.mxu0 0.0
  %102 = vmatprep.subr.mxu0 0.0
  %103 = vmatpush1.msra.mxu0 0.0
  %104 = vmatprep.subr.mxu0 0.0
  %105 = vmatpush1.msra.mxu0 0.0
  %106 = vmatprep.subr.mxu0 0.0
  %107 = vmatpush1.msra.mxu0 0.0
  %108 = vmatprep.subr.mxu0 0.0
  %109 = vmatpush1.msra.mxu0 0.0
  %110 = vmatprep.subr.mxu0 0.0
  %111 = vmatpush1.msra.mxu0 0.0
  %112 = vmatprep.subr.mxu0 0.0
  %113 = vmatpush1.msra.mxu0 0.0
  %114 = vmatprep.subr.mxu0 0.0
  %115 = vmatpush1.msra.mxu0 0.0
  %116 = vmatprep.mubr.f32.mxu0 0.0
  %117 = vmatmul.mubr.f32.gmra.mrb[0].mxu0 %v43
  %v118 = vpop.f32.mrb[0].mxu0
  %v119 = vadd.f32 0.0, %v118
  %v120 = vpop.f32.mrb[0].mxu0
  %121 = vmatprep.mubr.f32.mxu0 0.0
  %122 = vmatmul.mubr.f32.gmra.mrb[0].mxu0 %v44
  %v123 = vpop.f32.mrb[0].mxu0
  %v124 = vadd.f32 0.0, %v123
  %v125 = vpop.f32.mrb[0].mxu0
  %126 = vmatprep.mubr.f32.mxu0 0.0
  %127 = vmatmul.mubr.f32.gmra.mrb[0].mxu0 %v45
  %v128 = vpop.f32.mrb[0].mxu0
  %v129 = vadd.f32 0.0, %v128
  %v130 = vpop.f32.mrb[0].mxu0
  %131 = vmatprep.mubr.f32.mxu0 0.0
  %132 = vmatmul.mubr.f32.gmra.mrb[0].mxu0 %v46
  %v133 = vpop.f32.mrb[0].mxu0
  %v134 = vadd.f32 0.0, %v133
  %v135 = vpop.f32.mrb[0].mxu0
  %136 = vmatprep.mubr.f32.mxu0 0.0
  %137 = vmatmul.mubr.f32.gmra.mrb[0].mxu0 %v47
  %v138 = vpop.f32.mrb[0].mxu0
  %v139 = vadd.f32 0.0, %v138
  %v140 = vpop.f32.mrb[0].mxu0
  %141 = vmatprep.mubr.f32.mxu0 0.0
  %142 = vmatmul.mubr.f32.gmra.mrb[0].mxu0 %v48
  %v143 = vpop.f32.mrb[0].mxu0
  %v144 = vadd.f32 0.0, %v143
  %v145 = vpop.f32.mrb[0].mxu0
  %146 = vmatprep.mubr.f32.mxu0 0.0
  %147 = vmatmul.mubr.f32.gmra.mrb[0].mxu0 %v49
  %v148 = vpop.f32.mrb[0].mxu0
  %v149 = vadd.f32 0.0, %v148
  %v150 = vpop.f32.mrb[0].mxu0
  %151 = vmatprep.mubr.f32.mxu0 0.0
  %152 = vmatmul.mubr.f32.gmra.mrb[0].mxu0 %v50
  %v153 = vpop.f32.mrb[0].mxu0
  %v154 = vadd.f32 0.0, %v153
  %v155 = vpop.f32.mrb[0].mxu0
  %156 = vmatprep.mubr.f32.mxu0 0.0
  %157 = vmatmul.mubr.f32.gmra.mrb[0].mxu0 %v51
  %v158 = vpop.f32.mrb[0].mxu0
  %v159 = vadd.f32 0.0, %v158
  %v160 = vpop.f32.mrb[0].mxu0
  %161 = vdwg.mxu0
  %v162 = vld [vmem:[%s2] sm:$0xff]
  %v163 = vld [vmem:[%s2 + $0x8] sm:$0xff]
  %v164 = vld [vmem:[%s2 + $0x10] sm:$0xff]
  %v165 = vld [vmem:[%s2 + $0x18] sm:$0xff]
  %v166 = vld [vmem:[%s2 + $0x20] sm:$0xff]
  %v167 = vld [vmem:[%s2 + $0x28] sm:$0xff]
  %v168 = vld [vmem:[%s2 + $0x30] sm:$0xff]
  %v169 = vld [vmem:[%s2 + $0x38] sm:$0xff]
  %v170 = vld [vmem:[%s2 + $0x40] sm:$0xff]
  %171 = vmatprep.subr.mxu0 0.0
  %172 = vmatpush1.msra.mxu0 %v27
  %173 = vmatprep.subr.mxu0 0.0
  %174 = vmatpush1.msra.mxu0 %v28
  %175 = vmatprep.subr.mxu0 0.0
  %176 = vmatpush1.msra.mxu0 %v29
  %177 = vmatprep.subr.mxu0 0.0
  %178 = vmatpush1.msra.mxu0 %v30
  %179 = vmatprep.subr.mxu0 0.0
  %180 = vmatpush1.msra.mxu0 %v31
  %181 = vmatprep.subr.mxu0 0.0
  %182 = vmatpush1.msra.mxu0 %v32
  %183 = vmatprep.subr.mxu0 0.0
  %184 = vmatpush1.msra.mxu0 %v33
  %185 = vmatprep.subr.mxu0 0.0
  %186 = vmatpush1.msra.mxu0 %v34
  %187 = vmatprep.subr.mxu0 0.0
  %188 = vmatpush1.msra.mxu0 %v35
  %189 = vmatprep.subr.mxu0 0.0
  %190 = vmatpush1.msra.mxu0 %v36
  %191 = vmatprep.subr.mxu0 0.0
  %192 = vmatpush1.msra.mxu0 %v37
  %193 = vmatprep.subr.mxu0 0.0
  %194 = vmatpush1.msra.mxu0 %v38
  %195 = vmatprep.subr.mxu0 0.0
  %196 = vmatpush1.msra.mxu0 %v39
  %197 = vmatprep.subr.mxu0 0.0
  %198 = vmatpush1.msra.mxu0 %v40
  %199 = vmatprep.subr.mxu0 0.0
  %200 = vmatpush1.msra.mxu0 %v41
  %201 = vmatprep.subr.mxu0 0.0
  %202 = vmatpush1.msra.mxu0 %v42
  %203 = vmatprep.subr.mxu0 0.0
  %204 = vmatpush1.msra.mxu0 0.0
  %205 = vmatprep.subr.mxu0 0.0
  %206 = vmatpush1.msra.mxu0 0.0
  %207 = vmatprep.subr.mxu0 0.0
  %208 = vmatpush1.msra.mxu0 0.0
  %209 = vmatprep.subr.mxu0 0.0
  %210 = vmatpush1.msra.mxu0 0.0
  %211 = vmatprep.subr.mxu0 0.0
  %212 = vmatpush1.msra.mxu0 0.0
  %213 = vmatprep.subr.mxu0 0.0
  %214 = vmatpush1.msra.mxu0 0.0
  %215 = vmatprep.subr.mxu0 0.0
  %216 = vmatpush1.msra.mxu0 0.0
  %217 = vmatprep.subr.mxu0 0.0
  %218 = vmatpush1.msra.mxu0 0.0
  %219 = vmatprep.subr.mxu0 0.0
  %220 = vmatpush1.msra.mxu0 0.0
  %221 = vmatprep.subr.mxu0 0.0
  %222 = vmatpush1.msra.mxu0 0.0
  %223 = vmatprep.subr.mxu0 0.0
  %224 = vmatpush1.msra.mxu0 0.0
  %225 = vmatprep.subr.mxu0 0.0
  %226 = vmatpush1.msra.mxu0 0.0
  %227 = vmatprep.subr.mxu0 0.0
  %228 = vmatpush1.msra.mxu0 0.0
  %229 = vmatprep.subr.mxu0 0.0
  %230 = vmatpush1.msra.mxu0 0.0
  %231 = vmatprep.subr.mxu0 0.0
  %232 = vmatpush1.msra.mxu0 0.0
  %233 = vmatprep.subr.mxu0 0.0
  %234 = vmatpush1.msra.mxu0 0.0
  %235 = vmatprep.mubr.f32.mxu0 0.0
  %236 = vmatmul.mubr.f32.gmra.mrb[0].mxu0 %v162
  %v237 = vpop.f32.mrb[0].mxu0
  %v238 = vadd.f32 0.0, %v237
  %v239 = vpop.f32.mrb[0].mxu0
  %240 = vmatprep.mubr.f32.mxu0 0.0
  %241 = vmatmul.mubr.f32.gmra.mrb[0].mxu0 %v163
  %v242 = vpop.f32.mrb[0].mxu0
  %v243 = vadd.f32 0.0, %v242
  %v244 = vpop.f32.mrb[0].mxu0
  %245 = vmatprep.mubr.f32.mxu0 0.0
  %246 = vmatmul.mubr.f32.gmra.mrb[0].mxu0 %v164
  %v247 = vpop.f32.mrb[0].mxu0
  %v248 = vadd.f32 0.0, %v247
  %v249 = vpop.f32.mrb[0].mxu0
  %250 = vmatprep.mubr.f32.mxu0 0.0
  %251 = vmatmul.mubr.f32.gmra.mrb[0].mxu0 %v165
  %v252 = vpop.f32.mrb[0].mxu0
  %v253 = vadd.f32 0.0, %v252
  %v254 = vpop.f32.mrb[0].mxu0
  %255 = vmatprep.mubr.f32.mxu0 0.0
  %256 = vmatmul.mubr.f32.gmra.mrb[0].mxu0 %v166
  %v257 = vpop.f32.mrb[0].mxu0
  %v258 = vadd.f32 0.0, %v257
  %v259 = vpop.f32.mrb[0].mxu0
  %260 = vmatprep.mubr.f32.mxu0 0.0
  %261 = vmatmul.mubr.f32.gmra.mrb[0].mxu0 %v167
  %v262 = vpop.f32.mrb[0].mxu0
  %v263 = vadd.f32 0.0, %v262
  %v264 = vpop.f32.mrb[0].mxu0
  %265 = vmatprep.mubr.f32.mxu0 0.0
  %266 = vmatmul.mubr.f32.gmra.mrb[0].mxu0 %v168
  %v267 = vpop.f32.mrb[0].mxu0
  %v268 = vadd.f32 0.0, %v267
  %v269 = vpop.f32.mrb[0].mxu0
  %270 = vmatprep.mubr.f32.mxu0 0.0
  %271 = vmatmul.mubr.f32.gmra.mrb[0].mxu0 %v169
  %v272 = vpop.f32.mrb[0].mxu0
  %v273 = vadd.f32 0.0, %v272
  %v274 = vpop.f32.mrb[0].mxu0
  %275 = vmatprep.mubr.f32.mxu0 0.0
  %276 = vmatmul.mubr.f32.gmra.mrb[0].mxu0 %v170
  %v277 = vpop.f32.mrb[0].mxu0
  %v278 = vadd.f32 0.0, %v277
  %v279 = vpop.f32.mrb[0].mxu0
  %280 = vdwg.mxu0
  %v281 = vmul.f32 %v119, %v119
  %v282 = vmul.f32 %v124, %v124
  %v283 = vmul.f32 %v129, %v129
  %v284 = vmul.f32 %v134, %v134
  %v285 = vmul.f32 %v139, %v139
  %v286 = vmul.f32 %v144, %v144
  %v287 = vmul.f32 %v149, %v149
  %v288 = vmul.f32 %v154, %v154
  %v289 = vmul.f32 %v159, %v159
  %v290 = vmul.f32 %v238, %v238
  %v291 = vmul.f32 %v243, %v243
  %v292 = vmul.f32 %v248, %v248
  %v293 = vmul.f32 %v253, %v253
  %v294 = vmul.f32 %v258, %v258
  %v295 = vmul.f32 %v263, %v263
  %v296 = vmul.f32 %v268, %v268
  %v297 = vmul.f32 %v273, %v273
  %v298 = vmul.f32 %v278, %v278
  %v299 = vadd.f32 %v281, %v290
  %v300 = vadd.f32 %v282, %v291
  %v301 = vadd.f32 %v283, %v292
  %v302 = vadd.f32 %v284, %v293
  %v303 = vadd.f32 %v285, %v294
  %v304 = vadd.f32 %v286, %v295
  %v305 = vadd.f32 %v287, %v296
  %v306 = vadd.f32 %v288, %v297
  %v307 = vadd.f32 %v289, %v298
  %v308 = vld [vmem:[%s3] sm:$0xff]
  %v309 = vld [vmem:[%s3 + $0x8] sm:$0xff]
  %v310 = vld [vmem:[%s3 + $0x10] sm:$0xff]
  %v311 = vld [vmem:[%s3 + $0x18] sm:$0xff]
  %vm312 = vcmask 588800
  %v314 = vsel %vm312, %v308, 0
  %v317 = vsel %vm312, %v309, 0
  %v320 = vsel %vm312, %v310, 0
  %v323 = vsel %vm312, %v311, 0
  %325 = vmatprep.subr.mxu0 0.0
  %326 = vmatpush1.msra.mxu0 %v299
  %327 = vmatprep.subr.mxu0 0.0
  %328 = vmatpush1.msra.mxu0 %v300
  %329 = vmatprep.subr.mxu0 0.0
  %330 = vmatpush1.msra.mxu0 %v301
  %331 = vmatprep.subr.mxu0 0.0
  %332 = vmatpush1.msra.mxu0 %v302
  %333 = vmatprep.subr.mxu0 0.0
  %334 = vmatpush1.msra.mxu0 %v303
  %335 = vmatprep.subr.mxu0 0.0
  %336 = vmatpush1.msra.mxu0 %v304
  %337 = vmatprep.subr.mxu0 0.0
  %338 = vmatpush1.msra.mxu0 %v305
  %339 = vmatprep.subr.mxu0 0.0
  %340 = vmatpush1.msra.mxu0 %v306
  %341 = vmatprep.subr.mxu0 0.0
  %342 = vmatpush1.msra.mxu0 %v307
  %343 = vmatprep.subr.mxu0 0.0
  %344 = vmatpush1.msra.mxu0 0.0
  %345 = vmatprep.subr.mxu0 0.0
  %346 = vmatpush1.msra.mxu0 0.0
  %347 = vmatprep.subr.mxu0 0.0
  %348 = vmatpush1.msra.mxu0 0.0
  %349 = vmatprep.subr.mxu0 0.0
  %350 = vmatpush1.msra.mxu0 0.0
  %351 = vmatprep.subr.mxu0 0.0
  %352 = vmatpush1.msra.mxu0 0.0
  %353 = vmatprep.subr.mxu0 0.0
  %354 = vmatpush1.msra.mxu0 0.0
  %355 = vmatprep.subr.mxu0 0.0
  %356 = vmatpush1.msra.mxu0 0.0
  %357 = vmatprep.subr.mxu0 0.0
  %358 = vmatpush1.msra.mxu0 0.0
  %359 = vmatprep.subr.mxu0 0.0
  %360 = vmatpush1.msra.mxu0 0.0
  %361 = vmatprep.subr.mxu0 0.0
  %362 = vmatpush1.msra.mxu0 0.0
  %363 = vmatprep.subr.mxu0 0.0
  %364 = vmatpush1.msra.mxu0 0.0
  %365 = vmatprep.subr.mxu0 0.0
  %366 = vmatpush1.msra.mxu0 0.0
  %367 = vmatprep.subr.mxu0 0.0
  %368 = vmatpush1.msra.mxu0 0.0
  %369 = vmatprep.subr.mxu0 0.0
  %370 = vmatpush1.msra.mxu0 0.0
  %371 = vmatprep.subr.mxu0 0.0
  %372 = vmatpush1.msra.mxu0 0.0
  %373 = vmatprep.subr.mxu0 0.0
  %374 = vmatpush1.msra.mxu0 0.0
  %375 = vmatprep.subr.mxu0 0.0
  %376 = vmatpush1.msra.mxu0 0.0
  %377 = vmatprep.subr.mxu0 0.0
  %378 = vmatpush1.msra.mxu0 0.0
  %379 = vmatprep.subr.mxu0 0.0
  %380 = vmatpush1.msra.mxu0 0.0
  %381 = vmatprep.subr.mxu0 0.0
  %382 = vmatpush1.msra.mxu0 0.0
  %383 = vmatprep.subr.mxu0 0.0
  %384 = vmatpush1.msra.mxu0 0.0
  %385 = vmatprep.subr.mxu0 0.0
  %386 = vmatpush1.msra.mxu0 0.0
  %387 = vmatprep.subr.mxu0 0.0
  %388 = vmatpush1.msra.mxu0 0.0
  %389 = vmatprep.mubr.f32.mxu0 0.0
  %390 = vmatmul.mubr.f32.gmra.mrb[0].mxu0 %v314
  %v391 = vpop.f32.mrb[0].mxu0
  %v392 = vadd.f32 0.0, %v391
  %v393 = vpop.f32.mrb[0].mxu0
  %394 = vmatprep.mubr.f32.mxu0 0.0
  %395 = vmatmul.mubr.f32.gmra.mrb[0].mxu0 %v317
  %v396 = vpop.f32.mrb[0].mxu0
  %v397 = vadd.f32 0.0, %v396
  %v398 = vpop.f32.mrb[0].mxu0
  %399 = vmatprep.mubr.f32.mxu0 0.0
  %400 = vmatmul.mubr.f32.gmra.mrb[0].mxu0 %v320
  %v401 = vpop.f32.mrb[0].mxu0
  %v402 = vadd.f32 0.0, %v401
  %v403 = vpop.f32.mrb[0].mxu0
  %404 = vmatprep.mubr.f32.mxu0 0.0
  %405 = vmatmul.mubr.f32.gmra.mrb[0].mxu0 %v323
  %v406 = vpop.f32.mrb[0].mxu0
  %v407 = vadd.f32 0.0, %v406
  %v408 = vpop.f32.mrb[0].mxu0
  %409 = vdwg.mxu0
  %v410 = vmax.f32 %v392, 1e-10
  %v411 = vmax.f32 %v397, 1e-10
  %v412 = vmax.f32 %v402, 1e-10
  %v413 = vmax.f32 %v407, 1e-10
  %v414 = vlog2.pop %v410
  %v415 = vmul.f32 %v414, 0.6931472
  %v416 = vlog2.pop %v411
  %v417 = vmul.f32 %v416, 0.6931472
  %v418 = vlog2.pop %v412
  %v419 = vmul.f32 %v418, 0.6931472
  %v420 = vlog2.pop %v413
  %v421 = vmul.f32 %v420, 0.6931472
  %v422 = vmul.f32 %v415, 0.4342945
  %v423 = vmul.f32 %v417, 0.4342945
  %v424 = vmul.f32 %v419, 0.4342945
  %v425 = vmul.f32 %v421, 0.4342945
  %v426 = vmul.f32 %v422, 10.0
  %v427 = vmul.f32 %v423, 10.0
  %v428 = vmul.f32 %v424, 10.0
  %v429 = vmul.f32 %v425, 10.0
  %v430 = vld [vmem:[#allocation2] sm:$0x1]
  %v432 = vlaneseq
  %v433 = vshrl.u32 %v432, 7
  %v434 = vsub.s32 0, %v433
  %v435 = vrot.slane %v430, %v434
  %436 = vset.pattern.permute.xlu0 0
  %437 = vperm.xlu0 %436, %v435
  %v438 = vpop.permute.xlu0 %437
  %v440 = vmul.f32 %v426, %v438
  %v441 = vmul.f32 %v427, %v438
  %v442 = vmul.f32 %v428, %v438
  %v443 = vmul.f32 %v429, %v438
  %v444 = vld [vmem:[#allocation3] sm:$0x1]
  %v446 = vlaneseq
  %v447 = vshrl.u32 %v446, 7
  %v448 = vsub.s32 0, %v447
  %v449 = vrot.slane %v444, %v448
  %450 = vset.pattern.permute.xlu0 0
  %451 = vperm.xlu0 %450, %v449
  %v452 = vpop.permute.xlu0 %451
  %v454 = vadd.f32 %v440, %v452
  %v455 = vadd.f32 %v441, %v452
  %v456 = vadd.f32 %v442, %v452
  %v457 = vadd.f32 %v443, %v452
  %vm458 = vcmask 146432
  %459 = vst.msk [vmem:[%s6] sm:$0xff] %vm458, %v454
  %460 = vst.msk [vmem:[%s6 + $0x8] sm:$0xff] %vm458, %v455
  %461 = vst.msk [vmem:[%s6 + $0x10] sm:$0xff] %vm458, %v456
  %462 = vst.msk [vmem:[%s6 + $0x18] sm:$0xff] %vm458, %v457
  // Predicated region
  $region26: #{model_forward.9} parent=0 // pred_check
    _
  $region27: #{model_forward.9} parent=0 // pred_check_branch
    %464 = sbr.rel (0) target = $region29
  $region28: #{model_forward.9} parent=0 // pred_region
    _
  $region29: #{model_forward.9} parent=0 // pred_fallthru
    _
  // Predicated region
  $region30: #{model_forward.9} parent=0 // pred_check
    _
  $region31: #{model_forward.9} parent=0 // pred_check_branch
    %466 = sbr.rel (0) target = $region33
  $region32: #{model_forward.9} parent=0 // pred_region
    _
  $region33: #{model_forward.9} parent=0 // pred_fallthru
    _

// kernel: model_forward.11
$region0: #{model_forward.11}
  #allocation0 [shape = 'u32[]', space=smem, size = 0x4, offset = 0x4, fixed_abs, tag = 'smem constant byte address 0x4 - core index']
  #allocation1 [shape = 'u32[144,128]{1,0:T(1,128)}', space=vmem, size = 0x12000, scoped, tag = 'internal scratch']
  %s0 = inlined_call_operand.vmem [shape: f32[16,80], index: 0, kind: input, shape index: {}]
  %s1 = inlined_call_operand.vmem [shape: f32[3,8,16], index: 1, kind: input, shape index: {}]
  %s2 = inlined_call_operand.vmem [shape: f32[3,8,8], index: 2, kind: input, shape index: {}]
  %s3 = inlined_call_operand.vmem [shape: f32[3,80,48], index: 3, kind: input, shape index: {}]
  %s4 = inlined_call_operand.vmem [shape: f32[8,48], index: 4, kind: input, shape index: {}]
  %s5 = inlined_call_operand.vmem [shape: f32[3,80,48], index: 5, kind: input, shape index: {}]
  %s6 = inlined_call_operand.vmem [shape: f32[8,48], index: 6, kind: input, shape index: {}]
  %s7 = inlined_call_operand.vmem [shape: f32[3,48,48], index: 7, kind: input, shape index: {}]
  %s8 = inlined_call_operand.vmem [shape: f32[8,48], index: 8, kind: input, shape index: {}]
  %s9 = inlined_call_operand.vmem [shape: f32[8,48], index: 9, kind: output, shape index: {}]
  %s10 = sld [smem:[#allocation0]]
  $region46: #{model_forward.11} parent=0
    _
  %s12 = ssub.s32 1, %s10
  %s13 = scalar_select 0, %s12, %s10
  // Predicated region
  $region2: #{model_forward.11} parent=0 // pred_check
    _
  $region3: #{model_forward.11} parent=0 // pred_check_branch
    %15 = sbr.rel (0) target = $region5
  $region4: #{model_forward.11} parent=0 // pred_region
    _
  $region5: #{model_forward.11} parent=0 // pred_fallthru
    _
  // Predicated region
  $region6: #{model_forward.11} parent=0 // pred_check
    _
  $region7: #{model_forward.11} parent=0 // pred_check_branch
    %17 = sbr.rel (0) target = $region9
  $region8: #{model_forward.11} parent=0 // pred_region
    _
  $region9: #{model_forward.11} parent=0 // pred_fallthru
    _
  // Predicated region
  $region10: #{model_forward.11} parent=0 // pred_check
    _
  $region11: #{model_forward.11} parent=0 // pred_check_branch
    %19 = sbr.rel (0) target = $region13
  $region12: #{model_forward.11} parent=0 // pred_region
    _
  $region13: #{model_forward.11} parent=0 // pred_fallthru
    _
  // Predicated region
  $region14: #{model_forward.11} parent=0 // pred_check
    _
  $region15: #{model_forward.11} parent=0 // pred_check_branch
    %21 = sbr.rel (0) target = $region17
  $region16: #{model_forward.11} parent=0 // pred_region
    _
  $region17: #{model_forward.11} parent=0 // pred_fallthru
    _
  // Predicated region
  $region18: #{model_forward.11} parent=0 // pred_check
    _
  $region19: #{model_forward.11} parent=0 // pred_check_branch
    %23 = sbr.rel (0) target = $region21
  $region20: #{model_forward.11} parent=0 // pred_region
    _
  $region21: #{model_forward.11} parent=0 // pred_fallthru
    _
  // Predicated region
  $region22: #{model_forward.11} parent=0 // pred_check
    _
  $region23: #{model_forward.11} parent=0 // pred_check_branch
    %25 = sbr.rel (0) target = $region25
  $region24: #{model_forward.11} parent=0 // pred_region
    _
  $region25: #{model_forward.11} parent=0 // pred_fallthru
    _
  // Predicated region
  $region26: #{model_forward.11} parent=0 // pred_check
    _
  $region27: #{model_forward.11} parent=0 // pred_check_branch
    %27 = sbr.rel (0) target = $region29
  $region28: #{model_forward.11} parent=0 // pred_region
    _
  $region29: #{model_forward.11} parent=0 // pred_fallthru
    _
  // Predicated region
  $region30: #{model_forward.11} parent=0 // pred_check
    _
  $region31: #{model_forward.11} parent=0 // pred_check_branch
    %29 = sbr.rel (0) target = $region33
  $region32: #{model_forward.11} parent=0 // pred_region
    _
  $region33: #{model_forward.11} parent=0 // pred_fallthru
    _
  // Predicated region
  $region34: #{model_forward.11} parent=0 // pred_check
    _
  $region35: #{model_forward.11} parent=0 // pred_check_branch
    %31 = sbr.rel (0) target = $region37
  $region36: #{model_forward.11} parent=0 // pred_region
    _
  $region37: #{model_forward.11} parent=0 // pred_fallthru
    _
  %v32 = vld [vmem:[%s0] sm:$0xff]
  %v33 = vld [vmem:[%s0 + $0x8] sm:$0xff]
  %v34 = vld [vmem:[%s1] sm:$0xff]
  %vm35 = vcmask 130048
  %v37 = vsel %vm35, %v34, 0
  %39 = vmatprep.subr.mxu0 0.0
  %40 = vmatpush1.msra.mxu0 %v32
  %41 = vmatprep.subr.mxu0 0.0
  %42 = vmatpush1.msra.mxu0 %v33
  %43 = vmatprep.subr.mxu0 0.0
  %44 = vmatpush1.msra.mxu0 0.0
  %45 = vmatprep.subr.mxu0 0.0
  %46 = vmatpush1.msra.mxu0 0.0
  %47 = vmatprep.subr.mxu0 0.0
  %48 = vmatpush1.msra.mxu0 0.0
  %49 = vmatprep.subr.mxu0 0.0
  %50 = vmatpush1.msra.mxu0 0.0
  %51 = vmatprep.subr.mxu0 0.0
  %52 = vmatpush1.msra.mxu0 0.0
  %53 = vmatprep.subr.mxu0 0.0
  %54 = vmatpush1.msra.mxu0 0.0
  %55 = vmatprep.subr.mxu0 0.0
  %56 = vmatpush1.msra.mxu0 0.0
  %57 = vmatprep.subr.mxu0 0.0
  %58 = vmatpush1.msra.mxu0 0.0
  %59 = vmatprep.subr.mxu0 0.0
  %60 = vmatpush1.msra.mxu0 0.0
  %61 = vmatprep.subr.mxu0 0.0
  %62 = vmatpush1.msra.mxu0 0.0
  %63 = vmatprep.subr.mxu0 0.0
  %64 = vmatpush1.msra.mxu0 0.0
  %65 = vmatprep.subr.mxu0 0.0
  %66 = vmatpush1.msra.mxu0 0.0
  %67 = vmatprep.subr.mxu0 0.0
  %68 = vmatpush1.msra.mxu0 0.0
  %69 = vmatprep.subr.mxu0 0.0
  %70 = vmatpush1.msra.mxu0 0.0
  %71 = vmatprep.subr.mxu0 0.0
  %72 = vmatpush1.msra.mxu0 0.0
  %73 = vmatprep.subr.mxu0 0.0
  %74 = vmatpush1.msra.mxu0 0.0
  %75 = vmatprep.subr.mxu0 0.0
  %76 = vmatpush1.msra.mxu0 0.0
  %77 = vmatprep.subr.mxu0 0.0
  %78 = vmatpush1.msra.mxu0 0.0
  %79 = vmatprep.subr.mxu0 0.0
  %80 = vmatpush1.msra.mxu0 0.0
  %81 = vmatprep.subr.mxu0 0.0
  %82 = vmatpush1.msra.mxu0 0.0
  %83 = vmatprep.subr.mxu0 0.0
  %84 = vmatpush1.msra.mxu0 0.0
  %85 = vmatprep.subr.mxu0 0.0
  %86 = vmatpush1.msra.mxu0 0.0
  %87 = vmatprep.subr.mxu0 0.0
  %88 = vmatpush1.msra.mxu0 0.0
  %89 = vmatprep.subr.mxu0 0.0
  %90 = vmatpush1.msra.mxu0 0.0
  %91 = vmatprep.subr.mxu0 0.0
  %92 = vmatpush1.msra.mxu0 0.0
  %93 = vmatprep.subr.mxu0 0.0
  %94 = vmatpush1.msra.mxu0 0.0
  %95 = vmatprep.subr.mxu0 0.0
  %96 = vmatpush1.msra.mxu0 0.0
  %97 = vmatprep.subr.mxu0 0.0
  %98 = vmatpush1.msra.mxu0 0.0
  %99 = vmatprep.subr.mxu0 0.0
  %100 = vmatpush1.msra.mxu0 0.0
  %101 = vmatprep.subr.mxu0 0.0
  %102 = vmatpush1.msra.mxu0 0.0
  %103 = vmatprep.mubr.f32.mxu0 0.0
  %104 = vmatmul.mubr.f32.gmra.mrb[0].mxu0 %v37
  %v105 = vpop.f32.mrb[0].mxu0
  %v106 = vadd.f32 0.0, %v105
  %v107 = vpop.f32.mrb[0].mxu0
  %108 = vdwg.mxu0
  %s109 = scalar_lea.vmem %s1, 8
  %v110 = vld [vmem:[%s109] sm:$0xff]
  %v112 = vsel %vm35, %v110, 0
  %114 = vmatprep.subr.mxu0 0.0
  %115 = vmatpush1.msra.mxu0 %v32
  %116 = vmatprep.subr.mxu0 0.0
  %117 = vmatpush1.msra.mxu0 %v33
  %118 = vmatprep.subr.mxu0 0.0
  %119 = vmatpush1.msra.mxu0 0.0
  %120 = vmatprep.subr.mxu0 0.0
  %121 = vmatpush1.msra.mxu0 0.0
  %122 = vmatprep.subr.mxu0 0.0
  %123 = vmatpush1.msra.mxu0 0.0
  %124 = vmatprep.subr.mxu0 0.0
  %125 = vmatpush1.msra.mxu0 0.0
  %126 = vmatprep.subr.mxu0 0.0
  %127 = vmatpush1.msra.mxu0 0.0
  %128 = vmatprep.subr.mxu0 0.0
  %129 = vmatpush1.msra.mxu0 0.0
  %130 = vmatprep.subr.mxu0 0.0
  %131 = vmatpush1.msra.mxu0 0.0
  %132 = vmatprep.subr.mxu0 0.0
  %133 = vmatpush1.msra.mxu0 0.0
  %134 = vmatprep.subr.mxu0 0.0
  %135 = vmatpush1.msra.mxu0 0.0
  %136 = vmatprep.subr.mxu0 0.0
  %137 = vmatpush1.msra.mxu0 0.0
  %138 = vmatprep.subr.mxu0 0.0
  %139 = vmatpush1.msra.mxu0 0.0
  %140 = vmatprep.subr.mxu0 0.0
  %141 = vmatpush1.msra.mxu0 0.0
  %142 = vmatprep.subr.mxu0 0.0
  %143 = vmatpush1.msra.mxu0 0.0
  %144 = vmatprep.subr.mxu0 0.0
  %145 = vmatpush1.msra.mxu0 0.0
  %146 = vmatprep.subr.mxu0 0.0
  %147 = vmatpush1.msra.mxu0 0.0
  %148 = vmatprep.subr.mxu0 0.0
  %149 = vmatpush1.msra.mxu0 0.0
  %150 = vmatprep.subr.mxu0 0.0
  %151 = vmatpush1.msra.mxu0 0.0
  %152 = vmatprep.subr.mxu0 0.0
  %153 = vmatpush1.msra.mxu0 0.0
  %154 = vmatprep.subr.mxu0 0.0
  %155 = vmatpush1.msra.mxu0 0.0
  %156 = vmatprep.subr.mxu0 0.0
  %157 = vmatpush1.msra.mxu0 0.0
  %158 = vmatprep.subr.mxu0 0.0
  %159 = vmatpush1.msra.mxu0 0.0
  %160 = vmatprep.subr.mxu0 0.0
  %161 = vmatpush1.msra.mxu0 0.0
  %162 = vmatprep.subr.mxu0 0.0
  %163 = vmatpush1.msra.mxu0 0.0
  %164 = vmatprep.subr.mxu0 0.0
  %165 = vmatpush1.msra.mxu0 0.0
  %166 = vmatprep.subr.mxu0 0.0
  %167 = vmatpush1.msra.mxu0 0.0
  %168 = vmatprep.subr.mxu0 0.0
  %169 = vmatpush1.msra.mxu0 0.0
  %170 = vmatprep.subr.mxu0 0.0
  %171 = vmatpush1.msra.mxu0 0.0
  %172 = vmatprep.subr.mxu0 0.0
  %173 = vmatpush1.msra.mxu0 0.0
  %174 = vmatprep.subr.mxu0 0.0
  %175 = vmatpush1.msra.mxu0 0.0
  %176 = vmatprep.subr.mxu0 0.0
  %177 = vmatpush1.msra.mxu0 0.0
  %178 = vmatprep.mubr.f32.mxu0 0.0
  %179 = vmatmul.mubr.f32.gmra.mrb[0].mxu0 %v112
  %v180 = vpop.f32.mrb[0].mxu0
  %v181 = vadd.f32 0.0, %v180
  %v182 = vpop.f32.mrb[0].mxu0
  %183 = vdwg.mxu0
  %s184 = scalar_lea.vmem %s1, 16
  %v185 = vld [vmem:[%s184] sm:$0xff]
  %v187 = vsel %vm35, %v185, 0
  %189 = vmatprep.subr.mxu0 0.0
  %190 = vmatpush1.msra.mxu0 %v32
  %191 = vmatprep.subr.mxu0 0.0
  %192 = vmatpush1.msra.mxu0 %v33
  %193 = vmatprep.subr.mxu0 0.0
  %194 = vmatpush1.msra.mxu0 0.0
  %195 = vmatprep.subr.mxu0 0.0
  %196 = vmatpush1.msra.mxu0 0.0
  %197 = vmatprep.subr.mxu0 0.0
  %198 = vmatpush1.msra.mxu0 0.0
  %199 = vmatprep.subr.mxu0 0.0
  %200 = vmatpush1.msra.mxu0 0.0
  %201 = vmatprep.subr.mxu0 0.0
  %202 = vmatpush1.msra.mxu0 0.0
  %203 = vmatprep.subr.mxu0 0.0
  %204 = vmatpush1.msra.mxu0 0.0
  %205 = vmatprep.subr.mxu0 0.0
  %206 = vmatpush1.msra.mxu0 0.0
  %207 = vmatprep.subr.mxu0 0.0
  %208 = vmatpush1.msra.mxu0 0.0
  %209 = vmatprep.subr.mxu0 0.0
  %210 = vmatpush1.msra.mxu0 0.0
  %211 = vmatprep.subr.mxu0 0.0
  %212 = vmatpush1.msra.mxu0 0.0
  %213 = vmatprep.subr.mxu0 0.0
  %214 = vmatpush1.msra.mxu0 0.0
  %215 = vmatprep.subr.mxu0 0.0
  %216 = vmatpush1.msra.mxu0 0.0
  %217 = vmatprep.subr.mxu0 0.0
  %218 = vmatpush1.msra.mxu0 0.0
  %219 = vmatprep.subr.mxu0 0.0
  %220 = vmatpush1.msra.mxu0 0.0
  %221 = vmatprep.subr.mxu0 0.0
  %222 = vmatpush1.msra.mxu0 0.0
  %223 = vmatprep.subr.mxu0 0.0
  %224 = vmatpush1.msra.mxu0 0.0
  %225 = vmatprep.subr.mxu0 0.0
  %226 = vmatpush1.msra.mxu0 0.0
  %227 = vmatprep.subr.mxu0 0.0
  %228 = vmatpush1.msra.mxu0 0.0
  %229 = vmatprep.subr.mxu0 0.0
  %230 = vmatpush1.msra.mxu0 0.0
  %231 = vmatprep.subr.mxu0 0.0
  %232 = vmatpush1.msra.mxu0 0.0
  %233 = vmatprep.subr.mxu0 0.0
  %234 = vmatpush1.msra.mxu0 0.0
  %235 = vmatprep.subr.mxu0 0.0
  %236 = vmatpush1.msra.mxu0 0.0
  %237 = vmatprep.subr.mxu0 0.0
  %238 = vmatpush1.msra.mxu0 0.0
  %239 = vmatprep.subr.mxu0 0.0
  %240 = vmatpush1.msra.mxu0 0.0
  %241 = vmatprep.subr.mxu0 0.0
  %242 = vmatpush1.msra.mxu0 0.0
  %243 = vmatprep.subr.mxu0 0.0
  %244 = vmatpush1.msra.mxu0 0.0
  %245 = vmatprep.subr.mxu0 0.0
  %246 = vmatpush1.msra.mxu0 0.0
  %247 = vmatprep.subr.mxu0 0.0
  %248 = vmatpush1.msra.mxu0 0.0
  %249 = vmatprep.subr.mxu0 0.0
  %250 = vmatpush1.msra.mxu0 0.0
  %251 = vmatprep.subr.mxu0 0.0
  %252 = vmatpush1.msra.mxu0 0.0
  %253 = vmatprep.mubr.f32.mxu0 0.0
  %254 = vmatmul.mubr.f32.gmra.mrb[0].mxu0 %v187
  %v255 = vpop.f32.mrb[0].mxu0
  %v256 = vadd.f32 0.0, %v255
  %v257 = vpop.f32.mrb[0].mxu0
  %258 = vdwg.mxu0
  %v259 = vld [vmem:[%s3] sm:$0xff]
  %v260 = vld [vmem:[%s3 + $0x8] sm:$0xff]
  %v261 = vld [vmem:[%s3 + $0x10] sm:$0xff]
  %v262 = vld [vmem:[%s3 + $0x18] sm:$0xff]
  %v263 = vld [vmem:[%s3 + $0x20] sm:$0xff]
  %v264 = vld [vmem:[%s3 + $0x28] sm:$0xff]
  %v265 = vld [vmem:[%s3 + $0x30] sm:$0xff]
  %v266 = vld [vmem:[%s3 + $0x38] sm:$0xff]
  %v267 = vld [vmem:[%s3 + $0x40] sm:$0xff]
  %v268 = vld [vmem:[%s3 + $0x48] sm:$0xff]
  %s269 = scalar_lea.vmem %s3, 80
  %v270 = vld [vmem:[%s269] sm:$0xff]
  %v271 = vld [vmem:[%s269 + $0x8] sm:$0xff]
  %v272 = vld [vmem:[%s269 + $0x10] sm:$0xff]
  %v273 = vld [vmem:[%s269 + $0x18] sm:$0xff]
  %v274 = vld [vmem:[%s269 + $0x20] sm:$0xff]
  %v275 = vld [vmem:[%s269 + $0x28] sm:$0xff]
  %v276 = vld [vmem:[%s269 + $0x30] sm:$0xff]
  %v277 = vld [vmem:[%s269 + $0x38] sm:$0xff]
  %v278 = vld [vmem:[%s269 + $0x40] sm:$0xff]
  %v279 = vld [vmem:[%s269 + $0x48] sm:$0xff]
  %vm280 = vcmask 654336
  %v282 = vsel %vm280, %v181, 0
  %284 = vmatprep.subr.mxu0 0.0
  %285 = vmatpush1.msra.mxu0 %v270
  %286 = vmatprep.subr.mxu0 0.0
  %287 = vmatpush1.msra.mxu0 %v271
  %288 = vmatprep.subr.mxu0 0.0
  %289 = vmatpush1.msra.mxu0 %v272
  %290 = vmatprep.subr.mxu0 0.0
  %291 = vmatpush1.msra.mxu0 %v273
  %292 = vmatprep.subr.mxu0 0.0
  %293 = vmatpush1.msra.mxu0 %v274
  %294 = vmatprep.subr.mxu0 0.0
  %295 = vmatpush1.msra.mxu0 %v275
  %296 = vmatprep.subr.mxu0 0.0
  %297 = vmatpush1.msra.mxu0 %v276
  %298 = vmatprep.subr.mxu0 0.0
  %299 = vmatpush1.msra.mxu0 %v277
  %300 = vmatprep.subr.mxu0 0.0
  %301 = vmatpush1.msra.mxu0 %v278
  %302 = vmatprep.subr.mxu0 0.0
  %303 = vmatpush1.msra.mxu0 %v279
  %304 = vmatprep.subr.mxu0 0.0
  %305 = vmatpush1.msra.mxu0 0.0
  %306 = vmatprep.subr.mxu0 0.0
  %307 = vmatpush1.msra.mxu0 0.0
  %308 = vmatprep.subr.mxu0 0.0
  %309 = vmatpush1.msra.mxu0 0.0
  %310 = vmatprep.subr.mxu0 0.0
  %311 = vmatpush1.msra.mxu0 0.0
  %312 = vmatprep.subr.mxu0 0.0
  %313 = vmatpush1.msra.mxu0 0.0
  %314 = vmatprep.subr.mxu0 0.0
  %315 = vmatpush1.msra.mxu0 0.0
  %316 = vmatprep.subr.mxu0 0.0
  %317 = vmatpush1.msra.mxu0 0.0
  %318 = vmatprep.subr.mxu0 0.0
  %319 = vmatpush1.msra.mxu0 0.0
  %320 = vmatprep.subr.mxu0 0.0
  %321 = vmatpush1.msra.mxu0 0.0
  %322 = vmatprep.subr.mxu0 0.0
  %323 = vmatpush1.msra.mxu0 0.0
  %324 = vmatprep.subr.mxu0 0.0
  %325 = vmatpush1.msra.mxu0 0.0
  %326 = vmatprep.subr.mxu0 0.0
  %327 = vmatpush1.msra.mxu0 0.0
  %328 = vmatprep.subr.mxu0 0.0
  %329 = vmatpush1.msra.mxu0 0.0
  %330 = vmatprep.subr.mxu0 0.0
  %331 = vmatpush1.msra.mxu0 0.0
  %332 = vmatprep.subr.mxu0 0.0
  %333 = vmatpush1.msra.mxu0 0.0
  %334 = vmatprep.subr.mxu0 0.0
  %335 = vmatpush1.msra.mxu0 0.0
  %336 = vmatprep.subr.mxu0 0.0
  %337 = vmatpush1.msra.mxu0 0.0
  %338 = vmatprep.subr.mxu0 0.0
  %339 = vmatpush1.msra.mxu0 0.0
  %340 = vmatprep.subr.mxu0 0.0
  %341 = vmatpush1.msra.mxu0 0.0
  %342 = vmatprep.subr.mxu0 0.0
  %343 = vmatpush1.msra.mxu0 0.0
  %344 = vmatprep.subr.mxu0 0.0
  %345 = vmatpush1.msra.mxu0 0.0
  %346 = vmatprep.subr.mxu0 0.0
  %347 = vmatpush1.msra.mxu0 0.0
  %348 = vmatprep.mubr.f32.mxu0 0.0
  %349 = vmatmul.mubr.f32.gmra.mrb[0].mxu0 %v282
  %v350 = vpop.f32.mrb[0].mxu0
  %v351 = vadd.f32 0.0, %v350
  %v352 = vpop.f32.mrb[0].mxu0
  %353 = vdwg.mxu0
  %v355 = vsel %vm280, %v106, 0
  %357 = vmatprep.subr.mxu0 0.0
  %358 = vmatpush1.msra.mxu0 %v259
  %359 = vmatprep.subr.mxu0 0.0
  %360 = vmatpush1.msra.mxu0 %v260
  %361 = vmatprep.subr.mxu0 0.0
  %362 = vmatpush1.msra.mxu0 %v261
  %363 = vmatprep.subr.mxu0 0.0
  %364 = vmatpush1.msra.mxu0 %v262
  %365 = vmatprep.subr.mxu0 0.0
  %366 = vmatpush1.msra.mxu0 %v263
  %367 = vmatprep.subr.mxu0 0.0
  %368 = vmatpush1.msra.mxu0 %v264
  %369 = vmatprep.subr.mxu0 0.0
  %370 = vmatpush1.msra.mxu0 %v265
  %371 = vmatprep.subr.mxu0 0.0
  %372 = vmatpush1.msra.mxu0 %v266
  %373 = vmatprep.subr.mxu0 0.0
  %374 = vmatpush1.msra.mxu0 %v267
  %375 = vmatprep.subr.mxu0 0.0
  %376 = vmatpush1.msra.mxu0 %v268
  %377 = vmatprep.subr.mxu0 0.0
  %378 = vmatpush1.msra.mxu0 0.0
  %379 = vmatprep.subr.mxu0 0.0
  %380 = vmatpush1.msra.mxu0 0.0
  %381 = vmatprep.subr.mxu0 0.0
  %382 = vmatpush1.msra.mxu0 0.0
  %383 = vmatprep.subr.mxu0 0.0
  %384 = vmatpush1.msra.mxu0 0.0
  %385 = vmatprep.subr.mxu0 0.0
  %386 = vmatpush1.msra.mxu0 0.0
  %387 = vmatprep.subr.mxu0 0.0
  %388 = vmatpush1.msra.mxu0 0.0
  %389 = vmatprep.subr.mxu0 0.0
  %390 = vmatpush1.msra.mxu0 0.0
  %391 = vmatprep.subr.mxu0 0.0
  %392 = vmatpush1.msra.mxu0 0.0
  %393 = vmatprep.subr.mxu0 0.0
  %394 = vmatpush1.msra.mxu0 0.0
  %395 = vmatprep.subr.mxu0 0.0
  %396 = vmatpush1.msra.mxu0 0.0
  %397 = vmatprep.subr.mxu0 0.0
  %398 = vmatpush1.msra.mxu0 0.0
  %399 = vmatprep.subr.mxu0 0.0
  %400 = vmatpush1.msra.mxu0 0.0
  %401 = vmatprep.subr.mxu0 0.0
  %402 = vmatpush1.msra.mxu0 0.0
  %403 = vmatprep.subr.mxu0 0.0
  %404 = vmatpush1.msra.mxu0 0.0
  %405 = vmatprep.subr.mxu0 0.0
  %406 = vmatpush1.msra.mxu0 0.0
  %407 = vmatprep.subr.mxu0 0.0
  %408 = vmatpush1.msra.mxu0 0.0
  %409 = vmatprep.subr.mxu0 0.0
  %410 = vmatpush1.msra.mxu0 0.0
  %411 = vmatprep.subr.mxu0 0.0
  %412 = vmatpush1.msra.mxu0 0.0
  %413 = vmatprep.subr.mxu0 0.0
  %414 = vmatpush1.msra.mxu0 0.0
  %415 = vmatprep.subr.mxu0 0.0
  %416 = vmatpush1.msra.mxu0 0.0
  %417 = vmatprep.subr.mxu0 0.0
  %418 = vmatpush1.msra.mxu0 0.0
  %419 = vmatprep.subr.mxu0 0.0
  %420 = vmatpush1.msra.mxu0 0.0
  %421 = vmatprep.mubr.f32.mxu0 0.0
  %422 = vmatmul.mubr.f32.gmra.mrb[0].mxu0 %v355
  %v423 = vpop.f32.mrb[0].mxu0
  %v424 = vadd.f32 %v351, %v423
  %v425 = vpop.f32.mrb[0].mxu0
  %426 = vdwg.mxu0
  %s427 = scalar_lea.vmem %s3, 160
  %v428 = vld [vmem:[%s427] sm:$0xff]
  %v429 = vld [vmem:[%s427 + $0x8] sm:$0xff]
  %v430 = vld [vmem:[%s427 + $0x10] sm:$0xff]
  %v431 = vld [vmem:[%s427 + $0x18] sm:$0xff]
  %v432 = vld [vmem:[%s427 + $0x20] sm:$0xff]
  %v433 = vld [vmem:[%s427 + $0x28] sm:$0xff]
  %v434 = vld [vmem:[%s427 + $0x30] sm:$0xff]
  %v435 = vld [vmem:[%s427 + $0x38] sm:$0xff]
  %v436 = vld [vmem:[%s427 + $0x40] sm:$0xff]
  %v437 = vld [vmem:[%s427 + $0x48] sm:$0xff]
  %v439 = vsel %vm280, %v256, 0
  %441 = vmatprep.subr.mxu0 0.0
  %442 = vmatpush1.msra.mxu0 %v428
  %443 = vmatprep.subr.mxu0 0.0
  %444 = vmatpush1.msra.mxu0 %v429
  %445 = vmatprep.subr.mxu0 0.0
  %446 = vmatpush1.msra.mxu0 %v430
  %447 = vmatprep.subr.mxu0 0.0
  %448 = vmatpush1.msra.mxu0 %v431
  %449 = vmatprep.subr.mxu0 0.0
  %450 = vmatpush1.msra.mxu0 %v432
  %451 = vmatprep.subr.mxu0 0.0
  %452 = vmatpush1.msra.mxu0 %v433
  %453 = vmatprep.subr.mxu0 0.0
  %454 = vmatpush1.msra.mxu0 %v434
  %455 = vmatprep.subr.mxu0 0.0
  %456 = vmatpush1.msra.mxu0 %v435
  %457 = vmatprep.subr.mxu0 0.0
  %458 = vmatpush1.msra.mxu0 %v436
  %459 = vmatprep.subr.mxu0 0.0
  %460 = vmatpush1.msra.mxu0 %v437
  %461 = vmatprep.subr.mxu0 0.0
  %462 = vmatpush1.msra.mxu0 0.0
  %463 = vmatprep.subr.mxu0 0.0
  %464 = vmatpush1.msra.mxu0 0.0
  %465 = vmatprep.subr.mxu0 0.0
  %466 = vmatpush1.msra.mxu0 0.0
  %467 = vmatprep.subr.mxu0 0.0
  %468 = vmatpush1.msra.mxu0 0.0
  %469 = vmatprep.subr.mxu0 0.0
  %470 = vmatpush1.msra.mxu0 0.0
  %471 = vmatprep.subr.mxu0 0.0
  %472 = vmatpush1.msra.mxu0 0.0
  %473 = vmatprep.subr.mxu0 0.0
  %474 = vmatpush1.msra.mxu0 0.0
  %475 = vmatprep.subr.mxu0 0.0
  %476 = vmatpush1.msra.mxu0 0.0
  %477 = vmatprep.subr.mxu0 0.0
  %478 = vmatpush1.msra.mxu0 0.0
  %479 = vmatprep.subr.mxu0 0.0
  %480 = vmatpush1.msra.mxu0 0.0
  %481 = vmatprep.subr.mxu0 0.0
  %482 = vmatpush1.msra.mxu0 0.0
  %483 = vmatprep.subr.mxu0 0.0
  %484 = vmatpush1.msra.mxu0 0.0
  %485 = vmatprep.subr.mxu0 0.0
  %486 = vmatpush1.msra.mxu0 0.0
  %487 = vmatprep.subr.mxu0 0.0
  %488 = vmatpush1.msra.mxu0 0.0
  %489 = vmatprep.subr.mxu0 0.0
  %490 = vmatpush1.msra.mxu0 0.0
  %491 = vmatprep.subr.mxu0 0.0
  %492 = vmatpush1.msra.mxu0 0.0
  %493 = vmatprep.subr.mxu0 0.0
  %494 = vmatpush1.msra.mxu0 0.0
  %495 = vmatprep.subr.mxu0 0.0
  %496 = vmatpush1.msra.mxu0 0.0
  %497 = vmatprep.subr.mxu0 0.0
  %498 = vmatpush1.msra.mxu0 0.0
  %499 = vmatprep.subr.mxu0 0.0
  %500 = vmatpush1.msra.mxu0 0.0
  %501 = vmatprep.subr.mxu0 0.0
  %502 = vmatpush1.msra.mxu0 0.0
  %503 = vmatprep.subr.mxu0 0.0
  %504 = vmatpush1.msra.mxu0 0.0
  %505 = vmatprep.mubr.f32.mxu0 0.0
  %506 = vmatmul.mubr.f32.gmra.mrb[0].mxu0 %v439
  %v507 = vpop.f32.mrb[0].mxu0
  %v508 = vadd.f32 0.0, %v507
  %v509 = vpop.f32.mrb[0].mxu0
  %510 = vdwg.mxu0
  %v511 = vadd.f32 %v424, %v508
  %v512 = vld [vmem:[%s4] sm:$0xff]
  %v513 = vadd.f32 %v511, %v512
  %v514 = vld [vmem:[%s5] sm:$0xff]
  %v515 = vld [vmem:[%s5 + $0x8] sm:$0xff]
  %v516 = vld [vmem:[%s5 + $0x10] sm:$0xff]
  %v517 = vld [vmem:[%s5 + $0x18] sm:$0xff]
  %v518 = vld [vmem:[%s5 + $0x20] sm:$0xff]
  %v519 = vld [vmem:[%s5 + $0x28] sm:$0xff]
  %v520 = vld [vmem:[%s5 + $0x30] sm:$0xff]
  %v521 = vld [vmem:[%s5 + $0x38] sm:$0xff]
  %v522 = vld [vmem:[%s5 + $0x40] sm:$0xff]
  %v523 = vld [vmem:[%s5 + $0x48] sm:$0xff]
  %s524 = scalar_lea.vmem %s5, 80
  %v525 = vld [vmem:[%s524] sm:$0xff]
  %v526 = vld [vmem:[%s524 + $0x8] sm:$0xff]
  %v527 = vld [vmem:[%s524 + $0x10] sm:$0xff]
  %v528 = vld [vmem:[%s524 + $0x18] sm:$0xff]
  %v529 = vld [vmem:[%s524 + $0x20] sm:$0xff]
  %v530 = vld [vmem:[%s524 + $0x28] sm:$0xff]
  %v531 = vld [vmem:[%s524 + $0x30] sm:$0xff]
  %v532 = vld [vmem:[%s524 + $0x38] sm:$0xff]
  %v533 = vld [vmem:[%s524 + $0x40] sm:$0xff]
  %v534 = vld [vmem:[%s524 + $0x48] sm:$0xff]
  %535 = vmatprep.subr.mxu0 0.0
  %536 = vmatpush1.msra.mxu0 %v525
  %537 = vmatprep.subr.mxu0 0.0
  %538 = vmatpush1.msra.mxu0 %v526
  %539 = vmatprep.subr.mxu0 0.0
  %540 = vmatpush1.msra.mxu0 %v527
  %541 = vmatprep.subr.mxu0 0.0
  %542 = vmatpush1.msra.mxu0 %v528
  %543 = vmatprep.subr.mxu0 0.0
  %544 = vmatpush1.msra.mxu0 %v529
  %545 = vmatprep.subr.mxu0 0.0
  %546 = vmatpush1.msra.mxu0 %v530
  %547 = vmatprep.subr.mxu0 0.0
  %548 = vmatpush1.msra.mxu0 %v531
  %549 = vmatprep.subr.mxu0 0.0
  %550 = vmatpush1.msra.mxu0 %v532
  %551 = vmatprep.subr.mxu0 0.0
  %552 = vmatpush1.msra.mxu0 %v533
  %553 = vmatprep.subr.mxu0 0.0
  %554 = vmatpush1.msra.mxu0 %v534
  %555 = vmatprep.subr.mxu0 0.0
  %556 = vmatpush1.msra.mxu0 0.0
  %557 = vmatprep.subr.mxu0 0.0
  %558 = vmatpush1.msra.mxu0 0.0
  %559 = vmatprep.subr.mxu0 0.0
  %560 = vmatpush1.msra.mxu0 0.0
  %561 = vmatprep.subr.mxu0 0.0
  %562 = vmatpush1.msra.mxu0 0.0
  %563 = vmatprep.subr.mxu0 0.0
  %564 = vmatpush1.msra.mxu0 0.0
  %565 = vmatprep.subr.mxu0 0.0
  %566 = vmatpush1.msra.mxu0 0.0
  %567 = vmatprep.subr.mxu0 0.0
  %568 = vmatpush1.msra.mxu0 0.0
  %569 = vmatprep.subr.mxu0 0.0
  %570 = vmatpush1.msra.mxu0 0.0
  %571 = vmatprep.subr.mxu0 0.0
  %572 = vmatpush1.msra.mxu0 0.0
  %573 = vmatprep.subr.mxu0 0.0
  %574 = vmatpush1.msra.mxu0 0.0
  %575 = vmatprep.subr.mxu0 0.0
  %576 = vmatpush1.msra.mxu0 0.0
  %577 = vmatprep.subr.mxu0 0.0
  %578 = vmatpush1.msra.mxu0 0.0
  %579 = vmatprep.subr.mxu0 0.0
  %580 = vmatpush1.msra.mxu0 0.0
  %581 = vmatprep.subr.mxu0 0.0
  %582 = vmatpush1.msra.mxu0 0.0
  %583 = vmatprep.subr.mxu0 0.0
  %584 = vmatpush1.msra.mxu0 0.0
  %585 = vmatprep.subr.mxu0 0.0
  %586 = vmatpush1.msra.mxu0 0.0
  %587 = vmatprep.subr.mxu0 0.0
  %588 = vmatpush1.msra.mxu0 0.0
  %589 = vmatprep.subr.mxu0 0.0
  %590 = vmatpush1.msra.mxu0 0.0
  %591 = vmatprep.subr.mxu0 0.0
  %592 = vmatpush1.msra.mxu0 0.0
  %593 = vmatprep.subr.mxu0 0.0
  %594 = vmatpush1.msra.mxu0 0.0
  %595 = vmatprep.subr.mxu0 0.0
  %596 = vmatpush1.msra.mxu0 0.0
  %597 = vmatprep.subr.mxu0 0.0
  %598 = vmatpush1.msra.mxu0 0.0
  %599 = vmatprep.mubr.f32.mxu0 0.0
  %600 = vmatmul.mubr.f32.gmra.mrb[0].mxu0 %v282
  %v601 = vpop.f32.mrb[0].mxu0
  %v602 = vadd.f32 0.0, %v601
  %v603 = vpop.f32.mrb[0].mxu0
  %604 = vdwg.mxu0
  %605 = vmatprep.subr.mxu0 0.0
  %606 = vmatpush1.msra.mxu0 %v514
  %607 = vmatprep.subr.mxu0 0.0
  %608 = vmatpush1.msra.mxu0 %v515
  %609 = vmatprep.subr.mxu0 0.0
  %610 = vmatpush1.msra.mxu0 %v516
  %611 = vmatprep.subr.mxu0 0.0
  %612 = vmatpush1.msra.mxu0 %v517
  %613 = vmatprep.subr.mxu0 0.0
  %614 = vmatpush1.msra.mxu0 %v518
  %615 = vmatprep.subr.mxu0 0.0
  %616 = vmatpush1.msra.mxu0 %v519
  %617 = vmatprep.subr.mxu0 0.0
  %618 = vmatpush1.msra.mxu0 %v520
  %619 = vmatprep.subr.mxu0 0.0
  %620 = vmatpush1.msra.mxu0 %v521
  %621 = vmatprep.subr.mxu0 0.0
  %622 = vmatpush1.msra.mxu0 %v522
  %623 = vmatprep.subr.mxu0 0.0
  %624 = vmatpush1.msra.mxu0 %v523
  %625 = vmatprep.subr.mxu0 0.0
  %626 = vmatpush1.msra.mxu0 0.0
  %627 = vmatprep.subr.mxu0 0.0
  %628 = vmatpush1.msra.mxu0 0.0
  %629 = vmatprep.subr.mxu0 0.0
  %630 = vmatpush1.msra.mxu0 0.0
  %631 = vmatprep.subr.mxu0 0.0
  %632 = vmatpush1.msra.mxu0 0.0
  %633 = vmatprep.subr.mxu0 0.0
  %634 = vmatpush1.msra.mxu0 0.0
  %635 = vmatprep.subr.mxu0 0.0
  %636 = vmatpush1.msra.mxu0 0.0
  %637 = vmatprep.subr.mxu0 0.0
  %638 = vmatpush1.msra.mxu0 0.0
  %639 = vmatprep.subr.mxu0 0.0
  %640 = vmatpush1.msra.mxu0 0.0
  %641 = vmatprep.subr.mxu0 0.0
  %642 = vmatpush1.msra.mxu0 0.0
  %643 = vmatprep.subr.mxu0 0.0
  %644 = vmatpush1.msra.mxu0 0.0
  %645 = vmatprep.subr.mxu0 0.0
  %646 = vmatpush1.msra.mxu0 0.0
  %647 = vmatprep.subr.mxu0 0.0
  %648 = vmatpush1.msra.mxu0 0.0
  %649 = vmatprep.subr.mxu0 0.0
  %650 = vmatpush1.msra.mxu0 0.0
  %651 = vmatprep.subr.mxu0 0.0
  %652 = vmatpush1.msra.mxu0 0.0
  %653 = vmatprep.subr.mxu0 0.0
  %654 = vmatpush1.msra.mxu0 0.0
  %655 = vmatprep.subr.mxu0 0.0
  %656 = vmatpush1.msra.mxu0 0.0
  %657 = vmatprep.subr.mxu0 0.0
  %658 = vmatpush1.msra.mxu0 0.0
  %659 = vmatprep.subr.mxu0 0.0
  %660 = vmatpush1.msra.mxu0 0.0
  %661 = vmatprep.subr.mxu0 0.0
  %662 = vmatpush1.msra.mxu0 0.0
  %663 = vmatprep.subr.mxu0 0.0
  %664 = vmatpush1.msra.mxu0 0.0
  %665 = vmatprep.subr.mxu0 0.0
  %666 = vmatpush1.msra.mxu0 0.0
  %667 = vmatprep.subr.mxu0 0.0
  %668 = vmatpush1.msra.mxu0 0.0
  %669 = vmatprep.mubr.f32.mxu0 0.0
  %670 = vmatmul.mubr.f32.gmra.mrb[0].mxu0 %v355
  %v671 = vpop.f32.mrb[0].mxu0
  %v672 = vadd.f32 %v602, %v671
  %v673 = vpop.f32.mrb[0].mxu0
  %674 = vdwg.mxu0
  %s675 = scalar_lea.vmem %s5, 160
  %v676 = vld [vmem:[%s675] sm:$0xff]
  %v677 = vld [vmem:[%s675 + $0x8] sm:$0xff]
  %v678 = vld [vmem:[%s675 + $0x10] sm:$0xff]
  %v679 = vld [vmem:[%s675 + $0x18] sm:$0xff]
  %v680 = vld [vmem:[%s675 + $0x20] sm:$0xff]
  %v681 = vld [vmem:[%s675 + $0x28] sm:$0xff]
  %v682 = vld [vmem:[%s675 + $0x30] sm:$0xff]
  %v683 = vld [vmem:[%s675 + $0x38] sm:$0xff]
  %v684 = vld [vmem:[%s675 + $0x40] sm:$0xff]
  %v685 = vld [vmem:[%s675 + $0x48] sm:$0xff]
  %686 = vmatprep.subr.mxu0 0.0
  %687 = vmatpush1.msra.mxu0 %v676
  %688 = vmatprep.subr.mxu0 0.0
  %689 = vmatpush1.msra.mxu0 %v677
  %690 = vmatprep.subr.mxu0 0.0
  %691 = vmatpush1.msra.mxu0 %v678
  %692 = vmatprep.subr.mxu0 0.0
  %693 = vmatpush1.msra.mxu0 %v679
  %694 = vmatprep.subr.mxu0 0.0
  %695 = vmatpush1.msra.mxu0 %v680
  %696 = vmatprep.subr.mxu0 0.0
  %697 = vmatpush1.msra.mxu0 %v681
  %698 = vmatprep.subr.mxu0 0.0
  %699 = vmatpush1.msra.mxu0 %v682
  %700 = vmatprep.subr.mxu0 0.0
  %701 = vmatpush1.msra.mxu0 %v683
  %702 = vmatprep.subr.mxu0 0.0
  %703 = vmatpush1.msra.mxu0 %v684
  %704 = vmatprep.subr.mxu0 0.0
  %705 = vmatpush1.msra.mxu0 %v685
  %706 = vmatprep.subr.mxu0 0.0
  %707 = vmatpush1.msra.mxu0 0.0
  %708 = vmatprep.subr.mxu0 0.0
  %709 = vmatpush1.msra.mxu0 0.0
  %710 = vmatprep.subr.mxu0 0.0
  %711 = vmatpush1.msra.mxu0 0.0
  %712 = vmatprep.subr.mxu0 0.0
  %713 = vmatpush1.msra.mxu0 0.0
  %714 = vmatprep.subr.mxu0 0.0
  %715 = vmatpush1.msra.mxu0 0.0
  %716 = vmatprep.subr.mxu0 0.0
  %717 = vmatpush1.msra.mxu0 0.0
  %718 = vmatprep.subr.mxu0 0.0
  %719 = vmatpush1.msra.mxu0 0.0
  %720 = vmatprep.subr.mxu0 0.0
  %721 = vmatpush1.msra.mxu0 0.0
  %722 = vmatprep.subr.mxu0 0.0
  %723 = vmatpush1.msra.mxu0 0.0
  %724 = vmatprep.subr.mxu0 0.0
  %725 = vmatpush1.msra.mxu0 0.0
  %726 = vmatprep.subr.mxu0 0.0
  %727 = vmatpush1.msra.mxu0 0.0
  %728 = vmatprep.subr.mxu0 0.0
  %729 = vmatpush1.msra.mxu0 0.0
  %730 = vmatprep.subr.mxu0 0.0
  %731 = vmatpush1.msra.mxu0 0.0
  %732 = vmatprep.subr.mxu0 0.0
  %733 = vmatpush1.msra.mxu0 0.0
  %734 = vmatprep.subr.mxu0 0.0
  %735 = vmatpush1.msra.mxu0 0.0
  %736 = vmatprep.subr.mxu0 0.0
  %737 = vmatpush1.msra.mxu0 0.0
  %738 = vmatprep.subr.mxu0 0.0
  %739 = vmatpush1.msra.mxu0 0.0
  %740 = vmatprep.subr.mxu0 0.0
  %741 = vmatpush1.msra.mxu0 0.0
  %742 = vmatprep.subr.mxu0 0.0
  %743 = vmatpush1.msra.mxu0 0.0
  %744 = vmatprep.subr.mxu0 0.0
  %745 = vmatpush1.msra.mxu0 0.0
  %746 = vmatprep.subr.mxu0 0.0
  %747 = vmatpush1.msra.mxu0 0.0
  %748 = vmatprep.subr.mxu0 0.0
  %749 = vmatpush1.msra.mxu0 0.0
  %750 = vmatprep.mubr.f32.mxu0 0.0
  %751 = vmatmul.mubr.f32.gmra.mrb[0].mxu0 %v439
  %v752 = vpop.f32.mrb[0].mxu0
  %v753 = vadd.f32 0.0, %v752
  %v754 = vpop.f32.mrb[0].mxu0
  %755 = vdwg.mxu0
  %v756 = vadd.f32 %v672, %v753
  %v757 = vld [vmem:[%s6] sm:$0xff]
  %v758 = vadd.f32 %v756, %v757
  %v759 = vmax.f32 %v513, 0.0
  %v760 = vld [vmem:[%s2] sm:$0xff]
  %vm761 = vcmask 64512
  %v763 = vsel %vm761, %v760, 0
  %765 = vmatprep.subr.mxu0 0.0
  %766 = vmatpush1.msra.mxu0 %v759
  %767 = vmatprep.subr.mxu0 0.0
  %768 = vmatpush1.msra.mxu0 0.0
  %769 = vmatprep.subr.mxu0 0.0
  %770 = vmatpush1.msra.mxu0 0.0
  %771 = vmatprep.subr.mxu0 0.0
  %772 = vmatpush1.msra.mxu0 0.0
  %773 = vmatprep.subr.mxu0 0.0
  %774 = vmatpush1.msra.mxu0 0.0
  %775 = vmatprep.subr.mxu0 0.0
  %776 = vmatpush1.msra.mxu0 0.0
  %777 = vmatprep.subr.mxu0 0.0
  %778 = vmatpush1.msra.mxu0 0.0
  %779 = vmatprep.subr.mxu0 0.0
  %780 = vmatpush1.msra.mxu0 0.0
  %781 = vmatprep.subr.mxu0 0.0
  %782 = vmatpush1.msra.mxu0 0.0
  %783 = vmatprep.subr.mxu0 0.0
  %784 = vmatpush1.msra.mxu0 0.0
  %785 = vmatprep.subr.mxu0 0.0
  %786 = vmatpush1.msra.mxu0 0.0
  %787 = vmatprep.subr.mxu0 0.0
  %788 = vmatpush1.msra.mxu0 0.0
  %789 = vmatprep.subr.mxu0 0.0
  %790 = vmatpush1.msra.mxu0 0.0
  %791 = vmatprep.subr.mxu0 0.0
  %792 = vmatpush1.msra.mxu0 0.0
  %793 = vmatprep.subr.mxu0 0.0
  %794 = vmatpush1.msra.mxu0 0.0
  %795 = vmatprep.subr.mxu0 0.0
  %796 = vmatpush1.msra.mxu0 0.0
  %797 = vmatprep.subr.mxu0 0.0
  %798 = vmatpush1.msra.mxu0 0.0
  %799 = vmatprep.subr.mxu0 0.0
  %800 = vmatpush1.msra.mxu0 0.0
  %801 = vmatprep.subr.mxu0 0.0
  %802 = vmatpush1.msra.mxu0 0.0
  %803 = vmatprep.subr.mxu0 0.0
  %804 = vmatpush1.msra.mxu0 0.0
  %805 = vmatprep.subr.mxu0 0.0
  %806 = vmatpush1.msra.mxu0 0.0
  %807 = vmatprep.subr.mxu0 0.0
  %808 = vmatpush1.msra.mxu0 0.0
  %809 = vmatprep.subr.mxu0 0.0
  %810 = vmatpush1.msra.mxu0 0.0
  %811 = vmatprep.subr.mxu0 0.0
  %812 = vmatpush1.msra.mxu0 0.0
  %813 = vmatprep.subr.mxu0 0.0
  %814 = vmatpush1.msra.mxu0 0.0
  %815 = vmatprep.subr.mxu0 0.0
  %816 = vmatpush1.msra.mxu0 0.0
  %817 = vmatprep.subr.mxu0 0.0
  %818 = vmatpush1.msra.mxu0 0.0
  %819 = vmatprep.subr.mxu0 0.0
  %820 = vmatpush1.msra.mxu0 0.0
  %821 = vmatprep.subr.mxu0 0.0
  %822 = vmatpush1.msra.mxu0 0.0
  %823 = vmatprep.subr.mxu0 0.0
  %824 = vmatpush1.msra.mxu0 0.0
  %825 = vmatprep.subr.mxu0 0.0
  %826 = vmatpush1.msra.mxu0 0.0
  %827 = vmatprep.subr.mxu0 0.0
  %828 = vmatpush1.msra.mxu0 0.0
  %829 = vmatprep.mubr.f32.mxu0 0.0
  %830 = vmatmul.mubr.f32.gmra.mrb[0].mxu0 %v763
  %v831 = vpop.f32.mrb[0].mxu0
  %v832 = vadd.f32 0.0, %v831
  %v833 = vpop.f32.mrb[0].mxu0
  %834 = vdwg.mxu0
  %s835 = scalar_lea.vmem %s2, 16
  %v836 = vld [vmem:[%s835] sm:$0xff]
  %v838 = vsel %vm761, %v836, 0
  %840 = vmatprep.subr.mxu0 0.0
  %841 = vmatpush1.msra.mxu0 %v759
  %842 = vmatprep.subr.mxu0 0.0
  %843 = vmatpush1.msra.mxu0 0.0
  %844 = vmatprep.subr.mxu0 0.0
  %845 = vmatpush1.msra.mxu0 0.0
  %846 = vmatprep.subr.mxu0 0.0
  %847 = vmatpush1.msra.mxu0 0.0
  %848 = vmatprep.subr.mxu0 0.0
  %849 = vmatpush1.msra.mxu0 0.0
  %850 = vmatprep.subr.mxu0 0.0
  %851 = vmatpush1.msra.mxu0 0.0
  %852 = vmatprep.subr.mxu0 0.0
  %853 = vmatpush1.msra.mxu0 0.0
  %854 = vmatprep.subr.mxu0 0.0
  %855 = vmatpush1.msra.mxu0 0.0
  %856 = vmatprep.subr.mxu0 0.0
  %857 = vmatpush1.msra.mxu0 0.0
  %858 = vmatprep.subr.mxu0 0.0
  %859 = vmatpush1.msra.mxu0 0.0
  %860 = vmatprep.subr.mxu0 0.0
  %861 = vmatpush1.msra.mxu0 0.0
  %862 = vmatprep.subr.mxu0 0.0
  %863 = vmatpush1.msra.mxu0 0.0
  %864 = vmatprep.subr.mxu0 0.0
  %865 = vmatpush1.msra.mxu0 0.0
  %866 = vmatprep.subr.mxu0 0.0
  %867 = vmatpush1.msra.mxu0 0.0
  %868 = vmatprep.subr.mxu0 0.0
  %869 = vmatpush1.msra.mxu0 0.0
  %870 = vmatprep.subr.mxu0 0.0
  %871 = vmatpush1.msra.mxu0 0.0
  %872 = vmatprep.subr.mxu0 0.0
  %873 = vmatpush1.msra.mxu0 0.0
  %874 = vmatprep.subr.mxu0 0.0
  %875 = vmatpush1.msra.mxu0 0.0
  %876 = vmatprep.subr.mxu0 0.0
  %877 = vmatpush1.msra.mxu0 0.0
  %878 = vmatprep.subr.mxu0 0.0
  %879 = vmatpush1.msra.mxu0 0.0
  %880 = vmatprep.subr.mxu0 0.0
  %881 = vmatpush1.msra.mxu0 0.0
  %882 = vmatprep.subr.mxu0 0.0
  %883 = vmatpush1.msra.mxu0 0.0
  %884 = vmatprep.subr.mxu0 0.0
  %885 = vmatpush1.msra.mxu0 0.0
  %886 = vmatprep.subr.mxu0 0.0
  %887 = vmatpush1.msra.mxu0 0.0
  %888 = vmatprep.subr.mxu0 0.0
  %889 = vmatpush1.msra.mxu0 0.0
  %890 = vmatprep.subr.mxu0 0.0
  %891 = vmatpush1.msra.mxu0 0.0
  %892 = vmatprep.subr.mxu0 0.0
  %893 = vmatpush1.msra.mxu0 0.0
  %894 = vmatprep.subr.mxu0 0.0
  %895 = vmatpush1.msra.mxu0 0.0
  %896 = vmatprep.subr.mxu0 0.0
  %897 = vmatpush1.msra.mxu0 0.0
  %898 = vmatprep.subr.mxu0 0.0
  %899 = vmatpush1.msra.mxu0 0.0
  %900 = vmatprep.subr.mxu0 0.0
  %901 = vmatpush1.msra.mxu0 0.0
  %902 = vmatprep.subr.mxu0 0.0
  %903 = vmatpush1.msra.mxu0 0.0
  %904 = vmatprep.mubr.f32.mxu0 0.0
  %905 = vmatmul.mubr.f32.gmra.mrb[0].mxu0 %v838
  %v906 = vpop.f32.mrb[0].mxu0
  %v907 = vadd.f32 0.0, %v906
  %v908 = vpop.f32.mrb[0].mxu0
  %909 = vdwg.mxu0
  %v910 = vld [vmem:[%s7] sm:$0xff]
  %v911 = vld [vmem:[%s7 + $0x8] sm:$0xff]
  %v912 = vld [vmem:[%s7 + $0x10] sm:$0xff]
  %v913 = vld [vmem:[%s7 + $0x18] sm:$0xff]
  %v914 = vld [vmem:[%s7 + $0x20] sm:$0xff]
  %v915 = vld [vmem:[%s7 + $0x28] sm:$0xff]
  %s916 = scalar_lea.vmem %s7, 48
  %v917 = vld [vmem:[%s916] sm:$0xff]
  %v918 = vld [vmem:[%s916 + $0x8] sm:$0xff]
  %v919 = vld [vmem:[%s916 + $0x10] sm:$0xff]
  %v920 = vld [vmem:[%s916 + $0x18] sm:$0xff]
  %v921 = vld [vmem:[%s916 + $0x20] sm:$0xff]
  %v922 = vld [vmem:[%s916 + $0x28] sm:$0xff]
  %vm923 = vcmask 392192
  %v925 = vsel %vm923, %v759, 0
  %927 = vmatprep.subr.mxu0 0.0
  %928 = vmatpush1.msra.mxu0 %v917
  %929 = vmatprep.subr.mxu0 0.0
  %930 = vmatpush1.msra.mxu0 %v918
  %931 = vmatprep.subr.mxu0 0.0
  %932 = vmatpush1.msra.mxu0 %v919
  %933 = vmatprep.subr.mxu0 0.0
  %934 = vmatpush1.msra.mxu0 %v920
  %935 = vmatprep.subr.mxu0 0.0
  %936 = vmatpush1.msra.mxu0 %v921
  %937 = vmatprep.subr.mxu0 0.0
  %938 = vmatpush1.msra.mxu0 %v922
  %939 = vmatprep.subr.mxu0 0.0
  %940 = vmatpush1.msra.mxu0 0.0
  %941 = vmatprep.subr.mxu0 0.0
  %942 = vmatpush1.msra.mxu0 0.0
  %943 = vmatprep.subr.mxu0 0.0
  %944 = vmatpush1.msra.mxu0 0.0
  %945 = vmatprep.subr.mxu0 0.0
  %946 = vmatpush1.msra.mxu0 0.0
  %947 = vmatprep.subr.mxu0 0.0
  %948 = vmatpush1.msra.mxu0 0.0
  %949 = vmatprep.subr.mxu0 0.0
  %950 = vmatpush1.msra.mxu0 0.0
  %951 = vmatprep.subr.mxu0 0.0
  %952 = vmatpush1.msra.mxu0 0.0
  %953 = vmatprep.subr.mxu0 0.0
  %954 = vmatpush1.msra.mxu0 0.0
  %955 = vmatprep.subr.mxu0 0.0
  %956 = vmatpush1.msra.mxu0 0.0
  %957 = vmatprep.subr.mxu0 0.0
  %958 = vmatpush1.msra.mxu0 0.0
  %959 = vmatprep.subr.mxu0 0.0
  %960 = vmatpush1.msra.mxu0 0.0
  %961 = vmatprep.subr.mxu0 0.0
  %962 = vmatpush1.msra.mxu0 0.0
  %963 = vmatprep.subr.mxu0 0.0
  %964 = vmatpush1.msra.mxu0 0.0
  %965 = vmatprep.subr.mxu0 0.0
  %966 = vmatpush1.msra.mxu0 0.0
  %967 = vmatprep.subr.mxu0 0.0
  %968 = vmatpush1.msra.mxu0 0.0
  %969 = vmatprep.subr.mxu0 0.0
  %970 = vmatpush1.msra.mxu0 0.0
  %971 = vmatprep.subr.mxu0 0.0
  %972 = vmatpush1.msra.mxu0 0.0
  %973 = vmatprep.subr.mxu0 0.0
  %974 = vmatpush1.msra.mxu0 0.0
  %975 = vmatprep.subr.mxu0 0.0
  %976 = vmatpush1.msra.mxu0 0.0
  %977 = vmatprep.subr.mxu0 0.0
  %978 = vmatpush1.msra.mxu0 0.0
  %979 = vmatprep.subr.mxu0 0.0
  %980 = vmatpush1.msra.mxu0 0.0
  %981 = vmatprep.subr.mxu0 0.0
  %982 = vmatpush1.msra.mxu0 0.0
  %983 = vmatprep.subr.mxu0 0.0
  %984 = vmatpush1.msra.mxu0 0.0
  %985 = vmatprep.subr.mxu0 0.0
  %986 = vmatpush1.msra.mxu0 0.0
  %987 = vmatprep.subr.mxu0 0.0
  %988 = vmatpush1.msra.mxu0 0.0
  %989 = vmatprep.subr.mxu0 0.0
  %990 = vmatpush1.msra.mxu0 0.0
  %991 = vmatprep.mubr.f32.mxu0 0.0
  %992 = vmatmul.mubr.f32.gmra.mrb[0].mxu0 %v925
  %v993 = vpop.f32.mrb[0].mxu0
  %v994 = vadd.f32 0.0, %v993
  %v995 = vpop.f32.mrb[0].mxu0
  %996 = vdwg.mxu0
  %v998 = vsel %vm923, %v832, 0
  %1000 = vmatprep.subr.mxu0 0.0
  %1001 = vmatpush1.msra.mxu0 %v910
  %1002 = vmatprep.subr.mxu0 0.0
  %1003 = vmatpush1.msra.mxu0 %v911
  %1004 = vmatprep.subr.mxu0 0.0
  %1005 = vmatpush1.msra.mxu0 %v912
  %1006 = vmatprep.subr.mxu0 0.0
  %1007 = vmatpush1.msra.mxu0 %v913
  %1008 = vmatprep.subr.mxu0 0.0
  %1009 = vmatpush1.msra.mxu0 %v914
  %1010 = vmatprep.subr.mxu0 0.0
  %1011 = vmatpush1.msra.mxu0 %v915
  %1012 = vmatprep.subr.mxu0 0.0
  %1013 = vmatpush1.msra.mxu0 0.0
  %1014 = vmatprep.subr.mxu0 0.0
  %1015 = vmatpush1.msra.mxu0 0.0
  %1016 = vmatprep.subr.mxu0 0.0
  %1017 = vmatpush1.msra.mxu0 0.0
  %1018 = vmatprep.subr.mxu0 0.0
  %1019 = vmatpush1.msra.mxu0 0.0
  %1020 = vmatprep.subr.mxu0 0.0
  %1021 = vmatpush1.msra.mxu0 0.0
  %1022 = vmatprep.subr.mxu0 0.0
  %1023 = vmatpush1.msra.mxu0 0.0
  %1024 = vmatprep.subr.mxu0 0.0
  %1025 = vmatpush1.msra.mxu0 0.0
  %1026 = vmatprep.subr.mxu0 0.0
  %1027 = vmatpush1.msra.mxu0 0.0
  %1028 = vmatprep.subr.mxu0 0.0
  %1029 = vmatpush1.msra.mxu0 0.0
  %1030 = vmatprep.subr.mxu0 0.0
  %1031 = vmatpush1.msra.mxu0 0.0
  %1032 = vmatprep.subr.mxu0 0.0
  %1033 = vmatpush1.msra.mxu0 0.0
  %1034 = vmatprep.subr.mxu0 0.0
  %1035 = vmatpush1.msra.mxu0 0.0
  %1036 = vmatprep.subr.mxu0 0.0
  %1037 = vmatpush1.msra.mxu0 0.0
  %1038 = vmatprep.subr.mxu0 0.0
  %1039 = vmatpush1.msra.mxu0 0.0
  %1040 = vmatprep.subr.mxu0 0.0
  %1041 = vmatpush1.msra.mxu0 0.0
  %1042 = vmatprep.subr.mxu0 0.0
  %1043 = vmatpush1.msra.mxu0 0.0
  %1044 = vmatprep.subr.mxu0 0.0
  %1045 = vmatpush1.msra.mxu0 0.0
  %1046 = vmatprep.subr.mxu0 0.0
  %1047 = vmatpush1.msra.mxu0 0.0
  %1048 = vmatprep.subr.mxu0 0.0
  %1049 = vmatpush1.msra.mxu0 0.0
  %1050 = vmatprep.subr.mxu0 0.0
  %1051 = vmatpush1.msra.mxu0 0.0
  %1052 = vmatprep.subr.mxu0 0.0
  %1053 = vmatpush1.msra.mxu0 0.0
  %1054 = vmatprep.subr.mxu0 0.0
  %1055 = vmatpush1.msra.mxu0 0.0
  %1056 = vmatprep.subr.mxu0 0.0
  %1057 = vmatpush1.msra.mxu0 0.0
  %1058 = vmatprep.subr.mxu0 0.0
  %1059 = vmatpush1.msra.mxu0 0.0
  %1060 = vmatprep.subr.mxu0 0.0
  %1061 = vmatpush1.msra.mxu0 0.0
  %1062 = vmatprep.subr.mxu0 0.0
  %1063 = vmatpush1.msra.mxu0 0.0
  %1064 = vmatprep.mubr.f32.mxu0 0.0
  %1065 = vmatmul.mubr.f32.gmra.mrb[0].mxu0 %v998
  %v1066 = vpop.f32.mrb[0].mxu0
  %v1067 = vadd.f32 %v994, %v1066
  %v1068 = vpop.f32.mrb[0].mxu0
  %1069 = vdwg.mxu0
  %s1070 = scalar_lea.vmem %s7, 96
  %v1071 = vld [vmem:[%s1070] sm:$0xff]
  %v1072 = vld [vmem:[%s1070 + $0x8] sm:$0xff]
  %v1073 = vld [vmem:[%s1070 + $0x10] sm:$0xff]
  %v1074 = vld [vmem:[%s1070 + $0x18] sm:$0xff]
  %v1075 = vld [vmem:[%s1070 + $0x20] sm:$0xff]
  %v1076 = vld [vmem:[%s1070 + $0x28] sm:$0xff]
  %v1078 = vsel %vm923, %v907, 0
  %1080 = vmatprep.subr.mxu0 0.0
  %1081 = vmatpush1.msra.mxu0 %v1071
  %1082 = vmatprep.subr.mxu0 0.0
  %1083 = vmatpush1.msra.mxu0 %v1072
  %1084 = vmatprep.subr.mxu0 0.0
  %1085 = vmatpush1.msra.mxu0 %v1073
  %1086 = vmatprep.subr.mxu0 0.0
  %1087 = vmatpush1.msra.mxu0 %v1074
  %1088 = vmatprep.subr.mxu0 0.0
  %1089 = vmatpush1.msra.mxu0 %v1075
  %1090 = vmatprep.subr.mxu0 0.0
  %1091 = vmatpush1.msra.mxu0 %v1076
  %1092 = vmatprep.subr.mxu0 0.0
  %1093 = vmatpush1.msra.mxu0 0.0
  %1094 = vmatprep.subr.mxu0 0.0
  %1095 = vmatpush1.msra.mxu0 0.0
  %1096 = vmatprep.subr.mxu0 0.0
  %1097 = vmatpush1.msra.mxu0 0.0
  %1098 = vmatprep.subr.mxu0 0.0
  %1099 = vmatpush1.msra.mxu0 0.0
  %1100 = vmatprep.subr.mxu0 0.0
  %1101 = vmatpush1.msra.mxu0 0.0
  %1102 = vmatprep.subr.mxu0 0.0
  %1103 = vmatpush1.msra.mxu0 0.0
  %1104 = vmatprep.subr.mxu0 0.0
  %1105 = vmatpush1.msra.mxu0 0.0
  %1106 = vmatprep.subr.mxu0 0.0
  %1107 = vmatpush1.msra.mxu0 0.0
  %1108 = vmatprep.subr.mxu0 0.0
  %1109 = vmatpush1.msra.mxu0 0.0
  %1110 = vmatprep.subr.mxu0 0.0
  %1111 = vmatpush1.msra.mxu0 0.0
  %1112 = vmatprep.subr.mxu0 0.0
  %1113 = vmatpush1.msra.mxu0 0.0
  %1114 = vmatprep.subr.mxu0 0.0
  %1115 = vmatpush1.msra.mxu0 0.0
  %1116 = vmatprep.subr.mxu0 0.0
  %1117 = vmatpush1.msra.mxu0 0.0
  %1118 = vmatprep.subr.mxu0 0.0
  %1119 = vmatpush1.msra.mxu0 0.0
  %1120 = vmatprep.subr.mxu0 0.0
  %1121 = vmatpush1.msra.mxu0 0.0
  %1122 = vmatprep.subr.mxu0 0.0
  %1123 = vmatpush1.msra.mxu0 0.0
  %1124 = vmatprep.subr.mxu0 0.0
  %1125 = vmatpush1.msra.mxu0 0.0
  %1126 = vmatprep.subr.mxu0 0.0
  %1127 = vmatpush1.msra.mxu0 0.0
  %1128 = vmatprep.subr.mxu0 0.0
  %1129 = vmatpush1.msra.mxu0 0.0
  %1130 = vmatprep.subr.mxu0 0.0
  %1131 = vmatpush1.msra.mxu0 0.0
  %1132 = vmatprep.subr.mxu0 0.0
  %1133 = vmatpush1.msra.mxu0 0.0
  %1134 = vmatprep.subr.mxu0 0.0
  %1135 = vmatpush1.msra.mxu0 0.0
  %1136 = vmatprep.subr.mxu0 0.0
  %1137 = vmatpush1.msra.mxu0 0.0
  %1138 = vmatprep.subr.mxu0 0.0
  %1139 = vmatpush1.msra.mxu0 0.0
  %1140 = vmatprep.subr.mxu0 0.0
  %1141 = vmatpush1.msra.mxu0 0.0
  %1142 = vmatprep.subr.mxu0 0.0
  %1143 = vmatpush1.msra.mxu0 0.0
  %1144 = vmatprep.mubr.f32.mxu0 0.0
  %1145 = vmatmul.mubr.f32.gmra.mrb[0].mxu0 %v1078
  %v1146 = vpop.f32.mrb[0].mxu0
  %v1147 = vadd.f32 0.0, %v1146
  %v1148 = vpop.f32.mrb[0].mxu0
  %1149 = vdwg.mxu0
  %v1150 = vadd.f32 %v1067, %v1147
  %v1151 = vld [vmem:[%s8] sm:$0xff]
  %v1152 = vadd.f32 %v1150, %v1151
  %v1153 = vadd.f32 %v1152, %v758
  %v1154 = vmax.f32 %v1153, 0.0
  %1155 = vst.msk [vmem:[%s9] sm:$0xff] %vm923, %v1154
  // Predicated region
  $region38: #{model_forward.11} parent=0 // pred_check
    _
  $region39: #{model_forward.11} parent=0 // pred_check_branch
    %1157 = sbr.rel (0) target = $region41
  $region40: #{model_forward.11} parent=0 // pred_region
    _
  $region41: #{model_forward.11} parent=0 // pred_fallthru
    _
  // Predicated region
  $region42: #{model_forward.11} parent=0 // pred_check
    _
  $region43: #{model_forward.11} parent=0 // pred_check_branch
    %1159 = sbr.rel (0) target = $region45
  $region44: #{model_forward.11} parent=0 // pred_region
    _
  $region45: #{model_forward.11} parent=0 // pred_fallthru
    _

// kernel: model_forward.10
$region0: #{model_forward.10}
  #allocation0 [shape = 'u32[]', space=smem, size = 0x4, offset = 0x4, fixed_abs, tag = 'smem constant byte address 0x4 - core index']
  #allocation1 [shape = 'u32[144,128]{1,0:T(1,128)}', space=vmem, size = 0x12000, scoped, tag = 'internal scratch']
  %s0 = inlined_call_operand.vmem [shape: f32[32,18], index: 0, kind: input, shape index: {}]
  %s1 = inlined_call_operand.vmem [shape: f32[3,16,32], index: 1, kind: input, shape index: {}]
  %s2 = inlined_call_operand.vmem [shape: f32[3,16,16], index: 2, kind: input, shape index: {}]
  %s3 = inlined_call_operand.vmem [shape: f32[3,18,80], index: 3, kind: input, shape index: {}]
  %s4 = inlined_call_operand.vmem [shape: f32[16,80], index: 4, kind: input, shape index: {}]
  %s5 = inlined_call_operand.vmem [shape: f32[3,18,80], index: 5, kind: input, shape index: {}]
  %s6 = inlined_call_operand.vmem [shape: f32[16,80], index: 6, kind: input, shape index: {}]
  %s7 = inlined_call_operand.vmem [shape: f32[3,80,80], index: 7, kind: input, shape index: {}]
  %s8 = inlined_call_operand.vmem [shape: f32[16,80], index: 8, kind: input, shape index: {}]
  %s9 = inlined_call_operand.vmem [shape: f32[16,80], index: 9, kind: output, shape index: {}]
  %s10 = sld [smem:[#allocation0]]
  $region46: #{model_forward.10} parent=0
    _
  %s12 = ssub.s32 1, %s10
  %s13 = scalar_select 0, %s12, %s10
  // Predicated region
  $region2: #{model_forward.10} parent=0 // pred_check
    _
  $region3: #{model_forward.10} parent=0 // pred_check_branch
    %15 = sbr.rel (0) target = $region5
  $region4: #{model_forward.10} parent=0 // pred_region
    _
  $region5: #{model_forward.10} parent=0 // pred_fallthru
    _
  // Predicated region
  $region6: #{model_forward.10} parent=0 // pred_check
    _
  $region7: #{model_forward.10} parent=0 // pred_check_branch
    %17 = sbr.rel (0) target = $region9
  $region8: #{model_forward.10} parent=0 // pred_region
    _
  $region9: #{model_forward.10} parent=0 // pred_fallthru
    _
  // Predicated region
  $region10: #{model_forward.10} parent=0 // pred_check
    _
  $region11: #{model_forward.10} parent=0 // pred_check_branch
    %19 = sbr.rel (0) target = $region13
  $region12: #{model_forward.10} parent=0 // pred_region
    _
  $region13: #{model_forward.10} parent=0 // pred_fallthru
    _
  // Predicated region
  $region14: #{model_forward.10} parent=0 // pred_check
    _
  $region15: #{model_forward.10} parent=0 // pred_check_branch
    %21 = sbr.rel (0) target = $region17
  $region16: #{model_forward.10} parent=0 // pred_region
    _
  $region17: #{model_forward.10} parent=0 // pred_fallthru
    _
  // Predicated region
  $region18: #{model_forward.10} parent=0 // pred_check
    _
  $region19: #{model_forward.10} parent=0 // pred_check_branch
    %23 = sbr.rel (0) target = $region21
  $region20: #{model_forward.10} parent=0 // pred_region
    _
  $region21: #{model_forward.10} parent=0 // pred_fallthru
    _
  // Predicated region
  $region22: #{model_forward.10} parent=0 // pred_check
    _
  $region23: #{model_forward.10} parent=0 // pred_check_branch
    %25 = sbr.rel (0) target = $region25
  $region24: #{model_forward.10} parent=0 // pred_region
    _
  $region25: #{model_forward.10} parent=0 // pred_fallthru
    _
  // Predicated region
  $region26: #{model_forward.10} parent=0 // pred_check
    _
  $region27: #{model_forward.10} parent=0 // pred_check_branch
    %27 = sbr.rel (0) target = $region29
  $region28: #{model_forward.10} parent=0 // pred_region
    _
  $region29: #{model_forward.10} parent=0 // pred_fallthru
    _
  // Predicated region
  $region30: #{model_forward.10} parent=0 // pred_check
    _
  $region31: #{model_forward.10} parent=0 // pred_check_branch
    %29 = sbr.rel (0) target = $region33
  $region32: #{model_forward.10} parent=0 // pred_region
    _
  $region33: #{model_forward.10} parent=0 // pred_fallthru
    _
  // Predicated region
  $region34: #{model_forward.10} parent=0 // pred_check
    _
  $region35: #{model_forward.10} parent=0 // pred_check_branch
    %31 = sbr.rel (0) target = $region37
  $region36: #{model_forward.10} parent=0 // pred_region
    _
  $region37: #{model_forward.10} parent=0 // pred_fallthru
    _
  %v32 = vld [vmem:[%s0] sm:$0xff]
  %v33 = vld [vmem:[%s0 + $0x8] sm:$0xff]
  %v34 = vld [vmem:[%s0 + $0x10] sm:$0xff]
  %v35 = vld [vmem:[%s0 + $0x18] sm:$0xff]
  %v36 = vld [vmem:[%s1] sm:$0xff]
  %v37 = vld [vmem:[%s1 + $0x8] sm:$0xff]
  %vm38 = vcmask 261120
  %v40 = vsel %vm38, %v36, 0
  %v43 = vsel %vm38, %v37, 0
  %45 = vmatprep.subr.mxu0 0.0
  %46 = vmatpush1.msra.mxu0 %v32
  %47 = vmatprep.subr.mxu0 0.0
  %48 = vmatpush1.msra.mxu0 %v33
  %49 = vmatprep.subr.mxu0 0.0
  %50 = vmatpush1.msra.mxu0 %v34
  %51 = vmatprep.subr.mxu0 0.0
  %52 = vmatpush1.msra.mxu0 %v35
  %53 = vmatprep.subr.mxu0 0.0
  %54 = vmatpush1.msra.mxu0 0.0
  %55 = vmatprep.subr.mxu0 0.0
  %56 = vmatpush1.msra.mxu0 0.0
  %57 = vmatprep.subr.mxu0 0.0
  %58 = vmatpush1.msra.mxu0 0.0
  %59 = vmatprep.subr.mxu0 0.0
  %60 = vmatpush1.msra.mxu0 0.0
  %61 = vmatprep.subr.mxu0 0.0
  %62 = vmatpush1.msra.mxu0 0.0
  %63 = vmatprep.subr.mxu0 0.0
  %64 = vmatpush1.msra.mxu0 0.0
  %65 = vmatprep.subr.mxu0 0.0
  %66 = vmatpush1.msra.mxu0 0.0
  %67 = vmatprep.subr.mxu0 0.0
  %68 = vmatpush1.msra.mxu0 0.0
  %69 = vmatprep.subr.mxu0 0.0
  %70 = vmatpush1.msra.mxu0 0.0
  %71 = vmatprep.subr.mxu0 0.0
  %72 = vmatpush1.msra.mxu0 0.0
  %73 = vmatprep.subr.mxu0 0.0
  %74 = vmatpush1.msra.mxu0 0.0
  %75 = vmatprep.subr.mxu0 0.0
  %76 = vmatpush1.msra.mxu0 0.0
  %77 = vmatprep.subr.mxu0 0.0
  %78 = vmatpush1.msra.mxu0 0.0
  %79 = vmatprep.subr.mxu0 0.0
  %80 = vmatpush1.msra.mxu0 0.0
  %81 = vmatprep.subr.mxu0 0.0
  %82 = vmatpush1.msra.mxu0 0.0
  %83 = vmatprep.subr.mxu0 0.0
  %84 = vmatpush1.msra.mxu0 0.0
  %85 = vmatprep.subr.mxu0 0.0
  %86 = vmatpush1.msra.mxu0 0.0
  %87 = vmatprep.subr.mxu0 0.0
  %88 = vmatpush1.msra.mxu0 0.0
  %89 = vmatprep.subr.mxu0 0.0
  %90 = vmatpush1.msra.mxu0 0.0
  %91 = vmatprep.subr.mxu0 0.0
  %92 = vmatpush1.msra.mxu0 0.0
  %93 = vmatprep.subr.mxu0 0.0
  %94 = vmatpush1.msra.mxu0 0.0
  %95 = vmatprep.subr.mxu0 0.0
  %96 = vmatpush1.msra.mxu0 0.0
  %97 = vmatprep.subr.mxu0 0.0
  %98 = vmatpush1.msra.mxu0 0.0
  %99 = vmatprep.subr.mxu0 0.0
  %100 = vmatpush1.msra.mxu0 0.0
  %101 = vmatprep.subr.mxu0 0.0
  %102 = vmatpush1.msra.mxu0 0.0
  %103 = vmatprep.subr.mxu0 0.0
  %104 = vmatpush1.msra.mxu0 0.0
  %105 = vmatprep.subr.mxu0 0.0
  %106 = vmatpush1.msra.mxu0 0.0
  %107 = vmatprep.subr.mxu0 0.0
  %108 = vmatpush1.msra.mxu0 0.0
  %109 = vmatprep.mubr.f32.mxu0 0.0
  %110 = vmatmul.mubr.f32.gmra.mrb[0].mxu0 %v40
  %v111 = vpop.f32.mrb[0].mxu0
  %v112 = vadd.f32 0.0, %v111
  %v113 = vpop.f32.mrb[0].mxu0
  %114 = vmatprep.mubr.f32.mxu0 0.0
  %115 = vmatmul.mubr.f32.gmra.mrb[0].mxu0 %v43
  %v116 = vpop.f32.mrb[0].mxu0
  %v117 = vadd.f32 0.0, %v116
  %v118 = vpop.f32.mrb[0].mxu0
  %119 = vdwg.mxu0
  %s120 = scalar_lea.vmem %s1, 16
  %v121 = vld [vmem:[%s120] sm:$0xff]
  %v122 = vld [vmem:[%s120 + $0x8] sm:$0xff]
  %v124 = vsel %vm38, %v121, 0
  %v127 = vsel %vm38, %v122, 0
  %129 = vmatprep.subr.mxu0 0.0
  %130 = vmatpush1.msra.mxu0 %v32
  %131 = vmatprep.subr.mxu0 0.0
  %132 = vmatpush1.msra.mxu0 %v33
  %133 = vmatprep.subr.mxu0 0.0
  %134 = vmatpush1.msra.mxu0 %v34
  %135 = vmatprep.subr.mxu0 0.0
  %136 = vmatpush1.msra.mxu0 %v35
  %137 = vmatprep.subr.mxu0 0.0
  %138 = vmatpush1.msra.mxu0 0.0
  %139 = vmatprep.subr.mxu0 0.0
  %140 = vmatpush1.msra.mxu0 0.0
  %141 = vmatprep.subr.mxu0 0.0
  %142 = vmatpush1.msra.mxu0 0.0
  %143 = vmatprep.subr.mxu0 0.0
  %144 = vmatpush1.msra.mxu0 0.0
  %145 = vmatprep.subr.mxu0 0.0
  %146 = vmatpush1.msra.mxu0 0.0
  %147 = vmatprep.subr.mxu0 0.0
  %148 = vmatpush1.msra.mxu0 0.0
  %149 = vmatprep.subr.mxu0 0.0
  %150 = vmatpush1.msra.mxu0 0.0
  %151 = vmatprep.subr.mxu0 0.0
  %152 = vmatpush1.msra.mxu0 0.0
  %153 = vmatprep.subr.mxu0 0.0
  %154 = vmatpush1.msra.mxu0 0.0
  %155 = vmatprep.subr.mxu0 0.0
  %156 = vmatpush1.msra.mxu0 0.0
  %157 = vmatprep.subr.mxu0 0.0
  %158 = vmatpush1.msra.mxu0 0.0
  %159 = vmatprep.subr.mxu0 0.0
  %160 = vmatpush1.msra.mxu0 0.0
  %161 = vmatprep.subr.mxu0 0.0
  %162 = vmatpush1.msra.mxu0 0.0
  %163 = vmatprep.subr.mxu0 0.0
  %164 = vmatpush1.msra.mxu0 0.0
  %165 = vmatprep.subr.mxu0 0.0
  %166 = vmatpush1.msra.mxu0 0.0
  %167 = vmatprep.subr.mxu0 0.0
  %168 = vmatpush1.msra.mxu0 0.0
  %169 = vmatprep.subr.mxu0 0.0
  %170 = vmatpush1.msra.mxu0 0.0
  %171 = vmatprep.subr.mxu0 0.0
  %172 = vmatpush1.msra.mxu0 0.0
  %173 = vmatprep.subr.mxu0 0.0
  %174 = vmatpush1.msra.mxu0 0.0
  %175 = vmatprep.subr.mxu0 0.0
  %176 = vmatpush1.msra.mxu0 0.0
  %177 = vmatprep.subr.mxu0 0.0
  %178 = vmatpush1.msra.mxu0 0.0
  %179 = vmatprep.subr.mxu0 0.0
  %180 = vmatpush1.msra.mxu0 0.0
  %181 = vmatprep.subr.mxu0 0.0
  %182 = vmatpush1.msra.mxu0 0.0
  %183 = vmatprep.subr.mxu0 0.0
  %184 = vmatpush1.msra.mxu0 0.0
  %185 = vmatprep.subr.mxu0 0.0
  %186 = vmatpush1.msra.mxu0 0.0
  %187 = vmatprep.subr.mxu0 0.0
  %188 = vmatpush1.msra.mxu0 0.0
  %189 = vmatprep.subr.mxu0 0.0
  %190 = vmatpush1.msra.mxu0 0.0
  %191 = vmatprep.subr.mxu0 0.0
  %192 = vmatpush1.msra.mxu0 0.0
  %193 = vmatprep.mubr.f32.mxu0 0.0
  %194 = vmatmul.mubr.f32.gmra.mrb[0].mxu0 %v124
  %v195 = vpop.f32.mrb[0].mxu0
  %v196 = vadd.f32 0.0, %v195
  %v197 = vpop.f32.mrb[0].mxu0
  %198 = vmatprep.mubr.f32.mxu0 0.0
  %199 = vmatmul.mubr.f32.gmra.mrb[0].mxu0 %v127
  %v200 = vpop.f32.mrb[0].mxu0
  %v201 = vadd.f32 0.0, %v200
  %v202 = vpop.f32.mrb[0].mxu0
  %203 = vdwg.mxu0
  %s204 = scalar_lea.vmem %s1, 32
  %v205 = vld [vmem:[%s204] sm:$0xff]
  %v206 = vld [vmem:[%s204 + $0x8] sm:$0xff]
  %v208 = vsel %vm38, %v205, 0
  %v211 = vsel %vm38, %v206, 0
  %213 = vmatprep.subr.mxu0 0.0
  %214 = vmatpush1.msra.mxu0 %v32
  %215 = vmatprep.subr.mxu0 0.0
  %216 = vmatpush1.msra.mxu0 %v33
  %217 = vmatprep.subr.mxu0 0.0
  %218 = vmatpush1.msra.mxu0 %v34
  %219 = vmatprep.subr.mxu0 0.0
  %220 = vmatpush1.msra.mxu0 %v35
  %221 = vmatprep.subr.mxu0 0.0
  %222 = vmatpush1.msra.mxu0 0.0
  %223 = vmatprep.subr.mxu0 0.0
  %224 = vmatpush1.msra.mxu0 0.0
  %225 = vmatprep.subr.mxu0 0.0
  %226 = vmatpush1.msra.mxu0 0.0
  %227 = vmatprep.subr.mxu0 0.0
  %228 = vmatpush1.msra.mxu0 0.0
  %229 = vmatprep.subr.mxu0 0.0
  %230 = vmatpush1.msra.mxu0 0.0
  %231 = vmatprep.subr.mxu0 0.0
  %232 = vmatpush1.msra.mxu0 0.0
  %233 = vmatprep.subr.mxu0 0.0
  %234 = vmatpush1.msra.mxu0 0.0
  %235 = vmatprep.subr.mxu0 0.0
  %236 = vmatpush1.msra.mxu0 0.0
  %237 = vmatprep.subr.mxu0 0.0
  %238 = vmatpush1.msra.mxu0 0.0
  %239 = vmatprep.subr.mxu0 0.0
  %240 = vmatpush1.msra.mxu0 0.0
  %241 = vmatprep.subr.mxu0 0.0
  %242 = vmatpush1.msra.mxu0 0.0
  %243 = vmatprep.subr.mxu0 0.0
  %244 = vmatpush1.msra.mxu0 0.0
  %245 = vmatprep.subr.mxu0 0.0
  %246 = vmatpush1.msra.mxu0 0.0
  %247 = vmatprep.subr.mxu0 0.0
  %248 = vmatpush1.msra.mxu0 0.0
  %249 = vmatprep.subr.mxu0 0.0
  %250 = vmatpush1.msra.mxu0 0.0
  %251 = vmatprep.subr.mxu0 0.0
  %252 = vmatpush1.msra.mxu0 0.0
  %253 = vmatprep.subr.mxu0 0.0
  %254 = vmatpush1.msra.mxu0 0.0
  %255 = vmatprep.subr.mxu0 0.0
  %256 = vmatpush1.msra.mxu0 0.0
  %257 = vmatprep.subr.mxu0 0.0
  %258 = vmatpush1.msra.mxu0 0.0
  %259 = vmatprep.subr.mxu0 0.0
  %260 = vmatpush1.msra.mxu0 0.0
  %261 = vmatprep.subr.mxu0 0.0
  %262 = vmatpush1.msra.mxu0 0.0
  %263 = vmatprep.subr.mxu0 0.0
  %264 = vmatpush1.msra.mxu0 0.0
  %265 = vmatprep.subr.mxu0 0.0
  %266 = vmatpush1.msra.mxu0 0.0
  %267 = vmatprep.subr.mxu0 0.0
  %268 = vmatpush1.msra.mxu0 0.0
  %269 = vmatprep.subr.mxu0 0.0
  %270 = vmatpush1.msra.mxu0 0.0
  %271 = vmatprep.subr.mxu0 0.0
  %272 = vmatpush1.msra.mxu0 0.0
  %273 = vmatprep.subr.mxu0 0.0
  %274 = vmatpush1.msra.mxu0 0.0
  %275 = vmatprep.subr.mxu0 0.0
  %276 = vmatpush1.msra.mxu0 0.0
  %277 = vmatprep.mubr.f32.mxu0 0.0
  %278 = vmatmul.mubr.f32.gmra.mrb[0].mxu0 %v208
  %v279 = vpop.f32.mrb[0].mxu0
  %v280 = vadd.f32 0.0, %v279
  %v281 = vpop.f32.mrb[0].mxu0
  %282 = vmatprep.mubr.f32.mxu0 0.0
  %283 = vmatmul.mubr.f32.gmra.mrb[0].mxu0 %v211
  %v284 = vpop.f32.mrb[0].mxu0
  %v285 = vadd.f32 0.0, %v284
  %v286 = vpop.f32.mrb[0].mxu0
  %287 = vdwg.mxu0
  %v288 = vld [vmem:[%s3] sm:$0xff]
  %v289 = vld [vmem:[%s3 + $0x8] sm:$0xff]
  %v290 = vld [vmem:[%s3 + $0x10] sm:$0x3]
  %s291 = scalar_lea.vmem %s3, 24
  %v292 = vld [vmem:[%s291] sm:$0xff]
  %v293 = vld [vmem:[%s291 + $0x8] sm:$0xff]
  %v294 = vld [vmem:[%s291 + $0x10] sm:$0x3]
  %vm295 = vcmask 146432
  %v297 = vsel %vm295, %v196, 0
  %v300 = vsel %vm295, %v201, 0
  %vm302 = vcmask 1041408
  %v304 = vsel %vm302, %v294, 0
  %306 = vmatprep.subr.mxu0 0.0
  %307 = vmatpush1.msra.mxu0 %v292
  %308 = vmatprep.subr.mxu0 0.0
  %309 = vmatpush1.msra.mxu0 %v293
  %310 = vmatprep.subr.mxu0 0.0
  %311 = vmatpush1.msra.mxu0 %v304
  %312 = vmatprep.subr.mxu0 0.0
  %313 = vmatpush1.msra.mxu0 0.0
  %314 = vmatprep.subr.mxu0 0.0
  %315 = vmatpush1.msra.mxu0 0.0
  %316 = vmatprep.subr.mxu0 0.0
  %317 = vmatpush1.msra.mxu0 0.0
  %318 = vmatprep.subr.mxu0 0.0
  %319 = vmatpush1.msra.mxu0 0.0
  %320 = vmatprep.subr.mxu0 0.0
  %321 = vmatpush1.msra.mxu0 0.0
  %322 = vmatprep.subr.mxu0 0.0
  %323 = vmatpush1.msra.mxu0 0.0
  %324 = vmatprep.subr.mxu0 0.0
  %325 = vmatpush1.msra.mxu0 0.0
  %326 = vmatprep.subr.mxu0 0.0
  %327 = vmatpush1.msra.mxu0 0.0
  %328 = vmatprep.subr.mxu0 0.0
  %329 = vmatpush1.msra.mxu0 0.0
  %330 = vmatprep.subr.mxu0 0.0
  %331 = vmatpush1.msra.mxu0 0.0
  %332 = vmatprep.subr.mxu0 0.0
  %333 = vmatpush1.msra.mxu0 0.0
  %334 = vmatprep.subr.mxu0 0.0
  %335 = vmatpush1.msra.mxu0 0.0
  %336 = vmatprep.subr.mxu0 0.0
  %337 = vmatpush1.msra.mxu0 0.0
  %338 = vmatprep.subr.mxu0 0.0
  %339 = vmatpush1.msra.mxu0 0.0
  %340 = vmatprep.subr.mxu0 0.0
  %341 = vmatpush1.msra.mxu0 0.0
  %342 = vmatprep.subr.mxu0 0.0
  %343 = vmatpush1.msra.mxu0 0.0
  %344 = vmatprep.subr.mxu0 0.0
  %345 = vmatpush1.msra.mxu0 0.0
  %346 = vmatprep.subr.mxu0 0.0
  %347 = vmatpush1.msra.mxu0 0.0
  %348 = vmatprep.subr.mxu0 0.0
  %349 = vmatpush1.msra.mxu0 0.0
  %350 = vmatprep.subr.mxu0 0.0
  %351 = vmatpush1.msra.mxu0 0.0
  %352 = vmatprep.subr.mxu0 0.0
  %353 = vmatpush1.msra.mxu0 0.0
  %354 = vmatprep.subr.mxu0 0.0
  %355 = vmatpush1.msra.mxu0 0.0
  %356 = vmatprep.subr.mxu0 0.0
  %357 = vmatpush1.msra.mxu0 0.0
  %358 = vmatprep.subr.mxu0 0.0
  %359 = vmatpush1.msra.mxu0 0.0
  %360 = vmatprep.subr.mxu0 0.0
  %361 = vmatpush1.msra.mxu0 0.0
  %362 = vmatprep.subr.mxu0 0.0
  %363 = vmatpush1.msra.mxu0 0.0
  %364 = vmatprep.subr.mxu0 0.0
  %365 = vmatpush1.msra.mxu0 0.0
  %366 = vmatprep.subr.mxu0 0.0
  %367 = vmatpush1.msra.mxu0 0.0
  %368 = vmatprep.subr.mxu0 0.0
  %369 = vmatpush1.msra.mxu0 0.0
  %370 = vmatprep.mubr.f32.mxu0 0.0
  %371 = vmatmul.mubr.f32.gmra.mrb[0].mxu0 %v297
  %v372 = vpop.f32.mrb[0].mxu0
  %v373 = vadd.f32 0.0, %v372
  %v374 = vpop.f32.mrb[0].mxu0
  %375 = vmatprep.mubr.f32.mxu0 0.0
  %376 = vmatmul.mubr.f32.gmra.mrb[0].mxu0 %v300
  %v377 = vpop.f32.mrb[0].mxu0
  %v378 = vadd.f32 0.0, %v377
  %v379 = vpop.f32.mrb[0].mxu0
  %380 = vdwg.mxu0
  %v382 = vsel %vm295, %v112, 0
  %v385 = vsel %vm295, %v117, 0
  %v388 = vsel %vm302, %v290, 0
  %390 = vmatprep.subr.mxu0 0.0
  %391 = vmatpush1.msra.mxu0 %v288
  %392 = vmatprep.subr.mxu0 0.0
  %393 = vmatpush1.msra.mxu0 %v289
  %394 = vmatprep.subr.mxu0 0.0
  %395 = vmatpush1.msra.mxu0 %v388
  %396 = vmatprep.subr.mxu0 0.0
  %397 = vmatpush1.msra.mxu0 0.0
  %398 = vmatprep.subr.mxu0 0.0
  %399 = vmatpush1.msra.mxu0 0.0
  %400 = vmatprep.subr.mxu0 0.0
  %401 = vmatpush1.msra.mxu0 0.0
  %402 = vmatprep.subr.mxu0 0.0
  %403 = vmatpush1.msra.mxu0 0.0
  %404 = vmatprep.subr.mxu0 0.0
  %405 = vmatpush1.msra.mxu0 0.0
  %406 = vmatprep.subr.mxu0 0.0
  %407 = vmatpush1.msra.mxu0 0.0
  %408 = vmatprep.subr.mxu0 0.0
  %409 = vmatpush1.msra.mxu0 0.0
  %410 = vmatprep.subr.mxu0 0.0
  %411 = vmatpush1.msra.mxu0 0.0
  %412 = vmatprep.subr.mxu0 0.0
  %413 = vmatpush1.msra.mxu0 0.0
  %414 = vmatprep.subr.mxu0 0.0
  %415 = vmatpush1.msra.mxu0 0.0
  %416 = vmatprep.subr.mxu0 0.0
  %417 = vmatpush1.msra.mxu0 0.0
  %418 = vmatprep.subr.mxu0 0.0
  %419 = vmatpush1.msra.mxu0 0.0
  %420 = vmatprep.subr.mxu0 0.0
  %421 = vmatpush1.msra.mxu0 0.0
  %422 = vmatprep.subr.mxu0 0.0
  %423 = vmatpush1.msra.mxu0 0.0
  %424 = vmatprep.subr.mxu0 0.0
  %425 = vmatpush1.msra.mxu0 0.0
  %426 = vmatprep.subr.mxu0 0.0
  %427 = vmatpush1.msra.mxu0 0.0
  %428 = vmatprep.subr.mxu0 0.0
  %429 = vmatpush1.msra.mxu0 0.0
  %430 = vmatprep.subr.mxu0 0.0
  %431 = vmatpush1.msra.mxu0 0.0
  %432 = vmatprep.subr.mxu0 0.0
  %433 = vmatpush1.msra.mxu0 0.0
  %434 = vmatprep.subr.mxu0 0.0
  %435 = vmatpush1.msra.mxu0 0.0
  %436 = vmatprep.subr.mxu0 0.0
  %437 = vmatpush1.msra.mxu0 0.0
  %438 = vmatprep.subr.mxu0 0.0
  %439 = vmatpush1.msra.mxu0 0.0
  %440 = vmatprep.subr.mxu0 0.0
  %441 = vmatpush1.msra.mxu0 0.0
  %442 = vmatprep.subr.mxu0 0.0
  %443 = vmatpush1.msra.mxu0 0.0
  %444 = vmatprep.subr.mxu0 0.0
  %445 = vmatpush1.msra.mxu0 0.0
  %446 = vmatprep.subr.mxu0 0.0
  %447 = vmatpush1.msra.mxu0 0.0
  %448 = vmatprep.subr.mxu0 0.0
  %449 = vmatpush1.msra.mxu0 0.0
  %450 = vmatprep.subr.mxu0 0.0
  %451 = vmatpush1.msra.mxu0 0.0
  %452 = vmatprep.subr.mxu0 0.0
  %453 = vmatpush1.msra.mxu0 0.0
  %454 = vmatprep.mubr.f32.mxu0 0.0
  %455 = vmatmul.mubr.f32.gmra.mrb[0].mxu0 %v382
  %v456 = vpop.f32.mrb[0].mxu0
  %v457 = vadd.f32 %v373, %v456
  %v458 = vpop.f32.mrb[0].mxu0
  %459 = vmatprep.mubr.f32.mxu0 0.0
  %460 = vmatmul.mubr.f32.gmra.mrb[0].mxu0 %v385
  %v461 = vpop.f32.mrb[0].mxu0
  %v462 = vadd.f32 %v378, %v461
  %v463 = vpop.f32.mrb[0].mxu0
  %464 = vdwg.mxu0
  %s465 = scalar_lea.vmem %s3, 48
  %v466 = vld [vmem:[%s465] sm:$0xff]
  %v467 = vld [vmem:[%s465 + $0x8] sm:$0xff]
  %v468 = vld [vmem:[%s465 + $0x10] sm:$0x3]
  %v470 = vsel %vm295, %v280, 0
  %v473 = vsel %vm295, %v285, 0
  %v476 = vsel %vm302, %v468, 0
  %478 = vmatprep.subr.mxu0 0.0
  %479 = vmatpush1.msra.mxu0 %v466
  %480 = vmatprep.subr.mxu0 0.0
  %481 = vmatpush1.msra.mxu0 %v467
  %482 = vmatprep.subr.mxu0 0.0
  %483 = vmatpush1.msra.mxu0 %v476
  %484 = vmatprep.subr.mxu0 0.0
  %485 = vmatpush1.msra.mxu0 0.0
  %486 = vmatprep.subr.mxu0 0.0
  %487 = vmatpush1.msra.mxu0 0.0
  %488 = vmatprep.subr.mxu0 0.0
  %489 = vmatpush1.msra.mxu0 0.0
  %490 = vmatprep.subr.mxu0 0.0
  %491 = vmatpush1.msra.mxu0 0.0
  %492 = vmatprep.subr.mxu0 0.0
  %493 = vmatpush1.msra.mxu0 0.0
  %494 = vmatprep.subr.mxu0 0.0
  %495 = vmatpush1.msra.mxu0 0.0
  %496 = vmatprep.subr.mxu0 0.0
  %497 = vmatpush1.msra.mxu0 0.0
  %498 = vmatprep.subr.mxu0 0.0
  %499 = vmatpush1.msra.mxu0 0.0
  %500 = vmatprep.subr.mxu0 0.0
  %501 = vmatpush1.msra.mxu0 0.0
  %502 = vmatprep.subr.mxu0 0.0
  %503 = vmatpush1.msra.mxu0 0.0
  %504 = vmatprep.subr.mxu0 0.0
  %505 = vmatpush1.msra.mxu0 0.0
  %506 = vmatprep.subr.mxu0 0.0
  %507 = vmatpush1.msra.mxu0 0.0
  %508 = vmatprep.subr.mxu0 0.0
  %509 = vmatpush1.msra.mxu0 0.0
  %510 = vmatprep.subr.mxu0 0.0
  %511 = vmatpush1.msra.mxu0 0.0
  %512 = vmatprep.subr.mxu0 0.0
  %513 = vmatpush1.msra.mxu0 0.0
  %514 = vmatprep.subr.mxu0 0.0
  %515 = vmatpush1.msra.mxu0 0.0
  %516 = vmatprep.subr.mxu0 0.0
  %517 = vmatpush1.msra.mxu0 0.0
  %518 = vmatprep.subr.mxu0 0.0
  %519 = vmatpush1.msra.mxu0 0.0
  %520 = vmatprep.subr.mxu0 0.0
  %521 = vmatpush1.msra.mxu0 0.0
  %522 = vmatprep.subr.mxu0 0.0
  %523 = vmatpush1.msra.mxu0 0.0
  %524 = vmatprep.subr.mxu0 0.0
  %525 = vmatpush1.msra.mxu0 0.0
  %526 = vmatprep.subr.mxu0 0.0
  %527 = vmatpush1.msra.mxu0 0.0
  %528 = vmatprep.subr.mxu0 0.0
  %529 = vmatpush1.msra.mxu0 0.0
  %530 = vmatprep.subr.mxu0 0.0
  %531 = vmatpush1.msra.mxu0 0.0
  %532 = vmatprep.subr.mxu0 0.0
  %533 = vmatpush1.msra.mxu0 0.0
  %534 = vmatprep.subr.mxu0 0.0
  %535 = vmatpush1.msra.mxu0 0.0
  %536 = vmatprep.subr.mxu0 0.0
  %537 = vmatpush1.msra.mxu0 0.0
  %538 = vmatprep.subr.mxu0 0.0
  %539 = vmatpush1.msra.mxu0 0.0
  %540 = vmatprep.subr.mxu0 0.0
  %541 = vmatpush1.msra.mxu0 0.0
  %542 = vmatprep.mubr.f32.mxu0 0.0
  %543 = vmatmul.mubr.f32.gmra.mrb[0].mxu0 %v470
  %v544 = vpop.f32.mrb[0].mxu0
  %v545 = vadd.f32 0.0, %v544
  %v546 = vpop.f32.mrb[0].mxu0
  %547 = vmatprep.mubr.f32.mxu0 0.0
  %548 = vmatmul.mubr.f32.gmra.mrb[0].mxu0 %v473
  %v549 = vpop.f32.mrb[0].mxu0
  %v550 = vadd.f32 0.0, %v549
  %v551 = vpop.f32.mrb[0].mxu0
  %552 = vdwg.mxu0
  %v553 = vadd.f32 %v457, %v545
  %v554 = vadd.f32 %v462, %v550
  %v555 = vld [vmem:[%s4] sm:$0xff]
  %v556 = vld [vmem:[%s4 + $0x8] sm:$0xff]
  %v557 = vadd.f32 %v553, %v555
  %v558 = vadd.f32 %v554, %v556
  %v559 = vld [vmem:[%s5] sm:$0xff]
  %v560 = vld [vmem:[%s5 + $0x8] sm:$0xff]
  %v561 = vld [vmem:[%s5 + $0x10] sm:$0x3]
  %s562 = scalar_lea.vmem %s5, 24
  %v563 = vld [vmem:[%s562] sm:$0xff]
  %v564 = vld [vmem:[%s562 + $0x8] sm:$0xff]
  %v565 = vld [vmem:[%s562 + $0x10] sm:$0x3]
  %v567 = vsel %vm302, %v565, 0
  %569 = vmatprep.subr.mxu0 0.0
  %570 = vmatpush1.msra.mxu0 %v563
  %571 = vmatprep.subr.mxu0 0.0
  %572 = vmatpush1.msra.mxu0 %v564
  %573 = vmatprep.subr.mxu0 0.0
  %574 = vmatpush1.msra.mxu0 %v567
  %575 = vmatprep.subr.mxu0 0.0
  %576 = vmatpush1.msra.mxu0 0.0
  %577 = vmatprep.subr.mxu0 0.0
  %578 = vmatpush1.msra.mxu0 0.0
  %579 = vmatprep.subr.mxu0 0.0
  %580 = vmatpush1.msra.mxu0 0.0
  %581 = vmatprep.subr.mxu0 0.0
  %582 = vmatpush1.msra.mxu0 0.0
  %583 = vmatprep.subr.mxu0 0.0
  %584 = vmatpush1.msra.mxu0 0.0
  %585 = vmatprep.subr.mxu0 0.0
  %586 = vmatpush1.msra.mxu0 0.0
  %587 = vmatprep.subr.mxu0 0.0
  %588 = vmatpush1.msra.mxu0 0.0
  %589 = vmatprep.subr.mxu0 0.0
  %590 = vmatpush1.msra.mxu0 0.0
  %591 = vmatprep.subr.mxu0 0.0
  %592 = vmatpush1.msra.mxu0 0.0
  %593 = vmatprep.subr.mxu0 0.0
  %594 = vmatpush1.msra.mxu0 0.0
  %595 = vmatprep.subr.mxu0 0.0
  %596 = vmatpush1.msra.mxu0 0.0
  %597 = vmatprep.subr.mxu0 0.0
  %598 = vmatpush1.msra.mxu0 0.0
  %599 = vmatprep.subr.mxu0 0.0
  %600 = vmatpush1.msra.mxu0 0.0
  %601 = vmatprep.subr.mxu0 0.0
  %602 = vmatpush1.msra.mxu0 0.0
  %603 = vmatprep.subr.mxu0 0.0
  %604 = vmatpush1.msra.mxu0 0.0
  %605 = vmatprep.subr.mxu0 0.0
  %606 = vmatpush1.msra.mxu0 0.0
  %607 = vmatprep.subr.mxu0 0.0
  %608 = vmatpush1.msra.mxu0 0.0
  %609 = vmatprep.subr.mxu0 0.0
  %610 = vmatpush1.msra.mxu0 0.0
  %611 = vmatprep.subr.mxu0 0.0
  %612 = vmatpush1.msra.mxu0 0.0
  %613 = vmatprep.subr.mxu0 0.0
  %614 = vmatpush1.msra.mxu0 0.0
  %615 = vmatprep.subr.mxu0 0.0
  %616 = vmatpush1.msra.mxu0 0.0
  %617 = vmatprep.subr.mxu0 0.0
  %618 = vmatpush1.msra.mxu0 0.0
  %619 = vmatprep.subr.mxu0 0.0
  %620 = vmatpush1.msra.mxu0 0.0
  %621 = vmatprep.subr.mxu0 0.0
  %622 = vmatpush1.msra.mxu0 0.0
  %623 = vmatprep.subr.mxu0 0.0
  %624 = vmatpush1.msra.mxu0 0.0
  %625 = vmatprep.subr.mxu0 0.0
  %626 = vmatpush1.msra.mxu0 0.0
  %627 = vmatprep.subr.mxu0 0.0
  %628 = vmatpush1.msra.mxu0 0.0
  %629 = vmatprep.subr.mxu0 0.0
  %630 = vmatpush1.msra.mxu0 0.0
  %631 = vmatprep.subr.mxu0 0.0
  %632 = vmatpush1.msra.mxu0 0.0
  %633 = vmatprep.mubr.f32.mxu0 0.0
  %634 = vmatmul.mubr.f32.gmra.mrb[0].mxu0 %v297
  %v635 = vpop.f32.mrb[0].mxu0
  %v636 = vadd.f32 0.0, %v635
  %v637 = vpop.f32.mrb[0].mxu0
  %638 = vmatprep.mubr.f32.mxu0 0.0
  %639 = vmatmul.mubr.f32.gmra.mrb[0].mxu0 %v300
  %v640 = vpop.f32.mrb[0].mxu0
  %v641 = vadd.f32 0.0, %v640
  %v642 = vpop.f32.mrb[0].mxu0
  %643 = vdwg.mxu0
  %v645 = vsel %vm302, %v561, 0
  %647 = vmatprep.subr.mxu0 0.0
  %648 = vmatpush1.msra.mxu0 %v559
  %649 = vmatprep.subr.mxu0 0.0
  %650 = vmatpush1.msra.mxu0 %v560
  %651 = vmatprep.subr.mxu0 0.0
  %652 = vmatpush1.msra.mxu0 %v645
  %653 = vmatprep.subr.mxu0 0.0
  %654 = vmatpush1.msra.mxu0 0.0
  %655 = vmatprep.subr.mxu0 0.0
  %656 = vmatpush1.msra.mxu0 0.0
  %657 = vmatprep.subr.mxu0 0.0
  %658 = vmatpush1.msra.mxu0 0.0
  %659 = vmatprep.subr.mxu0 0.0
  %660 = vmatpush1.msra.mxu0 0.0
  %661 = vmatprep.subr.mxu0 0.0
  %662 = vmatpush1.msra.mxu0 0.0
  %663 = vmatprep.subr.mxu0 0.0
  %664 = vmatpush1.msra.mxu0 0.0
  %665 = vmatprep.subr.mxu0 0.0
  %666 = vmatpush1.msra.mxu0 0.0
  %667 = vmatprep.subr.mxu0 0.0
  %668 = vmatpush1.msra.mxu0 0.0
  %669 = vmatprep.subr.mxu0 0.0
  %670 = vmatpush1.msra.mxu0 0.0
  %671 = vmatprep.subr.mxu0 0.0
  %672 = vmatpush1.msra.mxu0 0.0
  %673 = vmatprep.subr.mxu0 0.0
  %674 = vmatpush1.msra.mxu0 0.0
  %675 = vmatprep.subr.mxu0 0.0
  %676 = vmatpush1.msra.mxu0 0.0
  %677 = vmatprep.subr.mxu0 0.0
  %678 = vmatpush1.msra.mxu0 0.0
  %679 = vmatprep.subr.mxu0 0.0
  %680 = vmatpush1.msra.mxu0 0.0
  %681 = vmatprep.subr.mxu0 0.0
  %682 = vmatpush1.msra.mxu0 0.0
  %683 = vmatprep.subr.mxu0 0.0
  %684 = vmatpush1.msra.mxu0 0.0
  %685 = vmatprep.subr.mxu0 0.0
  %686 = vmatpush1.msra.mxu0 0.0
  %687 = vmatprep.subr.mxu0 0.0
  %688 = vmatpush1.msra.mxu0 0.0
  %689 = vmatprep.subr.mxu0 0.0
  %690 = vmatpush1.msra.mxu0 0.0
  %691 = vmatprep.subr.mxu0 0.0
  %692 = vmatpush1.msra.mxu0 0.0
  %693 = vmatprep.subr.mxu0 0.0
  %694 = vmatpush1.msra.mxu0 0.0
  %695 = vmatprep.subr.mxu0 0.0
  %696 = vmatpush1.msra.mxu0 0.0
  %697 = vmatprep.subr.mxu0 0.0
  %698 = vmatpush1.msra.mxu0 0.0
  %699 = vmatprep.subr.mxu0 0.0
  %700 = vmatpush1.msra.mxu0 0.0
  %701 = vmatprep.subr.mxu0 0.0
  %702 = vmatpush1.msra.mxu0 0.0
  %703 = vmatprep.subr.mxu0 0.0
  %704 = vmatpush1.msra.mxu0 0.0
  %705 = vmatprep.subr.mxu0 0.0
  %706 = vmatpush1.msra.mxu0 0.0
  %707 = vmatprep.subr.mxu0 0.0
  %708 = vmatpush1.msra.mxu0 0.0
  %709 = vmatprep.subr.mxu0 0.0
  %710 = vmatpush1.msra.mxu0 0.0
  %711 = vmatprep.mubr.f32.mxu0 0.0
  %712 = vmatmul.mubr.f32.gmra.mrb[0].mxu0 %v382
  %v713 = vpop.f32.mrb[0].mxu0
  %v714 = vadd.f32 %v636, %v713
  %v715 = vpop.f32.mrb[0].mxu0
  %716 = vmatprep.mubr.f32.mxu0 0.0
  %717 = vmatmul.mubr.f32.gmra.mrb[0].mxu0 %v385
  %v718 = vpop.f32.mrb[0].mxu0
  %v719 = vadd.f32 %v641, %v718
  %v720 = vpop.f32.mrb[0].mxu0
  %721 = vdwg.mxu0
  %s722 = scalar_lea.vmem %s5, 48
  %v723 = vld [vmem:[%s722] sm:$0xff]
  %v724 = vld [vmem:[%s722 + $0x8] sm:$0xff]
  %v725 = vld [vmem:[%s722 + $0x10] sm:$0x3]
  %v727 = vsel %vm302, %v725, 0
  %729 = vmatprep.subr.mxu0 0.0
  %730 = vmatpush1.msra.mxu0 %v723
  %731 = vmatprep.subr.mxu0 0.0
  %732 = vmatpush1.msra.mxu0 %v724
  %733 = vmatprep.subr.mxu0 0.0
  %734 = vmatpush1.msra.mxu0 %v727
  %735 = vmatprep.subr.mxu0 0.0
  %736 = vmatpush1.msra.mxu0 0.0
  %737 = vmatprep.subr.mxu0 0.0
  %738 = vmatpush1.msra.mxu0 0.0
  %739 = vmatprep.subr.mxu0 0.0
  %740 = vmatpush1.msra.mxu0 0.0
  %741 = vmatprep.subr.mxu0 0.0
  %742 = vmatpush1.msra.mxu0 0.0
  %743 = vmatprep.subr.mxu0 0.0
  %744 = vmatpush1.msra.mxu0 0.0
  %745 = vmatprep.subr.mxu0 0.0
  %746 = vmatpush1.msra.mxu0 0.0
  %747 = vmatprep.subr.mxu0 0.0
  %748 = vmatpush1.msra.mxu0 0.0
  %749 = vmatprep.subr.mxu0 0.0
  %750 = vmatpush1.msra.mxu0 0.0
  %751 = vmatprep.subr.mxu0 0.0
  %752 = vmatpush1.msra.mxu0 0.0
  %753 = vmatprep.subr.mxu0 0.0
  %754 = vmatpush1.msra.mxu0 0.0
  %755 = vmatprep.subr.mxu0 0.0
  %756 = vmatpush1.msra.mxu0 0.0
  %757 = vmatprep.subr.mxu0 0.0
  %758 = vmatpush1.msra.mxu0 0.0
  %759 = vmatprep.subr.mxu0 0.0
  %760 = vmatpush1.msra.mxu0 0.0
  %761 = vmatprep.subr.mxu0 0.0
  %762 = vmatpush1.msra.mxu0 0.0
  %763 = vmatprep.subr.mxu0 0.0
  %764 = vmatpush1.msra.mxu0 0.0
  %765 = vmatprep.subr.mxu0 0.0
  %766 = vmatpush1.msra.mxu0 0.0
  %767 = vmatprep.subr.mxu0 0.0
  %768 = vmatpush1.msra.mxu0 0.0
  %769 = vmatprep.subr.mxu0 0.0
  %770 = vmatpush1.msra.mxu0 0.0
  %771 = vmatprep.subr.mxu0 0.0
  %772 = vmatpush1.msra.mxu0 0.0
  %773 = vmatprep.subr.mxu0 0.0
  %774 = vmatpush1.msra.mxu0 0.0
  %775 = vmatprep.subr.mxu0 0.0
  %776 = vmatpush1.msra.mxu0 0.0
  %777 = vmatprep.subr.mxu0 0.0
  %778 = vmatpush1.msra.mxu0 0.0
  %779 = vmatprep.subr.mxu0 0.0
  %780 = vmatpush1.msra.mxu0 0.0
  %781 = vmatprep.subr.mxu0 0.0
  %782 = vmatpush1.msra.mxu0 0.0
  %783 = vmatprep.subr.mxu0 0.0
  %784 = vmatpush1.msra.mxu0 0.0
  %785 = vmatprep.subr.mxu0 0.0
  %786 = vmatpush1.msra.mxu0 0.0
  %787 = vmatprep.subr.mxu0 0.0
  %788 = vmatpush1.msra.mxu0 0.0
  %789 = vmatprep.subr.mxu0 0.0
  %790 = vmatpush1.msra.mxu0 0.0
  %791 = vmatprep.subr.mxu0 0.0
  %792 = vmatpush1.msra.mxu0 0.0
  %793 = vmatprep.mubr.f32.mxu0 0.0
  %794 = vmatmul.mubr.f32.gmra.mrb[0].mxu0 %v470
  %v795 = vpop.f32.mrb[0].mxu0
  %v796 = vadd.f32 0.0, %v795
  %v797 = vpop.f32.mrb[0].mxu0
  %798 = vmatprep.mubr.f32.mxu0 0.0
  %799 = vmatmul.mubr.f32.gmra.mrb[0].mxu0 %v473
  %v800 = vpop.f32.mrb[0].mxu0
  %v801 = vadd.f32 0.0, %v800
  %v802 = vpop.f32.mrb[0].mxu0
  %803 = vdwg.mxu0
  %v804 = vadd.f32 %v714, %v796
  %v805 = vadd.f32 %v719, %v801
  %v806 = vld [vmem:[%s6] sm:$0xff]
  %v807 = vld [vmem:[%s6 + $0x8] sm:$0xff]
  %v808 = vadd.f32 %v804, %v806
  %v809 = vadd.f32 %v805, %v807
  %v810 = vmax.f32 %v557, 0.0
  %v811 = vmax.f32 %v558, 0.0
  %v812 = vld [vmem:[%s2] sm:$0xff]
  %v813 = vld [vmem:[%s2 + $0x8] sm:$0xff]
  %vm814 = vcmask 130048
  %v816 = vsel %vm814, %v812, 0
  %v819 = vsel %vm814, %v813, 0
  %821 = vmatprep.subr.mxu0 0.0
  %822 = vmatpush1.msra.mxu0 %v810
  %823 = vmatprep.subr.mxu0 0.0
  %824 = vmatpush1.msra.mxu0 %v811
  %825 = vmatprep.subr.mxu0 0.0
  %826 = vmatpush1.msra.mxu0 0.0
  %827 = vmatprep.subr.mxu0 0.0
  %828 = vmatpush1.msra.mxu0 0.0
  %829 = vmatprep.subr.mxu0 0.0
  %830 = vmatpush1.msra.mxu0 0.0
  %831 = vmatprep.subr.mxu0 0.0
  %832 = vmatpush1.msra.mxu0 0.0
  %833 = vmatprep.subr.mxu0 0.0
  %834 = vmatpush1.msra.mxu0 0.0
  %835 = vmatprep.subr.mxu0 0.0
  %836 = vmatpush1.msra.mxu0 0.0
  %837 = vmatprep.subr.mxu0 0.0
  %838 = vmatpush1.msra.mxu0 0.0
  %839 = vmatprep.subr.mxu0 0.0
  %840 = vmatpush1.msra.mxu0 0.0
  %841 = vmatprep.subr.mxu0 0.0
  %842 = vmatpush1.msra.mxu0 0.0
  %843 = vmatprep.subr.mxu0 0.0
  %844 = vmatpush1.msra.mxu0 0.0
  %845 = vmatprep.subr.mxu0 0.0
  %846 = vmatpush1.msra.mxu0 0.0
  %847 = vmatprep.subr.mxu0 0.0
  %848 = vmatpush1.msra.mxu0 0.0
  %849 = vmatprep.subr.mxu0 0.0
  %850 = vmatpush1.msra.mxu0 0.0
  %851 = vmatprep.subr.mxu0 0.0
  %852 = vmatpush1.msra.mxu0 0.0
  %853 = vmatprep.subr.mxu0 0.0
  %854 = vmatpush1.msra.mxu0 0.0
  %855 = vmatprep.subr.mxu0 0.0
  %856 = vmatpush1.msra.mxu0 0.0
  %857 = vmatprep.subr.mxu0 0.0
  %858 = vmatpush1.msra.mxu0 0.0
  %859 = vmatprep.subr.mxu0 0.0
  %860 = vmatpush1.msra.mxu0 0.0
  %861 = vmatprep.subr.mxu0 0.0
  %862 = vmatpush1.msra.mxu0 0.0
  %863 = vmatprep.subr.mxu0 0.0
  %864 = vmatpush1.msra.mxu0 0.0
  %865 = vmatprep.subr.mxu0 0.0
  %866 = vmatpush1.msra.mxu0 0.0
  %867 = vmatprep.subr.mxu0 0.0
  %868 = vmatpush1.msra.mxu0 0.0
  %869 = vmatprep.subr.mxu0 0.0
  %870 = vmatpush1.msra.mxu0 0.0
  %871 = vmatprep.subr.mxu0 0.0
  %872 = vmatpush1.msra.mxu0 0.0
  %873 = vmatprep.subr.mxu0 0.0
  %874 = vmatpush1.msra.mxu0 0.0
  %875 = vmatprep.subr.mxu0 0.0
  %876 = vmatpush1.msra.mxu0 0.0
  %877 = vmatprep.subr.mxu0 0.0
  %878 = vmatpush1.msra.mxu0 0.0
  %879 = vmatprep.subr.mxu0 0.0
  %880 = vmatpush1.msra.mxu0 0.0
  %881 = vmatprep.subr.mxu0 0.0
  %882 = vmatpush1.msra.mxu0 0.0
  %883 = vmatprep.subr.mxu0 0.0
  %884 = vmatpush1.msra.mxu0 0.0
  %885 = vmatprep.mubr.f32.mxu0 0.0
  %886 = vmatmul.mubr.f32.gmra.mrb[0].mxu0 %v816
  %v887 = vpop.f32.mrb[0].mxu0
  %v888 = vadd.f32 0.0, %v887
  %v889 = vpop.f32.mrb[0].mxu0
  %890 = vmatprep.mubr.f32.mxu0 0.0
  %891 = vmatmul.mubr.f32.gmra.mrb[0].mxu0 %v819
  %v892 = vpop.f32.mrb[0].mxu0
  %v893 = vadd.f32 0.0, %v892
  %v894 = vpop.f32.mrb[0].mxu0
  %895 = vdwg.mxu0
  %s896 = scalar_lea.vmem %s2, 32
  %v897 = vld [vmem:[%s896] sm:$0xff]
  %v898 = vld [vmem:[%s896 + $0x8] sm:$0xff]
  %v900 = vsel %vm814, %v897, 0
  %v903 = vsel %vm814, %v898, 0
  %905 = vmatprep.subr.mxu0 0.0
  %906 = vmatpush1.msra.mxu0 %v810
  %907 = vmatprep.subr.mxu0 0.0
  %908 = vmatpush1.msra.mxu0 %v811
  %909 = vmatprep.subr.mxu0 0.0
  %910 = vmatpush1.msra.mxu0 0.0
  %911 = vmatprep.subr.mxu0 0.0
  %912 = vmatpush1.msra.mxu0 0.0
  %913 = vmatprep.subr.mxu0 0.0
  %914 = vmatpush1.msra.mxu0 0.0
  %915 = vmatprep.subr.mxu0 0.0
  %916 = vmatpush1.msra.mxu0 0.0
  %917 = vmatprep.subr.mxu0 0.0
  %918 = vmatpush1.msra.mxu0 0.0
  %919 = vmatprep.subr.mxu0 0.0
  %920 = vmatpush1.msra.mxu0 0.0
  %921 = vmatprep.subr.mxu0 0.0
  %922 = vmatpush1.msra.mxu0 0.0
  %923 = vmatprep.subr.mxu0 0.0
  %924 = vmatpush1.msra.mxu0 0.0
  %925 = vmatprep.subr.mxu0 0.0
  %926 = vmatpush1.msra.mxu0 0.0
  %927 = vmatprep.subr.mxu0 0.0
  %928 = vmatpush1.msra.mxu0 0.0
  %929 = vmatprep.subr.mxu0 0.0
  %930 = vmatpush1.msra.mxu0 0.0
  %931 = vmatprep.subr.mxu0 0.0
  %932 = vmatpush1.msra.mxu0 0.0
  %933 = vmatprep.subr.mxu0 0.0
  %934 = vmatpush1.msra.mxu0 0.0
  %935 = vmatprep.subr.mxu0 0.0
  %936 = vmatpush1.msra.mxu0 0.0
  %937 = vmatprep.subr.mxu0 0.0
  %938 = vmatpush1.msra.mxu0 0.0
  %939 = vmatprep.subr.mxu0 0.0
  %940 = vmatpush1.msra.mxu0 0.0
  %941 = vmatprep.subr.mxu0 0.0
  %942 = vmatpush1.msra.mxu0 0.0
  %943 = vmatprep.subr.mxu0 0.0
  %944 = vmatpush1.msra.mxu0 0.0
  %945 = vmatprep.subr.mxu0 0.0
  %946 = vmatpush1.msra.mxu0 0.0
  %947 = vmatprep.subr.mxu0 0.0
  %948 = vmatpush1.msra.mxu0 0.0
  %949 = vmatprep.subr.mxu0 0.0
  %950 = vmatpush1.msra.mxu0 0.0
  %951 = vmatprep.subr.mxu0 0.0
  %952 = vmatpush1.msra.mxu0 0.0
  %953 = vmatprep.subr.mxu0 0.0
  %954 = vmatpush1.msra.mxu0 0.0
  %955 = vmatprep.subr.mxu0 0.0
  %956 = vmatpush1.msra.mxu0 0.0
  %957 = vmatprep.subr.mxu0 0.0
  %958 = vmatpush1.msra.mxu0 0.0
  %959 = vmatprep.subr.mxu0 0.0
  %960 = vmatpush1.msra.mxu0 0.0
  %961 = vmatprep.subr.mxu0 0.0
  %962 = vmatpush1.msra.mxu0 0.0
  %963 = vmatprep.subr.mxu0 0.0
  %964 = vmatpush1.msra.mxu0 0.0
  %965 = vmatprep.subr.mxu0 0.0
  %966 = vmatpush1.msra.mxu0 0.0
  %967 = vmatprep.subr.mxu0 0.0
  %968 = vmatpush1.msra.mxu0 0.0
  %969 = vmatprep.mubr.f32.mxu0 0.0
  %970 = vmatmul.mubr.f32.gmra.mrb[0].mxu0 %v900
  %v971 = vpop.f32.mrb[0].mxu0
  %v972 = vadd.f32 0.0, %v971
  %v973 = vpop.f32.mrb[0].mxu0
  %974 = vmatprep.mubr.f32.mxu0 0.0
  %975 = vmatmul.mubr.f32.gmra.mrb[0].mxu0 %v903
  %v976 = vpop.f32.mrb[0].mxu0
  %v977 = vadd.f32 0.0, %v976
  %v978 = vpop.f32.mrb[0].mxu0
  %979 = vdwg.mxu0
  %v980 = vld [vmem:[%s7] sm:$0xff]
  %v981 = vld [vmem:[%s7 + $0x8] sm:$0xff]
  %v982 = vld [vmem:[%s7 + $0x10] sm:$0xff]
  %v983 = vld [vmem:[%s7 + $0x18] sm:$0xff]
  %v984 = vld [vmem:[%s7 + $0x20] sm:$0xff]
  %v985 = vld [vmem:[%s7 + $0x28] sm:$0xff]
  %v986 = vld [vmem:[%s7 + $0x30] sm:$0xff]
  %v987 = vld [vmem:[%s7 + $0x38] sm:$0xff]
  %v988 = vld [vmem:[%s7 + $0x40] sm:$0xff]
  %v989 = vld [vmem:[%s7 + $0x48] sm:$0xff]
  %s990 = scalar_lea.vmem %s7, 80
  %v991 = vld [vmem:[%s990] sm:$0xff]
  %v992 = vld [vmem:[%s990 + $0x8] sm:$0xff]
  %v993 = vld [vmem:[%s990 + $0x10] sm:$0xff]
  %v994 = vld [vmem:[%s990 + $0x18] sm:$0xff]
  %v995 = vld [vmem:[%s990 + $0x20] sm:$0xff]
  %v996 = vld [vmem:[%s990 + $0x28] sm:$0xff]
  %v997 = vld [vmem:[%s990 + $0x30] sm:$0xff]
  %v998 = vld [vmem:[%s990 + $0x38] sm:$0xff]
  %v999 = vld [vmem:[%s990 + $0x40] sm:$0xff]
  %v1000 = vld [vmem:[%s990 + $0x48] sm:$0xff]
  %vm1001 = vcmask 654336
  %v1003 = vsel %vm1001, %v810, 0
  %v1006 = vsel %vm1001, %v811, 0
  %1008 = vmatprep.subr.mxu0 0.0
  %1009 = vmatpush1.msra.mxu0 %v991
  %1010 = vmatprep.subr.mxu0 0.0
  %1011 = vmatpush1.msra.mxu0 %v992
  %1012 = vmatprep.subr.mxu0 0.0
  %1013 = vmatpush1.msra.mxu0 %v993
  %1014 = vmatprep.subr.mxu0 0.0
  %1015 = vmatpush1.msra.mxu0 %v994
  %1016 = vmatprep.subr.mxu0 0.0
  %1017 = vmatpush1.msra.mxu0 %v995
  %1018 = vmatprep.subr.mxu0 0.0
  %1019 = vmatpush1.msra.mxu0 %v996
  %1020 = vmatprep.subr.mxu0 0.0
  %1021 = vmatpush1.msra.mxu0 %v997
  %1022 = vmatprep.subr.mxu0 0.0
  %1023 = vmatpush1.msra.mxu0 %v998
  %1024 = vmatprep.subr.mxu0 0.0
  %1025 = vmatpush1.msra.mxu0 %v999
  %1026 = vmatprep.subr.mxu0 0.0
  %1027 = vmatpush1.msra.mxu0 %v1000
  %1028 = vmatprep.subr.mxu0 0.0
  %1029 = vmatpush1.msra.mxu0 0.0
  %1030 = vmatprep.subr.mxu0 0.0
  %1031 = vmatpush1.msra.mxu0 0.0
  %1032 = vmatprep.subr.mxu0 0.0
  %1033 = vmatpush1.msra.mxu0 0.0
  %1034 = vmatprep.subr.mxu0 0.0
  %1035 = vmatpush1.msra.mxu0 0.0
  %1036 = vmatprep.subr.mxu0 0.0
  %1037 = vmatpush1.msra.mxu0 0.0
  %1038 = vmatprep.subr.mxu0 0.0
  %1039 = vmatpush1.msra.mxu0 0.0
  %1040 = vmatprep.subr.mxu0 0.0
  %1041 = vmatpush1.msra.mxu0 0.0
  %1042 = vmatprep.subr.mxu0 0.0
  %1043 = vmatpush1.msra.mxu0 0.0
  %1044 = vmatprep.subr.mxu0 0.0
  %1045 = vmatpush1.msra.mxu0 0.0
  %1046 = vmatprep.subr.mxu0 0.0
  %1047 = vmatpush1.msra.mxu0 0.0
  %1048 = vmatprep.subr.mxu0 0.0
  %1049 = vmatpush1.msra.mxu0 0.0
  %1050 = vmatprep.subr.mxu0 0.0
  %1051 = vmatpush1.msra.mxu0 0.0
  %1052 = vmatprep.subr.mxu0 0.0
  %1053 = vmatpush1.msra.mxu0 0.0
  %1054 = vmatprep.subr.mxu0 0.0
  %1055 = vmatpush1.msra.mxu0 0.0
  %1056 = vmatprep.subr.mxu0 0.0
  %1057 = vmatpush1.msra.mxu0 0.0
  %1058 = vmatprep.subr.mxu0 0.0
  %1059 = vmatpush1.msra.mxu0 0.0
  %1060 = vmatprep.subr.mxu0 0.0
  %1061 = vmatpush1.msra.mxu0 0.0
  %1062 = vmatprep.subr.mxu0 0.0
  %1063 = vmatpush1.msra.mxu0 0.0
  %1064 = vmatprep.subr.mxu0 0.0
  %1065 = vmatpush1.msra.mxu0 0.0
  %1066 = vmatprep.subr.mxu0 0.0
  %1067 = vmatpush1.msra.mxu0 0.0
  %1068 = vmatprep.subr.mxu0 0.0
  %1069 = vmatpush1.msra.mxu0 0.0
  %1070 = vmatprep.subr.mxu0 0.0
  %1071 = vmatpush1.msra.mxu0 0.0
  %1072 = vmatprep.mubr.f32.mxu0 0.0
  %1073 = vmatmul.mubr.f32.gmra.mrb[0].mxu0 %v1003
  %v1074 = vpop.f32.mrb[0].mxu0
  %v1075 = vadd.f32 0.0, %v1074
  %v1076 = vpop.f32.mrb[0].mxu0
  %1077 = vmatprep.mubr.f32.mxu0 0.0
  %1078 = vmatmul.mubr.f32.gmra.mrb[0].mxu0 %v1006
  %v1079 = vpop.f32.mrb[0].mxu0
  %v1080 = vadd.f32 0.0, %v1079
  %v1081 = vpop.f32.mrb[0].mxu0
  %1082 = vdwg.mxu0
  %v1084 = vsel %vm1001, %v888, 0
  %v1087 = vsel %vm1001, %v893, 0
  %1089 = vmatprep.subr.mxu0 0.0
  %1090 = vmatpush1.msra.mxu0 %v980
  %1091 = vmatprep.subr.mxu0 0.0
  %1092 = vmatpush1.msra.mxu0 %v981
  %1093 = vmatprep.subr.mxu0 0.0
  %1094 = vmatpush1.msra.mxu0 %v982
  %1095 = vmatprep.subr.mxu0 0.0
  %1096 = vmatpush1.msra.mxu0 %v983
  %1097 = vmatprep.subr.mxu0 0.0
  %1098 = vmatpush1.msra.mxu0 %v984
  %1099 = vmatprep.subr.mxu0 0.0
  %1100 = vmatpush1.msra.mxu0 %v985
  %1101 = vmatprep.subr.mxu0 0.0
  %1102 = vmatpush1.msra.mxu0 %v986
  %1103 = vmatprep.subr.mxu0 0.0
  %1104 = vmatpush1.msra.mxu0 %v987
  %1105 = vmatprep.subr.mxu0 0.0
  %1106 = vmatpush1.msra.mxu0 %v988
  %1107 = vmatprep.subr.mxu0 0.0
  %1108 = vmatpush1.msra.mxu0 %v989
  %1109 = vmatprep.subr.mxu0 0.0
  %1110 = vmatpush1.msra.mxu0 0.0
  %1111 = vmatprep.subr.mxu0 0.0
  %1112 = vmatpush1.msra.mxu0 0.0
  %1113 = vmatprep.subr.mxu0 0.0
  %1114 = vmatpush1.msra.mxu0 0.0
  %1115 = vmatprep.subr.mxu0 0.0
  %1116 = vmatpush1.msra.mxu0 0.0
  %1117 = vmatprep.subr.mxu0 0.0
  %1118 = vmatpush1.msra.mxu0 0.0
  %1119 = vmatprep.subr.mxu0 0.0
  %1120 = vmatpush1.msra.mxu0 0.0
  %1121 = vmatprep.subr.mxu0 0.0
  %1122 = vmatpush1.msra.mxu0 0.0
  %1123 = vmatprep.subr.mxu0 0.0
  %1124 = vmatpush1.msra.mxu0 0.0
  %1125 = vmatprep.subr.mxu0 0.0
  %1126 = vmatpush1.msra.mxu0 0.0
  %1127 = vmatprep.subr.mxu0 0.0
  %1128 = vmatpush1.msra.mxu0 0.0
  %1129 = vmatprep.subr.mxu0 0.0
  %1130 = vmatpush1.msra.mxu0 0.0
  %1131 = vmatprep.subr.mxu0 0.0
  %1132 = vmatpush1.msra.mxu0 0.0
  %1133 = vmatprep.subr.mxu0 0.0
  %1134 = vmatpush1.msra.mxu0 0.0
  %1135 = vmatprep.subr.mxu0 0.0
  %1136 = vmatpush1.msra.mxu0 0.0
  %1137 = vmatprep.subr.mxu0 0.0
  %1138 = vmatpush1.msra.mxu0 0.0
  %1139 = vmatprep.subr.mxu0 0.0
  %1140 = vmatpush1.msra.mxu0 0.0
  %1141 = vmatprep.subr.mxu0 0.0
  %1142 = vmatpush1.msra.mxu0 0.0
  %1143 = vmatprep.subr.mxu0 0.0
  %1144 = vmatpush1.msra.mxu0 0.0
  %1145 = vmatprep.subr.mxu0 0.0
  %1146 = vmatpush1.msra.mxu0 0.0
  %1147 = vmatprep.subr.mxu0 0.0
  %1148 = vmatpush1.msra.mxu0 0.0
  %1149 = vmatprep.subr.mxu0 0.0
  %1150 = vmatpush1.msra.mxu0 0.0
  %1151 = vmatprep.subr.mxu0 0.0
  %1152 = vmatpush1.msra.mxu0 0.0
  %1153 = vmatprep.mubr.f32.mxu0 0.0
  %1154 = vmatmul.mubr.f32.gmra.mrb[0].mxu0 %v1084
  %v1155 = vpop.f32.mrb[0].mxu0
  %v1156 = vadd.f32 %v1075, %v1155
  %v1157 = vpop.f32.mrb[0].mxu0
  %1158 = vmatprep.mubr.f32.mxu0 0.0
  %1159 = vmatmul.mubr.f32.gmra.mrb[0].mxu0 %v1087
  %v1160 = vpop.f32.mrb[0].mxu0
  %v1161 = vadd.f32 %v1080, %v1160
  %v1162 = vpop.f32.mrb[0].mxu0
  %1163 = vdwg.mxu0
  %s1164 = scalar_lea.vmem %s7, 160
  %v1165 = vld [vmem:[%s1164] sm:$0xff]
  %v1166 = vld [vmem:[%s1164 + $0x8] sm:$0xff]
  %v1167 = vld [vmem:[%s1164 + $0x10] sm:$0xff]
  %v1168 = vld [vmem:[%s1164 + $0x18] sm:$0xff]
  %v1169 = vld [vmem:[%s1164 + $0x20] sm:$0xff]
  %v1170 = vld [vmem:[%s1164 + $0x28] sm:$0xff]
  %v1171 = vld [vmem:[%s1164 + $0x30] sm:$0xff]
  %v1172 = vld [vmem:[%s1164 + $0x38] sm:$0xff]
  %v1173 = vld [vmem:[%s1164 + $0x40] sm:$0xff]
  %v1174 = vld [vmem:[%s1164 + $0x48] sm:$0xff]
  %v1176 = vsel %vm1001, %v972, 0
  %v1179 = vsel %vm1001, %v977, 0
  %1181 = vmatprep.subr.mxu0 0.0
  %1182 = vmatpush1.msra.mxu0 %v1165
  %1183 = vmatprep.subr.mxu0 0.0
  %1184 = vmatpush1.msra.mxu0 %v1166
  %1185 = vmatprep.subr.mxu0 0.0
  %1186 = vmatpush1.msra.mxu0 %v1167
  %1187 = vmatprep.subr.mxu0 0.0
  %1188 = vmatpush1.msra.mxu0 %v1168
  %1189 = vmatprep.subr.mxu0 0.0
  %1190 = vmatpush1.msra.mxu0 %v1169
  %1191 = vmatprep.subr.mxu0 0.0
  %1192 = vmatpush1.msra.mxu0 %v1170
  %1193 = vmatprep.subr.mxu0 0.0
  %1194 = vmatpush1.msra.mxu0 %v1171
  %1195 = vmatprep.subr.mxu0 0.0
  %1196 = vmatpush1.msra.mxu0 %v1172
  %1197 = vmatprep.subr.mxu0 0.0
  %1198 = vmatpush1.msra.mxu0 %v1173
  %1199 = vmatprep.subr.mxu0 0.0
  %1200 = vmatpush1.msra.mxu0 %v1174
  %1201 = vmatprep.subr.mxu0 0.0
  %1202 = vmatpush1.msra.mxu0 0.0
  %1203 = vmatprep.subr.mxu0 0.0
  %1204 = vmatpush1.msra.mxu0 0.0
  %1205 = vmatprep.subr.mxu0 0.0
  %1206 = vmatpush1.msra.mxu0 0.0
  %1207 = vmatprep.subr.mxu0 0.0
  %1208 = vmatpush1.msra.mxu0 0.0
  %1209 = vmatprep.subr.mxu0 0.0
  %1210 = vmatpush1.msra.mxu0 0.0
  %1211 = vmatprep.subr.mxu0 0.0
  %1212 = vmatpush1.msra.mxu0 0.0
  %1213 = vmatprep.subr.mxu0 0.0
  %1214 = vmatpush1.msra.mxu0 0.0
  %1215 = vmatprep.subr.mxu0 0.0
  %1216 = vmatpush1.msra.mxu0 0.0
  %1217 = vmatprep.subr.mxu0 0.0
  %1218 = vmatpush1.msra.mxu0 0.0
  %1219 = vmatprep.subr.mxu0 0.0
  %1220 = vmatpush1.msra.mxu0 0.0
  %1221 = vmatprep.subr.mxu0 0.0
  %1222 = vmatpush1.msra.mxu0 0.0
  %1223 = vmatprep.subr.mxu0 0.0
  %1224 = vmatpush1.msra.mxu0 0.0
  %1225 = vmatprep.subr.mxu0 0.0
  %1226 = vmatpush1.msra.mxu0 0.0
  %1227 = vmatprep.subr.mxu0 0.0
  %1228 = vmatpush1.msra.mxu0 0.0
  %1229 = vmatprep.subr.mxu0 0.0
  %1230 = vmatpush1.msra.mxu0 0.0
  %1231 = vmatprep.subr.mxu0 0.0
  %1232 = vmatpush1.msra.mxu0 0.0
  %1233 = vmatprep.subr.mxu0 0.0
  %1234 = vmatpush1.msra.mxu0 0.0
  %1235 = vmatprep.subr.mxu0 0.0
  %1236 = vmatpush1.msra.mxu0 0.0
  %1237 = vmatprep.subr.mxu0 0.0
  %1238 = vmatpush1.msra.mxu0 0.0
  %1239 = vmatprep.subr.mxu0 0.0
  %1240 = vmatpush1.msra.mxu0 0.0
  %1241 = vmatprep.subr.mxu0 0.0
  %1242 = vmatpush1.msra.mxu0 0.0
  %1243 = vmatprep.subr.mxu0 0.0
  %1244 = vmatpush1.msra.mxu0 0.0
  %1245 = vmatprep.mubr.f32.mxu0 0.0
  %1246 = vmatmul.mubr.f32.gmra.mrb[0].mxu0 %v1176
  %v1247 = vpop.f32.mrb[0].mxu0
  %v1248 = vadd.f32 0.0, %v1247
  %v1249 = vpop.f32.mrb[0].mxu0
  %1250 = vmatprep.mubr.f32.mxu0 0.0
  %1251 = vmatmul.mubr.f32.gmra.mrb[0].mxu0 %v1179
  %v1252 = vpop.f32.mrb[0].mxu0
  %v1253 = vadd.f32 0.0, %v1252
  %v1254 = vpop.f32.mrb[0].mxu0
  %1255 = vdwg.mxu0
  %v1256 = vadd.f32 %v1156, %v1248
  %v1257 = vadd.f32 %v1161, %v1253
  %v1258 = vld [vmem:[%s8] sm:$0xff]
  %v1259 = vld [vmem:[%s8 + $0x8] sm:$0xff]
  %v1260 = vadd.f32 %v1256, %v1258
  %v1261 = vadd.f32 %v1257, %v1259
  %v1262 = vadd.f32 %v1260, %v808
  %v1263 = vadd.f32 %v1261, %v809
  %v1264 = vmax.f32 %v1262, 0.0
  %v1265 = vmax.f32 %v1263, 0.0
  %1266 = vst.msk [vmem:[%s9] sm:$0xff] %vm1001, %v1264
  %1267 = vst.msk [vmem:[%s9 + $0x8] sm:$0xff] %vm1001, %v1265
  // Predicated region
  $region38: #{model_forward.10} parent=0 // pred_check
    _
  $region39: #{model_forward.10} parent=0 // pred_check_branch
    %1269 = sbr.rel (0) target = $region41
  $region40: #{model_forward.10} parent=0 // pred_region
    _
  $region41: #{model_forward.10} parent=0 // pred_fallthru
    _
  // Predicated region
  $region42: #{model_forward.10} parent=0 // pred_check
    _
  $region43: #{model_forward.10} parent=0 // pred_check_branch
    %1271 = sbr.rel (0) target = $region45
  $region44: #{model_forward.10} parent=0 // pred_region
    _
  $region45: #{model_forward.10} parent=0 // pred_fallthru
    _

// kernel: model_forward.12
$region0: #{model_forward.12}
  #allocation0 [shape = 'u32[]', space=smem, size = 0x4, offset = 0x4, fixed_abs, tag = 'smem constant byte address 0x4 - core index']
  #allocation1 [shape = 'u32[144,128]{1,0:T(1,128)}', space=vmem, size = 0x12000, scoped, tag = 'internal scratch']
  %s0 = inlined_call_operand.vmem [shape: f32[8,48], index: 0, kind: input, shape index: {}]
  %s1 = inlined_call_operand.vmem [shape: f32[3,8,8], index: 1, kind: input, shape index: {}]
  %s2 = inlined_call_operand.vmem [shape: f32[3,8,8], index: 2, kind: input, shape index: {}]
  %s3 = inlined_call_operand.vmem [shape: f32[3,48,64], index: 3, kind: input, shape index: {}]
  %s4 = inlined_call_operand.vmem [shape: f32[8,64], index: 4, kind: input, shape index: {}]
  %s5 = inlined_call_operand.vmem [shape: f32[3,48,64], index: 5, kind: input, shape index: {}]
  %s6 = inlined_call_operand.vmem [shape: f32[8,64], index: 6, kind: input, shape index: {}]
  %s7 = inlined_call_operand.vmem [shape: f32[3,64,64], index: 7, kind: input, shape index: {}]
  %s8 = inlined_call_operand.vmem [shape: f32[8,64], index: 8, kind: input, shape index: {}]
  %s9 = inlined_call_operand.vmem [shape: f32[8,64], index: 9, kind: output, shape index: {}]
  %s10 = sld [smem:[#allocation0]]
  $region46: #{model_forward.12} parent=0
    _
  %s12 = ssub.s32 1, %s10
  %s13 = scalar_select 0, %s12, %s10
  // Predicated region
  $region2: #{model_forward.12} parent=0 // pred_check
    _
  $region3: #{model_forward.12} parent=0 // pred_check_branch
    %15 = sbr.rel (0) target = $region5
  $region4: #{model_forward.12} parent=0 // pred_region
    _
  $region5: #{model_forward.12} parent=0 // pred_fallthru
    _
  // Predicated region
  $region6: #{model_forward.12} parent=0 // pred_check
    _
  $region7: #{model_forward.12} parent=0 // pred_check_branch
    %17 = sbr.rel (0) target = $region9
  $region8: #{model_forward.12} parent=0 // pred_region
    _
  $region9: #{model_forward.12} parent=0 // pred_fallthru
    _
  // Predicated region
  $region10: #{model_forward.12} parent=0 // pred_check
    _
  $region11: #{model_forward.12} parent=0 // pred_check_branch
    %19 = sbr.rel (0) target = $region13
  $region12: #{model_forward.12} parent=0 // pred_region
    _
  $region13: #{model_forward.12} parent=0 // pred_fallthru
    _
  // Predicated region
  $region14: #{model_forward.12} parent=0 // pred_check
    _
  $region15: #{model_forward.12} parent=0 // pred_check_branch
    %21 = sbr.rel (0) target = $region17
  $region16: #{model_forward.12} parent=0 // pred_region
    _
  $region17: #{model_forward.12} parent=0 // pred_fallthru
    _
  // Predicated region
  $region18: #{model_forward.12} parent=0 // pred_check
    _
  $region19: #{model_forward.12} parent=0 // pred_check_branch
    %23 = sbr.rel (0) target = $region21
  $region20: #{model_forward.12} parent=0 // pred_region
    _
  $region21: #{model_forward.12} parent=0 // pred_fallthru
    _
  // Predicated region
  $region22: #{model_forward.12} parent=0 // pred_check
    _
  $region23: #{model_forward.12} parent=0 // pred_check_branch
    %25 = sbr.rel (0) target = $region25
  $region24: #{model_forward.12} parent=0 // pred_region
    _
  $region25: #{model_forward.12} parent=0 // pred_fallthru
    _
  // Predicated region
  $region26: #{model_forward.12} parent=0 // pred_check
    _
  $region27: #{model_forward.12} parent=0 // pred_check_branch
    %27 = sbr.rel (0) target = $region29
  $region28: #{model_forward.12} parent=0 // pred_region
    _
  $region29: #{model_forward.12} parent=0 // pred_fallthru
    _
  // Predicated region
  $region30: #{model_forward.12} parent=0 // pred_check
    _
  $region31: #{model_forward.12} parent=0 // pred_check_branch
    %29 = sbr.rel (0) target = $region33
  $region32: #{model_forward.12} parent=0 // pred_region
    _
  $region33: #{model_forward.12} parent=0 // pred_fallthru
    _
  // Predicated region
  $region34: #{model_forward.12} parent=0 // pred_check
    _
  $region35: #{model_forward.12} parent=0 // pred_check_branch
    %31 = sbr.rel (0) target = $region37
  $region36: #{model_forward.12} parent=0 // pred_region
    _
  $region37: #{model_forward.12} parent=0 // pred_fallthru
    _
  %v32 = vld [vmem:[%s0] sm:$0xff]
  %v33 = vld [vmem:[%s1] sm:$0xff]
  %vm34 = vcmask 64512
  %v36 = vsel %vm34, %v33, 0
  %38 = vmatprep.subr.mxu0 0.0
  %39 = vmatpush1.msra.mxu0 %v32
  %40 = vmatprep.subr.mxu0 0.0
  %41 = vmatpush1.msra.mxu0 0.0
  %42 = vmatprep.subr.mxu0 0.0
  %43 = vmatpush1.msra.mxu0 0.0
  %44 = vmatprep.subr.mxu0 0.0
  %45 = vmatpush1.msra.mxu0 0.0
  %46 = vmatprep.subr.mxu0 0.0
  %47 = vmatpush1.msra.mxu0 0.0
  %48 = vmatprep.subr.mxu0 0.0
  %49 = vmatpush1.msra.mxu0 0.0
  %50 = vmatprep.subr.mxu0 0.0
  %51 = vmatpush1.msra.mxu0 0.0
  %52 = vmatprep.subr.mxu0 0.0
  %53 = vmatpush1.msra.mxu0 0.0
  %54 = vmatprep.subr.mxu0 0.0
  %55 = vmatpush1.msra.mxu0 0.0
  %56 = vmatprep.subr.mxu0 0.0
  %57 = vmatpush1.msra.mxu0 0.0
  %58 = vmatprep.subr.mxu0 0.0
  %59 = vmatpush1.msra.mxu0 0.0
  %60 = vmatprep.subr.mxu0 0.0
  %61 = vmatpush1.msra.mxu0 0.0
  %62 = vmatprep.subr.mxu0 0.0
  %63 = vmatpush1.msra.mxu0 0.0
  %64 = vmatprep.subr.mxu0 0.0
  %65 = vmatpush1.msra.mxu0 0.0
  %66 = vmatprep.subr.mxu0 0.0
  %67 = vmatpush1.msra.mxu0 0.0
  %68 = vmatprep.subr.mxu0 0.0
  %69 = vmatpush1.msra.mxu0 0.0
  %70 = vmatprep.subr.mxu0 0.0
  %71 = vmatpush1.msra.mxu0 0.0
  %72 = vmatprep.subr.mxu0 0.0
  %73 = vmatpush1.msra.mxu0 0.0
  %74 = vmatprep.subr.mxu0 0.0
  %75 = vmatpush1.msra.mxu0 0.0
  %76 = vmatprep.subr.mxu0 0.0
  %77 = vmatpush1.msra.mxu0 0.0
  %78 = vmatprep.subr.mxu0 0.0
  %79 = vmatpush1.msra.mxu0 0.0
  %80 = vmatprep.subr.mxu0 0.0
  %81 = vmatpush1.msra.mxu0 0.0
  %82 = vmatprep.subr.mxu0 0.0
  %83 = vmatpush1.msra.mxu0 0.0
  %84 = vmatprep.subr.mxu0 0.0
  %85 = vmatpush1.msra.mxu0 0.0
  %86 = vmatprep.subr.mxu0 0.0
  %87 = vmatpush1.msra.mxu0 0.0
  %88 = vmatprep.subr.mxu0 0.0
  %89 = vmatpush1.msra.mxu0 0.0
  %90 = vmatprep.subr.mxu0 0.0
  %91 = vmatpush1.msra.mxu0 0.0
  %92 = vmatprep.subr.mxu0 0.0
  %93 = vmatpush1.msra.mxu0 0.0
  %94 = vmatprep.subr.mxu0 0.0
  %95 = vmatpush1.msra.mxu0 0.0
  %96 = vmatprep.subr.mxu0 0.0
  %97 = vmatpush1.msra.mxu0 0.0
  %98 = vmatprep.subr.mxu0 0.0
  %99 = vmatpush1.msra.mxu0 0.0
  %100 = vmatprep.subr.mxu0 0.0
  %101 = vmatpush1.msra.mxu0 0.0
  %102 = vmatprep.mubr.f32.mxu0 0.0
  %103 = vmatmul.mubr.f32.gmra.mrb[0].mxu0 %v36
  %v104 = vpop.f32.mrb[0].mxu0
  %v105 = vadd.f32 0.0, %v104
  %v106 = vpop.f32.mrb[0].mxu0
  %107 = vdwg.mxu0
  %s108 = scalar_lea.vmem %s1, 8
  %v109 = vld [vmem:[%s108] sm:$0xff]
  %v111 = vsel %vm34, %v109, 0
  %113 = vmatprep.subr.mxu0 0.0
  %114 = vmatpush1.msra.mxu0 %v32
  %115 = vmatprep.subr.mxu0 0.0
  %116 = vmatpush1.msra.mxu0 0.0
  %117 = vmatprep.subr.mxu0 0.0
  %118 = vmatpush1.msra.mxu0 0.0
  %119 = vmatprep.subr.mxu0 0.0
  %120 = vmatpush1.msra.mxu0 0.0
  %121 = vmatprep.subr.mxu0 0.0
  %122 = vmatpush1.msra.mxu0 0.0
  %123 = vmatprep.subr.mxu0 0.0
  %124 = vmatpush1.msra.mxu0 0.0
  %125 = vmatprep.subr.mxu0 0.0
  %126 = vmatpush1.msra.mxu0 0.0
  %127 = vmatprep.subr.mxu0 0.0
  %128 = vmatpush1.msra.mxu0 0.0
  %129 = vmatprep.subr.mxu0 0.0
  %130 = vmatpush1.msra.mxu0 0.0
  %131 = vmatprep.subr.mxu0 0.0
  %132 = vmatpush1.msra.mxu0 0.0
  %133 = vmatprep.subr.mxu0 0.0
  %134 = vmatpush1.msra.mxu0 0.0
  %135 = vmatprep.subr.mxu0 0.0
  %136 = vmatpush1.msra.mxu0 0.0
  %137 = vmatprep.subr.mxu0 0.0
  %138 = vmatpush1.msra.mxu0 0.0
  %139 = vmatprep.subr.mxu0 0.0
  %140 = vmatpush1.msra.mxu0 0.0
  %141 = vmatprep.subr.mxu0 0.0
  %142 = vmatpush1.msra.mxu0 0.0
  %143 = vmatprep.subr.mxu0 0.0
  %144 = vmatpush1.msra.mxu0 0.0
  %145 = vmatprep.subr.mxu0 0.0
  %146 = vmatpush1.msra.mxu0 0.0
  %147 = vmatprep.subr.mxu0 0.0
  %148 = vmatpush1.msra.mxu0 0.0
  %149 = vmatprep.subr.mxu0 0.0
  %150 = vmatpush1.msra.mxu0 0.0
  %151 = vmatprep.subr.mxu0 0.0
  %152 = vmatpush1.msra.mxu0 0.0
  %153 = vmatprep.subr.mxu0 0.0
  %154 = vmatpush1.msra.mxu0 0.0
  %155 = vmatprep.subr.mxu0 0.0
  %156 = vmatpush1.msra.mxu0 0.0
  %157 = vmatprep.subr.mxu0 0.0
  %158 = vmatpush1.msra.mxu0 0.0
  %159 = vmatprep.subr.mxu0 0.0
  %160 = vmatpush1.msra.mxu0 0.0
  %161 = vmatprep.subr.mxu0 0.0
  %162 = vmatpush1.msra.mxu0 0.0
  %163 = vmatprep.subr.mxu0 0.0
  %164 = vmatpush1.msra.mxu0 0.0
  %165 = vmatprep.subr.mxu0 0.0
  %166 = vmatpush1.msra.mxu0 0.0
  %167 = vmatprep.subr.mxu0 0.0
  %168 = vmatpush1.msra.mxu0 0.0
  %169 = vmatprep.subr.mxu0 0.0
  %170 = vmatpush1.msra.mxu0 0.0
  %171 = vmatprep.subr.mxu0 0.0
  %172 = vmatpush1.msra.mxu0 0.0
  %173 = vmatprep.subr.mxu0 0.0
  %174 = vmatpush1.msra.mxu0 0.0
  %175 = vmatprep.subr.mxu0 0.0
  %176 = vmatpush1.msra.mxu0 0.0
  %177 = vmatprep.mubr.f32.mxu0 0.0
  %178 = vmatmul.mubr.f32.gmra.mrb[0].mxu0 %v111
  %v179 = vpop.f32.mrb[0].mxu0
  %v180 = vadd.f32 0.0, %v179
  %v181 = vpop.f32.mrb[0].mxu0
  %182 = vdwg.mxu0
  %s183 = scalar_lea.vmem %s1, 16
  %v184 = vld [vmem:[%s183] sm:$0xff]
  %v186 = vsel %vm34, %v184, 0
  %188 = vmatprep.subr.mxu0 0.0
  %189 = vmatpush1.msra.mxu0 %v32
  %190 = vmatprep.subr.mxu0 0.0
  %191 = vmatpush1.msra.mxu0 0.0
  %192 = vmatprep.subr.mxu0 0.0
  %193 = vmatpush1.msra.mxu0 0.0
  %194 = vmatprep.subr.mxu0 0.0
  %195 = vmatpush1.msra.mxu0 0.0
  %196 = vmatprep.subr.mxu0 0.0
  %197 = vmatpush1.msra.mxu0 0.0
  %198 = vmatprep.subr.mxu0 0.0
  %199 = vmatpush1.msra.mxu0 0.0
  %200 = vmatprep.subr.mxu0 0.0
  %201 = vmatpush1.msra.mxu0 0.0
  %202 = vmatprep.subr.mxu0 0.0
  %203 = vmatpush1.msra.mxu0 0.0
  %204 = vmatprep.subr.mxu0 0.0
  %205 = vmatpush1.msra.mxu0 0.0
  %206 = vmatprep.subr.mxu0 0.0
  %207 = vmatpush1.msra.mxu0 0.0
  %208 = vmatprep.subr.mxu0 0.0
  %209 = vmatpush1.msra.mxu0 0.0
  %210 = vmatprep.subr.mxu0 0.0
  %211 = vmatpush1.msra.mxu0 0.0
  %212 = vmatprep.subr.mxu0 0.0
  %213 = vmatpush1.msra.mxu0 0.0
  %214 = vmatprep.subr.mxu0 0.0
  %215 = vmatpush1.msra.mxu0 0.0
  %216 = vmatprep.subr.mxu0 0.0
  %217 = vmatpush1.msra.mxu0 0.0
  %218 = vmatprep.subr.mxu0 0.0
  %219 = vmatpush1.msra.mxu0 0.0
  %220 = vmatprep.subr.mxu0 0.0
  %221 = vmatpush1.msra.mxu0 0.0
  %222 = vmatprep.subr.mxu0 0.0
  %223 = vmatpush1.msra.mxu0 0.0
  %224 = vmatprep.subr.mxu0 0.0
  %225 = vmatpush1.msra.mxu0 0.0
  %226 = vmatprep.subr.mxu0 0.0
  %227 = vmatpush1.msra.mxu0 0.0
  %228 = vmatprep.subr.mxu0 0.0
  %229 = vmatpush1.msra.mxu0 0.0
  %230 = vmatprep.subr.mxu0 0.0
  %231 = vmatpush1.msra.mxu0 0.0
  %232 = vmatprep.subr.mxu0 0.0
  %233 = vmatpush1.msra.mxu0 0.0
  %234 = vmatprep.subr.mxu0 0.0
  %235 = vmatpush1.msra.mxu0 0.0
  %236 = vmatprep.subr.mxu0 0.0
  %237 = vmatpush1.msra.mxu0 0.0
  %238 = vmatprep.subr.mxu0 0.0
  %239 = vmatpush1.msra.mxu0 0.0
  %240 = vmatprep.subr.mxu0 0.0
  %241 = vmatpush1.msra.mxu0 0.0
  %242 = vmatprep.subr.mxu0 0.0
  %243 = vmatpush1.msra.mxu0 0.0
  %244 = vmatprep.subr.mxu0 0.0
  %245 = vmatpush1.msra.mxu0 0.0
  %246 = vmatprep.subr.mxu0 0.0
  %247 = vmatpush1.msra.mxu0 0.0
  %248 = vmatprep.subr.mxu0 0.0
  %249 = vmatpush1.msra.mxu0 0.0
  %250 = vmatprep.subr.mxu0 0.0
  %251 = vmatpush1.msra.mxu0 0.0
  %252 = vmatprep.mubr.f32.mxu0 0.0
  %253 = vmatmul.mubr.f32.gmra.mrb[0].mxu0 %v186
  %v254 = vpop.f32.mrb[0].mxu0
  %v255 = vadd.f32 0.0, %v254
  %v256 = vpop.f32.mrb[0].mxu0
  %257 = vdwg.mxu0
  %v258 = vld [vmem:[%s3] sm:$0xff]
  %v259 = vld [vmem:[%s3 + $0x8] sm:$0xff]
  %v260 = vld [vmem:[%s3 + $0x10] sm:$0xff]
  %v261 = vld [vmem:[%s3 + $0x18] sm:$0xff]
  %v262 = vld [vmem:[%s3 + $0x20] sm:$0xff]
  %v263 = vld [vmem:[%s3 + $0x28] sm:$0xff]
  %s264 = scalar_lea.vmem %s3, 48
  %v265 = vld [vmem:[%s264] sm:$0xff]
  %v266 = vld [vmem:[%s264 + $0x8] sm:$0xff]
  %v267 = vld [vmem:[%s264 + $0x10] sm:$0xff]
  %v268 = vld [vmem:[%s264 + $0x18] sm:$0xff]
  %v269 = vld [vmem:[%s264 + $0x20] sm:$0xff]
  %v270 = vld [vmem:[%s264 + $0x28] sm:$0xff]
  %vm271 = vcmask 392192
  %v273 = vsel %vm271, %v180, 0
  %275 = vmatprep.subr.mxu0 0.0
  %276 = vmatpush1.msra.mxu0 %v265
  %277 = vmatprep.subr.mxu0 0.0
  %278 = vmatpush1.msra.mxu0 %v266
  %279 = vmatprep.subr.mxu0 0.0
  %280 = vmatpush1.msra.mxu0 %v267
  %281 = vmatprep.subr.mxu0 0.0
  %282 = vmatpush1.msra.mxu0 %v268
  %283 = vmatprep.subr.mxu0 0.0
  %284 = vmatpush1.msra.mxu0 %v269
  %285 = vmatprep.subr.mxu0 0.0
  %286 = vmatpush1.msra.mxu0 %v270
  %287 = vmatprep.subr.mxu0 0.0
  %288 = vmatpush1.msra.mxu0 0.0
  %289 = vmatprep.subr.mxu0 0.0
  %290 = vmatpush1.msra.mxu0 0.0
  %291 = vmatprep.subr.mxu0 0.0
  %292 = vmatpush1.msra.mxu0 0.0
  %293 = vmatprep.subr.mxu0 0.0
  %294 = vmatpush1.msra.mxu0 0.0
  %295 = vmatprep.subr.mxu0 0.0
  %296 = vmatpush1.msra.mxu0 0.0
  %297 = vmatprep.subr.mxu0 0.0
  %298 = vmatpush1.msra.mxu0 0.0
  %299 = vmatprep.subr.mxu0 0.0
  %300 = vmatpush1.msra.mxu0 0.0
  %301 = vmatprep.subr.mxu0 0.0
  %302 = vmatpush1.msra.mxu0 0.0
  %303 = vmatprep.subr.mxu0 0.0
  %304 = vmatpush1.msra.mxu0 0.0
  %305 = vmatprep.subr.mxu0 0.0
  %306 = vmatpush1.msra.mxu0 0.0
  %307 = vmatprep.subr.mxu0 0.0
  %308 = vmatpush1.msra.mxu0 0.0
  %309 = vmatprep.subr.mxu0 0.0
  %310 = vmatpush1.msra.mxu0 0.0
  %311 = vmatprep.subr.mxu0 0.0
  %312 = vmatpush1.msra.mxu0 0.0
  %313 = vmatprep.subr.mxu0 0.0
  %314 = vmatpush1.msra.mxu0 0.0
  %315 = vmatprep.subr.mxu0 0.0
  %316 = vmatpush1.msra.mxu0 0.0
  %317 = vmatprep.subr.mxu0 0.0
  %318 = vmatpush1.msra.mxu0 0.0
  %319 = vmatprep.subr.mxu0 0.0
  %320 = vmatpush1.msra.mxu0 0.0
  %321 = vmatprep.subr.mxu0 0.0
  %322 = vmatpush1.msra.mxu0 0.0
  %323 = vmatprep.subr.mxu0 0.0
  %324 = vmatpush1.msra.mxu0 0.0
  %325 = vmatprep.subr.mxu0 0.0
  %326 = vmatpush1.msra.mxu0 0.0
  %327 = vmatprep.subr.mxu0 0.0
  %328 = vmatpush1.msra.mxu0 0.0
  %329 = vmatprep.subr.mxu0 0.0
  %330 = vmatpush1.msra.mxu0 0.0
  %331 = vmatprep.subr.mxu0 0.0
  %332 = vmatpush1.msra.mxu0 0.0
  %333 = vmatprep.subr.mxu0 0.0
  %334 = vmatpush1.msra.mxu0 0.0
  %335 = vmatprep.subr.mxu0 0.0
  %336 = vmatpush1.msra.mxu0 0.0
  %337 = vmatprep.subr.mxu0 0.0
  %338 = vmatpush1.msra.mxu0 0.0
  %339 = vmatprep.mubr.f32.mxu0 0.0
  %340 = vmatmul.mubr.f32.gmra.mrb[0].mxu0 %v273
  %v341 = vpop.f32.mrb[0].mxu0
  %v342 = vadd.f32 0.0, %v341
  %v343 = vpop.f32.mrb[0].mxu0
  %344 = vdwg.mxu0
  %v346 = vsel %vm271, %v105, 0
  %348 = vmatprep.subr.mxu0 0.0
  %349 = vmatpush1.msra.mxu0 %v258
  %350 = vmatprep.subr.mxu0 0.0
  %351 = vmatpush1.msra.mxu0 %v259
  %352 = vmatprep.subr.mxu0 0.0
  %353 = vmatpush1.msra.mxu0 %v260
  %354 = vmatprep.subr.mxu0 0.0
  %355 = vmatpush1.msra.mxu0 %v261
  %356 = vmatprep.subr.mxu0 0.0
  %357 = vmatpush1.msra.mxu0 %v262
  %358 = vmatprep.subr.mxu0 0.0
  %359 = vmatpush1.msra.mxu0 %v263
  %360 = vmatprep.subr.mxu0 0.0
  %361 = vmatpush1.msra.mxu0 0.0
  %362 = vmatprep.subr.mxu0 0.0
  %363 = vmatpush1.msra.mxu0 0.0
  %364 = vmatprep.subr.mxu0 0.0
  %365 = vmatpush1.msra.mxu0 0.0
  %366 = vmatprep.subr.mxu0 0.0
  %367 = vmatpush1.msra.mxu0 0.0
  %368 = vmatprep.subr.mxu0 0.0
  %369 = vmatpush1.msra.mxu0 0.0
  %370 = vmatprep.subr.mxu0 0.0
  %371 = vmatpush1.msra.mxu0 0.0
  %372 = vmatprep.subr.mxu0 0.0
  %373 = vmatpush1.msra.mxu0 0.0
  %374 = vmatprep.subr.mxu0 0.0
  %375 = vmatpush1.msra.mxu0 0.0
  %376 = vmatprep.subr.mxu0 0.0
  %377 = vmatpush1.msra.mxu0 0.0
  %378 = vmatprep.subr.mxu0 0.0
  %379 = vmatpush1.msra.mxu0 0.0
  %380 = vmatprep.subr.mxu0 0.0
  %381 = vmatpush1.msra.mxu0 0.0
  %382 = vmatprep.subr.mxu0 0.0
  %383 = vmatpush1.msra.mxu0 0.0
  %384 = vmatprep.subr.mxu0 0.0
  %385 = vmatpush1.msra.mxu0 0.0
  %386 = vmatprep.subr.mxu0 0.0
  %387 = vmatpush1.msra.mxu0 0.0
  %388 = vmatprep.subr.mxu0 0.0
  %389 = vmatpush1.msra.mxu0 0.0
  %390 = vmatprep.subr.mxu0 0.0
  %391 = vmatpush1.msra.mxu0 0.0
  %392 = vmatprep.subr.mxu0 0.0
  %393 = vmatpush1.msra.mxu0 0.0
  %394 = vmatprep.subr.mxu0 0.0
  %395 = vmatpush1.msra.mxu0 0.0
  %396 = vmatprep.subr.mxu0 0.0
  %397 = vmatpush1.msra.mxu0 0.0
  %398 = vmatprep.subr.mxu0 0.0
  %399 = vmatpush1.msra.mxu0 0.0
  %400 = vmatprep.subr.mxu0 0.0
  %401 = vmatpush1.msra.mxu0 0.0
  %402 = vmatprep.subr.mxu0 0.0
  %403 = vmatpush1.msra.mxu0 0.0
  %404 = vmatprep.subr.mxu0 0.0
  %405 = vmatpush1.msra.mxu0 0.0
  %406 = vmatprep.subr.mxu0 0.0
  %407 = vmatpush1.msra.mxu0 0.0
  %408 = vmatprep.subr.mxu0 0.0
  %409 = vmatpush1.msra.mxu0 0.0
  %410 = vmatprep.subr.mxu0 0.0
  %411 = vmatpush1.msra.mxu0 0.0
  %412 = vmatprep.mubr.f32.mxu0 0.0
  %413 = vmatmul.mubr.f32.gmra.mrb[0].mxu0 %v346
  %v414 = vpop.f32.mrb[0].mxu0
  %v415 = vadd.f32 %v342, %v414
  %v416 = vpop.f32.mrb[0].mxu0
  %417 = vdwg.mxu0
  %s418 = scalar_lea.vmem %s3, 96
  %v419 = vld [vmem:[%s418] sm:$0xff]
  %v420 = vld [vmem:[%s418 + $0x8] sm:$0xff]
  %v421 = vld [vmem:[%s418 + $0x10] sm:$0xff]
  %v422 = vld [vmem:[%s418 + $0x18] sm:$0xff]
  %v423 = vld [vmem:[%s418 + $0x20] sm:$0xff]
  %v424 = vld [vmem:[%s418 + $0x28] sm:$0xff]
  %v426 = vsel %vm271, %v255, 0
  %428 = vmatprep.subr.mxu0 0.0
  %429 = vmatpush1.msra.mxu0 %v419
  %430 = vmatprep.subr.mxu0 0.0
  %431 = vmatpush1.msra.mxu0 %v420
  %432 = vmatprep.subr.mxu0 0.0
  %433 = vmatpush1.msra.mxu0 %v421
  %434 = vmatprep.subr.mxu0 0.0
  %435 = vmatpush1.msra.mxu0 %v422
  %436 = vmatprep.subr.mxu0 0.0
  %437 = vmatpush1.msra.mxu0 %v423
  %438 = vmatprep.subr.mxu0 0.0
  %439 = vmatpush1.msra.mxu0 %v424
  %440 = vmatprep.subr.mxu0 0.0
  %441 = vmatpush1.msra.mxu0 0.0
  %442 = vmatprep.subr.mxu0 0.0
  %443 = vmatpush1.msra.mxu0 0.0
  %444 = vmatprep.subr.mxu0 0.0
  %445 = vmatpush1.msra.mxu0 0.0
  %446 = vmatprep.subr.mxu0 0.0
  %447 = vmatpush1.msra.mxu0 0.0
  %448 = vmatprep.subr.mxu0 0.0
  %449 = vmatpush1.msra.mxu0 0.0
  %450 = vmatprep.subr.mxu0 0.0
  %451 = vmatpush1.msra.mxu0 0.0
  %452 = vmatprep.subr.mxu0 0.0
  %453 = vmatpush1.msra.mxu0 0.0
  %454 = vmatprep.subr.mxu0 0.0
  %455 = vmatpush1.msra.mxu0 0.0
  %456 = vmatprep.subr.mxu0 0.0
  %457 = vmatpush1.msra.mxu0 0.0
  %458 = vmatprep.subr.mxu0 0.0
  %459 = vmatpush1.msra.mxu0 0.0
  %460 = vmatprep.subr.mxu0 0.0
  %461 = vmatpush1.msra.mxu0 0.0
  %462 = vmatprep.subr.mxu0 0.0
  %463 = vmatpush1.msra.mxu0 0.0
  %464 = vmatprep.subr.mxu0 0.0
  %465 = vmatpush1.msra.mxu0 0.0
  %466 = vmatprep.subr.mxu0 0.0
  %467 = vmatpush1.msra.mxu0 0.0
  %468 = vmatprep.subr.mxu0 0.0
  %469 = vmatpush1.msra.mxu0 0.0
  %470 = vmatprep.subr.mxu0 0.0
  %471 = vmatpush1.msra.mxu0 0.0
  %472 = vmatprep.subr.mxu0 0.0
  %473 = vmatpush1.msra.mxu0 0.0
  %474 = vmatprep.subr.mxu0 0.0
  %475 = vmatpush1.msra.mxu0 0.0
  %476 = vmatprep.subr.mxu0 0.0
  %477 = vmatpush1.msra.mxu0 0.0
  %478 = vmatprep.subr.mxu0 0.0
  %479 = vmatpush1.msra.mxu0 0.0
  %480 = vmatprep.subr.mxu0 0.0
  %481 = vmatpush1.msra.mxu0 0.0
  %482 = vmatprep.subr.mxu0 0.0
  %483 = vmatpush1.msra.mxu0 0.0
  %484 = vmatprep.subr.mxu0 0.0
  %485 = vmatpush1.msra.mxu0 0.0
  %486 = vmatprep.subr.mxu0 0.0
  %487 = vmatpush1.msra.mxu0 0.0
  %488 = vmatprep.subr.mxu0 0.0
  %489 = vmatpush1.msra.mxu0 0.0
  %490 = vmatprep.subr.mxu0 0.0
  %491 = vmatpush1.msra.mxu0 0.0
  %492 = vmatprep.mubr.f32.mxu0 0.0
  %493 = vmatmul.mubr.f32.gmra.mrb[0].mxu0 %v426
  %v494 = vpop.f32.mrb[0].mxu0
  %v495 = vadd.f32 0.0, %v494
  %v496 = vpop.f32.mrb[0].mxu0
  %497 = vdwg.mxu0
  %v498 = vadd.f32 %v415, %v495
  %v499 = vld [vmem:[%s4] sm:$0xff]
  %v500 = vadd.f32 %v498, %v499
  %v501 = vld [vmem:[%s5] sm:$0xff]
  %v502 = vld [vmem:[%s5 + $0x8] sm:$0xff]
  %v503 = vld [vmem:[%s5 + $0x10] sm:$0xff]
  %v504 = vld [vmem:[%s5 + $0x18] sm:$0xff]
  %v505 = vld [vmem:[%s5 + $0x20] sm:$0xff]
  %v506 = vld [vmem:[%s5 + $0x28] sm:$0xff]
  %s507 = scalar_lea.vmem %s5, 48
  %v508 = vld [vmem:[%s507] sm:$0xff]
  %v509 = vld [vmem:[%s507 + $0x8] sm:$0xff]
  %v510 = vld [vmem:[%s507 + $0x10] sm:$0xff]
  %v511 = vld [vmem:[%s507 + $0x18] sm:$0xff]
  %v512 = vld [vmem:[%s507 + $0x20] sm:$0xff]
  %v513 = vld [vmem:[%s507 + $0x28] sm:$0xff]
  %514 = vmatprep.subr.mxu0 0.0
  %515 = vmatpush1.msra.mxu0 %v508
  %516 = vmatprep.subr.mxu0 0.0
  %517 = vmatpush1.msra.mxu0 %v509
  %518 = vmatprep.subr.mxu0 0.0
  %519 = vmatpush1.msra.mxu0 %v510
  %520 = vmatprep.subr.mxu0 0.0
  %521 = vmatpush1.msra.mxu0 %v511
  %522 = vmatprep.subr.mxu0 0.0
  %523 = vmatpush1.msra.mxu0 %v512
  %524 = vmatprep.subr.mxu0 0.0
  %525 = vmatpush1.msra.mxu0 %v513
  %526 = vmatprep.subr.mxu0 0.0
  %527 = vmatpush1.msra.mxu0 0.0
  %528 = vmatprep.subr.mxu0 0.0
  %529 = vmatpush1.msra.mxu0 0.0
  %530 = vmatprep.subr.mxu0 0.0
  %531 = vmatpush1.msra.mxu0 0.0
  %532 = vmatprep.subr.mxu0 0.0
  %533 = vmatpush1.msra.mxu0 0.0
  %534 = vmatprep.subr.mxu0 0.0
  %535 = vmatpush1.msra.mxu0 0.0
  %536 = vmatprep.subr.mxu0 0.0
  %537 = vmatpush1.msra.mxu0 0.0
  %538 = vmatprep.subr.mxu0 0.0
  %539 = vmatpush1.msra.mxu0 0.0
  %540 = vmatprep.subr.mxu0 0.0
  %541 = vmatpush1.msra.mxu0 0.0
  %542 = vmatprep.subr.mxu0 0.0
  %543 = vmatpush1.msra.mxu0 0.0
  %544 = vmatprep.subr.mxu0 0.0
  %545 = vmatpush1.msra.mxu0 0.0
  %546 = vmatprep.subr.mxu0 0.0
  %547 = vmatpush1.msra.mxu0 0.0
  %548 = vmatprep.subr.mxu0 0.0
  %549 = vmatpush1.msra.mxu0 0.0
  %550 = vmatprep.subr.mxu0 0.0
  %551 = vmatpush1.msra.mxu0 0.0
  %552 = vmatprep.subr.mxu0 0.0
  %553 = vmatpush1.msra.mxu0 0.0
  %554 = vmatprep.subr.mxu0 0.0
  %555 = vmatpush1.msra.mxu0 0.0
  %556 = vmatprep.subr.mxu0 0.0
  %557 = vmatpush1.msra.mxu0 0.0
  %558 = vmatprep.subr.mxu0 0.0
  %559 = vmatpush1.msra.mxu0 0.0
  %560 = vmatprep.subr.mxu0 0.0
  %561 = vmatpush1.msra.mxu0 0.0
  %562 = vmatprep.subr.mxu0 0.0
  %563 = vmatpush1.msra.mxu0 0.0
  %564 = vmatprep.subr.mxu0 0.0
  %565 = vmatpush1.msra.mxu0 0.0
  %566 = vmatprep.subr.mxu0 0.0
  %567 = vmatpush1.msra.mxu0 0.0
  %568 = vmatprep.subr.mxu0 0.0
  %569 = vmatpush1.msra.mxu0 0.0
  %570 = vmatprep.subr.mxu0 0.0
  %571 = vmatpush1.msra.mxu0 0.0
  %572 = vmatprep.subr.mxu0 0.0
  %573 = vmatpush1.msra.mxu0 0.0
  %574 = vmatprep.subr.mxu0 0.0
  %575 = vmatpush1.msra.mxu0 0.0
  %576 = vmatprep.subr.mxu0 0.0
  %577 = vmatpush1.msra.mxu0 0.0
  %578 = vmatprep.mubr.f32.mxu0 0.0
  %579 = vmatmul.mubr.f32.gmra.mrb[0].mxu0 %v273
  %v580 = vpop.f32.mrb[0].mxu0
  %v581 = vadd.f32 0.0, %v580
  %v582 = vpop.f32.mrb[0].mxu0
  %583 = vdwg.mxu0
  %584 = vmatprep.subr.mxu0 0.0
  %585 = vmatpush1.msra.mxu0 %v501
  %586 = vmatprep.subr.mxu0 0.0
  %587 = vmatpush1.msra.mxu0 %v502
  %588 = vmatprep.subr.mxu0 0.0
  %589 = vmatpush1.msra.mxu0 %v503
  %590 = vmatprep.subr.mxu0 0.0
  %591 = vmatpush1.msra.mxu0 %v504
  %592 = vmatprep.subr.mxu0 0.0
  %593 = vmatpush1.msra.mxu0 %v505
  %594 = vmatprep.subr.mxu0 0.0
  %595 = vmatpush1.msra.mxu0 %v506
  %596 = vmatprep.subr.mxu0 0.0
  %597 = vmatpush1.msra.mxu0 0.0
  %598 = vmatprep.subr.mxu0 0.0
  %599 = vmatpush1.msra.mxu0 0.0
  %600 = vmatprep.subr.mxu0 0.0
  %601 = vmatpush1.msra.mxu0 0.0
  %602 = vmatprep.subr.mxu0 0.0
  %603 = vmatpush1.msra.mxu0 0.0
  %604 = vmatprep.subr.mxu0 0.0
  %605 = vmatpush1.msra.mxu0 0.0
  %606 = vmatprep.subr.mxu0 0.0
  %607 = vmatpush1.msra.mxu0 0.0
  %608 = vmatprep.subr.mxu0 0.0
  %609 = vmatpush1.msra.mxu0 0.0
  %610 = vmatprep.subr.mxu0 0.0
  %611 = vmatpush1.msra.mxu0 0.0
  %612 = vmatprep.subr.mxu0 0.0
  %613 = vmatpush1.msra.mxu0 0.0
  %614 = vmatprep.subr.mxu0 0.0
  %615 = vmatpush1.msra.mxu0 0.0
  %616 = vmatprep.subr.mxu0 0.0
  %617 = vmatpush1.msra.mxu0 0.0
  %618 = vmatprep.subr.mxu0 0.0
  %619 = vmatpush1.msra.mxu0 0.0
  %620 = vmatprep.subr.mxu0 0.0
  %621 = vmatpush1.msra.mxu0 0.0
  %622 = vmatprep.subr.mxu0 0.0
  %623 = vmatpush1.msra.mxu0 0.0
  %624 = vmatprep.subr.mxu0 0.0
  %625 = vmatpush1.msra.mxu0 0.0
  %626 = vmatprep.subr.mxu0 0.0
  %627 = vmatpush1.msra.mxu0 0.0
  %628 = vmatprep.subr.mxu0 0.0
  %629 = vmatpush1.msra.mxu0 0.0
  %630 = vmatprep.subr.mxu0 0.0
  %631 = vmatpush1.msra.mxu0 0.0
  %632 = vmatprep.subr.mxu0 0.0
  %633 = vmatpush1.msra.mxu0 0.0
  %634 = vmatprep.subr.mxu0 0.0
  %635 = vmatpush1.msra.mxu0 0.0
  %636 = vmatprep.subr.mxu0 0.0
  %637 = vmatpush1.msra.mxu0 0.0
  %638 = vmatprep.subr.mxu0 0.0
  %639 = vmatpush1.msra.mxu0 0.0
  %640 = vmatprep.subr.mxu0 0.0
  %641 = vmatpush1.msra.mxu0 0.0
  %642 = vmatprep.subr.mxu0 0.0
  %643 = vmatpush1.msra.mxu0 0.0
  %644 = vmatprep.subr.mxu0 0.0
  %645 = vmatpush1.msra.mxu0 0.0
  %646 = vmatprep.subr.mxu0 0.0
  %647 = vmatpush1.msra.mxu0 0.0
  %648 = vmatprep.mubr.f32.mxu0 0.0
  %649 = vmatmul.mubr.f32.gmra.mrb[0].mxu0 %v346
  %v650 = vpop.f32.mrb[0].mxu0
  %v651 = vadd.f32 %v581, %v650
  %v652 = vpop.f32.mrb[0].mxu0
  %653 = vdwg.mxu0
  %s654 = scalar_lea.vmem %s5, 96
  %v655 = vld [vmem:[%s654] sm:$0xff]
  %v656 = vld [vmem:[%s654 + $0x8] sm:$0xff]
  %v657 = vld [vmem:[%s654 + $0x10] sm:$0xff]
  %v658 = vld [vmem:[%s654 + $0x18] sm:$0xff]
  %v659 = vld [vmem:[%s654 + $0x20] sm:$0xff]
  %v660 = vld [vmem:[%s654 + $0x28] sm:$0xff]
  %661 = vmatprep.subr.mxu0 0.0
  %662 = vmatpush1.msra.mxu0 %v655
  %663 = vmatprep.subr.mxu0 0.0
  %664 = vmatpush1.msra.mxu0 %v656
  %665 = vmatprep.subr.mxu0 0.0
  %666 = vmatpush1.msra.mxu0 %v657
  %667 = vmatprep.subr.mxu0 0.0
  %668 = vmatpush1.msra.mxu0 %v658
  %669 = vmatprep.subr.mxu0 0.0
  %670 = vmatpush1.msra.mxu0 %v659
  %671 = vmatprep.subr.mxu0 0.0
  %672 = vmatpush1.msra.mxu0 %v660
  %673 = vmatprep.subr.mxu0 0.0
  %674 = vmatpush1.msra.mxu0 0.0
  %675 = vmatprep.subr.mxu0 0.0
  %676 = vmatpush1.msra.mxu0 0.0
  %677 = vmatprep.subr.mxu0 0.0
  %678 = vmatpush1.msra.mxu0 0.0
  %679 = vmatprep.subr.mxu0 0.0
  %680 = vmatpush1.msra.mxu0 0.0
  %681 = vmatprep.subr.mxu0 0.0
  %682 = vmatpush1.msra.mxu0 0.0
  %683 = vmatprep.subr.mxu0 0.0
  %684 = vmatpush1.msra.mxu0 0.0
  %685 = vmatprep.subr.mxu0 0.0
  %686 = vmatpush1.msra.mxu0 0.0
  %687 = vmatprep.subr.mxu0 0.0
  %688 = vmatpush1.msra.mxu0 0.0
  %689 = vmatprep.subr.mxu0 0.0
  %690 = vmatpush1.msra.mxu0 0.0
  %691 = vmatprep.subr.mxu0 0.0
  %692 = vmatpush1.msra.mxu0 0.0
  %693 = vmatprep.subr.mxu0 0.0
  %694 = vmatpush1.msra.mxu0 0.0
  %695 = vmatprep.subr.mxu0 0.0
  %696 = vmatpush1.msra.mxu0 0.0
  %697 = vmatprep.subr.mxu0 0.0
  %698 = vmatpush1.msra.mxu0 0.0
  %699 = vmatprep.subr.mxu0 0.0
  %700 = vmatpush1.msra.mxu0 0.0
  %701 = vmatprep.subr.mxu0 0.0
  %702 = vmatpush1.msra.mxu0 0.0
  %703 = vmatprep.subr.mxu0 0.0
  %704 = vmatpush1.msra.mxu0 0.0
  %705 = vmatprep.subr.mxu0 0.0
  %706 = vmatpush1.msra.mxu0 0.0
  %707 = vmatprep.subr.mxu0 0.0
  %708 = vmatpush1.msra.mxu0 0.0
  %709 = vmatprep.subr.mxu0 0.0
  %710 = vmatpush1.msra.mxu0 0.0
  %711 = vmatprep.subr.mxu0 0.0
  %712 = vmatpush1.msra.mxu0 0.0
  %713 = vmatprep.subr.mxu0 0.0
  %714 = vmatpush1.msra.mxu0 0.0
  %715 = vmatprep.subr.mxu0 0.0
  %716 = vmatpush1.msra.mxu0 0.0
  %717 = vmatprep.subr.mxu0 0.0
  %718 = vmatpush1.msra.mxu0 0.0
  %719 = vmatprep.subr.mxu0 0.0
  %720 = vmatpush1.msra.mxu0 0.0
  %721 = vmatprep.subr.mxu0 0.0
  %722 = vmatpush1.msra.mxu0 0.0
  %723 = vmatprep.subr.mxu0 0.0
  %724 = vmatpush1.msra.mxu0 0.0
  %725 = vmatprep.mubr.f32.mxu0 0.0
  %726 = vmatmul.mubr.f32.gmra.mrb[0].mxu0 %v426
  %v727 = vpop.f32.mrb[0].mxu0
  %v728 = vadd.f32 0.0, %v727
  %v729 = vpop.f32.mrb[0].mxu0
  %730 = vdwg.mxu0
  %v731 = vadd.f32 %v651, %v728
  %v732 = vld [vmem:[%s6] sm:$0xff]
  %v733 = vadd.f32 %v731, %v732
  %v734 = vmax.f32 %v500, 0.0
  %v735 = vld [vmem:[%s2] sm:$0xff]
  %v737 = vsel %vm34, %v735, 0
  %739 = vmatprep.subr.mxu0 0.0
  %740 = vmatpush1.msra.mxu0 %v734
  %741 = vmatprep.subr.mxu0 0.0
  %742 = vmatpush1.msra.mxu0 0.0
  %743 = vmatprep.subr.mxu0 0.0
  %744 = vmatpush1.msra.mxu0 0.0
  %745 = vmatprep.subr.mxu0 0.0
  %746 = vmatpush1.msra.mxu0 0.0
  %747 = vmatprep.subr.mxu0 0.0
  %748 = vmatpush1.msra.mxu0 0.0
  %749 = vmatprep.subr.mxu0 0.0
  %750 = vmatpush1.msra.mxu0 0.0
  %751 = vmatprep.subr.mxu0 0.0
  %752 = vmatpush1.msra.mxu0 0.0
  %753 = vmatprep.subr.mxu0 0.0
  %754 = vmatpush1.msra.mxu0 0.0
  %755 = vmatprep.subr.mxu0 0.0
  %756 = vmatpush1.msra.mxu0 0.0
  %757 = vmatprep.subr.mxu0 0.0
  %758 = vmatpush1.msra.mxu0 0.0
  %759 = vmatprep.subr.mxu0 0.0
  %760 = vmatpush1.msra.mxu0 0.0
  %761 = vmatprep.subr.mxu0 0.0
  %762 = vmatpush1.msra.mxu0 0.0
  %763 = vmatprep.subr.mxu0 0.0
  %764 = vmatpush1.msra.mxu0 0.0
  %765 = vmatprep.subr.mxu0 0.0
  %766 = vmatpush1.msra.mxu0 0.0
  %767 = vmatprep.subr.mxu0 0.0
  %768 = vmatpush1.msra.mxu0 0.0
  %769 = vmatprep.subr.mxu0 0.0
  %770 = vmatpush1.msra.mxu0 0.0
  %771 = vmatprep.subr.mxu0 0.0
  %772 = vmatpush1.msra.mxu0 0.0
  %773 = vmatprep.subr.mxu0 0.0
  %774 = vmatpush1.msra.mxu0 0.0
  %775 = vmatprep.subr.mxu0 0.0
  %776 = vmatpush1.msra.mxu0 0.0
  %777 = vmatprep.subr.mxu0 0.0
  %778 = vmatpush1.msra.mxu0 0.0
  %779 = vmatprep.subr.mxu0 0.0
  %780 = vmatpush1.msra.mxu0 0.0
  %781 = vmatprep.subr.mxu0 0.0
  %782 = vmatpush1.msra.mxu0 0.0
  %783 = vmatprep.subr.mxu0 0.0
  %784 = vmatpush1.msra.mxu0 0.0
  %785 = vmatprep.subr.mxu0 0.0
  %786 = vmatpush1.msra.mxu0 0.0
  %787 = vmatprep.subr.mxu0 0.0
  %788 = vmatpush1.msra.mxu0 0.0
  %789 = vmatprep.subr.mxu0 0.0
  %790 = vmatpush1.msra.mxu0 0.0
  %791 = vmatprep.subr.mxu0 0.0
  %792 = vmatpush1.msra.mxu0 0.0
  %793 = vmatprep.subr.mxu0 0.0
  %794 = vmatpush1.msra.mxu0 0.0
  %795 = vmatprep.subr.mxu0 0.0
  %796 = vmatpush1.msra.mxu0 0.0
  %797 = vmatprep.subr.mxu0 0.0
  %798 = vmatpush1.msra.mxu0 0.0
  %799 = vmatprep.subr.mxu0 0.0
  %800 = vmatpush1.msra.mxu0 0.0
  %801 = vmatprep.subr.mxu0 0.0
  %802 = vmatpush1.msra.mxu0 0.0
  %803 = vmatprep.mubr.f32.mxu0 0.0
  %804 = vmatmul.mubr.f32.gmra.mrb[0].mxu0 %v737
  %v805 = vpop.f32.mrb[0].mxu0
  %v806 = vadd.f32 0.0, %v805
  %v807 = vpop.f32.mrb[0].mxu0
  %808 = vdwg.mxu0
  %s809 = scalar_lea.vmem %s2, 16
  %v810 = vld [vmem:[%s809] sm:$0xff]
  %v812 = vsel %vm34, %v810, 0
  %814 = vmatprep.subr.mxu0 0.0
  %815 = vmatpush1.msra.mxu0 %v734
  %816 = vmatprep.subr.mxu0 0.0
  %817 = vmatpush1.msra.mxu0 0.0
  %818 = vmatprep.subr.mxu0 0.0
  %819 = vmatpush1.msra.mxu0 0.0
  %820 = vmatprep.subr.mxu0 0.0
  %821 = vmatpush1.msra.mxu0 0.0
  %822 = vmatprep.subr.mxu0 0.0
  %823 = vmatpush1.msra.mxu0 0.0
  %824 = vmatprep.subr.mxu0 0.0
  %825 = vmatpush1.msra.mxu0 0.0
  %826 = vmatprep.subr.mxu0 0.0
  %827 = vmatpush1.msra.mxu0 0.0
  %828 = vmatprep.subr.mxu0 0.0
  %829 = vmatpush1.msra.mxu0 0.0
  %830 = vmatprep.subr.mxu0 0.0
  %831 = vmatpush1.msra.mxu0 0.0
  %832 = vmatprep.subr.mxu0 0.0
  %833 = vmatpush1.msra.mxu0 0.0
  %834 = vmatprep.subr.mxu0 0.0
  %835 = vmatpush1.msra.mxu0 0.0
  %836 = vmatprep.subr.mxu0 0.0
  %837 = vmatpush1.msra.mxu0 0.0
  %838 = vmatprep.subr.mxu0 0.0
  %839 = vmatpush1.msra.mxu0 0.0
  %840 = vmatprep.subr.mxu0 0.0
  %841 = vmatpush1.msra.mxu0 0.0
  %842 = vmatprep.subr.mxu0 0.0
  %843 = vmatpush1.msra.mxu0 0.0
  %844 = vmatprep.subr.mxu0 0.0
  %845 = vmatpush1.msra.mxu0 0.0
  %846 = vmatprep.subr.mxu0 0.0
  %847 = vmatpush1.msra.mxu0 0.0
  %848 = vmatprep.subr.mxu0 0.0
  %849 = vmatpush1.msra.mxu0 0.0
  %850 = vmatprep.subr.mxu0 0.0
  %851 = vmatpush1.msra.mxu0 0.0
  %852 = vmatprep.subr.mxu0 0.0
  %853 = vmatpush1.msra.mxu0 0.0
  %854 = vmatprep.subr.mxu0 0.0
  %855 = vmatpush1.msra.mxu0 0.0
  %856 = vmatprep.subr.mxu0 0.0
  %857 = vmatpush1.msra.mxu0 0.0
  %858 = vmatprep.subr.mxu0 0.0
  %859 = vmatpush1.msra.mxu0 0.0
  %860 = vmatprep.subr.mxu0 0.0
  %861 = vmatpush1.msra.mxu0 0.0
  %862 = vmatprep.subr.mxu0 0.0
  %863 = vmatpush1.msra.mxu0 0.0
  %864 = vmatprep.subr.mxu0 0.0
  %865 = vmatpush1.msra.mxu0 0.0
  %866 = vmatprep.subr.mxu0 0.0
  %867 = vmatpush1.msra.mxu0 0.0
  %868 = vmatprep.subr.mxu0 0.0
  %869 = vmatpush1.msra.mxu0 0.0
  %870 = vmatprep.subr.mxu0 0.0
  %871 = vmatpush1.msra.mxu0 0.0
  %872 = vmatprep.subr.mxu0 0.0
  %873 = vmatpush1.msra.mxu0 0.0
  %874 = vmatprep.subr.mxu0 0.0
  %875 = vmatpush1.msra.mxu0 0.0
  %876 = vmatprep.subr.mxu0 0.0
  %877 = vmatpush1.msra.mxu0 0.0
  %878 = vmatprep.mubr.f32.mxu0 0.0
  %879 = vmatmul.mubr.f32.gmra.mrb[0].mxu0 %v812
  %v880 = vpop.f32.mrb[0].mxu0
  %v881 = vadd.f32 0.0, %v880
  %v882 = vpop.f32.mrb[0].mxu0
  %883 = vdwg.mxu0
  %v884 = vld [vmem:[%s7] sm:$0xff]
  %v885 = vld [vmem:[%s7 + $0x8] sm:$0xff]
  %v886 = vld [vmem:[%s7 + $0x10] sm:$0xff]
  %v887 = vld [vmem:[%s7 + $0x18] sm:$0xff]
  %v888 = vld [vmem:[%s7 + $0x20] sm:$0xff]
  %v889 = vld [vmem:[%s7 + $0x28] sm:$0xff]
  %v890 = vld [vmem:[%s7 + $0x30] sm:$0xff]
  %v891 = vld [vmem:[%s7 + $0x38] sm:$0xff]
  %s892 = scalar_lea.vmem %s7, 64
  %v893 = vld [vmem:[%s892] sm:$0xff]
  %v894 = vld [vmem:[%s892 + $0x8] sm:$0xff]
  %v895 = vld [vmem:[%s892 + $0x10] sm:$0xff]
  %v896 = vld [vmem:[%s892 + $0x18] sm:$0xff]
  %v897 = vld [vmem:[%s892 + $0x20] sm:$0xff]
  %v898 = vld [vmem:[%s892 + $0x28] sm:$0xff]
  %v899 = vld [vmem:[%s892 + $0x30] sm:$0xff]
  %v900 = vld [vmem:[%s892 + $0x38] sm:$0xff]
  %vm901 = vcmask 523264
  %v903 = vsel %vm901, %v734, 0
  %905 = vmatprep.subr.mxu0 0.0
  %906 = vmatpush1.msra.mxu0 %v893
  %907 = vmatprep.subr.mxu0 0.0
  %908 = vmatpush1.msra.mxu0 %v894
  %909 = vmatprep.subr.mxu0 0.0
  %910 = vmatpush1.msra.mxu0 %v895
  %911 = vmatprep.subr.mxu0 0.0
  %912 = vmatpush1.msra.mxu0 %v896
  %913 = vmatprep.subr.mxu0 0.0
  %914 = vmatpush1.msra.mxu0 %v897
  %915 = vmatprep.subr.mxu0 0.0
  %916 = vmatpush1.msra.mxu0 %v898
  %917 = vmatprep.subr.mxu0 0.0
  %918 = vmatpush1.msra.mxu0 %v899
  %919 = vmatprep.subr.mxu0 0.0
  %920 = vmatpush1.msra.mxu0 %v900
  %921 = vmatprep.subr.mxu0 0.0
  %922 = vmatpush1.msra.mxu0 0.0
  %923 = vmatprep.subr.mxu0 0.0
  %924 = vmatpush1.msra.mxu0 0.0
  %925 = vmatprep.subr.mxu0 0.0
  %926 = vmatpush1.msra.mxu0 0.0
  %927 = vmatprep.subr.mxu0 0.0
  %928 = vmatpush1.msra.mxu0 0.0
  %929 = vmatprep.subr.mxu0 0.0
  %930 = vmatpush1.msra.mxu0 0.0
  %931 = vmatprep.subr.mxu0 0.0
  %932 = vmatpush1.msra.mxu0 0.0
  %933 = vmatprep.subr.mxu0 0.0
  %934 = vmatpush1.msra.mxu0 0.0
  %935 = vmatprep.subr.mxu0 0.0
  %936 = vmatpush1.msra.mxu0 0.0
  %937 = vmatprep.subr.mxu0 0.0
  %938 = vmatpush1.msra.mxu0 0.0
  %939 = vmatprep.subr.mxu0 0.0
  %940 = vmatpush1.msra.mxu0 0.0
  %941 = vmatprep.subr.mxu0 0.0
  %942 = vmatpush1.msra.mxu0 0.0
  %943 = vmatprep.subr.mxu0 0.0
  %944 = vmatpush1.msra.mxu0 0.0
  %945 = vmatprep.subr.mxu0 0.0
  %946 = vmatpush1.msra.mxu0 0.0
  %947 = vmatprep.subr.mxu0 0.0
  %948 = vmatpush1.msra.mxu0 0.0
  %949 = vmatprep.subr.mxu0 0.0
  %950 = vmatpush1.msra.mxu0 0.0
  %951 = vmatprep.subr.mxu0 0.0
  %952 = vmatpush1.msra.mxu0 0.0
  %953 = vmatprep.subr.mxu0 0.0
  %954 = vmatpush1.msra.mxu0 0.0
  %955 = vmatprep.subr.mxu0 0.0
  %956 = vmatpush1.msra.mxu0 0.0
  %957 = vmatprep.subr.mxu0 0.0
  %958 = vmatpush1.msra.mxu0 0.0
  %959 = vmatprep.subr.mxu0 0.0
  %960 = vmatpush1.msra.mxu0 0.0
  %961 = vmatprep.subr.mxu0 0.0
  %962 = vmatpush1.msra.mxu0 0.0
  %963 = vmatprep.subr.mxu0 0.0
  %964 = vmatpush1.msra.mxu0 0.0
  %965 = vmatprep.subr.mxu0 0.0
  %966 = vmatpush1.msra.mxu0 0.0
  %967 = vmatprep.subr.mxu0 0.0
  %968 = vmatpush1.msra.mxu0 0.0
  %969 = vmatprep.mubr.f32.mxu0 0.0
  %970 = vmatmul.mubr.f32.gmra.mrb[0].mxu0 %v903
  %v971 = vpop.f32.mrb[0].mxu0
  %v972 = vadd.f32 0.0, %v971
  %v973 = vpop.f32.mrb[0].mxu0
  %974 = vdwg.mxu0
  %v976 = vsel %vm901, %v806, 0
  %978 = vmatprep.subr.mxu0 0.0
  %979 = vmatpush1.msra.mxu0 %v884
  %980 = vmatprep.subr.mxu0 0.0
  %981 = vmatpush1.msra.mxu0 %v885
  %982 = vmatprep.subr.mxu0 0.0
  %983 = vmatpush1.msra.mxu0 %v886
  %984 = vmatprep.subr.mxu0 0.0
  %985 = vmatpush1.msra.mxu0 %v887
  %986 = vmatprep.subr.mxu0 0.0
  %987 = vmatpush1.msra.mxu0 %v888
  %988 = vmatprep.subr.mxu0 0.0
  %989 = vmatpush1.msra.mxu0 %v889
  %990 = vmatprep.subr.mxu0 0.0
  %991 = vmatpush1.msra.mxu0 %v890
  %992 = vmatprep.subr.mxu0 0.0
  %993 = vmatpush1.msra.mxu0 %v891
  %994 = vmatprep.subr.mxu0 0.0
  %995 = vmatpush1.msra.mxu0 0.0
  %996 = vmatprep.subr.mxu0 0.0
  %997 = vmatpush1.msra.mxu0 0.0
  %998 = vmatprep.subr.mxu0 0.0
  %999 = vmatpush1.msra.mxu0 0.0
  %1000 = vmatprep.subr.mxu0 0.0
  %1001 = vmatpush1.msra.mxu0 0.0
  %1002 = vmatprep.subr.mxu0 0.0
  %1003 = vmatpush1.msra.mxu0 0.0
  %1004 = vmatprep.subr.mxu0 0.0
  %1005 = vmatpush1.msra.mxu0 0.0
  %1006 = vmatprep.subr.mxu0 0.0
  %1007 = vmatpush1.msra.mxu0 0.0
  %1008 = vmatprep.subr.mxu0 0.0
  %1009 = vmatpush1.msra.mxu0 0.0
  %1010 = vmatprep.subr.mxu0 0.0
  %1011 = vmatpush1.msra.mxu0 0.0
  %1012 = vmatprep.subr.mxu0 0.0
  %1013 = vmatpush1.msra.mxu0 0.0
  %1014 = vmatprep.subr.mxu0 0.0
  %1015 = vmatpush1.msra.mxu0 0.0
  %1016 = vmatprep.subr.mxu0 0.0
  %1017 = vmatpush1.msra.mxu0 0.0
  %1018 = vmatprep.subr.mxu0 0.0
  %1019 = vmatpush1.msra.mxu0 0.0
  %1020 = vmatprep.subr.mxu0 0.0
  %1021 = vmatpush1.msra.mxu0 0.0
  %1022 = vmatprep.subr.mxu0 0.0
  %1023 = vmatpush1.msra.mxu0 0.0
  %1024 = vmatprep.subr.mxu0 0.0
  %1025 = vmatpush1.msra.mxu0 0.0
  %1026 = vmatprep.subr.mxu0 0.0
  %1027 = vmatpush1.msra.mxu0 0.0
  %1028 = vmatprep.subr.mxu0 0.0
  %1029 = vmatpush1.msra.mxu0 0.0
  %1030 = vmatprep.subr.mxu0 0.0
  %1031 = vmatpush1.msra.mxu0 0.0
  %1032 = vmatprep.subr.mxu0 0.0
  %1033 = vmatpush1.msra.mxu0 0.0
  %1034 = vmatprep.subr.mxu0 0.0
  %1035 = vmatpush1.msra.mxu0 0.0
  %1036 = vmatprep.subr.mxu0 0.0
  %1037 = vmatpush1.msra.mxu0 0.0
  %1038 = vmatprep.subr.mxu0 0.0
  %1039 = vmatpush1.msra.mxu0 0.0
  %1040 = vmatprep.subr.mxu0 0.0
  %1041 = vmatpush1.msra.mxu0 0.0
  %1042 = vmatprep.mubr.f32.mxu0 0.0
  %1043 = vmatmul.mubr.f32.gmra.mrb[0].mxu0 %v976
  %v1044 = vpop.f32.mrb[0].mxu0
  %v1045 = vadd.f32 %v972, %v1044
  %v1046 = vpop.f32.mrb[0].mxu0
  %1047 = vdwg.mxu0
  %s1048 = scalar_lea.vmem %s7, 128
  %v1049 = vld [vmem:[%s1048] sm:$0xff]
  %v1050 = vld [vmem:[%s1048 + $0x8] sm:$0xff]
  %v1051 = vld [vmem:[%s1048 + $0x10] sm:$0xff]
  %v1052 = vld [vmem:[%s1048 + $0x18] sm:$0xff]
  %v1053 = vld [vmem:[%s1048 + $0x20] sm:$0xff]
  %v1054 = vld [vmem:[%s1048 + $0x28] sm:$0xff]
  %v1055 = vld [vmem:[%s1048 + $0x30] sm:$0xff]
  %v1056 = vld [vmem:[%s1048 + $0x38] sm:$0xff]
  %v1058 = vsel %vm901, %v881, 0
  %1060 = vmatprep.subr.mxu0 0.0
  %1061 = vmatpush1.msra.mxu0 %v1049
  %1062 = vmatprep.subr.mxu0 0.0
  %1063 = vmatpush1.msra.mxu0 %v1050
  %1064 = vmatprep.subr.mxu0 0.0
  %1065 = vmatpush1.msra.mxu0 %v1051
  %1066 = vmatprep.subr.mxu0 0.0
  %1067 = vmatpush1.msra.mxu0 %v1052
  %1068 = vmatprep.subr.mxu0 0.0
  %1069 = vmatpush1.msra.mxu0 %v1053
  %1070 = vmatprep.subr.mxu0 0.0
  %1071 = vmatpush1.msra.mxu0 %v1054
  %1072 = vmatprep.subr.mxu0 0.0
  %1073 = vmatpush1.msra.mxu0 %v1055
  %1074 = vmatprep.subr.mxu0 0.0
  %1075 = vmatpush1.msra.mxu0 %v1056
  %1076 = vmatprep.subr.mxu0 0.0
  %1077 = vmatpush1.msra.mxu0 0.0
  %1078 = vmatprep.subr.mxu0 0.0
  %1079 = vmatpush1.msra.mxu0 0.0
  %1080 = vmatprep.subr.mxu0 0.0
  %1081 = vmatpush1.msra.mxu0 0.0
  %1082 = vmatprep.subr.mxu0 0.0
  %1083 = vmatpush1.msra.mxu0 0.0
  %1084 = vmatprep.subr.mxu0 0.0
  %1085 = vmatpush1.msra.mxu0 0.0
  %1086 = vmatprep.subr.mxu0 0.0
  %1087 = vmatpush1.msra.mxu0 0.0
  %1088 = vmatprep.subr.mxu0 0.0
  %1089 = vmatpush1.msra.mxu0 0.0
  %1090 = vmatprep.subr.mxu0 0.0
  %1091 = vmatpush1.msra.mxu0 0.0
  %1092 = vmatprep.subr.mxu0 0.0
  %1093 = vmatpush1.msra.mxu0 0.0
  %1094 = vmatprep.subr.mxu0 0.0
  %1095 = vmatpush1.msra.mxu0 0.0
  %1096 = vmatprep.subr.mxu0 0.0
  %1097 = vmatpush1.msra.mxu0 0.0
  %1098 = vmatprep.subr.mxu0 0.0
  %1099 = vmatpush1.msra.mxu0 0.0
  %1100 = vmatprep.subr.mxu0 0.0
  %1101 = vmatpush1.msra.mxu0 0.0
  %1102 = vmatprep.subr.mxu0 0.0
  %1103 = vmatpush1.msra.mxu0 0.0
  %1104 = vmatprep.subr.mxu0 0.0
  %1105 = vmatpush1.msra.mxu0 0.0
  %1106 = vmatprep.subr.mxu0 0.0
  %1107 = vmatpush1.msra.mxu0 0.0
  %1108 = vmatprep.subr.mxu0 0.0
  %1109 = vmatpush1.msra.mxu0 0.0
  %1110 = vmatprep.subr.mxu0 0.0
  %1111 = vmatpush1.msra.mxu0 0.0
  %1112 = vmatprep.subr.mxu0 0.0
  %1113 = vmatpush1.msra.mxu0 0.0
  %1114 = vmatprep.subr.mxu0 0.0
  %1115 = vmatpush1.msra.mxu0 0.0
  %1116 = vmatprep.subr.mxu0 0.0
  %1117 = vmatpush1.msra.mxu0 0.0
  %1118 = vmatprep.subr.mxu0 0.0
  %1119 = vmatpush1.msra.mxu0 0.0
  %1120 = vmatprep.subr.mxu0 0.0
  %1121 = vmatpush1.msra.mxu0 0.0
  %1122 = vmatprep.subr.mxu0 0.0
  %1123 = vmatpush1.msra.mxu0 0.0
  %1124 = vmatprep.mubr.f32.mxu0 0.0
  %1125 = vmatmul.mubr.f32.gmra.mrb[0].mxu0 %v1058
  %v1126 = vpop.f32.mrb[0].mxu0
  %v1127 = vadd.f32 0.0, %v1126
  %v1128 = vpop.f32.mrb[0].mxu0
  %1129 = vdwg.mxu0
  %v1130 = vadd.f32 %v1045, %v1127
  %v1131 = vld [vmem:[%s8] sm:$0xff]
  %v1132 = vadd.f32 %v1130, %v1131
  %v1133 = vadd.f32 %v1132, %v733
  %v1134 = vmax.f32 %v1133, 0.0
  %1135 = vst.msk [vmem:[%s9] sm:$0xff] %vm901, %v1134
  // Predicated region
  $region38: #{model_forward.12} parent=0 // pred_check
    _
  $region39: #{model_forward.12} parent=0 // pred_check_branch
    %1137 = sbr.rel (0) target = $region41
  $region40: #{model_forward.12} parent=0 // pred_region
    _
  $region41: #{model_forward.12} parent=0 // pred_fallthru
    _
  // Predicated region
  $region42: #{model_forward.12} parent=0 // pred_check
    _
  $region43: #{model_forward.12} parent=0 // pred_check_branch
    %1139 = sbr.rel (0) target = $region45
  $region44: #{model_forward.12} parent=0 // pred_region
    _
  $region45: #{model_forward.12} parent=0 // pred_fallthru
    _

// kernel: squeeze.1
$region0: #{squeeze.1}
  %s0 = inlined_call_operand.vmem [shape: f32[64], index: 0, kind: input, shape index: {}]
  %s1 = inlined_call_operand.vmem [shape: f32[2,32], index: 1, kind: output, shape index: {}]
  $region1: #{squeeze.1} parent=0
    #allocation0 [shape = 'u8[4096]{0}', space=vmem, size = 0x1000, scoped, tag = 'scoped mem for output reshape']
    #allocation1 [shape = 'u8[4096]{0}', space=vmem, size = 0x1000, scoped, tag = 'scoped mem for input reshape']
    %s3 = sshllo.u32 0, 1
    %v4 = vld [vmem:[%s0] sm:%s3]
    %5 = vst [vmem:[#allocation1] sm:%s3] %v4
    %v6 = vld [vmem:[#allocation1] sm:$0x1]
    %vm7 = vcmask 261120
    %8 = vst.msk [vmem:[#allocation0] sm:$0x1] %vm7, %v6
    %v9 = vld [vmem:[#allocation1] sm:$0x1]
    %10 = vrot.lane.b32.xlu0 %v9, 96
    %v11 = vpop.permute.xlu0 %10
    %vm12 = vcmask 261120
    %s13 = scalar_lea.vmem [#allocation0], 1
    %14 = vst.msk [vmem:[%s13] sm:$0x1] %vm12, %v11
    %s16 = sshllo.u32 0, 2
    %v18 = vld [vmem:[#allocation0] sm:%s16]
    %s19 = sshllo.u32 0, 2
    %20 = vst [vmem:[%s1] sm:%s19] %v18

// kernel: model_forward.14
$region0: #{model_forward.14}
  #allocation0 [shape = 'u32[]', space=smem, size = 0x4, offset = 0x4, fixed_abs, tag = 'smem constant byte address 0x4 - core index']
  #allocation1 [shape = 'u32[144,128]{1,0:T(1,128)}', space=vmem, size = 0x12000, scoped, tag = 'internal scratch']
  %s0 = inlined_call_operand.vmem [shape: f32[8,32], index: 0, kind: input, shape index: {}]
  %s1 = inlined_call_operand.vmem [shape: f32[3,8,8], index: 1, kind: input, shape index: {}]
  %s2 = inlined_call_operand.vmem [shape: f32[3,8,8], index: 2, kind: input, shape index: {}]
  %s3 = inlined_call_operand.vmem [shape: f32[3,32,32], index: 3, kind: input, shape index: {}]
  %s4 = inlined_call_operand.vmem [shape: f32[8,32], index: 4, kind: input, shape index: {}]
  %s5 = inlined_call_operand.vmem [shape: f32[3,32,32], index: 5, kind: input, shape index: {}]
  %s6 = inlined_call_operand.vmem [shape: f32[8,32], index: 6, kind: input, shape index: {}]
  %s7 = inlined_call_operand.vmem [shape: f32[3,32,32], index: 7, kind: input, shape index: {}]
  %s8 = inlined_call_operand.vmem [shape: f32[8,32], index: 8, kind: input, shape index: {}]
  %s9 = inlined_call_operand.vmem [shape: f32[8,32], index: 9, kind: output, shape index: {}]
  %s10 = sld [smem:[#allocation0]]
  $region46: #{model_forward.14} parent=0
    _
  %s12 = ssub.s32 1, %s10
  %s13 = scalar_select 0, %s12, %s10
  // Predicated region
  $region2: #{model_forward.14} parent=0 // pred_check
    _
  $region3: #{model_forward.14} parent=0 // pred_check_branch
    %15 = sbr.rel (0) target = $region5
  $region4: #{model_forward.14} parent=0 // pred_region
    _
  $region5: #{model_forward.14} parent=0 // pred_fallthru
    _
  // Predicated region
  $region6: #{model_forward.14} parent=0 // pred_check
    _
  $region7: #{model_forward.14} parent=0 // pred_check_branch
    %17 = sbr.rel (0) target = $region9
  $region8: #{model_forward.14} parent=0 // pred_region
    _
  $region9: #{model_forward.14} parent=0 // pred_fallthru
    _
  // Predicated region
  $region10: #{model_forward.14} parent=0 // pred_check
    _
  $region11: #{model_forward.14} parent=0 // pred_check_branch
    %19 = sbr.rel (0) target = $region13
  $region12: #{model_forward.14} parent=0 // pred_region
    _
  $region13: #{model_forward.14} parent=0 // pred_fallthru
    _
  // Predicated region
  $region14: #{model_forward.14} parent=0 // pred_check
    _
  $region15: #{model_forward.14} parent=0 // pred_check_branch
    %21 = sbr.rel (0) target = $region17
  $region16: #{model_forward.14} parent=0 // pred_region
    _
  $region17: #{model_forward.14} parent=0 // pred_fallthru
    _
  // Predicated region
  $region18: #{model_forward.14} parent=0 // pred_check
    _
  $region19: #{model_forward.14} parent=0 // pred_check_branch
    %23 = sbr.rel (0) target = $region21
  $region20: #{model_forward.14} parent=0 // pred_region
    _
  $region21: #{model_forward.14} parent=0 // pred_fallthru
    _
  // Predicated region
  $region22: #{model_forward.14} parent=0 // pred_check
    _
  $region23: #{model_forward.14} parent=0 // pred_check_branch
    %25 = sbr.rel (0) target = $region25
  $region24: #{model_forward.14} parent=0 // pred_region
    _
  $region25: #{model_forward.14} parent=0 // pred_fallthru
    _
  // Predicated region
  $region26: #{model_forward.14} parent=0 // pred_check
    _
  $region27: #{model_forward.14} parent=0 // pred_check_branch
    %27 = sbr.rel (0) target = $region29
  $region28: #{model_forward.14} parent=0 // pred_region
    _
  $region29: #{model_forward.14} parent=0 // pred_fallthru
    _
  // Predicated region
  $region30: #{model_forward.14} parent=0 // pred_check
    _
  $region31: #{model_forward.14} parent=0 // pred_check_branch
    %29 = sbr.rel (0) target = $region33
  $region32: #{model_forward.14} parent=0 // pred_region
    _
  $region33: #{model_forward.14} parent=0 // pred_fallthru
    _
  // Predicated region
  $region34: #{model_forward.14} parent=0 // pred_check
    _
  $region35: #{model_forward.14} parent=0 // pred_check_branch
    %31 = sbr.rel (0) target = $region37
  $region36: #{model_forward.14} parent=0 // pred_region
    _
  $region37: #{model_forward.14} parent=0 // pred_fallthru
    _
  %v32 = vld [vmem:[%s0] sm:$0xff]
  %v33 = vld [vmem:[%s1] sm:$0xff]
  %vm34 = vcmask 64512
  %v36 = vsel %vm34, %v33, 0
  %38 = vmatprep.subr.mxu0 0.0
  %39 = vmatpush1.msra.mxu0 %v32
  %40 = vmatprep.subr.mxu0 0.0
  %41 = vmatpush1.msra.mxu0 0.0
  %42 = vmatprep.subr.mxu0 0.0
  %43 = vmatpush1.msra.mxu0 0.0
  %44 = vmatprep.subr.mxu0 0.0
  %45 = vmatpush1.msra.mxu0 0.0
  %46 = vmatprep.subr.mxu0 0.0
  %47 = vmatpush1.msra.mxu0 0.0
  %48 = vmatprep.subr.mxu0 0.0
  %49 = vmatpush1.msra.mxu0 0.0
  %50 = vmatprep.subr.mxu0 0.0
  %51 = vmatpush1.msra.mxu0 0.0
  %52 = vmatprep.subr.mxu0 0.0
  %53 = vmatpush1.msra.mxu0 0.0
  %54 = vmatprep.subr.mxu0 0.0
  %55 = vmatpush1.msra.mxu0 0.0
  %56 = vmatprep.subr.mxu0 0.0
  %57 = vmatpush1.msra.mxu0 0.0
  %58 = vmatprep.subr.mxu0 0.0
  %59 = vmatpush1.msra.mxu0 0.0
  %60 = vmatprep.subr.mxu0 0.0
  %61 = vmatpush1.msra.mxu0 0.0
  %62 = vmatprep.subr.mxu0 0.0
  %63 = vmatpush1.msra.mxu0 0.0
  %64 = vmatprep.subr.mxu0 0.0
  %65 = vmatpush1.msra.mxu0 0.0
  %66 = vmatprep.subr.mxu0 0.0
  %67 = vmatpush1.msra.mxu0 0.0
  %68 = vmatprep.subr.mxu0 0.0
  %69 = vmatpush1.msra.mxu0 0.0
  %70 = vmatprep.subr.mxu0 0.0
  %71 = vmatpush1.msra.mxu0 0.0
  %72 = vmatprep.subr.mxu0 0.0
  %73 = vmatpush1.msra.mxu0 0.0
  %74 = vmatprep.subr.mxu0 0.0
  %75 = vmatpush1.msra.mxu0 0.0
  %76 = vmatprep.subr.mxu0 0.0
  %77 = vmatpush1.msra.mxu0 0.0
  %78 = vmatprep.subr.mxu0 0.0
  %79 = vmatpush1.msra.mxu0 0.0
  %80 = vmatprep.subr.mxu0 0.0
  %81 = vmatpush1.msra.mxu0 0.0
  %82 = vmatprep.subr.mxu0 0.0
  %83 = vmatpush1.msra.mxu0 0.0
  %84 = vmatprep.subr.mxu0 0.0
  %85 = vmatpush1.msra.mxu0 0.0
  %86 = vmatprep.subr.mxu0 0.0
  %87 = vmatpush1.msra.mxu0 0.0
  %88 = vmatprep.subr.mxu0 0.0
  %89 = vmatpush1.msra.mxu0 0.0
  %90 = vmatprep.subr.mxu0 0.0
  %91 = vmatpush1.msra.mxu0 0.0
  %92 = vmatprep.subr.mxu0 0.0
  %93 = vmatpush1.msra.mxu0 0.0
  %94 = vmatprep.subr.mxu0 0.0
  %95 = vmatpush1.msra.mxu0 0.0
  %96 = vmatprep.subr.mxu0 0.0
  %97 = vmatpush1.msra.mxu0 0.0
  %98 = vmatprep.subr.mxu0 0.0
  %99 = vmatpush1.msra.mxu0 0.0
  %100 = vmatprep.subr.mxu0 0.0
  %101 = vmatpush1.msra.mxu0 0.0
  %102 = vmatprep.mubr.f32.mxu0 0.0
  %103 = vmatmul.mubr.f32.gmra.mrb[0].mxu0 %v36
  %v104 = vpop.f32.mrb[0].mxu0
  %v105 = vadd.f32 0.0, %v104
  %v106 = vpop.f32.mrb[0].mxu0
  %107 = vdwg.mxu0
  %s108 = scalar_lea.vmem %s1, 8
  %v109 = vld [vmem:[%s108] sm:$0xff]
  %v111 = vsel %vm34, %v109, 0
  %113 = vmatprep.subr.mxu0 0.0
  %114 = vmatpush1.msra.mxu0 %v32
  %115 = vmatprep.subr.mxu0 0.0
  %116 = vmatpush1.msra.mxu0 0.0
  %117 = vmatprep.subr.mxu0 0.0
  %118 = vmatpush1.msra.mxu0 0.0
  %119 = vmatprep.subr.mxu0 0.0
  %120 = vmatpush1.msra.mxu0 0.0
  %121 = vmatprep.subr.mxu0 0.0
  %122 = vmatpush1.msra.mxu0 0.0
  %123 = vmatprep.subr.mxu0 0.0
  %124 = vmatpush1.msra.mxu0 0.0
  %125 = vmatprep.subr.mxu0 0.0
  %126 = vmatpush1.msra.mxu0 0.0
  %127 = vmatprep.subr.mxu0 0.0
  %128 = vmatpush1.msra.mxu0 0.0
  %129 = vmatprep.subr.mxu0 0.0
  %130 = vmatpush1.msra.mxu0 0.0
  %131 = vmatprep.subr.mxu0 0.0
  %132 = vmatpush1.msra.mxu0 0.0
  %133 = vmatprep.subr.mxu0 0.0
  %134 = vmatpush1.msra.mxu0 0.0
  %135 = vmatprep.subr.mxu0 0.0
  %136 = vmatpush1.msra.mxu0 0.0
  %137 = vmatprep.subr.mxu0 0.0
  %138 = vmatpush1.msra.mxu0 0.0
  %139 = vmatprep.subr.mxu0 0.0
  %140 = vmatpush1.msra.mxu0 0.0
  %141 = vmatprep.subr.mxu0 0.0
  %142 = vmatpush1.msra.mxu0 0.0
  %143 = vmatprep.subr.mxu0 0.0
  %144 = vmatpush1.msra.mxu0 0.0
  %145 = vmatprep.subr.mxu0 0.0
  %146 = vmatpush1.msra.mxu0 0.0
  %147 = vmatprep.subr.mxu0 0.0
  %148 = vmatpush1.msra.mxu0 0.0
  %149 = vmatprep.subr.mxu0 0.0
  %150 = vmatpush1.msra.mxu0 0.0
  %151 = vmatprep.subr.mxu0 0.0
  %152 = vmatpush1.msra.mxu0 0.0
  %153 = vmatprep.subr.mxu0 0.0
  %154 = vmatpush1.msra.mxu0 0.0
  %155 = vmatprep.subr.mxu0 0.0
  %156 = vmatpush1.msra.mxu0 0.0
  %157 = vmatprep.subr.mxu0 0.0
  %158 = vmatpush1.msra.mxu0 0.0
  %159 = vmatprep.subr.mxu0 0.0
  %160 = vmatpush1.msra.mxu0 0.0
  %161 = vmatprep.subr.mxu0 0.0
  %162 = vmatpush1.msra.mxu0 0.0
  %163 = vmatprep.subr.mxu0 0.0
  %164 = vmatpush1.msra.mxu0 0.0
  %165 = vmatprep.subr.mxu0 0.0
  %166 = vmatpush1.msra.mxu0 0.0
  %167 = vmatprep.subr.mxu0 0.0
  %168 = vmatpush1.msra.mxu0 0.0
  %169 = vmatprep.subr.mxu0 0.0
  %170 = vmatpush1.msra.mxu0 0.0
  %171 = vmatprep.subr.mxu0 0.0
  %172 = vmatpush1.msra.mxu0 0.0
  %173 = vmatprep.subr.mxu0 0.0
  %174 = vmatpush1.msra.mxu0 0.0
  %175 = vmatprep.subr.mxu0 0.0
  %176 = vmatpush1.msra.mxu0 0.0
  %177 = vmatprep.mubr.f32.mxu0 0.0
  %178 = vmatmul.mubr.f32.gmra.mrb[0].mxu0 %v111
  %v179 = vpop.f32.mrb[0].mxu0
  %v180 = vadd.f32 0.0, %v179
  %v181 = vpop.f32.mrb[0].mxu0
  %182 = vdwg.mxu0
  %s183 = scalar_lea.vmem %s1, 16
  %v184 = vld [vmem:[%s183] sm:$0xff]
  %v186 = vsel %vm34, %v184, 0
  %188 = vmatprep.subr.mxu0 0.0
  %189 = vmatpush1.msra.mxu0 %v32
  %190 = vmatprep.subr.mxu0 0.0
  %191 = vmatpush1.msra.mxu0 0.0
  %192 = vmatprep.subr.mxu0 0.0
  %193 = vmatpush1.msra.mxu0 0.0
  %194 = vmatprep.subr.mxu0 0.0
  %195 = vmatpush1.msra.mxu0 0.0
  %196 = vmatprep.subr.mxu0 0.0
  %197 = vmatpush1.msra.mxu0 0.0
  %198 = vmatprep.subr.mxu0 0.0
  %199 = vmatpush1.msra.mxu0 0.0
  %200 = vmatprep.subr.mxu0 0.0
  %201 = vmatpush1.msra.mxu0 0.0
  %202 = vmatprep.subr.mxu0 0.0
  %203 = vmatpush1.msra.mxu0 0.0
  %204 = vmatprep.subr.mxu0 0.0
  %205 = vmatpush1.msra.mxu0 0.0
  %206 = vmatprep.subr.mxu0 0.0
  %207 = vmatpush1.msra.mxu0 0.0
  %208 = vmatprep.subr.mxu0 0.0
  %209 = vmatpush1.msra.mxu0 0.0
  %210 = vmatprep.subr.mxu0 0.0
  %211 = vmatpush1.msra.mxu0 0.0
  %212 = vmatprep.subr.mxu0 0.0
  %213 = vmatpush1.msra.mxu0 0.0
  %214 = vmatprep.subr.mxu0 0.0
  %215 = vmatpush1.msra.mxu0 0.0
  %216 = vmatprep.subr.mxu0 0.0
  %217 = vmatpush1.msra.mxu0 0.0
  %218 = vmatprep.subr.mxu0 0.0
  %219 = vmatpush1.msra.mxu0 0.0
  %220 = vmatprep.subr.mxu0 0.0
  %221 = vmatpush1.msra.mxu0 0.0
  %222 = vmatprep.subr.mxu0 0.0
  %223 = vmatpush1.msra.mxu0 0.0
  %224 = vmatprep.subr.mxu0 0.0
  %225 = vmatpush1.msra.mxu0 0.0
  %226 = vmatprep.subr.mxu0 0.0
  %227 = vmatpush1.msra.mxu0 0.0
  %228 = vmatprep.subr.mxu0 0.0
  %229 = vmatpush1.msra.mxu0 0.0
  %230 = vmatprep.subr.mxu0 0.0
  %231 = vmatpush1.msra.mxu0 0.0
  %232 = vmatprep.subr.mxu0 0.0
  %233 = vmatpush1.msra.mxu0 0.0
  %234 = vmatprep.subr.mxu0 0.0
  %235 = vmatpush1.msra.mxu0 0.0
  %236 = vmatprep.subr.mxu0 0.0
  %237 = vmatpush1.msra.mxu0 0.0
  %238 = vmatprep.subr.mxu0 0.0
  %239 = vmatpush1.msra.mxu0 0.0
  %240 = vmatprep.subr.mxu0 0.0
  %241 = vmatpush1.msra.mxu0 0.0
  %242 = vmatprep.subr.mxu0 0.0
  %243 = vmatpush1.msra.mxu0 0.0
  %244 = vmatprep.subr.mxu0 0.0
  %245 = vmatpush1.msra.mxu0 0.0
  %246 = vmatprep.subr.mxu0 0.0
  %247 = vmatpush1.msra.mxu0 0.0
  %248 = vmatprep.subr.mxu0 0.0
  %249 = vmatpush1.msra.mxu0 0.0
  %250 = vmatprep.subr.mxu0 0.0
  %251 = vmatpush1.msra.mxu0 0.0
  %252 = vmatprep.mubr.f32.mxu0 0.0
  %253 = vmatmul.mubr.f32.gmra.mrb[0].mxu0 %v186
  %v254 = vpop.f32.mrb[0].mxu0
  %v255 = vadd.f32 0.0, %v254
  %v256 = vpop.f32.mrb[0].mxu0
  %257 = vdwg.mxu0
  %v258 = vld [vmem:[%s3] sm:$0xff]
  %v259 = vld [vmem:[%s3 + $0x8] sm:$0xff]
  %v260 = vld [vmem:[%s3 + $0x10] sm:$0xff]
  %v261 = vld [vmem:[%s3 + $0x18] sm:$0xff]
  %s262 = scalar_lea.vmem %s3, 32
  %v263 = vld [vmem:[%s262] sm:$0xff]
  %v264 = vld [vmem:[%s262 + $0x8] sm:$0xff]
  %v265 = vld [vmem:[%s262 + $0x10] sm:$0xff]
  %v266 = vld [vmem:[%s262 + $0x18] sm:$0xff]
  %vm267 = vcmask 261120
  %v269 = vsel %vm267, %v180, 0
  %271 = vmatprep.subr.mxu0 0.0
  %272 = vmatpush1.msra.mxu0 %v263
  %273 = vmatprep.subr.mxu0 0.0
  %274 = vmatpush1.msra.mxu0 %v264
  %275 = vmatprep.subr.mxu0 0.0
  %276 = vmatpush1.msra.mxu0 %v265
  %277 = vmatprep.subr.mxu0 0.0
  %278 = vmatpush1.msra.mxu0 %v266
  %279 = vmatprep.subr.mxu0 0.0
  %280 = vmatpush1.msra.mxu0 0.0
  %281 = vmatprep.subr.mxu0 0.0
  %282 = vmatpush1.msra.mxu0 0.0
  %283 = vmatprep.subr.mxu0 0.0
  %284 = vmatpush1.msra.mxu0 0.0
  %285 = vmatprep.subr.mxu0 0.0
  %286 = vmatpush1.msra.mxu0 0.0
  %287 = vmatprep.subr.mxu0 0.0
  %288 = vmatpush1.msra.mxu0 0.0
  %289 = vmatprep.subr.mxu0 0.0
  %290 = vmatpush1.msra.mxu0 0.0
  %291 = vmatprep.subr.mxu0 0.0
  %292 = vmatpush1.msra.mxu0 0.0
  %293 = vmatprep.subr.mxu0 0.0
  %294 = vmatpush1.msra.mxu0 0.0
  %295 = vmatprep.subr.mxu0 0.0
  %296 = vmatpush1.msra.mxu0 0.0
  %297 = vmatprep.subr.mxu0 0.0
  %298 = vmatpush1.msra.mxu0 0.0
  %299 = vmatprep.subr.mxu0 0.0
  %300 = vmatpush1.msra.mxu0 0.0
  %301 = vmatprep.subr.mxu0 0.0
  %302 = vmatpush1.msra.mxu0 0.0
  %303 = vmatprep.subr.mxu0 0.0
  %304 = vmatpush1.msra.mxu0 0.0
  %305 = vmatprep.subr.mxu0 0.0
  %306 = vmatpush1.msra.mxu0 0.0
  %307 = vmatprep.subr.mxu0 0.0
  %308 = vmatpush1.msra.mxu0 0.0
  %309 = vmatprep.subr.mxu0 0.0
  %310 = vmatpush1.msra.mxu0 0.0
  %311 = vmatprep.subr.mxu0 0.0
  %312 = vmatpush1.msra.mxu0 0.0
  %313 = vmatprep.subr.mxu0 0.0
  %314 = vmatpush1.msra.mxu0 0.0
  %315 = vmatprep.subr.mxu0 0.0
  %316 = vmatpush1.msra.mxu0 0.0
  %317 = vmatprep.subr.mxu0 0.0
  %318 = vmatpush1.msra.mxu0 0.0
  %319 = vmatprep.subr.mxu0 0.0
  %320 = vmatpush1.msra.mxu0 0.0
  %321 = vmatprep.subr.mxu0 0.0
  %322 = vmatpush1.msra.mxu0 0.0
  %323 = vmatprep.subr.mxu0 0.0
  %324 = vmatpush1.msra.mxu0 0.0
  %325 = vmatprep.subr.mxu0 0.0
  %326 = vmatpush1.msra.mxu0 0.0
  %327 = vmatprep.subr.mxu0 0.0
  %328 = vmatpush1.msra.mxu0 0.0
  %329 = vmatprep.subr.mxu0 0.0
  %330 = vmatpush1.msra.mxu0 0.0
  %331 = vmatprep.subr.mxu0 0.0
  %332 = vmatpush1.msra.mxu0 0.0
  %333 = vmatprep.subr.mxu0 0.0
  %334 = vmatpush1.msra.mxu0 0.0
  %335 = vmatprep.mubr.f32.mxu0 0.0
  %336 = vmatmul.mubr.f32.gmra.mrb[0].mxu0 %v269
  %v337 = vpop.f32.mrb[0].mxu0
  %v338 = vadd.f32 0.0, %v337
  %v339 = vpop.f32.mrb[0].mxu0
  %340 = vdwg.mxu0
  %v342 = vsel %vm267, %v105, 0
  %344 = vmatprep.subr.mxu0 0.0
  %345 = vmatpush1.msra.mxu0 %v258
  %346 = vmatprep.subr.mxu0 0.0
  %347 = vmatpush1.msra.mxu0 %v259
  %348 = vmatprep.subr.mxu0 0.0
  %349 = vmatpush1.msra.mxu0 %v260
  %350 = vmatprep.subr.mxu0 0.0
  %351 = vmatpush1.msra.mxu0 %v261
  %352 = vmatprep.subr.mxu0 0.0
  %353 = vmatpush1.msra.mxu0 0.0
  %354 = vmatprep.subr.mxu0 0.0
  %355 = vmatpush1.msra.mxu0 0.0
  %356 = vmatprep.subr.mxu0 0.0
  %357 = vmatpush1.msra.mxu0 0.0
  %358 = vmatprep.subr.mxu0 0.0
  %359 = vmatpush1.msra.mxu0 0.0
  %360 = vmatprep.subr.mxu0 0.0
  %361 = vmatpush1.msra.mxu0 0.0
  %362 = vmatprep.subr.mxu0 0.0
  %363 = vmatpush1.msra.mxu0 0.0
  %364 = vmatprep.subr.mxu0 0.0
  %365 = vmatpush1.msra.mxu0 0.0
  %366 = vmatprep.subr.mxu0 0.0
  %367 = vmatpush1.msra.mxu0 0.0
  %368 = vmatprep.subr.mxu0 0.0
  %369 = vmatpush1.msra.mxu0 0.0
  %370 = vmatprep.subr.mxu0 0.0
  %371 = vmatpush1.msra.mxu0 0.0
  %372 = vmatprep.subr.mxu0 0.0
  %373 = vmatpush1.msra.mxu0 0.0
  %374 = vmatprep.subr.mxu0 0.0
  %375 = vmatpush1.msra.mxu0 0.0
  %376 = vmatprep.subr.mxu0 0.0
  %377 = vmatpush1.msra.mxu0 0.0
  %378 = vmatprep.subr.mxu0 0.0
  %379 = vmatpush1.msra.mxu0 0.0
  %380 = vmatprep.subr.mxu0 0.0
  %381 = vmatpush1.msra.mxu0 0.0
  %382 = vmatprep.subr.mxu0 0.0
  %383 = vmatpush1.msra.mxu0 0.0
  %384 = vmatprep.subr.mxu0 0.0
  %385 = vmatpush1.msra.mxu0 0.0
  %386 = vmatprep.subr.mxu0 0.0
  %387 = vmatpush1.msra.mxu0 0.0
  %388 = vmatprep.subr.mxu0 0.0
  %389 = vmatpush1.msra.mxu0 0.0
  %390 = vmatprep.subr.mxu0 0.0
  %391 = vmatpush1.msra.mxu0 0.0
  %392 = vmatprep.subr.mxu0 0.0
  %393 = vmatpush1.msra.mxu0 0.0
  %394 = vmatprep.subr.mxu0 0.0
  %395 = vmatpush1.msra.mxu0 0.0
  %396 = vmatprep.subr.mxu0 0.0
  %397 = vmatpush1.msra.mxu0 0.0
  %398 = vmatprep.subr.mxu0 0.0
  %399 = vmatpush1.msra.mxu0 0.0
  %400 = vmatprep.subr.mxu0 0.0
  %401 = vmatpush1.msra.mxu0 0.0
  %402 = vmatprep.subr.mxu0 0.0
  %403 = vmatpush1.msra.mxu0 0.0
  %404 = vmatprep.subr.mxu0 0.0
  %405 = vmatpush1.msra.mxu0 0.0
  %406 = vmatprep.subr.mxu0 0.0
  %407 = vmatpush1.msra.mxu0 0.0
  %408 = vmatprep.mubr.f32.mxu0 0.0
  %409 = vmatmul.mubr.f32.gmra.mrb[0].mxu0 %v342
  %v410 = vpop.f32.mrb[0].mxu0
  %v411 = vadd.f32 %v338, %v410
  %v412 = vpop.f32.mrb[0].mxu0
  %413 = vdwg.mxu0
  %s414 = scalar_lea.vmem %s3, 64
  %v415 = vld [vmem:[%s414] sm:$0xff]
  %v416 = vld [vmem:[%s414 + $0x8] sm:$0xff]
  %v417 = vld [vmem:[%s414 + $0x10] sm:$0xff]
  %v418 = vld [vmem:[%s414 + $0x18] sm:$0xff]
  %v420 = vsel %vm267, %v255, 0
  %422 = vmatprep.subr.mxu0 0.0
  %423 = vmatpush1.msra.mxu0 %v415
  %424 = vmatprep.subr.mxu0 0.0
  %425 = vmatpush1.msra.mxu0 %v416
  %426 = vmatprep.subr.mxu0 0.0
  %427 = vmatpush1.msra.mxu0 %v417
  %428 = vmatprep.subr.mxu0 0.0
  %429 = vmatpush1.msra.mxu0 %v418
  %430 = vmatprep.subr.mxu0 0.0
  %431 = vmatpush1.msra.mxu0 0.0
  %432 = vmatprep.subr.mxu0 0.0
  %433 = vmatpush1.msra.mxu0 0.0
  %434 = vmatprep.subr.mxu0 0.0
  %435 = vmatpush1.msra.mxu0 0.0
  %436 = vmatprep.subr.mxu0 0.0
  %437 = vmatpush1.msra.mxu0 0.0
  %438 = vmatprep.subr.mxu0 0.0
  %439 = vmatpush1.msra.mxu0 0.0
  %440 = vmatprep.subr.mxu0 0.0
  %441 = vmatpush1.msra.mxu0 0.0
  %442 = vmatprep.subr.mxu0 0.0
  %443 = vmatpush1.msra.mxu0 0.0
  %444 = vmatprep.subr.mxu0 0.0
  %445 = vmatpush1.msra.mxu0 0.0
  %446 = vmatprep.subr.mxu0 0.0
  %447 = vmatpush1.msra.mxu0 0.0
  %448 = vmatprep.subr.mxu0 0.0
  %449 = vmatpush1.msra.mxu0 0.0
  %450 = vmatprep.subr.mxu0 0.0
  %451 = vmatpush1.msra.mxu0 0.0
  %452 = vmatprep.subr.mxu0 0.0
  %453 = vmatpush1.msra.mxu0 0.0
  %454 = vmatprep.subr.mxu0 0.0
  %455 = vmatpush1.msra.mxu0 0.0
  %456 = vmatprep.subr.mxu0 0.0
  %457 = vmatpush1.msra.mxu0 0.0
  %458 = vmatprep.subr.mxu0 0.0
  %459 = vmatpush1.msra.mxu0 0.0
  %460 = vmatprep.subr.mxu0 0.0
  %461 = vmatpush1.msra.mxu0 0.0
  %462 = vmatprep.subr.mxu0 0.0
  %463 = vmatpush1.msra.mxu0 0.0
  %464 = vmatprep.subr.mxu0 0.0
  %465 = vmatpush1.msra.mxu0 0.0
  %466 = vmatprep.subr.mxu0 0.0
  %467 = vmatpush1.msra.mxu0 0.0
  %468 = vmatprep.subr.mxu0 0.0
  %469 = vmatpush1.msra.mxu0 0.0
  %470 = vmatprep.subr.mxu0 0.0
  %471 = vmatpush1.msra.mxu0 0.0
  %472 = vmatprep.subr.mxu0 0.0
  %473 = vmatpush1.msra.mxu0 0.0
  %474 = vmatprep.subr.mxu0 0.0
  %475 = vmatpush1.msra.mxu0 0.0
  %476 = vmatprep.subr.mxu0 0.0
  %477 = vmatpush1.msra.mxu0 0.0
  %478 = vmatprep.subr.mxu0 0.0
  %479 = vmatpush1.msra.mxu0 0.0
  %480 = vmatprep.subr.mxu0 0.0
  %481 = vmatpush1.msra.mxu0 0.0
  %482 = vmatprep.subr.mxu0 0.0
  %483 = vmatpush1.msra.mxu0 0.0
  %484 = vmatprep.subr.mxu0 0.0
  %485 = vmatpush1.msra.mxu0 0.0
  %486 = vmatprep.mubr.f32.mxu0 0.0
  %487 = vmatmul.mubr.f32.gmra.mrb[0].mxu0 %v420
  %v488 = vpop.f32.mrb[0].mxu0
  %v489 = vadd.f32 0.0, %v488
  %v490 = vpop.f32.mrb[0].mxu0
  %491 = vdwg.mxu0
  %v492 = vadd.f32 %v411, %v489
  %v493 = vld [vmem:[%s4] sm:$0xff]
  %v494 = vadd.f32 %v492, %v493
  %v495 = vld [vmem:[%s5] sm:$0xff]
  %v496 = vld [vmem:[%s5 + $0x8] sm:$0xff]
  %v497 = vld [vmem:[%s5 + $0x10] sm:$0xff]
  %v498 = vld [vmem:[%s5 + $0x18] sm:$0xff]
  %s499 = scalar_lea.vmem %s5, 32
  %v500 = vld [vmem:[%s499] sm:$0xff]
  %v501 = vld [vmem:[%s499 + $0x8] sm:$0xff]
  %v502 = vld [vmem:[%s499 + $0x10] sm:$0xff]
  %v503 = vld [vmem:[%s499 + $0x18] sm:$0xff]
  %504 = vmatprep.subr.mxu0 0.0
  %505 = vmatpush1.msra.mxu0 %v500
  %506 = vmatprep.subr.mxu0 0.0
  %507 = vmatpush1.msra.mxu0 %v501
  %508 = vmatprep.subr.mxu0 0.0
  %509 = vmatpush1.msra.mxu0 %v502
  %510 = vmatprep.subr.mxu0 0.0
  %511 = vmatpush1.msra.mxu0 %v503
  %512 = vmatprep.subr.mxu0 0.0
  %513 = vmatpush1.msra.mxu0 0.0
  %514 = vmatprep.subr.mxu0 0.0
  %515 = vmatpush1.msra.mxu0 0.0
  %516 = vmatprep.subr.mxu0 0.0
  %517 = vmatpush1.msra.mxu0 0.0
  %518 = vmatprep.subr.mxu0 0.0
  %519 = vmatpush1.msra.mxu0 0.0
  %520 = vmatprep.subr.mxu0 0.0
  %521 = vmatpush1.msra.mxu0 0.0
  %522 = vmatprep.subr.mxu0 0.0
  %523 = vmatpush1.msra.mxu0 0.0
  %524 = vmatprep.subr.mxu0 0.0
  %525 = vmatpush1.msra.mxu0 0.0
  %526 = vmatprep.subr.mxu0 0.0
  %527 = vmatpush1.msra.mxu0 0.0
  %528 = vmatprep.subr.mxu0 0.0
  %529 = vmatpush1.msra.mxu0 0.0
  %530 = vmatprep.subr.mxu0 0.0
  %531 = vmatpush1.msra.mxu0 0.0
  %532 = vmatprep.subr.mxu0 0.0
  %533 = vmatpush1.msra.mxu0 0.0
  %534 = vmatprep.subr.mxu0 0.0
  %535 = vmatpush1.msra.mxu0 0.0
  %536 = vmatprep.subr.mxu0 0.0
  %537 = vmatpush1.msra.mxu0 0.0
  %538 = vmatprep.subr.mxu0 0.0
  %539 = vmatpush1.msra.mxu0 0.0
  %540 = vmatprep.subr.mxu0 0.0
  %541 = vmatpush1.msra.mxu0 0.0
  %542 = vmatprep.subr.mxu0 0.0
  %543 = vmatpush1.msra.mxu0 0.0
  %544 = vmatprep.subr.mxu0 0.0
  %545 = vmatpush1.msra.mxu0 0.0
  %546 = vmatprep.subr.mxu0 0.0
  %547 = vmatpush1.msra.mxu0 0.0
  %548 = vmatprep.subr.mxu0 0.0
  %549 = vmatpush1.msra.mxu0 0.0
  %550 = vmatprep.subr.mxu0 0.0
  %551 = vmatpush1.msra.mxu0 0.0
  %552 = vmatprep.subr.mxu0 0.0
  %553 = vmatpush1.msra.mxu0 0.0
  %554 = vmatprep.subr.mxu0 0.0
  %555 = vmatpush1.msra.mxu0 0.0
  %556 = vmatprep.subr.mxu0 0.0
  %557 = vmatpush1.msra.mxu0 0.0
  %558 = vmatprep.subr.mxu0 0.0
  %559 = vmatpush1.msra.mxu0 0.0
  %560 = vmatprep.subr.mxu0 0.0
  %561 = vmatpush1.msra.mxu0 0.0
  %562 = vmatprep.subr.mxu0 0.0
  %563 = vmatpush1.msra.mxu0 0.0
  %564 = vmatprep.subr.mxu0 0.0
  %565 = vmatpush1.msra.mxu0 0.0
  %566 = vmatprep.subr.mxu0 0.0
  %567 = vmatpush1.msra.mxu0 0.0
  %568 = vmatprep.mubr.f32.mxu0 0.0
  %569 = vmatmul.mubr.f32.gmra.mrb[0].mxu0 %v269
  %v570 = vpop.f32.mrb[0].mxu0
  %v571 = vadd.f32 0.0, %v570
  %v572 = vpop.f32.mrb[0].mxu0
  %573 = vdwg.mxu0
  %574 = vmatprep.subr.mxu0 0.0
  %575 = vmatpush1.msra.mxu0 %v495
  %576 = vmatprep.subr.mxu0 0.0
  %577 = vmatpush1.msra.mxu0 %v496
  %578 = vmatprep.subr.mxu0 0.0
  %579 = vmatpush1.msra.mxu0 %v497
  %580 = vmatprep.subr.mxu0 0.0
  %581 = vmatpush1.msra.mxu0 %v498
  %582 = vmatprep.subr.mxu0 0.0
  %583 = vmatpush1.msra.mxu0 0.0
  %584 = vmatprep.subr.mxu0 0.0
  %585 = vmatpush1.msra.mxu0 0.0
  %586 = vmatprep.subr.mxu0 0.0
  %587 = vmatpush1.msra.mxu0 0.0
  %588 = vmatprep.subr.mxu0 0.0
  %589 = vmatpush1.msra.mxu0 0.0
  %590 = vmatprep.subr.mxu0 0.0
  %591 = vmatpush1.msra.mxu0 0.0
  %592 = vmatprep.subr.mxu0 0.0
  %593 = vmatpush1.msra.mxu0 0.0
  %594 = vmatprep.subr.mxu0 0.0
  %595 = vmatpush1.msra.mxu0 0.0
  %596 = vmatprep.subr.mxu0 0.0
  %597 = vmatpush1.msra.mxu0 0.0
  %598 = vmatprep.subr.mxu0 0.0
  %599 = vmatpush1.msra.mxu0 0.0
  %600 = vmatprep.subr.mxu0 0.0
  %601 = vmatpush1.msra.mxu0 0.0
  %602 = vmatprep.subr.mxu0 0.0
  %603 = vmatpush1.msra.mxu0 0.0
  %604 = vmatprep.subr.mxu0 0.0
  %605 = vmatpush1.msra.mxu0 0.0
  %606 = vmatprep.subr.mxu0 0.0
  %607 = vmatpush1.msra.mxu0 0.0
  %608 = vmatprep.subr.mxu0 0.0
  %609 = vmatpush1.msra.mxu0 0.0
  %610 = vmatprep.subr.mxu0 0.0
  %611 = vmatpush1.msra.mxu0 0.0
  %612 = vmatprep.subr.mxu0 0.0
  %613 = vmatpush1.msra.mxu0 0.0
  %614 = vmatprep.subr.mxu0 0.0
  %615 = vmatpush1.msra.mxu0 0.0
  %616 = vmatprep.subr.mxu0 0.0
  %617 = vmatpush1.msra.mxu0 0.0
  %618 = vmatprep.subr.mxu0 0.0
  %619 = vmatpush1.msra.mxu0 0.0
  %620 = vmatprep.subr.mxu0 0.0
  %621 = vmatpush1.msra.mxu0 0.0
  %622 = vmatprep.subr.mxu0 0.0
  %623 = vmatpush1.msra.mxu0 0.0
  %624 = vmatprep.subr.mxu0 0.0
  %625 = vmatpush1.msra.mxu0 0.0
  %626 = vmatprep.subr.mxu0 0.0
  %627 = vmatpush1.msra.mxu0 0.0
  %628 = vmatprep.subr.mxu0 0.0
  %629 = vmatpush1.msra.mxu0 0.0
  %630 = vmatprep.subr.mxu0 0.0
  %631 = vmatpush1.msra.mxu0 0.0
  %632 = vmatprep.subr.mxu0 0.0
  %633 = vmatpush1.msra.mxu0 0.0
  %634 = vmatprep.subr.mxu0 0.0
  %635 = vmatpush1.msra.mxu0 0.0
  %636 = vmatprep.subr.mxu0 0.0
  %637 = vmatpush1.msra.mxu0 0.0
  %638 = vmatprep.mubr.f32.mxu0 0.0
  %639 = vmatmul.mubr.f32.gmra.mrb[0].mxu0 %v342
  %v640 = vpop.f32.mrb[0].mxu0
  %v641 = vadd.f32 %v571, %v640
  %v642 = vpop.f32.mrb[0].mxu0
  %643 = vdwg.mxu0
  %s644 = scalar_lea.vmem %s5, 64
  %v645 = vld [vmem:[%s644] sm:$0xff]
  %v646 = vld [vmem:[%s644 + $0x8] sm:$0xff]
  %v647 = vld [vmem:[%s644 + $0x10] sm:$0xff]
  %v648 = vld [vmem:[%s644 + $0x18] sm:$0xff]
  %649 = vmatprep.subr.mxu0 0.0
  %650 = vmatpush1.msra.mxu0 %v645
  %651 = vmatprep.subr.mxu0 0.0
  %652 = vmatpush1.msra.mxu0 %v646
  %653 = vmatprep.subr.mxu0 0.0
  %654 = vmatpush1.msra.mxu0 %v647
  %655 = vmatprep.subr.mxu0 0.0
  %656 = vmatpush1.msra.mxu0 %v648
  %657 = vmatprep.subr.mxu0 0.0
  %658 = vmatpush1.msra.mxu0 0.0
  %659 = vmatprep.subr.mxu0 0.0
  %660 = vmatpush1.msra.mxu0 0.0
  %661 = vmatprep.subr.mxu0 0.0
  %662 = vmatpush1.msra.mxu0 0.0
  %663 = vmatprep.subr.mxu0 0.0
  %664 = vmatpush1.msra.mxu0 0.0
  %665 = vmatprep.subr.mxu0 0.0
  %666 = vmatpush1.msra.mxu0 0.0
  %667 = vmatprep.subr.mxu0 0.0
  %668 = vmatpush1.msra.mxu0 0.0
  %669 = vmatprep.subr.mxu0 0.0
  %670 = vmatpush1.msra.mxu0 0.0
  %671 = vmatprep.subr.mxu0 0.0
  %672 = vmatpush1.msra.mxu0 0.0
  %673 = vmatprep.subr.mxu0 0.0
  %674 = vmatpush1.msra.mxu0 0.0
  %675 = vmatprep.subr.mxu0 0.0
  %676 = vmatpush1.msra.mxu0 0.0
  %677 = vmatprep.subr.mxu0 0.0
  %678 = vmatpush1.msra.mxu0 0.0
  %679 = vmatprep.subr.mxu0 0.0
  %680 = vmatpush1.msra.mxu0 0.0
  %681 = vmatprep.subr.mxu0 0.0
  %682 = vmatpush1.msra.mxu0 0.0
  %683 = vmatprep.subr.mxu0 0.0
  %684 = vmatpush1.msra.mxu0 0.0
  %685 = vmatprep.subr.mxu0 0.0
  %686 = vmatpush1.msra.mxu0 0.0
  %687 = vmatprep.subr.mxu0 0.0
  %688 = vmatpush1.msra.mxu0 0.0
  %689 = vmatprep.subr.mxu0 0.0
  %690 = vmatpush1.msra.mxu0 0.0
  %691 = vmatprep.subr.mxu0 0.0
  %692 = vmatpush1.msra.mxu0 0.0
  %693 = vmatprep.subr.mxu0 0.0
  %694 = vmatpush1.msra.mxu0 0.0
  %695 = vmatprep.subr.mxu0 0.0
  %696 = vmatpush1.msra.mxu0 0.0
  %697 = vmatprep.subr.mxu0 0.0
  %698 = vmatpush1.msra.mxu0 0.0
  %699 = vmatprep.subr.mxu0 0.0
  %700 = vmatpush1.msra.mxu0 0.0
  %701 = vmatprep.subr.mxu0 0.0
  %702 = vmatpush1.msra.mxu0 0.0
  %703 = vmatprep.subr.mxu0 0.0
  %704 = vmatpush1.msra.mxu0 0.0
  %705 = vmatprep.subr.mxu0 0.0
  %706 = vmatpush1.msra.mxu0 0.0
  %707 = vmatprep.subr.mxu0 0.0
  %708 = vmatpush1.msra.mxu0 0.0
  %709 = vmatprep.subr.mxu0 0.0
  %710 = vmatpush1.msra.mxu0 0.0
  %711 = vmatprep.subr.mxu0 0.0
  %712 = vmatpush1.msra.mxu0 0.0
  %713 = vmatprep.mubr.f32.mxu0 0.0
  %714 = vmatmul.mubr.f32.gmra.mrb[0].mxu0 %v420
  %v715 = vpop.f32.mrb[0].mxu0
  %v716 = vadd.f32 0.0, %v715
  %v717 = vpop.f32.mrb[0].mxu0
  %718 = vdwg.mxu0
  %v719 = vadd.f32 %v641, %v716
  %v720 = vld [vmem:[%s6] sm:$0xff]
  %v721 = vadd.f32 %v719, %v720
  %v722 = vmax.f32 %v494, 0.0
  %v723 = vld [vmem:[%s2] sm:$0xff]
  %v725 = vsel %vm34, %v723, 0
  %727 = vmatprep.subr.mxu0 0.0
  %728 = vmatpush1.msra.mxu0 %v722
  %729 = vmatprep.subr.mxu0 0.0
  %730 = vmatpush1.msra.mxu0 0.0
  %731 = vmatprep.subr.mxu0 0.0
  %732 = vmatpush1.msra.mxu0 0.0
  %733 = vmatprep.subr.mxu0 0.0
  %734 = vmatpush1.msra.mxu0 0.0
  %735 = vmatprep.subr.mxu0 0.0
  %736 = vmatpush1.msra.mxu0 0.0
  %737 = vmatprep.subr.mxu0 0.0
  %738 = vmatpush1.msra.mxu0 0.0
  %739 = vmatprep.subr.mxu0 0.0
  %740 = vmatpush1.msra.mxu0 0.0
  %741 = vmatprep.subr.mxu0 0.0
  %742 = vmatpush1.msra.mxu0 0.0
  %743 = vmatprep.subr.mxu0 0.0
  %744 = vmatpush1.msra.mxu0 0.0
  %745 = vmatprep.subr.mxu0 0.0
  %746 = vmatpush1.msra.mxu0 0.0
  %747 = vmatprep.subr.mxu0 0.0
  %748 = vmatpush1.msra.mxu0 0.0
  %749 = vmatprep.subr.mxu0 0.0
  %750 = vmatpush1.msra.mxu0 0.0
  %751 = vmatprep.subr.mxu0 0.0
  %752 = vmatpush1.msra.mxu0 0.0
  %753 = vmatprep.subr.mxu0 0.0
  %754 = vmatpush1.msra.mxu0 0.0
  %755 = vmatprep.subr.mxu0 0.0
  %756 = vmatpush1.msra.mxu0 0.0
  %757 = vmatprep.subr.mxu0 0.0
  %758 = vmatpush1.msra.mxu0 0.0
  %759 = vmatprep.subr.mxu0 0.0
  %760 = vmatpush1.msra.mxu0 0.0
  %761 = vmatprep.subr.mxu0 0.0
  %762 = vmatpush1.msra.mxu0 0.0
  %763 = vmatprep.subr.mxu0 0.0
  %764 = vmatpush1.msra.mxu0 0.0
  %765 = vmatprep.subr.mxu0 0.0
  %766 = vmatpush1.msra.mxu0 0.0
  %767 = vmatprep.subr.mxu0 0.0
  %768 = vmatpush1.msra.mxu0 0.0
  %769 = vmatprep.subr.mxu0 0.0
  %770 = vmatpush1.msra.mxu0 0.0
  %771 = vmatprep.subr.mxu0 0.0
  %772 = vmatpush1.msra.mxu0 0.0
  %773 = vmatprep.subr.mxu0 0.0
  %774 = vmatpush1.msra.mxu0 0.0
  %775 = vmatprep.subr.mxu0 0.0
  %776 = vmatpush1.msra.mxu0 0.0
  %777 = vmatprep.subr.mxu0 0.0
  %778 = vmatpush1.msra.mxu0 0.0
  %779 = vmatprep.subr.mxu0 0.0
  %780 = vmatpush1.msra.mxu0 0.0
  %781 = vmatprep.subr.mxu0 0.0
  %782 = vmatpush1.msra.mxu0 0.0
  %783 = vmatprep.subr.mxu0 0.0
  %784 = vmatpush1.msra.mxu0 0.0
  %785 = vmatprep.subr.mxu0 0.0
  %786 = vmatpush1.msra.mxu0 0.0
  %787 = vmatprep.subr.mxu0 0.0
  %788 = vmatpush1.msra.mxu0 0.0
  %789 = vmatprep.subr.mxu0 0.0
  %790 = vmatpush1.msra.mxu0 0.0
  %791 = vmatprep.mubr.f32.mxu0 0.0
  %792 = vmatmul.mubr.f32.gmra.mrb[0].mxu0 %v725
  %v793 = vpop.f32.mrb[0].mxu0
  %v794 = vadd.f32 0.0, %v793
  %v795 = vpop.f32.mrb[0].mxu0
  %796 = vdwg.mxu0
  %s797 = scalar_lea.vmem %s2, 16
  %v798 = vld [vmem:[%s797] sm:$0xff]
  %v800 = vsel %vm34, %v798, 0
  %802 = vmatprep.subr.mxu0 0.0
  %803 = vmatpush1.msra.mxu0 %v722
  %804 = vmatprep.subr.mxu0 0.0
  %805 = vmatpush1.msra.mxu0 0.0
  %806 = vmatprep.subr.mxu0 0.0
  %807 = vmatpush1.msra.mxu0 0.0
  %808 = vmatprep.subr.mxu0 0.0
  %809 = vmatpush1.msra.mxu0 0.0
  %810 = vmatprep.subr.mxu0 0.0
  %811 = vmatpush1.msra.mxu0 0.0
  %812 = vmatprep.subr.mxu0 0.0
  %813 = vmatpush1.msra.mxu0 0.0
  %814 = vmatprep.subr.mxu0 0.0
  %815 = vmatpush1.msra.mxu0 0.0
  %816 = vmatprep.subr.mxu0 0.0
  %817 = vmatpush1.msra.mxu0 0.0
  %818 = vmatprep.subr.mxu0 0.0
  %819 = vmatpush1.msra.mxu0 0.0
  %820 = vmatprep.subr.mxu0 0.0
  %821 = vmatpush1.msra.mxu0 0.0
  %822 = vmatprep.subr.mxu0 0.0
  %823 = vmatpush1.msra.mxu0 0.0
  %824 = vmatprep.subr.mxu0 0.0
  %825 = vmatpush1.msra.mxu0 0.0
  %826 = vmatprep.subr.mxu0 0.0
  %827 = vmatpush1.msra.mxu0 0.0
  %828 = vmatprep.subr.mxu0 0.0
  %829 = vmatpush1.msra.mxu0 0.0
  %830 = vmatprep.subr.mxu0 0.0
  %831 = vmatpush1.msra.mxu0 0.0
  %832 = vmatprep.subr.mxu0 0.0
  %833 = vmatpush1.msra.mxu0 0.0
  %834 = vmatprep.subr.mxu0 0.0
  %835 = vmatpush1.msra.mxu0 0.0
  %836 = vmatprep.subr.mxu0 0.0
  %837 = vmatpush1.msra.mxu0 0.0
  %838 = vmatprep.subr.mxu0 0.0
  %839 = vmatpush1.msra.mxu0 0.0
  %840 = vmatprep.subr.mxu0 0.0
  %841 = vmatpush1.msra.mxu0 0.0
  %842 = vmatprep.subr.mxu0 0.0
  %843 = vmatpush1.msra.mxu0 0.0
  %844 = vmatprep.subr.mxu0 0.0
  %845 = vmatpush1.msra.mxu0 0.0
  %846 = vmatprep.subr.mxu0 0.0
  %847 = vmatpush1.msra.mxu0 0.0
  %848 = vmatprep.subr.mxu0 0.0
  %849 = vmatpush1.msra.mxu0 0.0
  %850 = vmatprep.subr.mxu0 0.0
  %851 = vmatpush1.msra.mxu0 0.0
  %852 = vmatprep.subr.mxu0 0.0
  %853 = vmatpush1.msra.mxu0 0.0
  %854 = vmatprep.subr.mxu0 0.0
  %855 = vmatpush1.msra.mxu0 0.0
  %856 = vmatprep.subr.mxu0 0.0
  %857 = vmatpush1.msra.mxu0 0.0
  %858 = vmatprep.subr.mxu0 0.0
  %859 = vmatpush1.msra.mxu0 0.0
  %860 = vmatprep.subr.mxu0 0.0
  %861 = vmatpush1.msra.mxu0 0.0
  %862 = vmatprep.subr.mxu0 0.0
  %863 = vmatpush1.msra.mxu0 0.0
  %864 = vmatprep.subr.mxu0 0.0
  %865 = vmatpush1.msra.mxu0 0.0
  %866 = vmatprep.mubr.f32.mxu0 0.0
  %867 = vmatmul.mubr.f32.gmra.mrb[0].mxu0 %v800
  %v868 = vpop.f32.mrb[0].mxu0
  %v869 = vadd.f32 0.0, %v868
  %v870 = vpop.f32.mrb[0].mxu0
  %871 = vdwg.mxu0
  %v872 = vld [vmem:[%s7] sm:$0xff]
  %v873 = vld [vmem:[%s7 + $0x8] sm:$0xff]
  %v874 = vld [vmem:[%s7 + $0x10] sm:$0xff]
  %v875 = vld [vmem:[%s7 + $0x18] sm:$0xff]
  %s876 = scalar_lea.vmem %s7, 32
  %v877 = vld [vmem:[%s876] sm:$0xff]
  %v878 = vld [vmem:[%s876 + $0x8] sm:$0xff]
  %v879 = vld [vmem:[%s876 + $0x10] sm:$0xff]
  %v880 = vld [vmem:[%s876 + $0x18] sm:$0xff]
  %v882 = vsel %vm267, %v722, 0
  %884 = vmatprep.subr.mxu0 0.0
  %885 = vmatpush1.msra.mxu0 %v877
  %886 = vmatprep.subr.mxu0 0.0
  %887 = vmatpush1.msra.mxu0 %v878
  %888 = vmatprep.subr.mxu0 0.0
  %889 = vmatpush1.msra.mxu0 %v879
  %890 = vmatprep.subr.mxu0 0.0
  %891 = vmatpush1.msra.mxu0 %v880
  %892 = vmatprep.subr.mxu0 0.0
  %893 = vmatpush1.msra.mxu0 0.0
  %894 = vmatprep.subr.mxu0 0.0
  %895 = vmatpush1.msra.mxu0 0.0
  %896 = vmatprep.subr.mxu0 0.0
  %897 = vmatpush1.msra.mxu0 0.0
  %898 = vmatprep.subr.mxu0 0.0
  %899 = vmatpush1.msra.mxu0 0.0
  %900 = vmatprep.subr.mxu0 0.0
  %901 = vmatpush1.msra.mxu0 0.0
  %902 = vmatprep.subr.mxu0 0.0
  %903 = vmatpush1.msra.mxu0 0.0
  %904 = vmatprep.subr.mxu0 0.0
  %905 = vmatpush1.msra.mxu0 0.0
  %906 = vmatprep.subr.mxu0 0.0
  %907 = vmatpush1.msra.mxu0 0.0
  %908 = vmatprep.subr.mxu0 0.0
  %909 = vmatpush1.msra.mxu0 0.0
  %910 = vmatprep.subr.mxu0 0.0
  %911 = vmatpush1.msra.mxu0 0.0
  %912 = vmatprep.subr.mxu0 0.0
  %913 = vmatpush1.msra.mxu0 0.0
  %914 = vmatprep.subr.mxu0 0.0
  %915 = vmatpush1.msra.mxu0 0.0
  %916 = vmatprep.subr.mxu0 0.0
  %917 = vmatpush1.msra.mxu0 0.0
  %918 = vmatprep.subr.mxu0 0.0
  %919 = vmatpush1.msra.mxu0 0.0
  %920 = vmatprep.subr.mxu0 0.0
  %921 = vmatpush1.msra.mxu0 0.0
  %922 = vmatprep.subr.mxu0 0.0
  %923 = vmatpush1.msra.mxu0 0.0
  %924 = vmatprep.subr.mxu0 0.0
  %925 = vmatpush1.msra.mxu0 0.0
  %926 = vmatprep.subr.mxu0 0.0
  %927 = vmatpush1.msra.mxu0 0.0
  %928 = vmatprep.subr.mxu0 0.0
  %929 = vmatpush1.msra.mxu0 0.0
  %930 = vmatprep.subr.mxu0 0.0
  %931 = vmatpush1.msra.mxu0 0.0
  %932 = vmatprep.subr.mxu0 0.0
  %933 = vmatpush1.msra.mxu0 0.0
  %934 = vmatprep.subr.mxu0 0.0
  %935 = vmatpush1.msra.mxu0 0.0
  %936 = vmatprep.subr.mxu0 0.0
  %937 = vmatpush1.msra.mxu0 0.0
  %938 = vmatprep.subr.mxu0 0.0
  %939 = vmatpush1.msra.mxu0 0.0
  %940 = vmatprep.subr.mxu0 0.0
  %941 = vmatpush1.msra.mxu0 0.0
  %942 = vmatprep.subr.mxu0 0.0
  %943 = vmatpush1.msra.mxu0 0.0
  %944 = vmatprep.subr.mxu0 0.0
  %945 = vmatpush1.msra.mxu0 0.0
  %946 = vmatprep.subr.mxu0 0.0
  %947 = vmatpush1.msra.mxu0 0.0
  %948 = vmatprep.mubr.f32.mxu0 0.0
  %949 = vmatmul.mubr.f32.gmra.mrb[0].mxu0 %v882
  %v950 = vpop.f32.mrb[0].mxu0
  %v951 = vadd.f32 0.0, %v950
  %v952 = vpop.f32.mrb[0].mxu0
  %953 = vdwg.mxu0
  %v955 = vsel %vm267, %v794, 0
  %957 = vmatprep.subr.mxu0 0.0
  %958 = vmatpush1.msra.mxu0 %v872
  %959 = vmatprep.subr.mxu0 0.0
  %960 = vmatpush1.msra.mxu0 %v873
  %961 = vmatprep.subr.mxu0 0.0
  %962 = vmatpush1.msra.mxu0 %v874
  %963 = vmatprep.subr.mxu0 0.0
  %964 = vmatpush1.msra.mxu0 %v875
  %965 = vmatprep.subr.mxu0 0.0
  %966 = vmatpush1.msra.mxu0 0.0
  %967 = vmatprep.subr.mxu0 0.0
  %968 = vmatpush1.msra.mxu0 0.0
  %969 = vmatprep.subr.mxu0 0.0
  %970 = vmatpush1.msra.mxu0 0.0
  %971 = vmatprep.subr.mxu0 0.0
  %972 = vmatpush1.msra.mxu0 0.0
  %973 = vmatprep.subr.mxu0 0.0
  %974 = vmatpush1.msra.mxu0 0.0
  %975 = vmatprep.subr.mxu0 0.0
  %976 = vmatpush1.msra.mxu0 0.0
  %977 = vmatprep.subr.mxu0 0.0
  %978 = vmatpush1.msra.mxu0 0.0
  %979 = vmatprep.subr.mxu0 0.0
  %980 = vmatpush1.msra.mxu0 0.0
  %981 = vmatprep.subr.mxu0 0.0
  %982 = vmatpush1.msra.mxu0 0.0
  %983 = vmatprep.subr.mxu0 0.0
  %984 = vmatpush1.msra.mxu0 0.0
  %985 = vmatprep.subr.mxu0 0.0
  %986 = vmatpush1.msra.mxu0 0.0
  %987 = vmatprep.subr.mxu0 0.0
  %988 = vmatpush1.msra.mxu0 0.0
  %989 = vmatprep.subr.mxu0 0.0
  %990 = vmatpush1.msra.mxu0 0.0
  %991 = vmatprep.subr.mxu0 0.0
  %992 = vmatpush1.msra.mxu0 0.0
  %993 = vmatprep.subr.mxu0 0.0
  %994 = vmatpush1.msra.mxu0 0.0
  %995 = vmatprep.subr.mxu0 0.0
  %996 = vmatpush1.msra.mxu0 0.0
  %997 = vmatprep.subr.mxu0 0.0
  %998 = vmatpush1.msra.mxu0 0.0
  %999 = vmatprep.subr.mxu0 0.0
  %1000 = vmatpush1.msra.mxu0 0.0
  %1001 = vmatprep.subr.mxu0 0.0
  %1002 = vmatpush1.msra.mxu0 0.0
  %1003 = vmatprep.subr.mxu0 0.0
  %1004 = vmatpush1.msra.mxu0 0.0
  %1005 = vmatprep.subr.mxu0 0.0
  %1006 = vmatpush1.msra.mxu0 0.0
  %1007 = vmatprep.subr.mxu0 0.0
  %1008 = vmatpush1.msra.mxu0 0.0
  %1009 = vmatprep.subr.mxu0 0.0
  %1010 = vmatpush1.msra.mxu0 0.0
  %1011 = vmatprep.subr.mxu0 0.0
  %1012 = vmatpush1.msra.mxu0 0.0
  %1013 = vmatprep.subr.mxu0 0.0
  %1014 = vmatpush1.msra.mxu0 0.0
  %1015 = vmatprep.subr.mxu0 0.0
  %1016 = vmatpush1.msra.mxu0 0.0
  %1017 = vmatprep.subr.mxu0 0.0
  %1018 = vmatpush1.msra.mxu0 0.0
  %1019 = vmatprep.subr.mxu0 0.0
  %1020 = vmatpush1.msra.mxu0 0.0
  %1021 = vmatprep.mubr.f32.mxu0 0.0
  %1022 = vmatmul.mubr.f32.gmra.mrb[0].mxu0 %v955
  %v1023 = vpop.f32.mrb[0].mxu0
  %v1024 = vadd.f32 %v951, %v1023
  %v1025 = vpop.f32.mrb[0].mxu0
  %1026 = vdwg.mxu0
  %s1027 = scalar_lea.vmem %s7, 64
  %v1028 = vld [vmem:[%s1027] sm:$0xff]
  %v1029 = vld [vmem:[%s1027 + $0x8] sm:$0xff]
  %v1030 = vld [vmem:[%s1027 + $0x10] sm:$0xff]
  %v1031 = vld [vmem:[%s1027 + $0x18] sm:$0xff]
  %v1033 = vsel %vm267, %v869, 0
  %1035 = vmatprep.subr.mxu0 0.0
  %1036 = vmatpush1.msra.mxu0 %v1028
  %1037 = vmatprep.subr.mxu0 0.0
  %1038 = vmatpush1.msra.mxu0 %v1029
  %1039 = vmatprep.subr.mxu0 0.0
  %1040 = vmatpush1.msra.mxu0 %v1030
  %1041 = vmatprep.subr.mxu0 0.0
  %1042 = vmatpush1.msra.mxu0 %v1031
  %1043 = vmatprep.subr.mxu0 0.0
  %1044 = vmatpush1.msra.mxu0 0.0
  %1045 = vmatprep.subr.mxu0 0.0
  %1046 = vmatpush1.msra.mxu0 0.0
  %1047 = vmatprep.subr.mxu0 0.0
  %1048 = vmatpush1.msra.mxu0 0.0
  %1049 = vmatprep.subr.mxu0 0.0
  %1050 = vmatpush1.msra.mxu0 0.0
  %1051 = vmatprep.subr.mxu0 0.0
  %1052 = vmatpush1.msra.mxu0 0.0
  %1053 = vmatprep.subr.mxu0 0.0
  %1054 = vmatpush1.msra.mxu0 0.0
  %1055 = vmatprep.subr.mxu0 0.0
  %1056 = vmatpush1.msra.mxu0 0.0
  %1057 = vmatprep.subr.mxu0 0.0
  %1058 = vmatpush1.msra.mxu0 0.0
  %1059 = vmatprep.subr.mxu0 0.0
  %1060 = vmatpush1.msra.mxu0 0.0
  %1061 = vmatprep.subr.mxu0 0.0
  %1062 = vmatpush1.msra.mxu0 0.0
  %1063 = vmatprep.subr.mxu0 0.0
  %1064 = vmatpush1.msra.mxu0 0.0
  %1065 = vmatprep.subr.mxu0 0.0
  %1066 = vmatpush1.msra.mxu0 0.0
  %1067 = vmatprep.subr.mxu0 0.0
  %1068 = vmatpush1.msra.mxu0 0.0
  %1069 = vmatprep.subr.mxu0 0.0
  %1070 = vmatpush1.msra.mxu0 0.0
  %1071 = vmatprep.subr.mxu0 0.0
  %1072 = vmatpush1.msra.mxu0 0.0
  %1073 = vmatprep.subr.mxu0 0.0
  %1074 = vmatpush1.msra.mxu0 0.0
  %1075 = vmatprep.subr.mxu0 0.0
  %1076 = vmatpush1.msra.mxu0 0.0
  %1077 = vmatprep.subr.mxu0 0.0
  %1078 = vmatpush1.msra.mxu0 0.0
  %1079 = vmatprep.subr.mxu0 0.0
  %1080 = vmatpush1.msra.mxu0 0.0
  %1081 = vmatprep.subr.mxu0 0.0
  %1082 = vmatpush1.msra.mxu0 0.0
  %1083 = vmatprep.subr.mxu0 0.0
  %1084 = vmatpush1.msra.mxu0 0.0
  %1085 = vmatprep.subr.mxu0 0.0
  %1086 = vmatpush1.msra.mxu0 0.0
  %1087 = vmatprep.subr.mxu0 0.0
  %1088 = vmatpush1.msra.mxu0 0.0
  %1089 = vmatprep.subr.mxu0 0.0
  %1090 = vmatpush1.msra.mxu0 0.0
  %1091 = vmatprep.subr.mxu0 0.0
  %1092 = vmatpush1.msra.mxu0 0.0
  %1093 = vmatprep.subr.mxu0 0.0
  %1094 = vmatpush1.msra.mxu0 0.0
  %1095 = vmatprep.subr.mxu0 0.0
  %1096 = vmatpush1.msra.mxu0 0.0
  %1097 = vmatprep.subr.mxu0 0.0
  %1098 = vmatpush1.msra.mxu0 0.0
  %1099 = vmatprep.mubr.f32.mxu0 0.0
  %1100 = vmatmul.mubr.f32.gmra.mrb[0].mxu0 %v1033
  %v1101 = vpop.f32.mrb[0].mxu0
  %v1102 = vadd.f32 0.0, %v1101
  %v1103 = vpop.f32.mrb[0].mxu0
  %1104 = vdwg.mxu0
  %v1105 = vadd.f32 %v1024, %v1102
  %v1106 = vld [vmem:[%s8] sm:$0xff]
  %v1107 = vadd.f32 %v1105, %v1106
  %v1108 = vadd.f32 %v1107, %v721
  %v1109 = vmax.f32 %v1108, 0.0
  %1110 = vst.msk [vmem:[%s9] sm:$0xff] %vm267, %v1109
  // Predicated region
  $region38: #{model_forward.14} parent=0 // pred_check
    _
  $region39: #{model_forward.14} parent=0 // pred_check_branch
    %1112 = sbr.rel (0) target = $region41
  $region40: #{model_forward.14} parent=0 // pred_region
    _
  $region41: #{model_forward.14} parent=0 // pred_fallthru
    _
  // Predicated region
  $region42: #{model_forward.14} parent=0 // pred_check
    _
  $region43: #{model_forward.14} parent=0 // pred_check_branch
    %1114 = sbr.rel (0) target = $region45
  $region44: #{model_forward.14} parent=0 // pred_region
    _
  $region45: #{model_forward.14} parent=0 // pred_fallthru
    _

// kernel: model_forward.16
$region0: #{model_forward.16}
  #allocation0 [shape = 'u32[]', space=smem, size = 0x4, offset = 0x4, fixed_abs, tag = 'smem constant byte address 0x4 - core index']
  #allocation1 [shape = 'u32[144,128]{1,0:T(1,128)}', space=vmem, size = 0x12000, scoped, tag = 'internal scratch']
  %s0 = inlined_call_operand.vmem [shape: f32[8,32], index: 0, kind: input, shape index: {}]
  %s1 = inlined_call_operand.vmem [shape: f32[3,8,8], index: 1, kind: input, shape index: {}]
  %s2 = inlined_call_operand.vmem [shape: f32[3,8,8], index: 2, kind: input, shape index: {}]
  %s3 = inlined_call_operand.vmem [shape: f32[3,32,64], index: 3, kind: input, shape index: {}]
  %s4 = inlined_call_operand.vmem [shape: f32[8,64], index: 4, kind: input, shape index: {}]
  %s5 = inlined_call_operand.vmem [shape: f32[3,32,64], index: 5, kind: input, shape index: {}]
  %s6 = inlined_call_operand.vmem [shape: f32[8,64], index: 6, kind: input, shape index: {}]
  %s7 = inlined_call_operand.vmem [shape: f32[3,64,64], index: 7, kind: input, shape index: {}]
  %s8 = inlined_call_operand.vmem [shape: f32[8,64], index: 8, kind: input, shape index: {}]
  %s9 = inlined_call_operand.vmem [shape: f32[8,64], index: 9, kind: output, shape index: {}]
  %s10 = sld [smem:[#allocation0]]
  $region46: #{model_forward.16} parent=0
    _
  %s12 = ssub.s32 1, %s10
  %s13 = scalar_select 0, %s12, %s10
  // Predicated region
  $region2: #{model_forward.16} parent=0 // pred_check
    _
  $region3: #{model_forward.16} parent=0 // pred_check_branch
    %15 = sbr.rel (0) target = $region5
  $region4: #{model_forward.16} parent=0 // pred_region
    _
  $region5: #{model_forward.16} parent=0 // pred_fallthru
    _
  // Predicated region
  $region6: #{model_forward.16} parent=0 // pred_check
    _
  $region7: #{model_forward.16} parent=0 // pred_check_branch
    %17 = sbr.rel (0) target = $region9
  $region8: #{model_forward.16} parent=0 // pred_region
    _
  $region9: #{model_forward.16} parent=0 // pred_fallthru
    _
  // Predicated region
  $region10: #{model_forward.16} parent=0 // pred_check
    _
  $region11: #{model_forward.16} parent=0 // pred_check_branch
    %19 = sbr.rel (0) target = $region13
  $region12: #{model_forward.16} parent=0 // pred_region
    _
  $region13: #{model_forward.16} parent=0 // pred_fallthru
    _
  // Predicated region
  $region14: #{model_forward.16} parent=0 // pred_check
    _
  $region15: #{model_forward.16} parent=0 // pred_check_branch
    %21 = sbr.rel (0) target = $region17
  $region16: #{model_forward.16} parent=0 // pred_region
    _
  $region17: #{model_forward.16} parent=0 // pred_fallthru
    _
  // Predicated region
  $region18: #{model_forward.16} parent=0 // pred_check
    _
  $region19: #{model_forward.16} parent=0 // pred_check_branch
    %23 = sbr.rel (0) target = $region21
  $region20: #{model_forward.16} parent=0 // pred_region
    _
  $region21: #{model_forward.16} parent=0 // pred_fallthru
    _
  // Predicated region
  $region22: #{model_forward.16} parent=0 // pred_check
    _
  $region23: #{model_forward.16} parent=0 // pred_check_branch
    %25 = sbr.rel (0) target = $region25
  $region24: #{model_forward.16} parent=0 // pred_region
    _
  $region25: #{model_forward.16} parent=0 // pred_fallthru
    _
  // Predicated region
  $region26: #{model_forward.16} parent=0 // pred_check
    _
  $region27: #{model_forward.16} parent=0 // pred_check_branch
    %27 = sbr.rel (0) target = $region29
  $region28: #{model_forward.16} parent=0 // pred_region
    _
  $region29: #{model_forward.16} parent=0 // pred_fallthru
    _
  // Predicated region
  $region30: #{model_forward.16} parent=0 // pred_check
    _
  $region31: #{model_forward.16} parent=0 // pred_check_branch
    %29 = sbr.rel (0) target = $region33
  $region32: #{model_forward.16} parent=0 // pred_region
    _
  $region33: #{model_forward.16} parent=0 // pred_fallthru
    _
  // Predicated region
  $region34: #{model_forward.16} parent=0 // pred_check
    _
  $region35: #{model_forward.16} parent=0 // pred_check_branch
    %31 = sbr.rel (0) target = $region37
  $region36: #{model_forward.16} parent=0 // pred_region
    _
  $region37: #{model_forward.16} parent=0 // pred_fallthru
    _
  %v32 = vld [vmem:[%s0] sm:$0xff]
  %v33 = vld [vmem:[%s1] sm:$0xff]
  %vm34 = vcmask 64512
  %v36 = vsel %vm34, %v33, 0
  %38 = vmatprep.subr.mxu0 0.0
  %39 = vmatpush1.msra.mxu0 %v32
  %40 = vmatprep.subr.mxu0 0.0
  %41 = vmatpush1.msra.mxu0 0.0
  %42 = vmatprep.subr.mxu0 0.0
  %43 = vmatpush1.msra.mxu0 0.0
  %44 = vmatprep.subr.mxu0 0.0
  %45 = vmatpush1.msra.mxu0 0.0
  %46 = vmatprep.subr.mxu0 0.0
  %47 = vmatpush1.msra.mxu0 0.0
  %48 = vmatprep.subr.mxu0 0.0
  %49 = vmatpush1.msra.mxu0 0.0
  %50 = vmatprep.subr.mxu0 0.0
  %51 = vmatpush1.msra.mxu0 0.0
  %52 = vmatprep.subr.mxu0 0.0
  %53 = vmatpush1.msra.mxu0 0.0
  %54 = vmatprep.subr.mxu0 0.0
  %55 = vmatpush1.msra.mxu0 0.0
  %56 = vmatprep.subr.mxu0 0.0
  %57 = vmatpush1.msra.mxu0 0.0
  %58 = vmatprep.subr.mxu0 0.0
  %59 = vmatpush1.msra.mxu0 0.0
  %60 = vmatprep.subr.mxu0 0.0
  %61 = vmatpush1.msra.mxu0 0.0
  %62 = vmatprep.subr.mxu0 0.0
  %63 = vmatpush1.msra.mxu0 0.0
  %64 = vmatprep.subr.mxu0 0.0
  %65 = vmatpush1.msra.mxu0 0.0
  %66 = vmatprep.subr.mxu0 0.0
  %67 = vmatpush1.msra.mxu0 0.0
  %68 = vmatprep.subr.mxu0 0.0
  %69 = vmatpush1.msra.mxu0 0.0
  %70 = vmatprep.subr.mxu0 0.0
  %71 = vmatpush1.msra.mxu0 0.0
  %72 = vmatprep.subr.mxu0 0.0
  %73 = vmatpush1.msra.mxu0 0.0
  %74 = vmatprep.subr.mxu0 0.0
  %75 = vmatpush1.msra.mxu0 0.0
  %76 = vmatprep.subr.mxu0 0.0
  %77 = vmatpush1.msra.mxu0 0.0
  %78 = vmatprep.subr.mxu0 0.0
  %79 = vmatpush1.msra.mxu0 0.0
  %80 = vmatprep.subr.mxu0 0.0
  %81 = vmatpush1.msra.mxu0 0.0
  %82 = vmatprep.subr.mxu0 0.0
  %83 = vmatpush1.msra.mxu0 0.0
  %84 = vmatprep.subr.mxu0 0.0
  %85 = vmatpush1.msra.mxu0 0.0
  %86 = vmatprep.subr.mxu0 0.0
  %87 = vmatpush1.msra.mxu0 0.0
  %88 = vmatprep.subr.mxu0 0.0
  %89 = vmatpush1.msra.mxu0 0.0
  %90 = vmatprep.subr.mxu0 0.0
  %91 = vmatpush1.msra.mxu0 0.0
  %92 = vmatprep.subr.mxu0 0.0
  %93 = vmatpush1.msra.mxu0 0.0
  %94 = vmatprep.subr.mxu0 0.0
  %95 = vmatpush1.msra.mxu0 0.0
  %96 = vmatprep.subr.mxu0 0.0
  %97 = vmatpush1.msra.mxu0 0.0
  %98 = vmatprep.subr.mxu0 0.0
  %99 = vmatpush1.msra.mxu0 0.0
  %100 = vmatprep.subr.mxu0 0.0
  %101 = vmatpush1.msra.mxu0 0.0
  %102 = vmatprep.mubr.f32.mxu0 0.0
  %103 = vmatmul.mubr.f32.gmra.mrb[0].mxu0 %v36
  %v104 = vpop.f32.mrb[0].mxu0
  %v105 = vadd.f32 0.0, %v104
  %v106 = vpop.f32.mrb[0].mxu0
  %107 = vdwg.mxu0
  %s108 = scalar_lea.vmem %s1, 8
  %v109 = vld [vmem:[%s108] sm:$0xff]
  %v111 = vsel %vm34, %v109, 0
  %113 = vmatprep.subr.mxu0 0.0
  %114 = vmatpush1.msra.mxu0 %v32
  %115 = vmatprep.subr.mxu0 0.0
  %116 = vmatpush1.msra.mxu0 0.0
  %117 = vmatprep.subr.mxu0 0.0
  %118 = vmatpush1.msra.mxu0 0.0
  %119 = vmatprep.subr.mxu0 0.0
  %120 = vmatpush1.msra.mxu0 0.0
  %121 = vmatprep.subr.mxu0 0.0
  %122 = vmatpush1.msra.mxu0 0.0
  %123 = vmatprep.subr.mxu0 0.0
  %124 = vmatpush1.msra.mxu0 0.0
  %125 = vmatprep.subr.mxu0 0.0
  %126 = vmatpush1.msra.mxu0 0.0
  %127 = vmatprep.subr.mxu0 0.0
  %128 = vmatpush1.msra.mxu0 0.0
  %129 = vmatprep.subr.mxu0 0.0
  %130 = vmatpush1.msra.mxu0 0.0
  %131 = vmatprep.subr.mxu0 0.0
  %132 = vmatpush1.msra.mxu0 0.0
  %133 = vmatprep.subr.mxu0 0.0
  %134 = vmatpush1.msra.mxu0 0.0
  %135 = vmatprep.subr.mxu0 0.0
  %136 = vmatpush1.msra.mxu0 0.0
  %137 = vmatprep.subr.mxu0 0.0
  %138 = vmatpush1.msra.mxu0 0.0
  %139 = vmatprep.subr.mxu0 0.0
  %140 = vmatpush1.msra.mxu0 0.0
  %141 = vmatprep.subr.mxu0 0.0
  %142 = vmatpush1.msra.mxu0 0.0
  %143 = vmatprep.subr.mxu0 0.0
  %144 = vmatpush1.msra.mxu0 0.0
  %145 = vmatprep.subr.mxu0 0.0
  %146 = vmatpush1.msra.mxu0 0.0
  %147 = vmatprep.subr.mxu0 0.0
  %148 = vmatpush1.msra.mxu0 0.0
  %149 = vmatprep.subr.mxu0 0.0
  %150 = vmatpush1.msra.mxu0 0.0
  %151 = vmatprep.subr.mxu0 0.0
  %152 = vmatpush1.msra.mxu0 0.0
  %153 = vmatprep.subr.mxu0 0.0
  %154 = vmatpush1.msra.mxu0 0.0
  %155 = vmatprep.subr.mxu0 0.0
  %156 = vmatpush1.msra.mxu0 0.0
  %157 = vmatprep.subr.mxu0 0.0
  %158 = vmatpush1.msra.mxu0 0.0
  %159 = vmatprep.subr.mxu0 0.0
  %160 = vmatpush1.msra.mxu0 0.0
  %161 = vmatprep.subr.mxu0 0.0
  %162 = vmatpush1.msra.mxu0 0.0
  %163 = vmatprep.subr.mxu0 0.0
  %164 = vmatpush1.msra.mxu0 0.0
  %165 = vmatprep.subr.mxu0 0.0
  %166 = vmatpush1.msra.mxu0 0.0
  %167 = vmatprep.subr.mxu0 0.0
  %168 = vmatpush1.msra.mxu0 0.0
  %169 = vmatprep.subr.mxu0 0.0
  %170 = vmatpush1.msra.mxu0 0.0
  %171 = vmatprep.subr.mxu0 0.0
  %172 = vmatpush1.msra.mxu0 0.0
  %173 = vmatprep.subr.mxu0 0.0
  %174 = vmatpush1.msra.mxu0 0.0
  %175 = vmatprep.subr.mxu0 0.0
  %176 = vmatpush1.msra.mxu0 0.0
  %177 = vmatprep.mubr.f32.mxu0 0.0
  %178 = vmatmul.mubr.f32.gmra.mrb[0].mxu0 %v111
  %v179 = vpop.f32.mrb[0].mxu0
  %v180 = vadd.f32 0.0, %v179
  %v181 = vpop.f32.mrb[0].mxu0
  %182 = vdwg.mxu0
  %s183 = scalar_lea.vmem %s1, 16
  %v184 = vld [vmem:[%s183] sm:$0xff]
  %v186 = vsel %vm34, %v184, 0
  %188 = vmatprep.subr.mxu0 0.0
  %189 = vmatpush1.msra.mxu0 %v32
  %190 = vmatprep.subr.mxu0 0.0
  %191 = vmatpush1.msra.mxu0 0.0
  %192 = vmatprep.subr.mxu0 0.0
  %193 = vmatpush1.msra.mxu0 0.0
  %194 = vmatprep.subr.mxu0 0.0
  %195 = vmatpush1.msra.mxu0 0.0
  %196 = vmatprep.subr.mxu0 0.0
  %197 = vmatpush1.msra.mxu0 0.0
  %198 = vmatprep.subr.mxu0 0.0
  %199 = vmatpush1.msra.mxu0 0.0
  %200 = vmatprep.subr.mxu0 0.0
  %201 = vmatpush1.msra.mxu0 0.0
  %202 = vmatprep.subr.mxu0 0.0
  %203 = vmatpush1.msra.mxu0 0.0
  %204 = vmatprep.subr.mxu0 0.0
  %205 = vmatpush1.msra.mxu0 0.0
  %206 = vmatprep.subr.mxu0 0.0
  %207 = vmatpush1.msra.mxu0 0.0
  %208 = vmatprep.subr.mxu0 0.0
  %209 = vmatpush1.msra.mxu0 0.0
  %210 = vmatprep.subr.mxu0 0.0
  %211 = vmatpush1.msra.mxu0 0.0
  %212 = vmatprep.subr.mxu0 0.0
  %213 = vmatpush1.msra.mxu0 0.0
  %214 = vmatprep.subr.mxu0 0.0
  %215 = vmatpush1.msra.mxu0 0.0
  %216 = vmatprep.subr.mxu0 0.0
  %217 = vmatpush1.msra.mxu0 0.0
  %218 = vmatprep.subr.mxu0 0.0
  %219 = vmatpush1.msra.mxu0 0.0
  %220 = vmatprep.subr.mxu0 0.0
  %221 = vmatpush1.msra.mxu0 0.0
  %222 = vmatprep.subr.mxu0 0.0
  %223 = vmatpush1.msra.mxu0 0.0
  %224 = vmatprep.subr.mxu0 0.0
  %225 = vmatpush1.msra.mxu0 0.0
  %226 = vmatprep.subr.mxu0 0.0
  %227 = vmatpush1.msra.mxu0 0.0
  %228 = vmatprep.subr.mxu0 0.0
  %229 = vmatpush1.msra.mxu0 0.0
  %230 = vmatprep.subr.mxu0 0.0
  %231 = vmatpush1.msra.mxu0 0.0
  %232 = vmatprep.subr.mxu0 0.0
  %233 = vmatpush1.msra.mxu0 0.0
  %234 = vmatprep.subr.mxu0 0.0
  %235 = vmatpush1.msra.mxu0 0.0
  %236 = vmatprep.subr.mxu0 0.0
  %237 = vmatpush1.msra.mxu0 0.0
  %238 = vmatprep.subr.mxu0 0.0
  %239 = vmatpush1.msra.mxu0 0.0
  %240 = vmatprep.subr.mxu0 0.0
  %241 = vmatpush1.msra.mxu0 0.0
  %242 = vmatprep.subr.mxu0 0.0
  %243 = vmatpush1.msra.mxu0 0.0
  %244 = vmatprep.subr.mxu0 0.0
  %245 = vmatpush1.msra.mxu0 0.0
  %246 = vmatprep.subr.mxu0 0.0
  %247 = vmatpush1.msra.mxu0 0.0
  %248 = vmatprep.subr.mxu0 0.0
  %249 = vmatpush1.msra.mxu0 0.0
  %250 = vmatprep.subr.mxu0 0.0
  %251 = vmatpush1.msra.mxu0 0.0
  %252 = vmatprep.mubr.f32.mxu0 0.0
  %253 = vmatmul.mubr.f32.gmra.mrb[0].mxu0 %v186
  %v254 = vpop.f32.mrb[0].mxu0
  %v255 = vadd.f32 0.0, %v254
  %v256 = vpop.f32.mrb[0].mxu0
  %257 = vdwg.mxu0
  %v258 = vld [vmem:[%s3] sm:$0xff]
  %v259 = vld [vmem:[%s3 + $0x8] sm:$0xff]
  %v260 = vld [vmem:[%s3 + $0x10] sm:$0xff]
  %v261 = vld [vmem:[%s3 + $0x18] sm:$0xff]
  %s262 = scalar_lea.vmem %s3, 32
  %v263 = vld [vmem:[%s262] sm:$0xff]
  %v264 = vld [vmem:[%s262 + $0x8] sm:$0xff]
  %v265 = vld [vmem:[%s262 + $0x10] sm:$0xff]
  %v266 = vld [vmem:[%s262 + $0x18] sm:$0xff]
  %vm267 = vcmask 261120
  %v269 = vsel %vm267, %v180, 0
  %271 = vmatprep.subr.mxu0 0.0
  %272 = vmatpush1.msra.mxu0 %v263
  %273 = vmatprep.subr.mxu0 0.0
  %274 = vmatpush1.msra.mxu0 %v264
  %275 = vmatprep.subr.mxu0 0.0
  %276 = vmatpush1.msra.mxu0 %v265
  %277 = vmatprep.subr.mxu0 0.0
  %278 = vmatpush1.msra.mxu0 %v266
  %279 = vmatprep.subr.mxu0 0.0
  %280 = vmatpush1.msra.mxu0 0.0
  %281 = vmatprep.subr.mxu0 0.0
  %282 = vmatpush1.msra.mxu0 0.0
  %283 = vmatprep.subr.mxu0 0.0
  %284 = vmatpush1.msra.mxu0 0.0
  %285 = vmatprep.subr.mxu0 0.0
  %286 = vmatpush1.msra.mxu0 0.0
  %287 = vmatprep.subr.mxu0 0.0
  %288 = vmatpush1.msra.mxu0 0.0
  %289 = vmatprep.subr.mxu0 0.0
  %290 = vmatpush1.msra.mxu0 0.0
  %291 = vmatprep.subr.mxu0 0.0
  %292 = vmatpush1.msra.mxu0 0.0
  %293 = vmatprep.subr.mxu0 0.0
  %294 = vmatpush1.msra.mxu0 0.0
  %295 = vmatprep.subr.mxu0 0.0
  %296 = vmatpush1.msra.mxu0 0.0
  %297 = vmatprep.subr.mxu0 0.0
  %298 = vmatpush1.msra.mxu0 0.0
  %299 = vmatprep.subr.mxu0 0.0
  %300 = vmatpush1.msra.mxu0 0.0
  %301 = vmatprep.subr.mxu0 0.0
  %302 = vmatpush1.msra.mxu0 0.0
  %303 = vmatprep.subr.mxu0 0.0
  %304 = vmatpush1.msra.mxu0 0.0
  %305 = vmatprep.subr.mxu0 0.0
  %306 = vmatpush1.msra.mxu0 0.0
  %307 = vmatprep.subr.mxu0 0.0
  %308 = vmatpush1.msra.mxu0 0.0
  %309 = vmatprep.subr.mxu0 0.0
  %310 = vmatpush1.msra.mxu0 0.0
  %311 = vmatprep.subr.mxu0 0.0
  %312 = vmatpush1.msra.mxu0 0.0
  %313 = vmatprep.subr.mxu0 0.0
  %314 = vmatpush1.msra.mxu0 0.0
  %315 = vmatprep.subr.mxu0 0.0
  %316 = vmatpush1.msra.mxu0 0.0
  %317 = vmatprep.subr.mxu0 0.0
  %318 = vmatpush1.msra.mxu0 0.0
  %319 = vmatprep.subr.mxu0 0.0
  %320 = vmatpush1.msra.mxu0 0.0
  %321 = vmatprep.subr.mxu0 0.0
  %322 = vmatpush1.msra.mxu0 0.0
  %323 = vmatprep.subr.mxu0 0.0
  %324 = vmatpush1.msra.mxu0 0.0
  %325 = vmatprep.subr.mxu0 0.0
  %326 = vmatpush1.msra.mxu0 0.0
  %327 = vmatprep.subr.mxu0 0.0
  %328 = vmatpush1.msra.mxu0 0.0
  %329 = vmatprep.subr.mxu0 0.0
  %330 = vmatpush1.msra.mxu0 0.0
  %331 = vmatprep.subr.mxu0 0.0
  %332 = vmatpush1.msra.mxu0 0.0
  %333 = vmatprep.subr.mxu0 0.0
  %334 = vmatpush1.msra.mxu0 0.0
  %335 = vmatprep.mubr.f32.mxu0 0.0
  %336 = vmatmul.mubr.f32.gmra.mrb[0].mxu0 %v269
  %v337 = vpop.f32.mrb[0].mxu0
  %v338 = vadd.f32 0.0, %v337
  %v339 = vpop.f32.mrb[0].mxu0
  %340 = vdwg.mxu0
  %v342 = vsel %vm267, %v105, 0
  %344 = vmatprep.subr.mxu0 0.0
  %345 = vmatpush1.msra.mxu0 %v258
  %346 = vmatprep.subr.mxu0 0.0
  %347 = vmatpush1.msra.mxu0 %v259
  %348 = vmatprep.subr.mxu0 0.0
  %349 = vmatpush1.msra.mxu0 %v260
  %350 = vmatprep.subr.mxu0 0.0
  %351 = vmatpush1.msra.mxu0 %v261
  %352 = vmatprep.subr.mxu0 0.0
  %353 = vmatpush1.msra.mxu0 0.0
  %354 = vmatprep.subr.mxu0 0.0
  %355 = vmatpush1.msra.mxu0 0.0
  %356 = vmatprep.subr.mxu0 0.0
  %357 = vmatpush1.msra.mxu0 0.0
  %358 = vmatprep.subr.mxu0 0.0
  %359 = vmatpush1.msra.mxu0 0.0
  %360 = vmatprep.subr.mxu0 0.0
  %361 = vmatpush1.msra.mxu0 0.0
  %362 = vmatprep.subr.mxu0 0.0
  %363 = vmatpush1.msra.mxu0 0.0
  %364 = vmatprep.subr.mxu0 0.0
  %365 = vmatpush1.msra.mxu0 0.0
  %366 = vmatprep.subr.mxu0 0.0
  %367 = vmatpush1.msra.mxu0 0.0
  %368 = vmatprep.subr.mxu0 0.0
  %369 = vmatpush1.msra.mxu0 0.0
  %370 = vmatprep.subr.mxu0 0.0
  %371 = vmatpush1.msra.mxu0 0.0
  %372 = vmatprep.subr.mxu0 0.0
  %373 = vmatpush1.msra.mxu0 0.0
  %374 = vmatprep.subr.mxu0 0.0
  %375 = vmatpush1.msra.mxu0 0.0
  %376 = vmatprep.subr.mxu0 0.0
  %377 = vmatpush1.msra.mxu0 0.0
  %378 = vmatprep.subr.mxu0 0.0
  %379 = vmatpush1.msra.mxu0 0.0
  %380 = vmatprep.subr.mxu0 0.0
  %381 = vmatpush1.msra.mxu0 0.0
  %382 = vmatprep.subr.mxu0 0.0
  %383 = vmatpush1.msra.mxu0 0.0
  %384 = vmatprep.subr.mxu0 0.0
  %385 = vmatpush1.msra.mxu0 0.0
  %386 = vmatprep.subr.mxu0 0.0
  %387 = vmatpush1.msra.mxu0 0.0
  %388 = vmatprep.subr.mxu0 0.0
  %389 = vmatpush1.msra.mxu0 0.0
  %390 = vmatprep.subr.mxu0 0.0
  %391 = vmatpush1.msra.mxu0 0.0
  %392 = vmatprep.subr.mxu0 0.0
  %393 = vmatpush1.msra.mxu0 0.0
  %394 = vmatprep.subr.mxu0 0.0
  %395 = vmatpush1.msra.mxu0 0.0
  %396 = vmatprep.subr.mxu0 0.0
  %397 = vmatpush1.msra.mxu0 0.0
  %398 = vmatprep.subr.mxu0 0.0
  %399 = vmatpush1.msra.mxu0 0.0
  %400 = vmatprep.subr.mxu0 0.0
  %401 = vmatpush1.msra.mxu0 0.0
  %402 = vmatprep.subr.mxu0 0.0
  %403 = vmatpush1.msra.mxu0 0.0
  %404 = vmatprep.subr.mxu0 0.0
  %405 = vmatpush1.msra.mxu0 0.0
  %406 = vmatprep.subr.mxu0 0.0
  %407 = vmatpush1.msra.mxu0 0.0
  %408 = vmatprep.mubr.f32.mxu0 0.0
  %409 = vmatmul.mubr.f32.gmra.mrb[0].mxu0 %v342
  %v410 = vpop.f32.mrb[0].mxu0
  %v411 = vadd.f32 %v338, %v410
  %v412 = vpop.f32.mrb[0].mxu0
  %413 = vdwg.mxu0
  %s414 = scalar_lea.vmem %s3, 64
  %v415 = vld [vmem:[%s414] sm:$0xff]
  %v416 = vld [vmem:[%s414 + $0x8] sm:$0xff]
  %v417 = vld [vmem:[%s414 + $0x10] sm:$0xff]
  %v418 = vld [vmem:[%s414 + $0x18] sm:$0xff]
  %v420 = vsel %vm267, %v255, 0
  %422 = vmatprep.subr.mxu0 0.0
  %423 = vmatpush1.msra.mxu0 %v415
  %424 = vmatprep.subr.mxu0 0.0
  %425 = vmatpush1.msra.mxu0 %v416
  %426 = vmatprep.subr.mxu0 0.0
  %427 = vmatpush1.msra.mxu0 %v417
  %428 = vmatprep.subr.mxu0 0.0
  %429 = vmatpush1.msra.mxu0 %v418
  %430 = vmatprep.subr.mxu0 0.0
  %431 = vmatpush1.msra.mxu0 0.0
  %432 = vmatprep.subr.mxu0 0.0
  %433 = vmatpush1.msra.mxu0 0.0
  %434 = vmatprep.subr.mxu0 0.0
  %435 = vmatpush1.msra.mxu0 0.0
  %436 = vmatprep.subr.mxu0 0.0
  %437 = vmatpush1.msra.mxu0 0.0
  %438 = vmatprep.subr.mxu0 0.0
  %439 = vmatpush1.msra.mxu0 0.0
  %440 = vmatprep.subr.mxu0 0.0
  %441 = vmatpush1.msra.mxu0 0.0
  %442 = vmatprep.subr.mxu0 0.0
  %443 = vmatpush1.msra.mxu0 0.0
  %444 = vmatprep.subr.mxu0 0.0
  %445 = vmatpush1.msra.mxu0 0.0
  %446 = vmatprep.subr.mxu0 0.0
  %447 = vmatpush1.msra.mxu0 0.0
  %448 = vmatprep.subr.mxu0 0.0
  %449 = vmatpush1.msra.mxu0 0.0
  %450 = vmatprep.subr.mxu0 0.0
  %451 = vmatpush1.msra.mxu0 0.0
  %452 = vmatprep.subr.mxu0 0.0
  %453 = vmatpush1.msra.mxu0 0.0
  %454 = vmatprep.subr.mxu0 0.0
  %455 = vmatpush1.msra.mxu0 0.0
  %456 = vmatprep.subr.mxu0 0.0
  %457 = vmatpush1.msra.mxu0 0.0
  %458 = vmatprep.subr.mxu0 0.0
  %459 = vmatpush1.msra.mxu0 0.0
  %460 = vmatprep.subr.mxu0 0.0
  %461 = vmatpush1.msra.mxu0 0.0
  %462 = vmatprep.subr.mxu0 0.0
  %463 = vmatpush1.msra.mxu0 0.0
  %464 = vmatprep.subr.mxu0 0.0
  %465 = vmatpush1.msra.mxu0 0.0
  %466 = vmatprep.subr.mxu0 0.0
  %467 = vmatpush1.msra.mxu0 0.0
  %468 = vmatprep.subr.mxu0 0.0
  %469 = vmatpush1.msra.mxu0 0.0
  %470 = vmatprep.subr.mxu0 0.0
  %471 = vmatpush1.msra.mxu0 0.0
  %472 = vmatprep.subr.mxu0 0.0
  %473 = vmatpush1.msra.mxu0 0.0
  %474 = vmatprep.subr.mxu0 0.0
  %475 = vmatpush1.msra.mxu0 0.0
  %476 = vmatprep.subr.mxu0 0.0
  %477 = vmatpush1.msra.mxu0 0.0
  %478 = vmatprep.subr.mxu0 0.0
  %479 = vmatpush1.msra.mxu0 0.0
  %480 = vmatprep.subr.mxu0 0.0
  %481 = vmatpush1.msra.mxu0 0.0
  %482 = vmatprep.subr.mxu0 0.0
  %483 = vmatpush1.msra.mxu0 0.0
  %484 = vmatprep.subr.mxu0 0.0
  %485 = vmatpush1.msra.mxu0 0.0
  %486 = vmatprep.mubr.f32.mxu0 0.0
  %487 = vmatmul.mubr.f32.gmra.mrb[0].mxu0 %v420
  %v488 = vpop.f32.mrb[0].mxu0
  %v489 = vadd.f32 0.0, %v488
  %v490 = vpop.f32.mrb[0].mxu0
  %491 = vdwg.mxu0
  %v492 = vadd.f32 %v411, %v489
  %v493 = vld [vmem:[%s4] sm:$0xff]
  %v494 = vadd.f32 %v492, %v493
  %v495 = vld [vmem:[%s5] sm:$0xff]
  %v496 = vld [vmem:[%s5 + $0x8] sm:$0xff]
  %v497 = vld [vmem:[%s5 + $0x10] sm:$0xff]
  %v498 = vld [vmem:[%s5 + $0x18] sm:$0xff]
  %s499 = scalar_lea.vmem %s5, 32
  %v500 = vld [vmem:[%s499] sm:$0xff]
  %v501 = vld [vmem:[%s499 + $0x8] sm:$0xff]
  %v502 = vld [vmem:[%s499 + $0x10] sm:$0xff]
  %v503 = vld [vmem:[%s499 + $0x18] sm:$0xff]
  %504 = vmatprep.subr.mxu0 0.0
  %505 = vmatpush1.msra.mxu0 %v500
  %506 = vmatprep.subr.mxu0 0.0
  %507 = vmatpush1.msra.mxu0 %v501
  %508 = vmatprep.subr.mxu0 0.0
  %509 = vmatpush1.msra.mxu0 %v502
  %510 = vmatprep.subr.mxu0 0.0
  %511 = vmatpush1.msra.mxu0 %v503
  %512 = vmatprep.subr.mxu0 0.0
  %513 = vmatpush1.msra.mxu0 0.0
  %514 = vmatprep.subr.mxu0 0.0
  %515 = vmatpush1.msra.mxu0 0.0
  %516 = vmatprep.subr.mxu0 0.0
  %517 = vmatpush1.msra.mxu0 0.0
  %518 = vmatprep.subr.mxu0 0.0
  %519 = vmatpush1.msra.mxu0 0.0
  %520 = vmatprep.subr.mxu0 0.0
  %521 = vmatpush1.msra.mxu0 0.0
  %522 = vmatprep.subr.mxu0 0.0
  %523 = vmatpush1.msra.mxu0 0.0
  %524 = vmatprep.subr.mxu0 0.0
  %525 = vmatpush1.msra.mxu0 0.0
  %526 = vmatprep.subr.mxu0 0.0
  %527 = vmatpush1.msra.mxu0 0.0
  %528 = vmatprep.subr.mxu0 0.0
  %529 = vmatpush1.msra.mxu0 0.0
  %530 = vmatprep.subr.mxu0 0.0
  %531 = vmatpush1.msra.mxu0 0.0
  %532 = vmatprep.subr.mxu0 0.0
  %533 = vmatpush1.msra.mxu0 0.0
  %534 = vmatprep.subr.mxu0 0.0
  %535 = vmatpush1.msra.mxu0 0.0
  %536 = vmatprep.subr.mxu0 0.0
  %537 = vmatpush1.msra.mxu0 0.0
  %538 = vmatprep.subr.mxu0 0.0
  %539 = vmatpush1.msra.mxu0 0.0
  %540 = vmatprep.subr.mxu0 0.0
  %541 = vmatpush1.msra.mxu0 0.0
  %542 = vmatprep.subr.mxu0 0.0
  %543 = vmatpush1.msra.mxu0 0.0
  %544 = vmatprep.subr.mxu0 0.0
  %545 = vmatpush1.msra.mxu0 0.0
  %546 = vmatprep.subr.mxu0 0.0
  %547 = vmatpush1.msra.mxu0 0.0
  %548 = vmatprep.subr.mxu0 0.0
  %549 = vmatpush1.msra.mxu0 0.0
  %550 = vmatprep.subr.mxu0 0.0
  %551 = vmatpush1.msra.mxu0 0.0
  %552 = vmatprep.subr.mxu0 0.0
  %553 = vmatpush1.msra.mxu0 0.0
  %554 = vmatprep.subr.mxu0 0.0
  %555 = vmatpush1.msra.mxu0 0.0
  %556 = vmatprep.subr.mxu0 0.0
  %557 = vmatpush1.msra.mxu0 0.0
  %558 = vmatprep.subr.mxu0 0.0
  %559 = vmatpush1.msra.mxu0 0.0
  %560 = vmatprep.subr.mxu0 0.0
  %561 = vmatpush1.msra.mxu0 0.0
  %562 = vmatprep.subr.mxu0 0.0
  %563 = vmatpush1.msra.mxu0 0.0
  %564 = vmatprep.subr.mxu0 0.0
  %565 = vmatpush1.msra.mxu0 0.0
  %566 = vmatprep.subr.mxu0 0.0
  %567 = vmatpush1.msra.mxu0 0.0
  %568 = vmatprep.mubr.f32.mxu0 0.0
  %569 = vmatmul.mubr.f32.gmra.mrb[0].mxu0 %v269
  %v570 = vpop.f32.mrb[0].mxu0
  %v571 = vadd.f32 0.0, %v570
  %v572 = vpop.f32.mrb[0].mxu0
  %573 = vdwg.mxu0
  %574 = vmatprep.subr.mxu0 0.0
  %575 = vmatpush1.msra.mxu0 %v495
  %576 = vmatprep.subr.mxu0 0.0
  %577 = vmatpush1.msra.mxu0 %v496
  %578 = vmatprep.subr.mxu0 0.0
  %579 = vmatpush1.msra.mxu0 %v497
  %580 = vmatprep.subr.mxu0 0.0
  %581 = vmatpush1.msra.mxu0 %v498
  %582 = vmatprep.subr.mxu0 0.0
  %583 = vmatpush1.msra.mxu0 0.0
  %584 = vmatprep.subr.mxu0 0.0
  %585 = vmatpush1.msra.mxu0 0.0
  %586 = vmatprep.subr.mxu0 0.0
  %587 = vmatpush1.msra.mxu0 0.0
  %588 = vmatprep.subr.mxu0 0.0
  %589 = vmatpush1.msra.mxu0 0.0
  %590 = vmatprep.subr.mxu0 0.0
  %591 = vmatpush1.msra.mxu0 0.0
  %592 = vmatprep.subr.mxu0 0.0
  %593 = vmatpush1.msra.mxu0 0.0
  %594 = vmatprep.subr.mxu0 0.0
  %595 = vmatpush1.msra.mxu0 0.0
  %596 = vmatprep.subr.mxu0 0.0
  %597 = vmatpush1.msra.mxu0 0.0
  %598 = vmatprep.subr.mxu0 0.0
  %599 = vmatpush1.msra.mxu0 0.0
  %600 = vmatprep.subr.mxu0 0.0
  %601 = vmatpush1.msra.mxu0 0.0
  %602 = vmatprep.subr.mxu0 0.0
  %603 = vmatpush1.msra.mxu0 0.0
  %604 = vmatprep.subr.mxu0 0.0
  %605 = vmatpush1.msra.mxu0 0.0
  %606 = vmatprep.subr.mxu0 0.0
  %607 = vmatpush1.msra.mxu0 0.0
  %608 = vmatprep.subr.mxu0 0.0
  %609 = vmatpush1.msra.mxu0 0.0
  %610 = vmatprep.subr.mxu0 0.0
  %611 = vmatpush1.msra.mxu0 0.0
  %612 = vmatprep.subr.mxu0 0.0
  %613 = vmatpush1.msra.mxu0 0.0
  %614 = vmatprep.subr.mxu0 0.0
  %615 = vmatpush1.msra.mxu0 0.0
  %616 = vmatprep.subr.mxu0 0.0
  %617 = vmatpush1.msra.mxu0 0.0
  %618 = vmatprep.subr.mxu0 0.0
  %619 = vmatpush1.msra.mxu0 0.0
  %620 = vmatprep.subr.mxu0 0.0
  %621 = vmatpush1.msra.mxu0 0.0
  %622 = vmatprep.subr.mxu0 0.0
  %623 = vmatpush1.msra.mxu0 0.0
  %624 = vmatprep.subr.mxu0 0.0
  %625 = vmatpush1.msra.mxu0 0.0
  %626 = vmatprep.subr.mxu0 0.0
  %627 = vmatpush1.msra.mxu0 0.0
  %628 = vmatprep.subr.mxu0 0.0
  %629 = vmatpush1.msra.mxu0 0.0
  %630 = vmatprep.subr.mxu0 0.0
  %631 = vmatpush1.msra.mxu0 0.0
  %632 = vmatprep.subr.mxu0 0.0
  %633 = vmatpush1.msra.mxu0 0.0
  %634 = vmatprep.subr.mxu0 0.0
  %635 = vmatpush1.msra.mxu0 0.0
  %636 = vmatprep.subr.mxu0 0.0
  %637 = vmatpush1.msra.mxu0 0.0
  %638 = vmatprep.mubr.f32.mxu0 0.0
  %639 = vmatmul.mubr.f32.gmra.mrb[0].mxu0 %v342
  %v640 = vpop.f32.mrb[0].mxu0
  %v641 = vadd.f32 %v571, %v640
  %v642 = vpop.f32.mrb[0].mxu0
  %643 = vdwg.mxu0
  %s644 = scalar_lea.vmem %s5, 64
  %v645 = vld [vmem:[%s644] sm:$0xff]
  %v646 = vld [vmem:[%s644 + $0x8] sm:$0xff]
  %v647 = vld [vmem:[%s644 + $0x10] sm:$0xff]
  %v648 = vld [vmem:[%s644 + $0x18] sm:$0xff]
  %649 = vmatprep.subr.mxu0 0.0
  %650 = vmatpush1.msra.mxu0 %v645
  %651 = vmatprep.subr.mxu0 0.0
  %652 = vmatpush1.msra.mxu0 %v646
  %653 = vmatprep.subr.mxu0 0.0
  %654 = vmatpush1.msra.mxu0 %v647
  %655 = vmatprep.subr.mxu0 0.0
  %656 = vmatpush1.msra.mxu0 %v648
  %657 = vmatprep.subr.mxu0 0.0
  %658 = vmatpush1.msra.mxu0 0.0
  %659 = vmatprep.subr.mxu0 0.0
  %660 = vmatpush1.msra.mxu0 0.0
  %661 = vmatprep.subr.mxu0 0.0
  %662 = vmatpush1.msra.mxu0 0.0
  %663 = vmatprep.subr.mxu0 0.0
  %664 = vmatpush1.msra.mxu0 0.0
  %665 = vmatprep.subr.mxu0 0.0
  %666 = vmatpush1.msra.mxu0 0.0
  %667 = vmatprep.subr.mxu0 0.0
  %668 = vmatpush1.msra.mxu0 0.0
  %669 = vmatprep.subr.mxu0 0.0
  %670 = vmatpush1.msra.mxu0 0.0
  %671 = vmatprep.subr.mxu0 0.0
  %672 = vmatpush1.msra.mxu0 0.0
  %673 = vmatprep.subr.mxu0 0.0
  %674 = vmatpush1.msra.mxu0 0.0
  %675 = vmatprep.subr.mxu0 0.0
  %676 = vmatpush1.msra.mxu0 0.0
  %677 = vmatprep.subr.mxu0 0.0
  %678 = vmatpush1.msra.mxu0 0.0
  %679 = vmatprep.subr.mxu0 0.0
  %680 = vmatpush1.msra.mxu0 0.0
  %681 = vmatprep.subr.mxu0 0.0
  %682 = vmatpush1.msra.mxu0 0.0
  %683 = vmatprep.subr.mxu0 0.0
  %684 = vmatpush1.msra.mxu0 0.0
  %685 = vmatprep.subr.mxu0 0.0
  %686 = vmatpush1.msra.mxu0 0.0
  %687 = vmatprep.subr.mxu0 0.0
  %688 = vmatpush1.msra.mxu0 0.0
  %689 = vmatprep.subr.mxu0 0.0
  %690 = vmatpush1.msra.mxu0 0.0
  %691 = vmatprep.subr.mxu0 0.0
  %692 = vmatpush1.msra.mxu0 0.0
  %693 = vmatprep.subr.mxu0 0.0
  %694 = vmatpush1.msra.mxu0 0.0
  %695 = vmatprep.subr.mxu0 0.0
  %696 = vmatpush1.msra.mxu0 0.0
  %697 = vmatprep.subr.mxu0 0.0
  %698 = vmatpush1.msra.mxu0 0.0
  %699 = vmatprep.subr.mxu0 0.0
  %700 = vmatpush1.msra.mxu0 0.0
  %701 = vmatprep.subr.mxu0 0.0
  %702 = vmatpush1.msra.mxu0 0.0
  %703 = vmatprep.subr.mxu0 0.0
  %704 = vmatpush1.msra.mxu0 0.0
  %705 = vmatprep.subr.mxu0 0.0
  %706 = vmatpush1.msra.mxu0 0.0
  %707 = vmatprep.subr.mxu0 0.0
  %708 = vmatpush1.msra.mxu0 0.0
  %709 = vmatprep.subr.mxu0 0.0
  %710 = vmatpush1.msra.mxu0 0.0
  %711 = vmatprep.subr.mxu0 0.0
  %712 = vmatpush1.msra.mxu0 0.0
  %713 = vmatprep.mubr.f32.mxu0 0.0
  %714 = vmatmul.mubr.f32.gmra.mrb[0].mxu0 %v420
  %v715 = vpop.f32.mrb[0].mxu0
  %v716 = vadd.f32 0.0, %v715
  %v717 = vpop.f32.mrb[0].mxu0
  %718 = vdwg.mxu0
  %v719 = vadd.f32 %v641, %v716
  %v720 = vld [vmem:[%s6] sm:$0xff]
  %v721 = vadd.f32 %v719, %v720
  %v722 = vmax.f32 %v494, 0.0
  %v723 = vld [vmem:[%s2] sm:$0xff]
  %v725 = vsel %vm34, %v723, 0
  %727 = vmatprep.subr.mxu0 0.0
  %728 = vmatpush1.msra.mxu0 %v722
  %729 = vmatprep.subr.mxu0 0.0
  %730 = vmatpush1.msra.mxu0 0.0
  %731 = vmatprep.subr.mxu0 0.0
  %732 = vmatpush1.msra.mxu0 0.0
  %733 = vmatprep.subr.mxu0 0.0
  %734 = vmatpush1.msra.mxu0 0.0
  %735 = vmatprep.subr.mxu0 0.0
  %736 = vmatpush1.msra.mxu0 0.0
  %737 = vmatprep.subr.mxu0 0.0
  %738 = vmatpush1.msra.mxu0 0.0
  %739 = vmatprep.subr.mxu0 0.0
  %740 = vmatpush1.msra.mxu0 0.0
  %741 = vmatprep.subr.mxu0 0.0
  %742 = vmatpush1.msra.mxu0 0.0
  %743 = vmatprep.subr.mxu0 0.0
  %744 = vmatpush1.msra.mxu0 0.0
  %745 = vmatprep.subr.mxu0 0.0
  %746 = vmatpush1.msra.mxu0 0.0
  %747 = vmatprep.subr.mxu0 0.0
  %748 = vmatpush1.msra.mxu0 0.0
  %749 = vmatprep.subr.mxu0 0.0
  %750 = vmatpush1.msra.mxu0 0.0
  %751 = vmatprep.subr.mxu0 0.0
  %752 = vmatpush1.msra.mxu0 0.0
  %753 = vmatprep.subr.mxu0 0.0
  %754 = vmatpush1.msra.mxu0 0.0
  %755 = vmatprep.subr.mxu0 0.0
  %756 = vmatpush1.msra.mxu0 0.0
  %757 = vmatprep.subr.mxu0 0.0
  %758 = vmatpush1.msra.mxu0 0.0
  %759 = vmatprep.subr.mxu0 0.0
  %760 = vmatpush1.msra.mxu0 0.0
  %761 = vmatprep.subr.mxu0 0.0
  %762 = vmatpush1.msra.mxu0 0.0
  %763 = vmatprep.subr.mxu0 0.0
  %764 = vmatpush1.msra.mxu0 0.0
  %765 = vmatprep.subr.mxu0 0.0
  %766 = vmatpush1.msra.mxu0 0.0
  %767 = vmatprep.subr.mxu0 0.0
  %768 = vmatpush1.msra.mxu0 0.0
  %769 = vmatprep.subr.mxu0 0.0
  %770 = vmatpush1.msra.mxu0 0.0
  %771 = vmatprep.subr.mxu0 0.0
  %772 = vmatpush1.msra.mxu0 0.0
  %773 = vmatprep.subr.mxu0 0.0
  %774 = vmatpush1.msra.mxu0 0.0
  %775 = vmatprep.subr.mxu0 0.0
  %776 = vmatpush1.msra.mxu0 0.0
  %777 = vmatprep.subr.mxu0 0.0
  %778 = vmatpush1.msra.mxu0 0.0
  %779 = vmatprep.subr.mxu0 0.0
  %780 = vmatpush1.msra.mxu0 0.0
  %781 = vmatprep.subr.mxu0 0.0
  %782 = vmatpush1.msra.mxu0 0.0
  %783 = vmatprep.subr.mxu0 0.0
  %784 = vmatpush1.msra.mxu0 0.0
  %785 = vmatprep.subr.mxu0 0.0
  %786 = vmatpush1.msra.mxu0 0.0
  %787 = vmatprep.subr.mxu0 0.0
  %788 = vmatpush1.msra.mxu0 0.0
  %789 = vmatprep.subr.mxu0 0.0
  %790 = vmatpush1.msra.mxu0 0.0
  %791 = vmatprep.mubr.f32.mxu0 0.0
  %792 = vmatmul.mubr.f32.gmra.mrb[0].mxu0 %v725
  %v793 = vpop.f32.mrb[0].mxu0
  %v794 = vadd.f32 0.0, %v793
  %v795 = vpop.f32.mrb[0].mxu0
  %796 = vdwg.mxu0
  %s797 = scalar_lea.vmem %s2, 16
  %v798 = vld [vmem:[%s797] sm:$0xff]
  %v800 = vsel %vm34, %v798, 0
  %802 = vmatprep.subr.mxu0 0.0
  %803 = vmatpush1.msra.mxu0 %v722
  %804 = vmatprep.subr.mxu0 0.0
  %805 = vmatpush1.msra.mxu0 0.0
  %806 = vmatprep.subr.mxu0 0.0
  %807 = vmatpush1.msra.mxu0 0.0
  %808 = vmatprep.subr.mxu0 0.0
  %809 = vmatpush1.msra.mxu0 0.0
  %810 = vmatprep.subr.mxu0 0.0
  %811 = vmatpush1.msra.mxu0 0.0
  %812 = vmatprep.subr.mxu0 0.0
  %813 = vmatpush1.msra.mxu0 0.0
  %814 = vmatprep.subr.mxu0 0.0
  %815 = vmatpush1.msra.mxu0 0.0
  %816 = vmatprep.subr.mxu0 0.0
  %817 = vmatpush1.msra.mxu0 0.0
  %818 = vmatprep.subr.mxu0 0.0
  %819 = vmatpush1.msra.mxu0 0.0
  %820 = vmatprep.subr.mxu0 0.0
  %821 = vmatpush1.msra.mxu0 0.0
  %822 = vmatprep.subr.mxu0 0.0
  %823 = vmatpush1.msra.mxu0 0.0
  %824 = vmatprep.subr.mxu0 0.0
  %825 = vmatpush1.msra.mxu0 0.0
  %826 = vmatprep.subr.mxu0 0.0
  %827 = vmatpush1.msra.mxu0 0.0
  %828 = vmatprep.subr.mxu0 0.0
  %829 = vmatpush1.msra.mxu0 0.0
  %830 = vmatprep.subr.mxu0 0.0
  %831 = vmatpush1.msra.mxu0 0.0
  %832 = vmatprep.subr.mxu0 0.0
  %833 = vmatpush1.msra.mxu0 0.0
  %834 = vmatprep.subr.mxu0 0.0
  %835 = vmatpush1.msra.mxu0 0.0
  %836 = vmatprep.subr.mxu0 0.0
  %837 = vmatpush1.msra.mxu0 0.0
  %838 = vmatprep.subr.mxu0 0.0
  %839 = vmatpush1.msra.mxu0 0.0
  %840 = vmatprep.subr.mxu0 0.0
  %841 = vmatpush1.msra.mxu0 0.0
  %842 = vmatprep.subr.mxu0 0.0
  %843 = vmatpush1.msra.mxu0 0.0
  %844 = vmatprep.subr.mxu0 0.0
  %845 = vmatpush1.msra.mxu0 0.0
  %846 = vmatprep.subr.mxu0 0.0
  %847 = vmatpush1.msra.mxu0 0.0
  %848 = vmatprep.subr.mxu0 0.0
  %849 = vmatpush1.msra.mxu0 0.0
  %850 = vmatprep.subr.mxu0 0.0
  %851 = vmatpush1.msra.mxu0 0.0
  %852 = vmatprep.subr.mxu0 0.0
  %853 = vmatpush1.msra.mxu0 0.0
  %854 = vmatprep.subr.mxu0 0.0
  %855 = vmatpush1.msra.mxu0 0.0
  %856 = vmatprep.subr.mxu0 0.0
  %857 = vmatpush1.msra.mxu0 0.0
  %858 = vmatprep.subr.mxu0 0.0
  %859 = vmatpush1.msra.mxu0 0.0
  %860 = vmatprep.subr.mxu0 0.0
  %861 = vmatpush1.msra.mxu0 0.0
  %862 = vmatprep.subr.mxu0 0.0
  %863 = vmatpush1.msra.mxu0 0.0
  %864 = vmatprep.subr.mxu0 0.0
  %865 = vmatpush1.msra.mxu0 0.0
  %866 = vmatprep.mubr.f32.mxu0 0.0
  %867 = vmatmul.mubr.f32.gmra.mrb[0].mxu0 %v800
  %v868 = vpop.f32.mrb[0].mxu0
  %v869 = vadd.f32 0.0, %v868
  %v870 = vpop.f32.mrb[0].mxu0
  %871 = vdwg.mxu0
  %v872 = vld [vmem:[%s7] sm:$0xff]
  %v873 = vld [vmem:[%s7 + $0x8] sm:$0xff]
  %v874 = vld [vmem:[%s7 + $0x10] sm:$0xff]
  %v875 = vld [vmem:[%s7 + $0x18] sm:$0xff]
  %v876 = vld [vmem:[%s7 + $0x20] sm:$0xff]
  %v877 = vld [vmem:[%s7 + $0x28] sm:$0xff]
  %v878 = vld [vmem:[%s7 + $0x30] sm:$0xff]
  %v879 = vld [vmem:[%s7 + $0x38] sm:$0xff]
  %s880 = scalar_lea.vmem %s7, 64
  %v881 = vld [vmem:[%s880] sm:$0xff]
  %v882 = vld [vmem:[%s880 + $0x8] sm:$0xff]
  %v883 = vld [vmem:[%s880 + $0x10] sm:$0xff]
  %v884 = vld [vmem:[%s880 + $0x18] sm:$0xff]
  %v885 = vld [vmem:[%s880 + $0x20] sm:$0xff]
  %v886 = vld [vmem:[%s880 + $0x28] sm:$0xff]
  %v887 = vld [vmem:[%s880 + $0x30] sm:$0xff]
  %v888 = vld [vmem:[%s880 + $0x38] sm:$0xff]
  %vm889 = vcmask 523264
  %v891 = vsel %vm889, %v722, 0
  %893 = vmatprep.subr.mxu0 0.0
  %894 = vmatpush1.msra.mxu0 %v881
  %895 = vmatprep.subr.mxu0 0.0
  %896 = vmatpush1.msra.mxu0 %v882
  %897 = vmatprep.subr.mxu0 0.0
  %898 = vmatpush1.msra.mxu0 %v883
  %899 = vmatprep.subr.mxu0 0.0
  %900 = vmatpush1.msra.mxu0 %v884
  %901 = vmatprep.subr.mxu0 0.0
  %902 = vmatpush1.msra.mxu0 %v885
  %903 = vmatprep.subr.mxu0 0.0
  %904 = vmatpush1.msra.mxu0 %v886
  %905 = vmatprep.subr.mxu0 0.0
  %906 = vmatpush1.msra.mxu0 %v887
  %907 = vmatprep.subr.mxu0 0.0
  %908 = vmatpush1.msra.mxu0 %v888
  %909 = vmatprep.subr.mxu0 0.0
  %910 = vmatpush1.msra.mxu0 0.0
  %911 = vmatprep.subr.mxu0 0.0
  %912 = vmatpush1.msra.mxu0 0.0
  %913 = vmatprep.subr.mxu0 0.0
  %914 = vmatpush1.msra.mxu0 0.0
  %915 = vmatprep.subr.mxu0 0.0
  %916 = vmatpush1.msra.mxu0 0.0
  %917 = vmatprep.subr.mxu0 0.0
  %918 = vmatpush1.msra.mxu0 0.0
  %919 = vmatprep.subr.mxu0 0.0
  %920 = vmatpush1.msra.mxu0 0.0
  %921 = vmatprep.subr.mxu0 0.0
  %922 = vmatpush1.msra.mxu0 0.0
  %923 = vmatprep.subr.mxu0 0.0
  %924 = vmatpush1.msra.mxu0 0.0
  %925 = vmatprep.subr.mxu0 0.0
  %926 = vmatpush1.msra.mxu0 0.0
  %927 = vmatprep.subr.mxu0 0.0
  %928 = vmatpush1.msra.mxu0 0.0
  %929 = vmatprep.subr.mxu0 0.0
  %930 = vmatpush1.msra.mxu0 0.0
  %931 = vmatprep.subr.mxu0 0.0
  %932 = vmatpush1.msra.mxu0 0.0
  %933 = vmatprep.subr.mxu0 0.0
  %934 = vmatpush1.msra.mxu0 0.0
  %935 = vmatprep.subr.mxu0 0.0
  %936 = vmatpush1.msra.mxu0 0.0
  %937 = vmatprep.subr.mxu0 0.0
  %938 = vmatpush1.msra.mxu0 0.0
  %939 = vmatprep.subr.mxu0 0.0
  %940 = vmatpush1.msra.mxu0 0.0
  %941 = vmatprep.subr.mxu0 0.0
  %942 = vmatpush1.msra.mxu0 0.0
  %943 = vmatprep.subr.mxu0 0.0
  %944 = vmatpush1.msra.mxu0 0.0
  %945 = vmatprep.subr.mxu0 0.0
  %946 = vmatpush1.msra.mxu0 0.0
  %947 = vmatprep.subr.mxu0 0.0
  %948 = vmatpush1.msra.mxu0 0.0
  %949 = vmatprep.subr.mxu0 0.0
  %950 = vmatpush1.msra.mxu0 0.0
  %951 = vmatprep.subr.mxu0 0.0
  %952 = vmatpush1.msra.mxu0 0.0
  %953 = vmatprep.subr.mxu0 0.0
  %954 = vmatpush1.msra.mxu0 0.0
  %955 = vmatprep.subr.mxu0 0.0
  %956 = vmatpush1.msra.mxu0 0.0
  %957 = vmatprep.mubr.f32.mxu0 0.0
  %958 = vmatmul.mubr.f32.gmra.mrb[0].mxu0 %v891
  %v959 = vpop.f32.mrb[0].mxu0
  %v960 = vadd.f32 0.0, %v959
  %v961 = vpop.f32.mrb[0].mxu0
  %962 = vdwg.mxu0
  %v964 = vsel %vm889, %v794, 0
  %966 = vmatprep.subr.mxu0 0.0
  %967 = vmatpush1.msra.mxu0 %v872
  %968 = vmatprep.subr.mxu0 0.0
  %969 = vmatpush1.msra.mxu0 %v873
  %970 = vmatprep.subr.mxu0 0.0
  %971 = vmatpush1.msra.mxu0 %v874
  %972 = vmatprep.subr.mxu0 0.0
  %973 = vmatpush1.msra.mxu0 %v875
  %974 = vmatprep.subr.mxu0 0.0
  %975 = vmatpush1.msra.mxu0 %v876
  %976 = vmatprep.subr.mxu0 0.0
  %977 = vmatpush1.msra.mxu0 %v877
  %978 = vmatprep.subr.mxu0 0.0
  %979 = vmatpush1.msra.mxu0 %v878
  %980 = vmatprep.subr.mxu0 0.0
  %981 = vmatpush1.msra.mxu0 %v879
  %982 = vmatprep.subr.mxu0 0.0
  %983 = vmatpush1.msra.mxu0 0.0
  %984 = vmatprep.subr.mxu0 0.0
  %985 = vmatpush1.msra.mxu0 0.0
  %986 = vmatprep.subr.mxu0 0.0
  %987 = vmatpush1.msra.mxu0 0.0
  %988 = vmatprep.subr.mxu0 0.0
  %989 = vmatpush1.msra.mxu0 0.0
  %990 = vmatprep.subr.mxu0 0.0
  %991 = vmatpush1.msra.mxu0 0.0
  %992 = vmatprep.subr.mxu0 0.0
  %993 = vmatpush1.msra.mxu0 0.0
  %994 = vmatprep.subr.mxu0 0.0
  %995 = vmatpush1.msra.mxu0 0.0
  %996 = vmatprep.subr.mxu0 0.0
  %997 = vmatpush1.msra.mxu0 0.0
  %998 = vmatprep.subr.mxu0 0.0
  %999 = vmatpush1.msra.mxu0 0.0
  %1000 = vmatprep.subr.mxu0 0.0
  %1001 = vmatpush1.msra.mxu0 0.0
  %1002 = vmatprep.subr.mxu0 0.0
  %1003 = vmatpush1.msra.mxu0 0.0
  %1004 = vmatprep.subr.mxu0 0.0
  %1005 = vmatpush1.msra.mxu0 0.0
  %1006 = vmatprep.subr.mxu0 0.0
  %1007 = vmatpush1.msra.mxu0 0.0
  %1008 = vmatprep.subr.mxu0 0.0
  %1009 = vmatpush1.msra.mxu0 0.0
  %1010 = vmatprep.subr.mxu0 0.0
  %1011 = vmatpush1.msra.mxu0 0.0
  %1012 = vmatprep.subr.mxu0 0.0
  %1013 = vmatpush1.msra.mxu0 0.0
  %1014 = vmatprep.subr.mxu0 0.0
  %1015 = vmatpush1.msra.mxu0 0.0
  %1016 = vmatprep.subr.mxu0 0.0
  %1017 = vmatpush1.msra.mxu0 0.0
  %1018 = vmatprep.subr.mxu0 0.0
  %1019 = vmatpush1.msra.mxu0 0.0
  %1020 = vmatprep.subr.mxu0 0.0
  %1021 = vmatpush1.msra.mxu0 0.0
  %1022 = vmatprep.subr.mxu0 0.0
  %1023 = vmatpush1.msra.mxu0 0.0
  %1024 = vmatprep.subr.mxu0 0.0
  %1025 = vmatpush1.msra.mxu0 0.0
  %1026 = vmatprep.subr.mxu0 0.0
  %1027 = vmatpush1.msra.mxu0 0.0
  %1028 = vmatprep.subr.mxu0 0.0
  %1029 = vmatpush1.msra.mxu0 0.0
  %1030 = vmatprep.mubr.f32.mxu0 0.0
  %1031 = vmatmul.mubr.f32.gmra.mrb[0].mxu0 %v964
  %v1032 = vpop.f32.mrb[0].mxu0
  %v1033 = vadd.f32 %v960, %v1032
  %v1034 = vpop.f32.mrb[0].mxu0
  %1035 = vdwg.mxu0
  %s1036 = scalar_lea.vmem %s7, 128
  %v1037 = vld [vmem:[%s1036] sm:$0xff]
  %v1038 = vld [vmem:[%s1036 + $0x8] sm:$0xff]
  %v1039 = vld [vmem:[%s1036 + $0x10] sm:$0xff]
  %v1040 = vld [vmem:[%s1036 + $0x18] sm:$0xff]
  %v1041 = vld [vmem:[%s1036 + $0x20] sm:$0xff]
  %v1042 = vld [vmem:[%s1036 + $0x28] sm:$0xff]
  %v1043 = vld [vmem:[%s1036 + $0x30] sm:$0xff]
  %v1044 = vld [vmem:[%s1036 + $0x38] sm:$0xff]
  %v1046 = vsel %vm889, %v869, 0
  %1048 = vmatprep.subr.mxu0 0.0
  %1049 = vmatpush1.msra.mxu0 %v1037
  %1050 = vmatprep.subr.mxu0 0.0
  %1051 = vmatpush1.msra.mxu0 %v1038
  %1052 = vmatprep.subr.mxu0 0.0
  %1053 = vmatpush1.msra.mxu0 %v1039
  %1054 = vmatprep.subr.mxu0 0.0
  %1055 = vmatpush1.msra.mxu0 %v1040
  %1056 = vmatprep.subr.mxu0 0.0
  %1057 = vmatpush1.msra.mxu0 %v1041
  %1058 = vmatprep.subr.mxu0 0.0
  %1059 = vmatpush1.msra.mxu0 %v1042
  %1060 = vmatprep.subr.mxu0 0.0
  %1061 = vmatpush1.msra.mxu0 %v1043
  %1062 = vmatprep.subr.mxu0 0.0
  %1063 = vmatpush1.msra.mxu0 %v1044
  %1064 = vmatprep.subr.mxu0 0.0
  %1065 = vmatpush1.msra.mxu0 0.0
  %1066 = vmatprep.subr.mxu0 0.0
  %1067 = vmatpush1.msra.mxu0 0.0
  %1068 = vmatprep.subr.mxu0 0.0
  %1069 = vmatpush1.msra.mxu0 0.0
  %1070 = vmatprep.subr.mxu0 0.0
  %1071 = vmatpush1.msra.mxu0 0.0
  %1072 = vmatprep.subr.mxu0 0.0
  %1073 = vmatpush1.msra.mxu0 0.0
  %1074 = vmatprep.subr.mxu0 0.0
  %1075 = vmatpush1.msra.mxu0 0.0
  %1076 = vmatprep.subr.mxu0 0.0
  %1077 = vmatpush1.msra.mxu0 0.0
  %1078 = vmatprep.subr.mxu0 0.0
  %1079 = vmatpush1.msra.mxu0 0.0
  %1080 = vmatprep.subr.mxu0 0.0
  %1081 = vmatpush1.msra.mxu0 0.0
  %1082 = vmatprep.subr.mxu0 0.0
  %1083 = vmatpush1.msra.mxu0 0.0
  %1084 = vmatprep.subr.mxu0 0.0
  %1085 = vmatpush1.msra.mxu0 0.0
  %1086 = vmatprep.subr.mxu0 0.0
  %1087 = vmatpush1.msra.mxu0 0.0
  %1088 = vmatprep.subr.mxu0 0.0
  %1089 = vmatpush1.msra.mxu0 0.0
  %1090 = vmatprep.subr.mxu0 0.0
  %1091 = vmatpush1.msra.mxu0 0.0
  %1092 = vmatprep.subr.mxu0 0.0
  %1093 = vmatpush1.msra.mxu0 0.0
  %1094 = vmatprep.subr.mxu0 0.0
  %1095 = vmatpush1.msra.mxu0 0.0
  %1096 = vmatprep.subr.mxu0 0.0
  %1097 = vmatpush1.msra.mxu0 0.0
  %1098 = vmatprep.subr.mxu0 0.0
  %1099 = vmatpush1.msra.mxu0 0.0
  %1100 = vmatprep.subr.mxu0 0.0
  %1101 = vmatpush1.msra.mxu0 0.0
  %1102 = vmatprep.subr.mxu0 0.0
  %1103 = vmatpush1.msra.mxu0 0.0
  %1104 = vmatprep.subr.mxu0 0.0
  %1105 = vmatpush1.msra.mxu0 0.0
  %1106 = vmatprep.subr.mxu0 0.0
  %1107 = vmatpush1.msra.mxu0 0.0
  %1108 = vmatprep.subr.mxu0 0.0
  %1109 = vmatpush1.msra.mxu0 0.0
  %1110 = vmatprep.subr.mxu0 0.0
  %1111 = vmatpush1.msra.mxu0 0.0
  %1112 = vmatprep.mubr.f32.mxu0 0.0
  %1113 = vmatmul.mubr.f32.gmra.mrb[0].mxu0 %v1046
  %v1114 = vpop.f32.mrb[0].mxu0
  %v1115 = vadd.f32 0.0, %v1114
  %v1116 = vpop.f32.mrb[0].mxu0
  %1117 = vdwg.mxu0
  %v1118 = vadd.f32 %v1033, %v1115
  %v1119 = vld [vmem:[%s8] sm:$0xff]
  %v1120 = vadd.f32 %v1118, %v1119
  %v1121 = vadd.f32 %v1120, %v721
  %v1122 = vmax.f32 %v1121, 0.0
  %1123 = vst.msk [vmem:[%s9] sm:$0xff] %vm889, %v1122
  // Predicated region
  $region38: #{model_forward.16} parent=0 // pred_check
    _
  $region39: #{model_forward.16} parent=0 // pred_check_branch
    %1125 = sbr.rel (0) target = $region41
  $region40: #{model_forward.16} parent=0 // pred_region
    _
  $region41: #{model_forward.16} parent=0 // pred_fallthru
    _
  // Predicated region
  $region42: #{model_forward.16} parent=0 // pred_check
    _
  $region43: #{model_forward.16} parent=0 // pred_check_branch
    %1127 = sbr.rel (0) target = $region45
  $region44: #{model_forward.16} parent=0 // pred_region
    _
  $region45: #{model_forward.16} parent=0 // pred_fallthru
    _

// kernel: model_forward.17
$region0: #{model_forward.17}
  #allocation0 [shape = 'u32[]', space=smem, size = 0x4, offset = 0x4, fixed_abs, tag = 'smem constant byte address 0x4 - core index']
  #allocation1 [shape = 'u32[144,128]{1,0:T(1,128)}', space=vmem, size = 0x12000, scoped, tag = 'internal scratch']
  %s0 = inlined_call_operand.vmem [shape: f32[8,32], index: 0, kind: input, shape index: {}]
  %s1 = inlined_call_operand.vmem [shape: f32[32,16], index: 1, kind: input, shape index: {}]
  %s2 = inlined_call_operand.vmem [shape: f32[1,16], index: 2, kind: input, shape index: {}]
  %s3 = inlined_call_operand.vmem [shape: f32[16,10], index: 3, kind: input, shape index: {}]
  %s4 = inlined_call_operand.vmem [shape: f32[1,10], index: 4, kind: input, shape index: {}]
  %s5 = inlined_call_operand.vmem [shape: f32[8,10], index: 5, kind: output, shape index: {}]
  %s6 = sld [smem:[#allocation0]]
  $region30: #{model_forward.17} parent=0
    _
  %s8 = ssub.s32 1, %s6
  %s9 = scalar_select 0, %s8, %s6
  // Predicated region
  $region2: #{model_forward.17} parent=0 // pred_check
    _
  $region3: #{model_forward.17} parent=0 // pred_check_branch
    %11 = sbr.rel (0) target = $region5
  $region4: #{model_forward.17} parent=0 // pred_region
    _
  $region5: #{model_forward.17} parent=0 // pred_fallthru
    _
  // Predicated region
  $region6: #{model_forward.17} parent=0 // pred_check
    _
  $region7: #{model_forward.17} parent=0 // pred_check_branch
    %13 = sbr.rel (0) target = $region9
  $region8: #{model_forward.17} parent=0 // pred_region
    _
  $region9: #{model_forward.17} parent=0 // pred_fallthru
    _
  // Predicated region
  $region10: #{model_forward.17} parent=0 // pred_check
    _
  $region11: #{model_forward.17} parent=0 // pred_check_branch
    %15 = sbr.rel (0) target = $region13
  $region12: #{model_forward.17} parent=0 // pred_region
    _
  $region13: #{model_forward.17} parent=0 // pred_fallthru
    _
  // Predicated region
  $region14: #{model_forward.17} parent=0 // pred_check
    _
  $region15: #{model_forward.17} parent=0 // pred_check_branch
    %17 = sbr.rel (0) target = $region17
  $region16: #{model_forward.17} parent=0 // pred_region
    _
  $region17: #{model_forward.17} parent=0 // pred_fallthru
    _
  // Predicated region
  $region18: #{model_forward.17} parent=0 // pred_check
    _
  $region19: #{model_forward.17} parent=0 // pred_check_branch
    %19 = sbr.rel (0) target = $region21
  $region20: #{model_forward.17} parent=0 // pred_region
    _
  $region21: #{model_forward.17} parent=0 // pred_fallthru
    _
  %v20 = vld [vmem:[%s0] sm:$0xff]
  %v21 = vld [vmem:[%s1] sm:$0xff]
  %v22 = vld [vmem:[%s1 + $0x8] sm:$0xff]
  %v23 = vld [vmem:[%s1 + $0x10] sm:$0xff]
  %v24 = vld [vmem:[%s1 + $0x18] sm:$0xff]
  %v25 = vld [vmem:[%s2] sm:$0x1]
  %v27 = vlaneseq
  %v28 = vshrl.u32 %v27, 7
  %v29 = vsub.s32 0, %v28
  %v30 = vrot.slane %v25, %v29
  %vm32 = vcmask 261120
  %v34 = vsel %vm32, %v20, 0
  %36 = vmatprep.subr.mxu0 0.0
  %37 = vmatpush1.msra.mxu0 %v21
  %38 = vmatprep.subr.mxu0 0.0
  %39 = vmatpush1.msra.mxu0 %v22
  %40 = vmatprep.subr.mxu0 0.0
  %41 = vmatpush1.msra.mxu0 %v23
  %42 = vmatprep.subr.mxu0 0.0
  %43 = vmatpush1.msra.mxu0 %v24
  %44 = vmatprep.subr.mxu0 0.0
  %45 = vmatpush1.msra.mxu0 0.0
  %46 = vmatprep.subr.mxu0 0.0
  %47 = vmatpush1.msra.mxu0 0.0
  %48 = vmatprep.subr.mxu0 0.0
  %49 = vmatpush1.msra.mxu0 0.0
  %50 = vmatprep.subr.mxu0 0.0
  %51 = vmatpush1.msra.mxu0 0.0
  %52 = vmatprep.subr.mxu0 0.0
  %53 = vmatpush1.msra.mxu0 0.0
  %54 = vmatprep.subr.mxu0 0.0
  %55 = vmatpush1.msra.mxu0 0.0
  %56 = vmatprep.subr.mxu0 0.0
  %57 = vmatpush1.msra.mxu0 0.0
  %58 = vmatprep.subr.mxu0 0.0
  %59 = vmatpush1.msra.mxu0 0.0
  %60 = vmatprep.subr.mxu0 0.0
  %61 = vmatpush1.msra.mxu0 0.0
  %62 = vmatprep.subr.mxu0 0.0
  %63 = vmatpush1.msra.mxu0 0.0
  %64 = vmatprep.subr.mxu0 0.0
  %65 = vmatpush1.msra.mxu0 0.0
  %66 = vmatprep.subr.mxu0 0.0
  %67 = vmatpush1.msra.mxu0 0.0
  %68 = vmatprep.subr.mxu0 0.0
  %69 = vmatpush1.msra.mxu0 0.0
  %70 = vmatprep.subr.mxu0 0.0
  %71 = vmatpush1.msra.mxu0 0.0
  %72 = vmatprep.subr.mxu0 0.0
  %73 = vmatpush1.msra.mxu0 0.0
  %74 = vmatprep.subr.mxu0 0.0
  %75 = vmatpush1.msra.mxu0 0.0
  %76 = vmatprep.subr.mxu0 0.0
  %77 = vmatpush1.msra.mxu0 0.0
  %78 = vmatprep.subr.mxu0 0.0
  %79 = vmatpush1.msra.mxu0 0.0
  %80 = vmatprep.subr.mxu0 0.0
  %81 = vmatpush1.msra.mxu0 0.0
  %82 = vmatprep.subr.mxu0 0.0
  %83 = vmatpush1.msra.mxu0 0.0
  %84 = vmatprep.subr.mxu0 0.0
  %85 = vmatpush1.msra.mxu0 0.0
  %86 = vmatprep.subr.mxu0 0.0
  %87 = vmatpush1.msra.mxu0 0.0
  %88 = vmatprep.subr.mxu0 0.0
  %89 = vmatpush1.msra.mxu0 0.0
  %90 = vmatprep.subr.mxu0 0.0
  %91 = vmatpush1.msra.mxu0 0.0
  %92 = vmatprep.subr.mxu0 0.0
  %93 = vmatpush1.msra.mxu0 0.0
  %94 = vmatprep.subr.mxu0 0.0
  %95 = vmatpush1.msra.mxu0 0.0
  %96 = vmatprep.subr.mxu0 0.0
  %97 = vmatpush1.msra.mxu0 0.0
  %98 = vmatprep.subr.mxu0 0.0
  %99 = vmatpush1.msra.mxu0 0.0
  %100 = vmatprep.mubr.f32.mxu0 0.0
  %101 = vmatmul.mubr.f32.gmra.mrb[0].mxu0 %v34
  %v102 = vpop.f32.mrb[0].mxu0
  %v103 = vadd.f32 %v30, %v102
  %v104 = vpop.f32.mrb[0].mxu0
  %105 = vdwg.mxu0
  %v106 = vmax.f32 %v103, 0.0
  %v107 = vld [vmem:[%s3] sm:$0xff]
  %v108 = vld [vmem:[%s3 + $0x8] sm:$0xff]
  %v109 = vld [vmem:[%s4] sm:$0x1]
  %v111 = vlaneseq
  %v112 = vshrl.u32 %v111, 7
  %v113 = vsub.s32 0, %v112
  %v114 = vrot.slane %v109, %v113
  %vm116 = vcmask 130048
  %v118 = vsel %vm116, %v106, 0
  %120 = vmatprep.subr.mxu0 0.0
  %121 = vmatpush1.msra.mxu0 %v107
  %122 = vmatprep.subr.mxu0 0.0
  %123 = vmatpush1.msra.mxu0 %v108
  %124 = vmatprep.subr.mxu0 0.0
  %125 = vmatpush1.msra.mxu0 0.0
  %126 = vmatprep.subr.mxu0 0.0
  %127 = vmatpush1.msra.mxu0 0.0
  %128 = vmatprep.subr.mxu0 0.0
  %129 = vmatpush1.msra.mxu0 0.0
  %130 = vmatprep.subr.mxu0 0.0
  %131 = vmatpush1.msra.mxu0 0.0
  %132 = vmatprep.subr.mxu0 0.0
  %133 = vmatpush1.msra.mxu0 0.0
  %134 = vmatprep.subr.mxu0 0.0
  %135 = vmatpush1.msra.mxu0 0.0
  %136 = vmatprep.subr.mxu0 0.0
  %137 = vmatpush1.msra.mxu0 0.0
  %138 = vmatprep.subr.mxu0 0.0
  %139 = vmatpush1.msra.mxu0 0.0
  %140 = vmatprep.subr.mxu0 0.0
  %141 = vmatpush1.msra.mxu0 0.0
  %142 = vmatprep.subr.mxu0 0.0
  %143 = vmatpush1.msra.mxu0 0.0
  %144 = vmatprep.subr.mxu0 0.0
  %145 = vmatpush1.msra.mxu0 0.0
  %146 = vmatprep.subr.mxu0 0.0
  %147 = vmatpush1.msra.mxu0 0.0
  %148 = vmatprep.subr.mxu0 0.0
  %149 = vmatpush1.msra.mxu0 0.0
  %150 = vmatprep.subr.mxu0 0.0
  %151 = vmatpush1.msra.mxu0 0.0
  %152 = vmatprep.subr.mxu0 0.0
  %153 = vmatpush1.msra.mxu0 0.0
  %154 = vmatprep.subr.mxu0 0.0
  %155 = vmatpush1.msra.mxu0 0.0
  %156 = vmatprep.subr.mxu0 0.0
  %157 = vmatpush1.msra.mxu0 0.0
  %158 = vmatprep.subr.mxu0 0.0
  %159 = vmatpush1.msra.mxu0 0.0
  %160 = vmatprep.subr.mxu0 0.0
  %161 = vmatpush1.msra.mxu0 0.0
  %162 = vmatprep.subr.mxu0 0.0
  %163 = vmatpush1.msra.mxu0 0.0
  %164 = vmatprep.subr.mxu0 0.0
  %165 = vmatpush1.msra.mxu0 0.0
  %166 = vmatprep.subr.mxu0 0.0
  %167 = vmatpush1.msra.mxu0 0.0
  %168 = vmatprep.subr.mxu0 0.0
  %169 = vmatpush1.msra.mxu0 0.0
  %170 = vmatprep.subr.mxu0 0.0
  %171 = vmatpush1.msra.mxu0 0.0
  %172 = vmatprep.subr.mxu0 0.0
  %173 = vmatpush1.msra.mxu0 0.0
  %174 = vmatprep.subr.mxu0 0.0
  %175 = vmatpush1.msra.mxu0 0.0
  %176 = vmatprep.subr.mxu0 0.0
  %177 = vmatpush1.msra.mxu0 0.0
  %178 = vmatprep.subr.mxu0 0.0
  %179 = vmatpush1.msra.mxu0 0.0
  %180 = vmatprep.subr.mxu0 0.0
  %181 = vmatpush1.msra.mxu0 0.0
  %182 = vmatprep.subr.mxu0 0.0
  %183 = vmatpush1.msra.mxu0 0.0
  %184 = vmatprep.mubr.f32.mxu0 0.0
  %185 = vmatmul.mubr.f32.gmra.mrb[0].mxu0 %v118
  %v186 = vpop.f32.mrb[0].mxu0
  %v187 = vadd.f32 %v114, %v186
  %v188 = vpop.f32.mrb[0].mxu0
  %189 = vdwg.mxu0
  %vm190 = vcmask 80896
  %191 = vst.msk [vmem:[%s5] sm:$0xff] %vm190, %v187
  // Predicated region
  $region22: #{model_forward.17} parent=0 // pred_check
    _
  $region23: #{model_forward.17} parent=0 // pred_check_branch
    %193 = sbr.rel (0) target = $region25
  $region24: #{model_forward.17} parent=0 // pred_region
    _
  $region25: #{model_forward.17} parent=0 // pred_fallthru
    _
  // Predicated region
  $region26: #{model_forward.17} parent=0 // pred_check
    _
  $region27: #{model_forward.17} parent=0 // pred_check_branch
    %195 = sbr.rel (0) target = $region29
  $region28: #{model_forward.17} parent=0 // pred_region
    _
  $region29: #{model_forward.17} parent=0 // pred_fallthru
    _

// kernel: model_forward.13
$region0: #{model_forward.13}
  #allocation0 [shape = 'u32[]', space=smem, size = 0x4, offset = 0x4, fixed_abs, tag = 'smem constant byte address 0x4 - core index']
  #allocation1 [shape = 'u32[144,128]{1,0:T(1,128)}', space=vmem, size = 0x12000, scoped, tag = 'internal scratch']
  %s0 = inlined_call_operand.vmem [shape: f32[8,64], index: 0, kind: input, shape index: {}]
  %s1 = inlined_call_operand.vmem [shape: f32[3,8,8], index: 1, kind: input, shape index: {}]
  %s2 = inlined_call_operand.vmem [shape: f32[3,8,8], index: 2, kind: input, shape index: {}]
  %s3 = inlined_call_operand.vmem [shape: f32[3,64,32], index: 3, kind: input, shape index: {}]
  %s4 = inlined_call_operand.vmem [shape: f32[8,32], index: 4, kind: input, shape index: {}]
  %s5 = inlined_call_operand.vmem [shape: f32[3,64,32], index: 5, kind: input, shape index: {}]
  %s6 = inlined_call_operand.vmem [shape: f32[8,32], index: 6, kind: input, shape index: {}]
  %s7 = inlined_call_operand.vmem [shape: f32[3,32,32], index: 7, kind: input, shape index: {}]
  %s8 = inlined_call_operand.vmem [shape: f32[8,32], index: 8, kind: input, shape index: {}]
  %s9 = inlined_call_operand.vmem [shape: f32[8,32], index: 9, kind: output, shape index: {}]
  %s10 = sld [smem:[#allocation0]]
  $region46: #{model_forward.13} parent=0
    _
  %s12 = ssub.s32 1, %s10
  %s13 = scalar_select 0, %s12, %s10
  // Predicated region
  $region2: #{model_forward.13} parent=0 // pred_check
    _
  $region3: #{model_forward.13} parent=0 // pred_check_branch
    %15 = sbr.rel (0) target = $region5
  $region4: #{model_forward.13} parent=0 // pred_region
    _
  $region5: #{model_forward.13} parent=0 // pred_fallthru
    _
  // Predicated region
  $region6: #{model_forward.13} parent=0 // pred_check
    _
  $region7: #{model_forward.13} parent=0 // pred_check_branch
    %17 = sbr.rel (0) target = $region9
  $region8: #{model_forward.13} parent=0 // pred_region
    _
  $region9: #{model_forward.13} parent=0 // pred_fallthru
    _
  // Predicated region
  $region10: #{model_forward.13} parent=0 // pred_check
    _
  $region11: #{model_forward.13} parent=0 // pred_check_branch
    %19 = sbr.rel (0) target = $region13
  $region12: #{model_forward.13} parent=0 // pred_region
    _
  $region13: #{model_forward.13} parent=0 // pred_fallthru
    _
  // Predicated region
  $region14: #{model_forward.13} parent=0 // pred_check
    _
  $region15: #{model_forward.13} parent=0 // pred_check_branch
    %21 = sbr.rel (0) target = $region17
  $region16: #{model_forward.13} parent=0 // pred_region
    _
  $region17: #{model_forward.13} parent=0 // pred_fallthru
    _
  // Predicated region
  $region18: #{model_forward.13} parent=0 // pred_check
    _
  $region19: #{model_forward.13} parent=0 // pred_check_branch
    %23 = sbr.rel (0) target = $region21
  $region20: #{model_forward.13} parent=0 // pred_region
    _
  $region21: #{model_forward.13} parent=0 // pred_fallthru
    _
  // Predicated region
  $region22: #{model_forward.13} parent=0 // pred_check
    _
  $region23: #{model_forward.13} parent=0 // pred_check_branch
    %25 = sbr.rel (0) target = $region25
  $region24: #{model_forward.13} parent=0 // pred_region
    _
  $region25: #{model_forward.13} parent=0 // pred_fallthru
    _
  // Predicated region
  $region26: #{model_forward.13} parent=0 // pred_check
    _
  $region27: #{model_forward.13} parent=0 // pred_check_branch
    %27 = sbr.rel (0) target = $region29
  $region28: #{model_forward.13} parent=0 // pred_region
    _
  $region29: #{model_forward.13} parent=0 // pred_fallthru
    _
  // Predicated region
  $region30: #{model_forward.13} parent=0 // pred_check
    _
  $region31: #{model_forward.13} parent=0 // pred_check_branch
    %29 = sbr.rel (0) target = $region33
  $region32: #{model_forward.13} parent=0 // pred_region
    _
  $region33: #{model_forward.13} parent=0 // pred_fallthru
    _
  // Predicated region
  $region34: #{model_forward.13} parent=0 // pred_check
    _
  $region35: #{model_forward.13} parent=0 // pred_check_branch
    %31 = sbr.rel (0) target = $region37
  $region36: #{model_forward.13} parent=0 // pred_region
    _
  $region37: #{model_forward.13} parent=0 // pred_fallthru
    _
  %v32 = vld [vmem:[%s0] sm:$0xff]
  %v33 = vld [vmem:[%s1] sm:$0xff]
  %vm34 = vcmask 64512
  %v36 = vsel %vm34, %v33, 0
  %38 = vmatprep.subr.mxu0 0.0
  %39 = vmatpush1.msra.mxu0 %v32
  %40 = vmatprep.subr.mxu0 0.0
  %41 = vmatpush1.msra.mxu0 0.0
  %42 = vmatprep.subr.mxu0 0.0
  %43 = vmatpush1.msra.mxu0 0.0
  %44 = vmatprep.subr.mxu0 0.0
  %45 = vmatpush1.msra.mxu0 0.0
  %46 = vmatprep.subr.mxu0 0.0
  %47 = vmatpush1.msra.mxu0 0.0
  %48 = vmatprep.subr.mxu0 0.0
  %49 = vmatpush1.msra.mxu0 0.0
  %50 = vmatprep.subr.mxu0 0.0
  %51 = vmatpush1.msra.mxu0 0.0
  %52 = vmatprep.subr.mxu0 0.0
  %53 = vmatpush1.msra.mxu0 0.0
  %54 = vmatprep.subr.mxu0 0.0
  %55 = vmatpush1.msra.mxu0 0.0
  %56 = vmatprep.subr.mxu0 0.0
  %57 = vmatpush1.msra.mxu0 0.0
  %58 = vmatprep.subr.mxu0 0.0
  %59 = vmatpush1.msra.mxu0 0.0
  %60 = vmatprep.subr.mxu0 0.0
  %61 = vmatpush1.msra.mxu0 0.0
  %62 = vmatprep.subr.mxu0 0.0
  %63 = vmatpush1.msra.mxu0 0.0
  %64 = vmatprep.subr.mxu0 0.0
  %65 = vmatpush1.msra.mxu0 0.0
  %66 = vmatprep.subr.mxu0 0.0
  %67 = vmatpush1.msra.mxu0 0.0
  %68 = vmatprep.subr.mxu0 0.0
  %69 = vmatpush1.msra.mxu0 0.0
  %70 = vmatprep.subr.mxu0 0.0
  %71 = vmatpush1.msra.mxu0 0.0
  %72 = vmatprep.subr.mxu0 0.0
  %73 = vmatpush1.msra.mxu0 0.0
  %74 = vmatprep.subr.mxu0 0.0
  %75 = vmatpush1.msra.mxu0 0.0
  %76 = vmatprep.subr.mxu0 0.0
  %77 = vmatpush1.msra.mxu0 0.0
  %78 = vmatprep.subr.mxu0 0.0
  %79 = vmatpush1.msra.mxu0 0.0
  %80 = vmatprep.subr.mxu0 0.0
  %81 = vmatpush1.msra.mxu0 0.0
  %82 = vmatprep.subr.mxu0 0.0
  %83 = vmatpush1.msra.mxu0 0.0
  %84 = vmatprep.subr.mxu0 0.0
  %85 = vmatpush1.msra.mxu0 0.0
  %86 = vmatprep.subr.mxu0 0.0
  %87 = vmatpush1.msra.mxu0 0.0
  %88 = vmatprep.subr.mxu0 0.0
  %89 = vmatpush1.msra.mxu0 0.0
  %90 = vmatprep.subr.mxu0 0.0
  %91 = vmatpush1.msra.mxu0 0.0
  %92 = vmatprep.subr.mxu0 0.0
  %93 = vmatpush1.msra.mxu0 0.0
  %94 = vmatprep.subr.mxu0 0.0
  %95 = vmatpush1.msra.mxu0 0.0
  %96 = vmatprep.subr.mxu0 0.0
  %97 = vmatpush1.msra.mxu0 0.0
  %98 = vmatprep.subr.mxu0 0.0
  %99 = vmatpush1.msra.mxu0 0.0
  %100 = vmatprep.subr.mxu0 0.0
  %101 = vmatpush1.msra.mxu0 0.0
  %102 = vmatprep.mubr.f32.mxu0 0.0
  %103 = vmatmul.mubr.f32.gmra.mrb[0].mxu0 %v36
  %v104 = vpop.f32.mrb[0].mxu0
  %v105 = vadd.f32 0.0, %v104
  %v106 = vpop.f32.mrb[0].mxu0
  %107 = vdwg.mxu0
  %s108 = scalar_lea.vmem %s1, 8
  %v109 = vld [vmem:[%s108] sm:$0xff]
  %v111 = vsel %vm34, %v109, 0
  %113 = vmatprep.subr.mxu0 0.0
  %114 = vmatpush1.msra.mxu0 %v32
  %115 = vmatprep.subr.mxu0 0.0
  %116 = vmatpush1.msra.mxu0 0.0
  %117 = vmatprep.subr.mxu0 0.0
  %118 = vmatpush1.msra.mxu0 0.0
  %119 = vmatprep.subr.mxu0 0.0
  %120 = vmatpush1.msra.mxu0 0.0
  %121 = vmatprep.subr.mxu0 0.0
  %122 = vmatpush1.msra.mxu0 0.0
  %123 = vmatprep.subr.mxu0 0.0
  %124 = vmatpush1.msra.mxu0 0.0
  %125 = vmatprep.subr.mxu0 0.0
  %126 = vmatpush1.msra.mxu0 0.0
  %127 = vmatprep.subr.mxu0 0.0
  %128 = vmatpush1.msra.mxu0 0.0
  %129 = vmatprep.subr.mxu0 0.0
  %130 = vmatpush1.msra.mxu0 0.0
  %131 = vmatprep.subr.mxu0 0.0
  %132 = vmatpush1.msra.mxu0 0.0
  %133 = vmatprep.subr.mxu0 0.0
  %134 = vmatpush1.msra.mxu0 0.0
  %135 = vmatprep.subr.mxu0 0.0
  %136 = vmatpush1.msra.mxu0 0.0
  %137 = vmatprep.subr.mxu0 0.0
  %138 = vmatpush1.msra.mxu0 0.0
  %139 = vmatprep.subr.mxu0 0.0
  %140 = vmatpush1.msra.mxu0 0.0
  %141 = vmatprep.subr.mxu0 0.0
  %142 = vmatpush1.msra.mxu0 0.0
  %143 = vmatprep.subr.mxu0 0.0
  %144 = vmatpush1.msra.mxu0 0.0
  %145 = vmatprep.subr.mxu0 0.0
  %146 = vmatpush1.msra.mxu0 0.0
  %147 = vmatprep.subr.mxu0 0.0
  %148 = vmatpush1.msra.mxu0 0.0
  %149 = vmatprep.subr.mxu0 0.0
  %150 = vmatpush1.msra.mxu0 0.0
  %151 = vmatprep.subr.mxu0 0.0
  %152 = vmatpush1.msra.mxu0 0.0
  %153 = vmatprep.subr.mxu0 0.0
  %154 = vmatpush1.msra.mxu0 0.0
  %155 = vmatprep.subr.mxu0 0.0
  %156 = vmatpush1.msra.mxu0 0.0
  %157 = vmatprep.subr.mxu0 0.0
  %158 = vmatpush1.msra.mxu0 0.0
  %159 = vmatprep.subr.mxu0 0.0
  %160 = vmatpush1.msra.mxu0 0.0
  %161 = vmatprep.subr.mxu0 0.0
  %162 = vmatpush1.msra.mxu0 0.0
  %163 = vmatprep.subr.mxu0 0.0
  %164 = vmatpush1.msra.mxu0 0.0
  %165 = vmatprep.subr.mxu0 0.0
  %166 = vmatpush1.msra.mxu0 0.0
  %167 = vmatprep.subr.mxu0 0.0
  %168 = vmatpush1.msra.mxu0 0.0
  %169 = vmatprep.subr.mxu0 0.0
  %170 = vmatpush1.msra.mxu0 0.0
  %171 = vmatprep.subr.mxu0 0.0
  %172 = vmatpush1.msra.mxu0 0.0
  %173 = vmatprep.subr.mxu0 0.0
  %174 = vmatpush1.msra.mxu0 0.0
  %175 = vmatprep.subr.mxu0 0.0
  %176 = vmatpush1.msra.mxu0 0.0
  %177 = vmatprep.mubr.f32.mxu0 0.0
  %178 = vmatmul.mubr.f32.gmra.mrb[0].mxu0 %v111
  %v179 = vpop.f32.mrb[0].mxu0
  %v180 = vadd.f32 0.0, %v179
  %v181 = vpop.f32.mrb[0].mxu0
  %182 = vdwg.mxu0
  %s183 = scalar_lea.vmem %s1, 16
  %v184 = vld [vmem:[%s183] sm:$0xff]
  %v186 = vsel %vm34, %v184, 0
  %188 = vmatprep.subr.mxu0 0.0
  %189 = vmatpush1.msra.mxu0 %v32
  %190 = vmatprep.subr.mxu0 0.0
  %191 = vmatpush1.msra.mxu0 0.0
  %192 = vmatprep.subr.mxu0 0.0
  %193 = vmatpush1.msra.mxu0 0.0
  %194 = vmatprep.subr.mxu0 0.0
  %195 = vmatpush1.msra.mxu0 0.0
  %196 = vmatprep.subr.mxu0 0.0
  %197 = vmatpush1.msra.mxu0 0.0
  %198 = vmatprep.subr.mxu0 0.0
  %199 = vmatpush1.msra.mxu0 0.0
  %200 = vmatprep.subr.mxu0 0.0
  %201 = vmatpush1.msra.mxu0 0.0
  %202 = vmatprep.subr.mxu0 0.0
  %203 = vmatpush1.msra.mxu0 0.0
  %204 = vmatprep.subr.mxu0 0.0
  %205 = vmatpush1.msra.mxu0 0.0
  %206 = vmatprep.subr.mxu0 0.0
  %207 = vmatpush1.msra.mxu0 0.0
  %208 = vmatprep.subr.mxu0 0.0
  %209 = vmatpush1.msra.mxu0 0.0
  %210 = vmatprep.subr.mxu0 0.0
  %211 = vmatpush1.msra.mxu0 0.0
  %212 = vmatprep.subr.mxu0 0.0
  %213 = vmatpush1.msra.mxu0 0.0
  %214 = vmatprep.subr.mxu0 0.0
  %215 = vmatpush1.msra.mxu0 0.0
  %216 = vmatprep.subr.mxu0 0.0
  %217 = vmatpush1.msra.mxu0 0.0
  %218 = vmatprep.subr.mxu0 0.0
  %219 = vmatpush1.msra.mxu0 0.0
  %220 = vmatprep.subr.mxu0 0.0
  %221 = vmatpush1.msra.mxu0 0.0
  %222 = vmatprep.subr.mxu0 0.0
  %223 = vmatpush1.msra.mxu0 0.0
  %224 = vmatprep.subr.mxu0 0.0
  %225 = vmatpush1.msra.mxu0 0.0
  %226 = vmatprep.subr.mxu0 0.0
  %227 = vmatpush1.msra.mxu0 0.0
  %228 = vmatprep.subr.mxu0 0.0
  %229 = vmatpush1.msra.mxu0 0.0
  %230 = vmatprep.subr.mxu0 0.0
  %231 = vmatpush1.msra.mxu0 0.0
  %232 = vmatprep.subr.mxu0 0.0
  %233 = vmatpush1.msra.mxu0 0.0
  %234 = vmatprep.subr.mxu0 0.0
  %235 = vmatpush1.msra.mxu0 0.0
  %236 = vmatprep.subr.mxu0 0.0
  %237 = vmatpush1.msra.mxu0 0.0
  %238 = vmatprep.subr.mxu0 0.0
  %239 = vmatpush1.msra.mxu0 0.0
  %240 = vmatprep.subr.mxu0 0.0
  %241 = vmatpush1.msra.mxu0 0.0
  %242 = vmatprep.subr.mxu0 0.0
  %243 = vmatpush1.msra.mxu0 0.0
  %244 = vmatprep.subr.mxu0 0.0
  %245 = vmatpush1.msra.mxu0 0.0
  %246 = vmatprep.subr.mxu0 0.0
  %247 = vmatpush1.msra.mxu0 0.0
  %248 = vmatprep.subr.mxu0 0.0
  %249 = vmatpush1.msra.mxu0 0.0
  %250 = vmatprep.subr.mxu0 0.0
  %251 = vmatpush1.msra.mxu0 0.0
  %252 = vmatprep.mubr.f32.mxu0 0.0
  %253 = vmatmul.mubr.f32.gmra.mrb[0].mxu0 %v186
  %v254 = vpop.f32.mrb[0].mxu0
  %v255 = vadd.f32 0.0, %v254
  %v256 = vpop.f32.mrb[0].mxu0
  %257 = vdwg.mxu0
  %v258 = vld [vmem:[%s3] sm:$0xff]
  %v259 = vld [vmem:[%s3 + $0x8] sm:$0xff]
  %v260 = vld [vmem:[%s3 + $0x10] sm:$0xff]
  %v261 = vld [vmem:[%s3 + $0x18] sm:$0xff]
  %v262 = vld [vmem:[%s3 + $0x20] sm:$0xff]
  %v263 = vld [vmem:[%s3 + $0x28] sm:$0xff]
  %v264 = vld [vmem:[%s3 + $0x30] sm:$0xff]
  %v265 = vld [vmem:[%s3 + $0x38] sm:$0xff]
  %s266 = scalar_lea.vmem %s3, 64
  %v267 = vld [vmem:[%s266] sm:$0xff]
  %v268 = vld [vmem:[%s266 + $0x8] sm:$0xff]
  %v269 = vld [vmem:[%s266 + $0x10] sm:$0xff]
  %v270 = vld [vmem:[%s266 + $0x18] sm:$0xff]
  %v271 = vld [vmem:[%s266 + $0x20] sm:$0xff]
  %v272 = vld [vmem:[%s266 + $0x28] sm:$0xff]
  %v273 = vld [vmem:[%s266 + $0x30] sm:$0xff]
  %v274 = vld [vmem:[%s266 + $0x38] sm:$0xff]
  %vm275 = vcmask 523264
  %v277 = vsel %vm275, %v180, 0
  %279 = vmatprep.subr.mxu0 0.0
  %280 = vmatpush1.msra.mxu0 %v267
  %281 = vmatprep.subr.mxu0 0.0
  %282 = vmatpush1.msra.mxu0 %v268
  %283 = vmatprep.subr.mxu0 0.0
  %284 = vmatpush1.msra.mxu0 %v269
  %285 = vmatprep.subr.mxu0 0.0
  %286 = vmatpush1.msra.mxu0 %v270
  %287 = vmatprep.subr.mxu0 0.0
  %288 = vmatpush1.msra.mxu0 %v271
  %289 = vmatprep.subr.mxu0 0.0
  %290 = vmatpush1.msra.mxu0 %v272
  %291 = vmatprep.subr.mxu0 0.0
  %292 = vmatpush1.msra.mxu0 %v273
  %293 = vmatprep.subr.mxu0 0.0
  %294 = vmatpush1.msra.mxu0 %v274
  %295 = vmatprep.subr.mxu0 0.0
  %296 = vmatpush1.msra.mxu0 0.0
  %297 = vmatprep.subr.mxu0 0.0
  %298 = vmatpush1.msra.mxu0 0.0
  %299 = vmatprep.subr.mxu0 0.0
  %300 = vmatpush1.msra.mxu0 0.0
  %301 = vmatprep.subr.mxu0 0.0
  %302 = vmatpush1.msra.mxu0 0.0
  %303 = vmatprep.subr.mxu0 0.0
  %304 = vmatpush1.msra.mxu0 0.0
  %305 = vmatprep.subr.mxu0 0.0
  %306 = vmatpush1.msra.mxu0 0.0
  %307 = vmatprep.subr.mxu0 0.0
  %308 = vmatpush1.msra.mxu0 0.0
  %309 = vmatprep.subr.mxu0 0.0
  %310 = vmatpush1.msra.mxu0 0.0
  %311 = vmatprep.subr.mxu0 0.0
  %312 = vmatpush1.msra.mxu0 0.0
  %313 = vmatprep.subr.mxu0 0.0
  %314 = vmatpush1.msra.mxu0 0.0
  %315 = vmatprep.subr.mxu0 0.0
  %316 = vmatpush1.msra.mxu0 0.0
  %317 = vmatprep.subr.mxu0 0.0
  %318 = vmatpush1.msra.mxu0 0.0
  %319 = vmatprep.subr.mxu0 0.0
  %320 = vmatpush1.msra.mxu0 0.0
  %321 = vmatprep.subr.mxu0 0.0
  %322 = vmatpush1.msra.mxu0 0.0
  %323 = vmatprep.subr.mxu0 0.0
  %324 = vmatpush1.msra.mxu0 0.0
  %325 = vmatprep.subr.mxu0 0.0
  %326 = vmatpush1.msra.mxu0 0.0
  %327 = vmatprep.subr.mxu0 0.0
  %328 = vmatpush1.msra.mxu0 0.0
  %329 = vmatprep.subr.mxu0 0.0
  %330 = vmatpush1.msra.mxu0 0.0
  %331 = vmatprep.subr.mxu0 0.0
  %332 = vmatpush1.msra.mxu0 0.0
  %333 = vmatprep.subr.mxu0 0.0
  %334 = vmatpush1.msra.mxu0 0.0
  %335 = vmatprep.subr.mxu0 0.0
  %336 = vmatpush1.msra.mxu0 0.0
  %337 = vmatprep.subr.mxu0 0.0
  %338 = vmatpush1.msra.mxu0 0.0
  %339 = vmatprep.subr.mxu0 0.0
  %340 = vmatpush1.msra.mxu0 0.0
  %341 = vmatprep.subr.mxu0 0.0
  %342 = vmatpush1.msra.mxu0 0.0
  %343 = vmatprep.mubr.f32.mxu0 0.0
  %344 = vmatmul.mubr.f32.gmra.mrb[0].mxu0 %v277
  %v345 = vpop.f32.mrb[0].mxu0
  %v346 = vadd.f32 0.0, %v345
  %v347 = vpop.f32.mrb[0].mxu0
  %348 = vdwg.mxu0
  %v350 = vsel %vm275, %v105, 0
  %352 = vmatprep.subr.mxu0 0.0
  %353 = vmatpush1.msra.mxu0 %v258
  %354 = vmatprep.subr.mxu0 0.0
  %355 = vmatpush1.msra.mxu0 %v259
  %356 = vmatprep.subr.mxu0 0.0
  %357 = vmatpush1.msra.mxu0 %v260
  %358 = vmatprep.subr.mxu0 0.0
  %359 = vmatpush1.msra.mxu0 %v261
  %360 = vmatprep.subr.mxu0 0.0
  %361 = vmatpush1.msra.mxu0 %v262
  %362 = vmatprep.subr.mxu0 0.0
  %363 = vmatpush1.msra.mxu0 %v263
  %364 = vmatprep.subr.mxu0 0.0
  %365 = vmatpush1.msra.mxu0 %v264
  %366 = vmatprep.subr.mxu0 0.0
  %367 = vmatpush1.msra.mxu0 %v265
  %368 = vmatprep.subr.mxu0 0.0
  %369 = vmatpush1.msra.mxu0 0.0
  %370 = vmatprep.subr.mxu0 0.0
  %371 = vmatpush1.msra.mxu0 0.0
  %372 = vmatprep.subr.mxu0 0.0
  %373 = vmatpush1.msra.mxu0 0.0
  %374 = vmatprep.subr.mxu0 0.0
  %375 = vmatpush1.msra.mxu0 0.0
  %376 = vmatprep.subr.mxu0 0.0
  %377 = vmatpush1.msra.mxu0 0.0
  %378 = vmatprep.subr.mxu0 0.0
  %379 = vmatpush1.msra.mxu0 0.0
  %380 = vmatprep.subr.mxu0 0.0
  %381 = vmatpush1.msra.mxu0 0.0
  %382 = vmatprep.subr.mxu0 0.0
  %383 = vmatpush1.msra.mxu0 0.0
  %384 = vmatprep.subr.mxu0 0.0
  %385 = vmatpush1.msra.mxu0 0.0
  %386 = vmatprep.subr.mxu0 0.0
  %387 = vmatpush1.msra.mxu0 0.0
  %388 = vmatprep.subr.mxu0 0.0
  %389 = vmatpush1.msra.mxu0 0.0
  %390 = vmatprep.subr.mxu0 0.0
  %391 = vmatpush1.msra.mxu0 0.0
  %392 = vmatprep.subr.mxu0 0.0
  %393 = vmatpush1.msra.mxu0 0.0
  %394 = vmatprep.subr.mxu0 0.0
  %395 = vmatpush1.msra.mxu0 0.0
  %396 = vmatprep.subr.mxu0 0.0
  %397 = vmatpush1.msra.mxu0 0.0
  %398 = vmatprep.subr.mxu0 0.0
  %399 = vmatpush1.msra.mxu0 0.0
  %400 = vmatprep.subr.mxu0 0.0
  %401 = vmatpush1.msra.mxu0 0.0
  %402 = vmatprep.subr.mxu0 0.0
  %403 = vmatpush1.msra.mxu0 0.0
  %404 = vmatprep.subr.mxu0 0.0
  %405 = vmatpush1.msra.mxu0 0.0
  %406 = vmatprep.subr.mxu0 0.0
  %407 = vmatpush1.msra.mxu0 0.0
  %408 = vmatprep.subr.mxu0 0.0
  %409 = vmatpush1.msra.mxu0 0.0
  %410 = vmatprep.subr.mxu0 0.0
  %411 = vmatpush1.msra.mxu0 0.0
  %412 = vmatprep.subr.mxu0 0.0
  %413 = vmatpush1.msra.mxu0 0.0
  %414 = vmatprep.subr.mxu0 0.0
  %415 = vmatpush1.msra.mxu0 0.0
  %416 = vmatprep.mubr.f32.mxu0 0.0
  %417 = vmatmul.mubr.f32.gmra.mrb[0].mxu0 %v350
  %v418 = vpop.f32.mrb[0].mxu0
  %v419 = vadd.f32 %v346, %v418
  %v420 = vpop.f32.mrb[0].mxu0
  %421 = vdwg.mxu0
  %s422 = scalar_lea.vmem %s3, 128
  %v423 = vld [vmem:[%s422] sm:$0xff]
  %v424 = vld [vmem:[%s422 + $0x8] sm:$0xff]
  %v425 = vld [vmem:[%s422 + $0x10] sm:$0xff]
  %v426 = vld [vmem:[%s422 + $0x18] sm:$0xff]
  %v427 = vld [vmem:[%s422 + $0x20] sm:$0xff]
  %v428 = vld [vmem:[%s422 + $0x28] sm:$0xff]
  %v429 = vld [vmem:[%s422 + $0x30] sm:$0xff]
  %v430 = vld [vmem:[%s422 + $0x38] sm:$0xff]
  %v432 = vsel %vm275, %v255, 0
  %434 = vmatprep.subr.mxu0 0.0
  %435 = vmatpush1.msra.mxu0 %v423
  %436 = vmatprep.subr.mxu0 0.0
  %437 = vmatpush1.msra.mxu0 %v424
  %438 = vmatprep.subr.mxu0 0.0
  %439 = vmatpush1.msra.mxu0 %v425
  %440 = vmatprep.subr.mxu0 0.0
  %441 = vmatpush1.msra.mxu0 %v426
  %442 = vmatprep.subr.mxu0 0.0
  %443 = vmatpush1.msra.mxu0 %v427
  %444 = vmatprep.subr.mxu0 0.0
  %445 = vmatpush1.msra.mxu0 %v428
  %446 = vmatprep.subr.mxu0 0.0
  %447 = vmatpush1.msra.mxu0 %v429
  %448 = vmatprep.subr.mxu0 0.0
  %449 = vmatpush1.msra.mxu0 %v430
  %450 = vmatprep.subr.mxu0 0.0
  %451 = vmatpush1.msra.mxu0 0.0
  %452 = vmatprep.subr.mxu0 0.0
  %453 = vmatpush1.msra.mxu0 0.0
  %454 = vmatprep.subr.mxu0 0.0
  %455 = vmatpush1.msra.mxu0 0.0
  %456 = vmatprep.subr.mxu0 0.0
  %457 = vmatpush1.msra.mxu0 0.0
  %458 = vmatprep.subr.mxu0 0.0
  %459 = vmatpush1.msra.mxu0 0.0
  %460 = vmatprep.subr.mxu0 0.0
  %461 = vmatpush1.msra.mxu0 0.0
  %462 = vmatprep.subr.mxu0 0.0
  %463 = vmatpush1.msra.mxu0 0.0
  %464 = vmatprep.subr.mxu0 0.0
  %465 = vmatpush1.msra.mxu0 0.0
  %466 = vmatprep.subr.mxu0 0.0
  %467 = vmatpush1.msra.mxu0 0.0
  %468 = vmatprep.subr.mxu0 0.0
  %469 = vmatpush1.msra.mxu0 0.0
  %470 = vmatprep.subr.mxu0 0.0
  %471 = vmatpush1.msra.mxu0 0.0
  %472 = vmatprep.subr.mxu0 0.0
  %473 = vmatpush1.msra.mxu0 0.0
  %474 = vmatprep.subr.mxu0 0.0
  %475 = vmatpush1.msra.mxu0 0.0
  %476 = vmatprep.subr.mxu0 0.0
  %477 = vmatpush1.msra.mxu0 0.0
  %478 = vmatprep.subr.mxu0 0.0
  %479 = vmatpush1.msra.mxu0 0.0
  %480 = vmatprep.subr.mxu0 0.0
  %481 = vmatpush1.msra.mxu0 0.0
  %482 = vmatprep.subr.mxu0 0.0
  %483 = vmatpush1.msra.mxu0 0.0
  %484 = vmatprep.subr.mxu0 0.0
  %485 = vmatpush1.msra.mxu0 0.0
  %486 = vmatprep.subr.mxu0 0.0
  %487 = vmatpush1.msra.mxu0 0.0
  %488 = vmatprep.subr.mxu0 0.0
  %489 = vmatpush1.msra.mxu0 0.0
  %490 = vmatprep.subr.mxu0 0.0
  %491 = vmatpush1.msra.mxu0 0.0
  %492 = vmatprep.subr.mxu0 0.0
  %493 = vmatpush1.msra.mxu0 0.0
  %494 = vmatprep.subr.mxu0 0.0
  %495 = vmatpush1.msra.mxu0 0.0
  %496 = vmatprep.subr.mxu0 0.0
  %497 = vmatpush1.msra.mxu0 0.0
  %498 = vmatprep.mubr.f32.mxu0 0.0
  %499 = vmatmul.mubr.f32.gmra.mrb[0].mxu0 %v432
  %v500 = vpop.f32.mrb[0].mxu0
  %v501 = vadd.f32 0.0, %v500
  %v502 = vpop.f32.mrb[0].mxu0
  %503 = vdwg.mxu0
  %v504 = vadd.f32 %v419, %v501
  %v505 = vld [vmem:[%s4] sm:$0xff]
  %v506 = vadd.f32 %v504, %v505
  %v507 = vld [vmem:[%s5] sm:$0xff]
  %v508 = vld [vmem:[%s5 + $0x8] sm:$0xff]
  %v509 = vld [vmem:[%s5 + $0x10] sm:$0xff]
  %v510 = vld [vmem:[%s5 + $0x18] sm:$0xff]
  %v511 = vld [vmem:[%s5 + $0x20] sm:$0xff]
  %v512 = vld [vmem:[%s5 + $0x28] sm:$0xff]
  %v513 = vld [vmem:[%s5 + $0x30] sm:$0xff]
  %v514 = vld [vmem:[%s5 + $0x38] sm:$0xff]
  %s515 = scalar_lea.vmem %s5, 64
  %v516 = vld [vmem:[%s515] sm:$0xff]
  %v517 = vld [vmem:[%s515 + $0x8] sm:$0xff]
  %v518 = vld [vmem:[%s515 + $0x10] sm:$0xff]
  %v519 = vld [vmem:[%s515 + $0x18] sm:$0xff]
  %v520 = vld [vmem:[%s515 + $0x20] sm:$0xff]
  %v521 = vld [vmem:[%s515 + $0x28] sm:$0xff]
  %v522 = vld [vmem:[%s515 + $0x30] sm:$0xff]
  %v523 = vld [vmem:[%s515 + $0x38] sm:$0xff]
  %524 = vmatprep.subr.mxu0 0.0
  %525 = vmatpush1.msra.mxu0 %v516
  %526 = vmatprep.subr.mxu0 0.0
  %527 = vmatpush1.msra.mxu0 %v517
  %528 = vmatprep.subr.mxu0 0.0
  %529 = vmatpush1.msra.mxu0 %v518
  %530 = vmatprep.subr.mxu0 0.0
  %531 = vmatpush1.msra.mxu0 %v519
  %532 = vmatprep.subr.mxu0 0.0
  %533 = vmatpush1.msra.mxu0 %v520
  %534 = vmatprep.subr.mxu0 0.0
  %535 = vmatpush1.msra.mxu0 %v521
  %536 = vmatprep.subr.mxu0 0.0
  %537 = vmatpush1.msra.mxu0 %v522
  %538 = vmatprep.subr.mxu0 0.0
  %539 = vmatpush1.msra.mxu0 %v523
  %540 = vmatprep.subr.mxu0 0.0
  %541 = vmatpush1.msra.mxu0 0.0
  %542 = vmatprep.subr.mxu0 0.0
  %543 = vmatpush1.msra.mxu0 0.0
  %544 = vmatprep.subr.mxu0 0.0
  %545 = vmatpush1.msra.mxu0 0.0
  %546 = vmatprep.subr.mxu0 0.0
  %547 = vmatpush1.msra.mxu0 0.0
  %548 = vmatprep.subr.mxu0 0.0
  %549 = vmatpush1.msra.mxu0 0.0
  %550 = vmatprep.subr.mxu0 0.0
  %551 = vmatpush1.msra.mxu0 0.0
  %552 = vmatprep.subr.mxu0 0.0
  %553 = vmatpush1.msra.mxu0 0.0
  %554 = vmatprep.subr.mxu0 0.0
  %555 = vmatpush1.msra.mxu0 0.0
  %556 = vmatprep.subr.mxu0 0.0
  %557 = vmatpush1.msra.mxu0 0.0
  %558 = vmatprep.subr.mxu0 0.0
  %559 = vmatpush1.msra.mxu0 0.0
  %560 = vmatprep.subr.mxu0 0.0
  %561 = vmatpush1.msra.mxu0 0.0
  %562 = vmatprep.subr.mxu0 0.0
  %563 = vmatpush1.msra.mxu0 0.0
  %564 = vmatprep.subr.mxu0 0.0
  %565 = vmatpush1.msra.mxu0 0.0
  %566 = vmatprep.subr.mxu0 0.0
  %567 = vmatpush1.msra.mxu0 0.0
  %568 = vmatprep.subr.mxu0 0.0
  %569 = vmatpush1.msra.mxu0 0.0
  %570 = vmatprep.subr.mxu0 0.0
  %571 = vmatpush1.msra.mxu0 0.0
  %572 = vmatprep.subr.mxu0 0.0
  %573 = vmatpush1.msra.mxu0 0.0
  %574 = vmatprep.subr.mxu0 0.0
  %575 = vmatpush1.msra.mxu0 0.0
  %576 = vmatprep.subr.mxu0 0.0
  %577 = vmatpush1.msra.mxu0 0.0
  %578 = vmatprep.subr.mxu0 0.0
  %579 = vmatpush1.msra.mxu0 0.0
  %580 = vmatprep.subr.mxu0 0.0
  %581 = vmatpush1.msra.mxu0 0.0
  %582 = vmatprep.subr.mxu0 0.0
  %583 = vmatpush1.msra.mxu0 0.0
  %584 = vmatprep.subr.mxu0 0.0
  %585 = vmatpush1.msra.mxu0 0.0
  %586 = vmatprep.subr.mxu0 0.0
  %587 = vmatpush1.msra.mxu0 0.0
  %588 = vmatprep.mubr.f32.mxu0 0.0
  %589 = vmatmul.mubr.f32.gmra.mrb[0].mxu0 %v277
  %v590 = vpop.f32.mrb[0].mxu0
  %v591 = vadd.f32 0.0, %v590
  %v592 = vpop.f32.mrb[0].mxu0
  %593 = vdwg.mxu0
  %594 = vmatprep.subr.mxu0 0.0
  %595 = vmatpush1.msra.mxu0 %v507
  %596 = vmatprep.subr.mxu0 0.0
  %597 = vmatpush1.msra.mxu0 %v508
  %598 = vmatprep.subr.mxu0 0.0
  %599 = vmatpush1.msra.mxu0 %v509
  %600 = vmatprep.subr.mxu0 0.0
  %601 = vmatpush1.msra.mxu0 %v510
  %602 = vmatprep.subr.mxu0 0.0
  %603 = vmatpush1.msra.mxu0 %v511
  %604 = vmatprep.subr.mxu0 0.0
  %605 = vmatpush1.msra.mxu0 %v512
  %606 = vmatprep.subr.mxu0 0.0
  %607 = vmatpush1.msra.mxu0 %v513
  %608 = vmatprep.subr.mxu0 0.0
  %609 = vmatpush1.msra.mxu0 %v514
  %610 = vmatprep.subr.mxu0 0.0
  %611 = vmatpush1.msra.mxu0 0.0
  %612 = vmatprep.subr.mxu0 0.0
  %613 = vmatpush1.msra.mxu0 0.0
  %614 = vmatprep.subr.mxu0 0.0
  %615 = vmatpush1.msra.mxu0 0.0
  %616 = vmatprep.subr.mxu0 0.0
  %617 = vmatpush1.msra.mxu0 0.0
  %618 = vmatprep.subr.mxu0 0.0
  %619 = vmatpush1.msra.mxu0 0.0
  %620 = vmatprep.subr.mxu0 0.0
  %621 = vmatpush1.msra.mxu0 0.0
  %622 = vmatprep.subr.mxu0 0.0
  %623 = vmatpush1.msra.mxu0 0.0
  %624 = vmatprep.subr.mxu0 0.0
  %625 = vmatpush1.msra.mxu0 0.0
  %626 = vmatprep.subr.mxu0 0.0
  %627 = vmatpush1.msra.mxu0 0.0
  %628 = vmatprep.subr.mxu0 0.0
  %629 = vmatpush1.msra.mxu0 0.0
  %630 = vmatprep.subr.mxu0 0.0
  %631 = vmatpush1.msra.mxu0 0.0
  %632 = vmatprep.subr.mxu0 0.0
  %633 = vmatpush1.msra.mxu0 0.0
  %634 = vmatprep.subr.mxu0 0.0
  %635 = vmatpush1.msra.mxu0 0.0
  %636 = vmatprep.subr.mxu0 0.0
  %637 = vmatpush1.msra.mxu0 0.0
  %638 = vmatprep.subr.mxu0 0.0
  %639 = vmatpush1.msra.mxu0 0.0
  %640 = vmatprep.subr.mxu0 0.0
  %641 = vmatpush1.msra.mxu0 0.0
  %642 = vmatprep.subr.mxu0 0.0
  %643 = vmatpush1.msra.mxu0 0.0
  %644 = vmatprep.subr.mxu0 0.0
  %645 = vmatpush1.msra.mxu0 0.0
  %646 = vmatprep.subr.mxu0 0.0
  %647 = vmatpush1.msra.mxu0 0.0
  %648 = vmatprep.subr.mxu0 0.0
  %649 = vmatpush1.msra.mxu0 0.0
  %650 = vmatprep.subr.mxu0 0.0
  %651 = vmatpush1.msra.mxu0 0.0
  %652 = vmatprep.subr.mxu0 0.0
  %653 = vmatpush1.msra.mxu0 0.0
  %654 = vmatprep.subr.mxu0 0.0
  %655 = vmatpush1.msra.mxu0 0.0
  %656 = vmatprep.subr.mxu0 0.0
  %657 = vmatpush1.msra.mxu0 0.0
  %658 = vmatprep.mubr.f32.mxu0 0.0
  %659 = vmatmul.mubr.f32.gmra.mrb[0].mxu0 %v350
  %v660 = vpop.f32.mrb[0].mxu0
  %v661 = vadd.f32 %v591, %v660
  %v662 = vpop.f32.mrb[0].mxu0
  %663 = vdwg.mxu0
  %s664 = scalar_lea.vmem %s5, 128
  %v665 = vld [vmem:[%s664] sm:$0xff]
  %v666 = vld [vmem:[%s664 + $0x8] sm:$0xff]
  %v667 = vld [vmem:[%s664 + $0x10] sm:$0xff]
  %v668 = vld [vmem:[%s664 + $0x18] sm:$0xff]
  %v669 = vld [vmem:[%s664 + $0x20] sm:$0xff]
  %v670 = vld [vmem:[%s664 + $0x28] sm:$0xff]
  %v671 = vld [vmem:[%s664 + $0x30] sm:$0xff]
  %v672 = vld [vmem:[%s664 + $0x38] sm:$0xff]
  %673 = vmatprep.subr.mxu0 0.0
  %674 = vmatpush1.msra.mxu0 %v665
  %675 = vmatprep.subr.mxu0 0.0
  %676 = vmatpush1.msra.mxu0 %v666
  %677 = vmatprep.subr.mxu0 0.0
  %678 = vmatpush1.msra.mxu0 %v667
  %679 = vmatprep.subr.mxu0 0.0
  %680 = vmatpush1.msra.mxu0 %v668
  %681 = vmatprep.subr.mxu0 0.0
  %682 = vmatpush1.msra.mxu0 %v669
  %683 = vmatprep.subr.mxu0 0.0
  %684 = vmatpush1.msra.mxu0 %v670
  %685 = vmatprep.subr.mxu0 0.0
  %686 = vmatpush1.msra.mxu0 %v671
  %687 = vmatprep.subr.mxu0 0.0
  %688 = vmatpush1.msra.mxu0 %v672
  %689 = vmatprep.subr.mxu0 0.0
  %690 = vmatpush1.msra.mxu0 0.0
  %691 = vmatprep.subr.mxu0 0.0
  %692 = vmatpush1.msra.mxu0 0.0
  %693 = vmatprep.subr.mxu0 0.0
  %694 = vmatpush1.msra.mxu0 0.0
  %695 = vmatprep.subr.mxu0 0.0
  %696 = vmatpush1.msra.mxu0 0.0
  %697 = vmatprep.subr.mxu0 0.0
  %698 = vmatpush1.msra.mxu0 0.0
  %699 = vmatprep.subr.mxu0 0.0
  %700 = vmatpush1.msra.mxu0 0.0
  %701 = vmatprep.subr.mxu0 0.0
  %702 = vmatpush1.msra.mxu0 0.0
  %703 = vmatprep.subr.mxu0 0.0
  %704 = vmatpush1.msra.mxu0 0.0
  %705 = vmatprep.subr.mxu0 0.0
  %706 = vmatpush1.msra.mxu0 0.0
  %707 = vmatprep.subr.mxu0 0.0
  %708 = vmatpush1.msra.mxu0 0.0
  %709 = vmatprep.subr.mxu0 0.0
  %710 = vmatpush1.msra.mxu0 0.0
  %711 = vmatprep.subr.mxu0 0.0
  %712 = vmatpush1.msra.mxu0 0.0
  %713 = vmatprep.subr.mxu0 0.0
  %714 = vmatpush1.msra.mxu0 0.0
  %715 = vmatprep.subr.mxu0 0.0
  %716 = vmatpush1.msra.mxu0 0.0
  %717 = vmatprep.subr.mxu0 0.0
  %718 = vmatpush1.msra.mxu0 0.0
  %719 = vmatprep.subr.mxu0 0.0
  %720 = vmatpush1.msra.mxu0 0.0
  %721 = vmatprep.subr.mxu0 0.0
  %722 = vmatpush1.msra.mxu0 0.0
  %723 = vmatprep.subr.mxu0 0.0
  %724 = vmatpush1.msra.mxu0 0.0
  %725 = vmatprep.subr.mxu0 0.0
  %726 = vmatpush1.msra.mxu0 0.0
  %727 = vmatprep.subr.mxu0 0.0
  %728 = vmatpush1.msra.mxu0 0.0
  %729 = vmatprep.subr.mxu0 0.0
  %730 = vmatpush1.msra.mxu0 0.0
  %731 = vmatprep.subr.mxu0 0.0
  %732 = vmatpush1.msra.mxu0 0.0
  %733 = vmatprep.subr.mxu0 0.0
  %734 = vmatpush1.msra.mxu0 0.0
  %735 = vmatprep.subr.mxu0 0.0
  %736 = vmatpush1.msra.mxu0 0.0
  %737 = vmatprep.mubr.f32.mxu0 0.0
  %738 = vmatmul.mubr.f32.gmra.mrb[0].mxu0 %v432
  %v739 = vpop.f32.mrb[0].mxu0
  %v740 = vadd.f32 0.0, %v739
  %v741 = vpop.f32.mrb[0].mxu0
  %742 = vdwg.mxu0
  %v743 = vadd.f32 %v661, %v740
  %v744 = vld [vmem:[%s6] sm:$0xff]
  %v745 = vadd.f32 %v743, %v744
  %v746 = vmax.f32 %v506, 0.0
  %v747 = vld [vmem:[%s2] sm:$0xff]
  %v749 = vsel %vm34, %v747, 0
  %751 = vmatprep.subr.mxu0 0.0
  %752 = vmatpush1.msra.mxu0 %v746
  %753 = vmatprep.subr.mxu0 0.0
  %754 = vmatpush1.msra.mxu0 0.0
  %755 = vmatprep.subr.mxu0 0.0
  %756 = vmatpush1.msra.mxu0 0.0
  %757 = vmatprep.subr.mxu0 0.0
  %758 = vmatpush1.msra.mxu0 0.0
  %759 = vmatprep.subr.mxu0 0.0
  %760 = vmatpush1.msra.mxu0 0.0
  %761 = vmatprep.subr.mxu0 0.0
  %762 = vmatpush1.msra.mxu0 0.0
  %763 = vmatprep.subr.mxu0 0.0
  %764 = vmatpush1.msra.mxu0 0.0
  %765 = vmatprep.subr.mxu0 0.0
  %766 = vmatpush1.msra.mxu0 0.0
  %767 = vmatprep.subr.mxu0 0.0
  %768 = vmatpush1.msra.mxu0 0.0
  %769 = vmatprep.subr.mxu0 0.0
  %770 = vmatpush1.msra.mxu0 0.0
  %771 = vmatprep.subr.mxu0 0.0
  %772 = vmatpush1.msra.mxu0 0.0
  %773 = vmatprep.subr.mxu0 0.0
  %774 = vmatpush1.msra.mxu0 0.0
  %775 = vmatprep.subr.mxu0 0.0
  %776 = vmatpush1.msra.mxu0 0.0
  %777 = vmatprep.subr.mxu0 0.0
  %778 = vmatpush1.msra.mxu0 0.0
  %779 = vmatprep.subr.mxu0 0.0
  %780 = vmatpush1.msra.mxu0 0.0
  %781 = vmatprep.subr.mxu0 0.0
  %782 = vmatpush1.msra.mxu0 0.0
  %783 = vmatprep.subr.mxu0 0.0
  %784 = vmatpush1.msra.mxu0 0.0
  %785 = vmatprep.subr.mxu0 0.0
  %786 = vmatpush1.msra.mxu0 0.0
  %787 = vmatprep.subr.mxu0 0.0
  %788 = vmatpush1.msra.mxu0 0.0
  %789 = vmatprep.subr.mxu0 0.0
  %790 = vmatpush1.msra.mxu0 0.0
  %791 = vmatprep.subr.mxu0 0.0
  %792 = vmatpush1.msra.mxu0 0.0
  %793 = vmatprep.subr.mxu0 0.0
  %794 = vmatpush1.msra.mxu0 0.0
  %795 = vmatprep.subr.mxu0 0.0
  %796 = vmatpush1.msra.mxu0 0.0
  %797 = vmatprep.subr.mxu0 0.0
  %798 = vmatpush1.msra.mxu0 0.0
  %799 = vmatprep.subr.mxu0 0.0
  %800 = vmatpush1.msra.mxu0 0.0
  %801 = vmatprep.subr.mxu0 0.0
  %802 = vmatpush1.msra.mxu0 0.0
  %803 = vmatprep.subr.mxu0 0.0
  %804 = vmatpush1.msra.mxu0 0.0
  %805 = vmatprep.subr.mxu0 0.0
  %806 = vmatpush1.msra.mxu0 0.0
  %807 = vmatprep.subr.mxu0 0.0
  %808 = vmatpush1.msra.mxu0 0.0
  %809 = vmatprep.subr.mxu0 0.0
  %810 = vmatpush1.msra.mxu0 0.0
  %811 = vmatprep.subr.mxu0 0.0
  %812 = vmatpush1.msra.mxu0 0.0
  %813 = vmatprep.subr.mxu0 0.0
  %814 = vmatpush1.msra.mxu0 0.0
  %815 = vmatprep.mubr.f32.mxu0 0.0
  %816 = vmatmul.mubr.f32.gmra.mrb[0].mxu0 %v749
  %v817 = vpop.f32.mrb[0].mxu0
  %v818 = vadd.f32 0.0, %v817
  %v819 = vpop.f32.mrb[0].mxu0
  %820 = vdwg.mxu0
  %s821 = scalar_lea.vmem %s2, 16
  %v822 = vld [vmem:[%s821] sm:$0xff]
  %v824 = vsel %vm34, %v822, 0
  %826 = vmatprep.subr.mxu0 0.0
  %827 = vmatpush1.msra.mxu0 %v746
  %828 = vmatprep.subr.mxu0 0.0
  %829 = vmatpush1.msra.mxu0 0.0
  %830 = vmatprep.subr.mxu0 0.0
  %831 = vmatpush1.msra.mxu0 0.0
  %832 = vmatprep.subr.mxu0 0.0
  %833 = vmatpush1.msra.mxu0 0.0
  %834 = vmatprep.subr.mxu0 0.0
  %835 = vmatpush1.msra.mxu0 0.0
  %836 = vmatprep.subr.mxu0 0.0
  %837 = vmatpush1.msra.mxu0 0.0
  %838 = vmatprep.subr.mxu0 0.0
  %839 = vmatpush1.msra.mxu0 0.0
  %840 = vmatprep.subr.mxu0 0.0
  %841 = vmatpush1.msra.mxu0 0.0
  %842 = vmatprep.subr.mxu0 0.0
  %843 = vmatpush1.msra.mxu0 0.0
  %844 = vmatprep.subr.mxu0 0.0
  %845 = vmatpush1.msra.mxu0 0.0
  %846 = vmatprep.subr.mxu0 0.0
  %847 = vmatpush1.msra.mxu0 0.0
  %848 = vmatprep.subr.mxu0 0.0
  %849 = vmatpush1.msra.mxu0 0.0
  %850 = vmatprep.subr.mxu0 0.0
  %851 = vmatpush1.msra.mxu0 0.0
  %852 = vmatprep.subr.mxu0 0.0
  %853 = vmatpush1.msra.mxu0 0.0
  %854 = vmatprep.subr.mxu0 0.0
  %855 = vmatpush1.msra.mxu0 0.0
  %856 = vmatprep.subr.mxu0 0.0
  %857 = vmatpush1.msra.mxu0 0.0
  %858 = vmatprep.subr.mxu0 0.0
  %859 = vmatpush1.msra.mxu0 0.0
  %860 = vmatprep.subr.mxu0 0.0
  %861 = vmatpush1.msra.mxu0 0.0
  %862 = vmatprep.subr.mxu0 0.0
  %863 = vmatpush1.msra.mxu0 0.0
  %864 = vmatprep.subr.mxu0 0.0
  %865 = vmatpush1.msra.mxu0 0.0
  %866 = vmatprep.subr.mxu0 0.0
  %867 = vmatpush1.msra.mxu0 0.0
  %868 = vmatprep.subr.mxu0 0.0
  %869 = vmatpush1.msra.mxu0 0.0
  %870 = vmatprep.subr.mxu0 0.0
  %871 = vmatpush1.msra.mxu0 0.0
  %872 = vmatprep.subr.mxu0 0.0
  %873 = vmatpush1.msra.mxu0 0.0
  %874 = vmatprep.subr.mxu0 0.0
  %875 = vmatpush1.msra.mxu0 0.0
  %876 = vmatprep.subr.mxu0 0.0
  %877 = vmatpush1.msra.mxu0 0.0
  %878 = vmatprep.subr.mxu0 0.0
  %879 = vmatpush1.msra.mxu0 0.0
  %880 = vmatprep.subr.mxu0 0.0
  %881 = vmatpush1.msra.mxu0 0.0
  %882 = vmatprep.subr.mxu0 0.0
  %883 = vmatpush1.msra.mxu0 0.0
  %884 = vmatprep.subr.mxu0 0.0
  %885 = vmatpush1.msra.mxu0 0.0
  %886 = vmatprep.subr.mxu0 0.0
  %887 = vmatpush1.msra.mxu0 0.0
  %888 = vmatprep.subr.mxu0 0.0
  %889 = vmatpush1.msra.mxu0 0.0
  %890 = vmatprep.mubr.f32.mxu0 0.0
  %891 = vmatmul.mubr.f32.gmra.mrb[0].mxu0 %v824
  %v892 = vpop.f32.mrb[0].mxu0
  %v893 = vadd.f32 0.0, %v892
  %v894 = vpop.f32.mrb[0].mxu0
  %895 = vdwg.mxu0
  %v896 = vld [vmem:[%s7] sm:$0xff]
  %v897 = vld [vmem:[%s7 + $0x8] sm:$0xff]
  %v898 = vld [vmem:[%s7 + $0x10] sm:$0xff]
  %v899 = vld [vmem:[%s7 + $0x18] sm:$0xff]
  %s900 = scalar_lea.vmem %s7, 32
  %v901 = vld [vmem:[%s900] sm:$0xff]
  %v902 = vld [vmem:[%s900 + $0x8] sm:$0xff]
  %v903 = vld [vmem:[%s900 + $0x10] sm:$0xff]
  %v904 = vld [vmem:[%s900 + $0x18] sm:$0xff]
  %vm905 = vcmask 261120
  %v907 = vsel %vm905, %v746, 0
  %909 = vmatprep.subr.mxu0 0.0
  %910 = vmatpush1.msra.mxu0 %v901
  %911 = vmatprep.subr.mxu0 0.0
  %912 = vmatpush1.msra.mxu0 %v902
  %913 = vmatprep.subr.mxu0 0.0
  %914 = vmatpush1.msra.mxu0 %v903
  %915 = vmatprep.subr.mxu0 0.0
  %916 = vmatpush1.msra.mxu0 %v904
  %917 = vmatprep.subr.mxu0 0.0
  %918 = vmatpush1.msra.mxu0 0.0
  %919 = vmatprep.subr.mxu0 0.0
  %920 = vmatpush1.msra.mxu0 0.0
  %921 = vmatprep.subr.mxu0 0.0
  %922 = vmatpush1.msra.mxu0 0.0
  %923 = vmatprep.subr.mxu0 0.0
  %924 = vmatpush1.msra.mxu0 0.0
  %925 = vmatprep.subr.mxu0 0.0
  %926 = vmatpush1.msra.mxu0 0.0
  %927 = vmatprep.subr.mxu0 0.0
  %928 = vmatpush1.msra.mxu0 0.0
  %929 = vmatprep.subr.mxu0 0.0
  %930 = vmatpush1.msra.mxu0 0.0
  %931 = vmatprep.subr.mxu0 0.0
  %932 = vmatpush1.msra.mxu0 0.0
  %933 = vmatprep.subr.mxu0 0.0
  %934 = vmatpush1.msra.mxu0 0.0
  %935 = vmatprep.subr.mxu0 0.0
  %936 = vmatpush1.msra.mxu0 0.0
  %937 = vmatprep.subr.mxu0 0.0
  %938 = vmatpush1.msra.mxu0 0.0
  %939 = vmatprep.subr.mxu0 0.0
  %940 = vmatpush1.msra.mxu0 0.0
  %941 = vmatprep.subr.mxu0 0.0
  %942 = vmatpush1.msra.mxu0 0.0
  %943 = vmatprep.subr.mxu0 0.0
  %944 = vmatpush1.msra.mxu0 0.0
  %945 = vmatprep.subr.mxu0 0.0
  %946 = vmatpush1.msra.mxu0 0.0
  %947 = vmatprep.subr.mxu0 0.0
  %948 = vmatpush1.msra.mxu0 0.0
  %949 = vmatprep.subr.mxu0 0.0
  %950 = vmatpush1.msra.mxu0 0.0
  %951 = vmatprep.subr.mxu0 0.0
  %952 = vmatpush1.msra.mxu0 0.0
  %953 = vmatprep.subr.mxu0 0.0
  %954 = vmatpush1.msra.mxu0 0.0
  %955 = vmatprep.subr.mxu0 0.0
  %956 = vmatpush1.msra.mxu0 0.0
  %957 = vmatprep.subr.mxu0 0.0
  %958 = vmatpush1.msra.mxu0 0.0
  %959 = vmatprep.subr.mxu0 0.0
  %960 = vmatpush1.msra.mxu0 0.0
  %961 = vmatprep.subr.mxu0 0.0
  %962 = vmatpush1.msra.mxu0 0.0
  %963 = vmatprep.subr.mxu0 0.0
  %964 = vmatpush1.msra.mxu0 0.0
  %965 = vmatprep.subr.mxu0 0.0
  %966 = vmatpush1.msra.mxu0 0.0
  %967 = vmatprep.subr.mxu0 0.0
  %968 = vmatpush1.msra.mxu0 0.0
  %969 = vmatprep.subr.mxu0 0.0
  %970 = vmatpush1.msra.mxu0 0.0
  %971 = vmatprep.subr.mxu0 0.0
  %972 = vmatpush1.msra.mxu0 0.0
  %973 = vmatprep.mubr.f32.mxu0 0.0
  %974 = vmatmul.mubr.f32.gmra.mrb[0].mxu0 %v907
  %v975 = vpop.f32.mrb[0].mxu0
  %v976 = vadd.f32 0.0, %v975
  %v977 = vpop.f32.mrb[0].mxu0
  %978 = vdwg.mxu0
  %v980 = vsel %vm905, %v818, 0
  %982 = vmatprep.subr.mxu0 0.0
  %983 = vmatpush1.msra.mxu0 %v896
  %984 = vmatprep.subr.mxu0 0.0
  %985 = vmatpush1.msra.mxu0 %v897
  %986 = vmatprep.subr.mxu0 0.0
  %987 = vmatpush1.msra.mxu0 %v898
  %988 = vmatprep.subr.mxu0 0.0
  %989 = vmatpush1.msra.mxu0 %v899
  %990 = vmatprep.subr.mxu0 0.0
  %991 = vmatpush1.msra.mxu0 0.0
  %992 = vmatprep.subr.mxu0 0.0
  %993 = vmatpush1.msra.mxu0 0.0
  %994 = vmatprep.subr.mxu0 0.0
  %995 = vmatpush1.msra.mxu0 0.0
  %996 = vmatprep.subr.mxu0 0.0
  %997 = vmatpush1.msra.mxu0 0.0
  %998 = vmatprep.subr.mxu0 0.0
  %999 = vmatpush1.msra.mxu0 0.0
  %1000 = vmatprep.subr.mxu0 0.0
  %1001 = vmatpush1.msra.mxu0 0.0
  %1002 = vmatprep.subr.mxu0 0.0
  %1003 = vmatpush1.msra.mxu0 0.0
  %1004 = vmatprep.subr.mxu0 0.0
  %1005 = vmatpush1.msra.mxu0 0.0
  %1006 = vmatprep.subr.mxu0 0.0
  %1007 = vmatpush1.msra.mxu0 0.0
  %1008 = vmatprep.subr.mxu0 0.0
  %1009 = vmatpush1.msra.mxu0 0.0
  %1010 = vmatprep.subr.mxu0 0.0
  %1011 = vmatpush1.msra.mxu0 0.0
  %1012 = vmatprep.subr.mxu0 0.0
  %1013 = vmatpush1.msra.mxu0 0.0
  %1014 = vmatprep.subr.mxu0 0.0
  %1015 = vmatpush1.msra.mxu0 0.0
  %1016 = vmatprep.subr.mxu0 0.0
  %1017 = vmatpush1.msra.mxu0 0.0
  %1018 = vmatprep.subr.mxu0 0.0
  %1019 = vmatpush1.msra.mxu0 0.0
  %1020 = vmatprep.subr.mxu0 0.0
  %1021 = vmatpush1.msra.mxu0 0.0
  %1022 = vmatprep.subr.mxu0 0.0
  %1023 = vmatpush1.msra.mxu0 0.0
  %1024 = vmatprep.subr.mxu0 0.0
  %1025 = vmatpush1.msra.mxu0 0.0
  %1026 = vmatprep.subr.mxu0 0.0
  %1027 = vmatpush1.msra.mxu0 0.0
  %1028 = vmatprep.subr.mxu0 0.0
  %1029 = vmatpush1.msra.mxu0 0.0
  %1030 = vmatprep.subr.mxu0 0.0
  %1031 = vmatpush1.msra.mxu0 0.0
  %1032 = vmatprep.subr.mxu0 0.0
  %1033 = vmatpush1.msra.mxu0 0.0
  %1034 = vmatprep.subr.mxu0 0.0
  %1035 = vmatpush1.msra.mxu0 0.0
  %1036 = vmatprep.subr.mxu0 0.0
  %1037 = vmatpush1.msra.mxu0 0.0
  %1038 = vmatprep.subr.mxu0 0.0
  %1039 = vmatpush1.msra.mxu0 0.0
  %1040 = vmatprep.subr.mxu0 0.0
  %1041 = vmatpush1.msra.mxu0 0.0
  %1042 = vmatprep.subr.mxu0 0.0
  %1043 = vmatpush1.msra.mxu0 0.0
  %1044 = vmatprep.subr.mxu0 0.0
  %1045 = vmatpush1.msra.mxu0 0.0
  %1046 = vmatprep.mubr.f32.mxu0 0.0
  %1047 = vmatmul.mubr.f32.gmra.mrb[0].mxu0 %v980
  %v1048 = vpop.f32.mrb[0].mxu0
  %v1049 = vadd.f32 %v976, %v1048
  %v1050 = vpop.f32.mrb[0].mxu0
  %1051 = vdwg.mxu0
  %s1052 = scalar_lea.vmem %s7, 64
  %v1053 = vld [vmem:[%s1052] sm:$0xff]
  %v1054 = vld [vmem:[%s1052 + $0x8] sm:$0xff]
  %v1055 = vld [vmem:[%s1052 + $0x10] sm:$0xff]
  %v1056 = vld [vmem:[%s1052 + $0x18] sm:$0xff]
  %v1058 = vsel %vm905, %v893, 0
  %1060 = vmatprep.subr.mxu0 0.0
  %1061 = vmatpush1.msra.mxu0 %v1053
  %1062 = vmatprep.subr.mxu0 0.0
  %1063 = vmatpush1.msra.mxu0 %v1054
  %1064 = vmatprep.subr.mxu0 0.0
  %1065 = vmatpush1.msra.mxu0 %v1055
  %1066 = vmatprep.subr.mxu0 0.0
  %1067 = vmatpush1.msra.mxu0 %v1056
  %1068 = vmatprep.subr.mxu0 0.0
  %1069 = vmatpush1.msra.mxu0 0.0
  %1070 = vmatprep.subr.mxu0 0.0
  %1071 = vmatpush1.msra.mxu0 0.0
  %1072 = vmatprep.subr.mxu0 0.0
  %1073 = vmatpush1.msra.mxu0 0.0
  %1074 = vmatprep.subr.mxu0 0.0
  %1075 = vmatpush1.msra.mxu0 0.0
  %1076 = vmatprep.subr.mxu0 0.0
  %1077 = vmatpush1.msra.mxu0 0.0
  %1078 = vmatprep.subr.mxu0 0.0
  %1079 = vmatpush1.msra.mxu0 0.0
  %1080 = vmatprep.subr.mxu0 0.0
  %1081 = vmatpush1.msra.mxu0 0.0
  %1082 = vmatprep.subr.mxu0 0.0
  %1083 = vmatpush1.msra.mxu0 0.0
  %1084 = vmatprep.subr.mxu0 0.0
  %1085 = vmatpush1.msra.mxu0 0.0
  %1086 = vmatprep.subr.mxu0 0.0
  %1087 = vmatpush1.msra.mxu0 0.0
  %1088 = vmatprep.subr.mxu0 0.0
  %1089 = vmatpush1.msra.mxu0 0.0
  %1090 = vmatprep.subr.mxu0 0.0
  %1091 = vmatpush1.msra.mxu0 0.0
  %1092 = vmatprep.subr.mxu0 0.0
  %1093 = vmatpush1.msra.mxu0 0.0
  %1094 = vmatprep.subr.mxu0 0.0
  %1095 = vmatpush1.msra.mxu0 0.0
  %1096 = vmatprep.subr.mxu0 0.0
  %1097 = vmatpush1.msra.mxu0 0.0
  %1098 = vmatprep.subr.mxu0 0.0
  %1099 = vmatpush1.msra.mxu0 0.0
  %1100 = vmatprep.subr.mxu0 0.0
  %1101 = vmatpush1.msra.mxu0 0.0
  %1102 = vmatprep.subr.mxu0 0.0
  %1103 = vmatpush1.msra.mxu0 0.0
  %1104 = vmatprep.subr.mxu0 0.0
  %1105 = vmatpush1.msra.mxu0 0.0
  %1106 = vmatprep.subr.mxu0 0.0
  %1107 = vmatpush1.msra.mxu0 0.0
  %1108 = vmatprep.subr.mxu0 0.0
  %1109 = vmatpush1.msra.mxu0 0.0
  %1110 = vmatprep.subr.mxu0 0.0
  %1111 = vmatpush1.msra.mxu0 0.0
  %1112 = vmatprep.subr.mxu0 0.0
  %1113 = vmatpush1.msra.mxu0 0.0
  %1114 = vmatprep.subr.mxu0 0.0
  %1115 = vmatpush1.msra.mxu0 0.0
  %1116 = vmatprep.subr.mxu0 0.0
  %1117 = vmatpush1.msra.mxu0 0.0
  %1118 = vmatprep.subr.mxu0 0.0
  %1119 = vmatpush1.msra.mxu0 0.0
  %1120 = vmatprep.subr.mxu0 0.0
  %1121 = vmatpush1.msra.mxu0 0.0
  %1122 = vmatprep.subr.mxu0 0.0
  %1123 = vmatpush1.msra.mxu0 0.0
  %1124 = vmatprep.mubr.f32.mxu0 0.0
  %1125 = vmatmul.mubr.f32.gmra.mrb[0].mxu0 %v1058
  %v1126 = vpop.f32.mrb[0].mxu0
  %v1127 = vadd.f32 0.0, %v1126
  %v1128 = vpop.f32.mrb[0].mxu0
  %1129 = vdwg.mxu0
  %v1130 = vadd.f32 %v1049, %v1127
  %v1131 = vld [vmem:[%s8] sm:$0xff]
  %v1132 = vadd.f32 %v1130, %v1131
  %v1133 = vadd.f32 %v1132, %v745
  %v1134 = vmax.f32 %v1133, 0.0
  %1135 = vst.msk [vmem:[%s9] sm:$0xff] %vm905, %v1134
  // Predicated region
  $region38: #{model_forward.13} parent=0 // pred_check
    _
  $region39: #{model_forward.13} parent=0 // pred_check_branch
    %1137 = sbr.rel (0) target = $region41
  $region40: #{model_forward.13} parent=0 // pred_region
    _
  $region41: #{model_forward.13} parent=0 // pred_fallthru
    _
  // Predicated region
  $region42: #{model_forward.13} parent=0 // pred_check
    _
  $region43: #{model_forward.13} parent=0 // pred_check_branch
    %1139 = sbr.rel (0) target = $region45
  $region44: #{model_forward.13} parent=0 // pred_region
    _
  $region45: #{model_forward.13} parent=0 // pred_fallthru
    _

</llo_original>
